<compile_context>
chip_gen: v5e
topology: v5e:2x2
jax: 0.10.0
libtpu: 0.0.40
codegen_flags: <defaults>
</compile_context>

<pallas_src>
import functools

import jax
import jax.numpy as jnp
from jax.experimental import pallas as pl
from jax.experimental.pallas import tpu as pltpu

EMB_DIM = 128
SA1_NPOINT = 512
SA2_NPOINT = 128
BN_EPS = 1e-5


# ----------------------------------------------------------------------------
# Pallas kernel 1: fused mlp_block (chained Conv1d(k=1) + folded BN + ReLU)
# ----------------------------------------------------------------------------
def _make_fused_mlp_kernel(n_inputs, n_layers):
    """Operand order: x_0..x_{n_inputs-1}, w0_0..w0_{n_inputs-1}, b0,
    (w_l, b_l) for l = 1..n_layers-1, then the output ref."""

    def kernel(*refs):
        x_refs = refs[:n_inputs]
        w0_refs = refs[n_inputs:2 * n_inputs]
        b0_ref = refs[2 * n_inputs]
        rest = refs[2 * n_inputs + 1:]
        o_ref = rest[-1]
        lw = rest[:-1]

        # Layer 0: split-K accumulation over the (pre-concat) input groups.
        y = jnp.dot(x_refs[0][...], w0_refs[0][...],
                    preferred_element_type=jnp.float32)
        for t in range(1, n_inputs):
            y = y + jnp.dot(x_refs[t][...], w0_refs[t][...],
                            preferred_element_type=jnp.float32)
        h = jnp.maximum(y + b0_ref[...], 0.0)

        # Remaining layers: intermediates live in VMEM/vregs, never in HBM.
        for li in range(n_layers - 1):
            w_ref = lw[2 * li]
            b_ref = lw[2 * li + 1]
            y = jnp.dot(h.astype(jnp.bfloat16), w_ref[...],
                        preferred_element_type=jnp.float32)
            h = jnp.maximum(y + b_ref[...], 0.0)

        o_ref[...] = h.astype(o_ref.dtype)

    return kernel


def _pick_tm(M, max_tm=512):
    """Largest row-tile in {128,256,512} that still leaves >=2 grid blocks."""
    tm = max_tm
    while tm > 128 and M <= tm:
        tm //= 2
    return tm


def apply_mlp_block(xs, layer_params, out_dtype=jnp.bfloat16, max_tm=512):
    """xs: list of (B, L, Ci) arrays (channel-concat order of the reference).
    layer_params: [(w_folded (Cin, Cout) f32, bias (1, Cout) f32), ...].
    Returns (B, L, Cout_last) in out_dtype."""
    B, L = xs[0].shape[0], xs[0].shape[1]
    M = B * L
    c_ins = [int(x.shape[-1]) for x in xs]
    tm = _pick_tm(M, max_tm)
    Mp = pl.cdiv(M, tm) * tm

    xs_flat = []
    for x in xs:
        xf = x.reshape(M, x.shape[-1]).astype(jnp.bfloat16)
        if Mp != M:
            xf = jnp.pad(xf, ((0, Mp - M), (0, 0)))
        xs_flat.append(xf)

    n_inputs = len(xs)
    n_layers = len(layer_params)

    # Split the first layer's (BN-folded) weight rows across the input groups.
    w0, b0 = layer_params[0]
    c1 = int(w0.shape[1])
    w0_parts, off = [], 0
    for c in c_ins:
        w0_parts.append(w0[off:off + c].astype(jnp.bfloat16))
        off += c

    operands = [*xs_flat, *w0_parts, b0]
    in_specs = (
        [pl.BlockSpec((tm, c), lambda i: (i, 0)) for c in c_ins]
        + [pl.BlockSpec((c, c1), lambda i: (0, 0)) for c in c_ins]
        + [pl.BlockSpec((1, c1), lambda i: (0, 0))]
    )
    for (w, b) in layer_params[1:]:
        cin_l, cout_l = int(w.shape[0]), int(w.shape[1])
        operands += [w.astype(jnp.bfloat16), b]
        in_specs += [pl.BlockSpec((cin_l, cout_l), lambda i: (0, 0)),
                     pl.BlockSpec((1, cout_l), lambda i: (0, 0))]

    cout = int(layer_params[-1][0].shape[1])
    out = pl.pallas_call(
        _make_fused_mlp_kernel(n_inputs, n_layers),
        out_shape=jax.ShapeDtypeStruct((Mp, cout), out_dtype),
        grid_spec=pltpu.PrefetchScalarGridSpec(
            num_scalar_prefetch=0,
            grid=(Mp // tm,),
            in_specs=in_specs,
            out_specs=pl.BlockSpec((tm, cout), lambda i: (i, 0)),
        ),
        compiler_params=pltpu.CompilerParams(dimension_semantics=("parallel",)),
    )(*operands)
    if Mp != M:
        out = out[:M]
    return out.reshape(B, L, cout)


# ----------------------------------------------------------------------------
# Pallas kernel 2: farthest point sampling (xyz + distance resident in VMEM)
# ----------------------------------------------------------------------------
def _make_fps_kernel(npoint):
    def kernel(xyz_ref, out_ref):
        xyz = xyz_ref[0]                                           # (3, N) f32
        N = xyz.shape[1]
        lane_n = jax.lax.broadcasted_iota(jnp.int32, (1, N), 1)
        lane_nf = lane_n.astype(jnp.float32)
        lane_s = jax.lax.broadcasted_iota(jnp.int32, (1, npoint), 1)

        def body(i, carry):
            distance, farthest, cent = carry                       # (1,N),(1,1),(1,npoint)
            cent = jnp.where(lane_s == i, farthest, cent)
            onehot = (lane_n == farthest).astype(jnp.float32)      # (1, N)
            c = jnp.sum(xyz * onehot, axis=1, keepdims=True)       # (3, 1)
            d = jnp.sum((xyz - c) ** 2, axis=0, keepdims=True)     # (1, N)
            distance = jnp.minimum(distance, d)
            m = jnp.max(distance, axis=1, keepdims=True)           # (1, 1)
            cand = jnp.where(distance == m, lane_nf, jnp.float32(N))
            farthest = jnp.min(cand, axis=1, keepdims=True).astype(jnp.int32)
            return distance, farthest, cent

        dist0 = jnp.full((1, N), 1e10, jnp.float32)
        cent0 = jnp.zeros((1, npoint), jnp.int32)
        # TODO(synk): reference seeds with torch.randint; deterministic index 0 here.
        far0 = jnp.zeros((1, 1), jnp.int32)
        _, _, cent = jax.lax.fori_loop(0, npoint, body, (dist0, far0, cent0))
        out_ref[0] = cent

    return kernel


def farthest_point_sampling(xyz, npoint):
    """xyz: (B, N, 3) f32 -> (B, npoint) int32 FPS indices (single Pallas kernel)."""
    B, N, _ = xyz.shape
    xyz_t = jnp.transpose(xyz, (0, 2, 1)).astype(jnp.float32)      # (B, 3, N)
    out = pl.pallas_call(
        _make_fps_kernel(npoint),
        out_shape=jax.ShapeDtypeStruct((B, 1, npoint), jnp.int32),
        grid_spec=pltpu.PrefetchScalarGridSpec(
            num_scalar_prefetch=0,
            grid=(B,),
            in_specs=[pl.BlockSpec((1, 3, N), lambda b: (b, 0, 0))],
            out_specs=pl.BlockSpec((1, 1, npoint), lambda b: (b, 0, 0)),
        ),
        compiler_params=pltpu.CompilerParams(dimension_semantics=("parallel",)),
    )(xyz_t)
    return out.reshape(B, npoint)


# ----------------------------------------------------------------------------
# Parameter init (deterministic; BN folded into the conv weight + bias)
# ----------------------------------------------------------------------------
def init_mlp_params(key, channels):
    params = []
    for i in range(len(channels) - 1):
        cin, cout = channels[i], channels[i + 1]
        key, k1, k2, k3, k4, k5 = jax.random.split(key, 6)
        w = jax.random.normal(k1, (cin, cout), jnp.float32) / jnp.sqrt(float(cin))
        b_conv = 0.01 * jax.random.normal(k2, (cout,), jnp.float32)
        gamma = 1.0 + 0.1 * jax.random.normal(k3, (cout,), jnp.float32)
        beta = 0.1 * jax.random.normal(k4, (cout,), jnp.float32)
        running_mean = 0.1 * jax.random.normal(k5, (cout,), jnp.float32)
        running_var = jnp.ones((cout,), jnp.float32)
        s = gamma / jnp.sqrt(running_var + BN_EPS)
        w_fold = w * s[None, :]                      # BN scale folded into the weight
        bias_eff = (b_conv - running_mean) * s + beta
        params.append((w_fold, bias_eff.reshape(1, cout)))
    return key, params


def init_params(seed=0):
    key = jax.random.PRNGKey(seed)
    key, sa1 = init_mlp_params(key, [9, 64, 64, 128])
    key, sa2 = init_mlp_params(key, [128, 128, 128, EMB_DIM])
    key, fp2 = init_mlp_params(key, [EMB_DIM + 128, 256, 256])
    key, fp1 = init_mlp_params(key, [256 + 9, 128, EMB_DIM])
    return {"sa1": sa1, "sa2": sa2, "fp2": fp2, "fp1": fp1}


# ----------------------------------------------------------------------------
# Glue: normals, positional encoding, gathers, nearest upsampling
# ----------------------------------------------------------------------------
def _smallest_eigvec_3x3(cov, iters=32):
    """Eigenvector of the smallest eigenvalue of a symmetric PSD 3x3 matrix via
    shifted power iteration (replaces batched jnp.linalg.eigh, which lowers
    poorly on TPU for tiny matrices)."""
    tr = jnp.trace(cov, axis1=-2, axis2=-1)[..., None, None]
    M = tr * jnp.eye(3, dtype=cov.dtype) - cov       # largest eig of M <-> smallest of cov
    v0 = jnp.full(cov.shape[:-1], 1.0 / jnp.sqrt(3.0), cov.dtype)

    def body(_, v):
        w = jnp.einsum("...ij,...j->...i", M, v)
        n = jnp.linalg.norm(w, axis=-1, keepdims=True)
        return jnp.where(n > 1e-20, w / (n + 1e-20), v)

    return jax.lax.fori_loop(0, iters, body, v0)


def estimate_normals_knn(xyz, k=16):
    # TODO(synk): Open3D KDTree normal estimation has no Pallas/JAX equivalent;
    # approximated with exact KNN + 3x3 covariance PCA (power iteration), z-positive sign.
    d2 = jnp.sum((xyz[:, :, None, :] - xyz[:, None, :, :]) ** 2, axis=-1)  # (B,N,N)
    _, idx = jax.lax.top_k(-d2, k)                                         # (B,N,k)
    nbrs = jax.vmap(lambda pts, ix: pts[ix])(xyz, idx)                     # (B,N,k,3)
    centered = nbrs - nbrs.mean(axis=2, keepdims=True)
    cov = jnp.einsum("bnki,bnkj->bnij", centered, centered) / float(k)
    n = _smallest_eigvec_3x3(cov)                                          # (B,N,3)
    n = n / (jnp.linalg.norm(n, axis=-1, keepdims=True) + 1e-12)
    sign = jnp.where(n[..., 2:3] >= 0.0, 1.0, -1.0)
    return n * sign


def add_positional_encoding_with_normals(xyz):
    x, y, z = xyz[..., 0], xyz[..., 1], xyz[..., 2]
    r = jnp.sqrt(x ** 2 + y ** 2 + z ** 2) + 1e-8
    theta = jnp.arctan2(y, x)
    phi = jnp.arccos(jnp.clip(z / r, -1.0, 1.0))
    pe = jnp.stack([x, y, z, r, theta, phi], axis=-1)
    normals = estimate_normals_knn(xyz, k=16)
    return jnp.concatenate([pe, normals], axis=-1)                         # (B,N,9)


def gather_points(x_bnc, idx):
    """x: (B,N,C), idx: (B,S) -> (B,S,C)."""
    return jax.vmap(lambda pts, ix: pts[ix])(x_bnc, idx)


def nearest_upsample_rows(x_blc, size):
    """F.interpolate(mode='nearest') along L for a points-major (B,L,C) tensor."""
    L_in = x_blc.shape[1]
    idx = (jnp.arange(size) * L_in) // size
    return x_blc[:, idx, :]


# ----------------------------------------------------------------------------
# Forward pass (points-major layout end-to-end)
# ----------------------------------------------------------------------------
@functools.partial(jax.jit, static_argnames=("return_skips",))
def pointnetpp_encoder_fp_forward(xyz, params, return_skips=False):
    B, N, _ = xyz.shape
    pe_xyz = add_positional_encoding_with_normals(xyz)            # (B,N,9) == l0 feats

    fps_idx1 = farthest_point_sampling(xyz, SA1_NPOINT)           # (B,512)
    l1_xyz = gather_points(xyz, fps_idx1)                         # (B,512,3)
    l1_points = gather_points(pe_xyz, fps_idx1)                   # (B,512,9)
    l1_features = apply_mlp_block([l1_points], params["sa1"],
                                  out_dtype=jnp.bfloat16)         # (B,512,128)

    fps_idx2 = farthest_point_sampling(l1_xyz, SA2_NPOINT)        # (B,128)
    l2_points = gather_points(l1_features, fps_idx2)              # (B,128,128)
    l2_features = apply_mlp_block([l2_points], params["sa2"],
                                  out_dtype=jnp.bfloat16)         # (B,128,128)

    # FP2: concat([l1_features, l2_up], channel) happens inside the fused kernel.
    l2_up = nearest_upsample_rows(l2_features, SA1_NPOINT)        # (B,512,128)
    l1_fp = apply_mlp_block([l1_features, l2_up], params["fp2"],
                            out_dtype=jnp.float32)                # (B,512,256)

    # FP1: concat([l1_up, l0_features], channel) happens inside the fused kernel.
    l1_up = nearest_upsample_rows(l1_fp, N)                       # (B,N,256)
    l0_fp = apply_mlp_block([l1_up, pe_xyz], params["fp1"],
                            out_dtype=jnp.float32)                # (B,N,128)

    if return_skips:
        return l0_fp, l1_fp
    return l0_fp                                                  # (B,N,128)


if __name__ == "__main__":
    key = jax.random.PRNGKey(0)
    B, N = 2, 1024
    xyz = jax.random.normal(key, (B, N, 3), jnp.float32)

    params = init_params(seed=0)
    out = pointnetpp_encoder_fp_forward(xyz, params)
    out = jax.block_until_ready(out)

    assert out.shape == (B, N, EMB_DIM), out.shape
    assert out.dtype == jnp.float32
    assert bool(jnp.all(jnp.isfinite(out)))
    print("KERNEL_OK")
</pallas_src>

<mosaic_0001>
module attributes {stable_mosaic.version = 11 : i64} {
  func.func @kernel(%arg0: i32, %arg1: memref<1x3x1024xf32, #tpu.memory_space<vmem>>, %arg2: memref<1x1x512xi32, #tpu.memory_space<vmem>>) attributes {dimension_semantics = [#tpu.dimension_semantics<parallel>], iteration_bounds = array<i64: 2>, scalar_prefetch = 0 : i64, scratch_operands = 0 : i64, tpu.core_type = #tpu.core_type<tc>, window_params = [{transform_indices = @transform_0, window_bounds = array<i64: 1, 3, 1024>}, {transform_indices = @transform_1, window_bounds = array<i64: 1, 1, 512>}]} {
    %c0 = arith.constant 0 : index
    %c0_0 = arith.constant 0 : index
    %c0_1 = arith.constant 0 : index
    %0 = vector.load %arg1[%c0, %c0_0, %c0_1] : memref<1x3x1024xf32, #tpu.memory_space<vmem>>, vector<1x3x1024xf32>
    %1 = vector.shape_cast %0 : vector<1x3x1024xf32> to vector<3x1024xf32>
    %2 = tpu.iota {dimensions = array<i32: 1>} : vector<1x1024xi32>
    %3 = arith.sitofp %2 : vector<1x1024xi32> to vector<1x1024xf32>
    %4 = tpu.iota {dimensions = array<i32: 1>} : vector<1x512xi32>
    %cst = arith.constant 1.000000e+10 : f32
    %5 = vector.broadcast %cst : f32 to vector<1x1024xf32>
    %c0_i32 = arith.constant 0 : i32
    %6 = vector.broadcast %c0_i32 : i32 to vector<1x512xi32>
    %c0_i32_2 = arith.constant 0 : i32
    %7 = vector.broadcast %c0_i32_2 : i32 to vector<1x1xi32>
    %c0_i32_3 = arith.constant 0 : i32
    %c512_i32 = arith.constant 512 : i32
    %8 = arith.addi %c0_i32_3, %c512_i32 : i32
    %c1_i32 = arith.constant 1 : i32
    %9:3 = scf.for %arg3 = %c0_i32_3 to %8 step %c1_i32 iter_args(%arg4 = %5, %arg5 = %7, %arg6 = %6) -> (vector<1x1024xf32>, vector<1x1xi32>, vector<1x512xi32>)  : i32 {
      %13 = vector.broadcast %arg3 : i32 to vector<1x512xi32>
      %14 = arith.cmpi eq, %4, %13 : vector<1x512xi32>
      %15 = vector.shape_cast %arg5 : vector<1x1xi32> to vector<1x1xi32>
      %16 = vector.broadcast %15 : vector<1x1xi32> to vector<1x512xi32>
      %17 = arith.select %14, %16, %arg6 : vector<1x512xi1>, vector<1x512xi32>
      %18 = vector.broadcast %arg5 : vector<1x1xi32> to vector<1x1024xi32>
      %19 = arith.cmpi eq, %2, %18 : vector<1x1024xi32>
      %20 = arith.extui %19 : vector<1x1024xi1> to vector<1x1024xi32>
      %21 = arith.sitofp %20 : vector<1x1024xi32> to vector<1x1024xf32>
      %22 = vector.broadcast %21 : vector<1x1024xf32> to vector<3x1024xf32>
      %23 = arith.mulf %1, %22 : vector<3x1024xf32>
      %cst_8 = arith.constant dense<0.000000e+00> : vector<3xf32>
      %24 = vector.multi_reduction <add>, %23, %cst_8 [1] : vector<3x1024xf32> to vector<3xf32>
      %25 = vector.shape_cast %24 : vector<3xf32> to vector<3x1xf32>
      %26 = vector.broadcast %25 : vector<3x1xf32> to vector<3x1024xf32>
      %27 = arith.subf %1, %26 : vector<3x1024xf32>
      %28 = arith.mulf %27, %27 : vector<3x1024xf32>
      %cst_9 = arith.constant dense<0.000000e+00> : vector<1024xf32>
      %29 = vector.multi_reduction <add>, %28, %cst_9 [0] : vector<3x1024xf32> to vector<1024xf32>
      %30 = vector.shape_cast %29 : vector<1024xf32> to vector<1x1024xf32>
      %31 = arith.minimumf %arg4, %30 : vector<1x1024xf32>
      %cst_10 = arith.constant dense<0xFF800000> : vector<1xf32>
      %32 = vector.multi_reduction <maximumf>, %31, %cst_10 [1] : vector<1x1024xf32> to vector<1xf32>
      %33 = vector.shape_cast %32 : vector<1xf32> to vector<1x1xf32>
      %34 = vector.broadcast %33 : vector<1x1xf32> to vector<1x1024xf32>
      %35 = arith.cmpf oeq, %31, %34 : vector<1x1024xf32>
      %cst_11 = arith.constant 1.024000e+03 : f32
      %36 = vector.broadcast %cst_11 : f32 to vector<1x1024xf32>
      %37 = arith.select %35, %3, %36 : vector<1x1024xi1>, vector<1x1024xf32>
      %cst_12 = arith.constant dense<0x7F800000> : vector<1xf32>
      %38 = vector.multi_reduction <minimumf>, %37, %cst_12 [1] : vector<1x1024xf32> to vector<1xf32>
      %39 = vector.shape_cast %38 : vector<1xf32> to vector<1x1xf32>
      %40 = arith.fptosi %39 : vector<1x1xf32> to vector<1x1xi32>
      scf.yield %31, %40, %17 : vector<1x1024xf32>, vector<1x1xi32>, vector<1x512xi32>
    }
    %c512_i32_4 = arith.constant 512 : i32
    %c0_5 = arith.constant 0 : index
    %c0_6 = arith.constant 0 : index
    %c0_7 = arith.constant 0 : index
    %10 = vector.load %arg2[%c0_5, %c0_6, %c0_7] : memref<1x1x512xi32, #tpu.memory_space<vmem>>, vector<1x1x512xi32>
    %11 = vector.shape_cast %10 : vector<1x1x512xi32> to vector<1x512xi32>
    %12 = vector.shape_cast %9#2 : vector<1x512xi32> to vector<1x1x512xi32>
    tpu.vector_store %arg2[%c0_5, %c0_6, %c0_7], %12 {strides = array<i32>} : memref<1x1x512xi32, #tpu.memory_space<vmem>>, vector<1x1x512xi32>,
    return
  }
  func.func @transform_0(%arg0: i32) -> (i32, i32, i32) {
    %c0_i32 = arith.constant 0 : i32
    %c0_i32_0 = arith.constant 0 : i32
    %c0_i32_1 = arith.constant 0 : i32
    return %arg0, %c0_i32, %c0_i32_0 : i32, i32, i32
  }
  func.func @transform_1(%arg0: i32) -> (i32, i32, i32) {
    %c0_i32 = arith.constant 0 : i32
    %c0_i32_0 = arith.constant 0 : i32
    %c0_i32_1 = arith.constant 0 : i32
    return %arg0, %c0_i32, %c0_i32_0 : i32, i32, i32
  }
}

module attributes {stable_mosaic.version = 11 : i64} {
  func.func @kernel(%arg0: i32, %arg1: memref<1x3x512xf32, #tpu.memory_space<vmem>>, %arg2: memref<1x1x128xi32, #tpu.memory_space<vmem>>) attributes {dimension_semantics = [#tpu.dimension_semantics<parallel>], iteration_bounds = array<i64: 2>, scalar_prefetch = 0 : i64, scratch_operands = 0 : i64, tpu.core_type = #tpu.core_type<tc>, window_params = [{transform_indices = @transform_0, window_bounds = array<i64: 1, 3, 512>}, {transform_indices = @transform_1, window_bounds = array<i64: 1, 1, 128>}]} {
    %c0 = arith.constant 0 : index
    %c0_0 = arith.constant 0 : index
    %c0_1 = arith.constant 0 : index
    %0 = vector.load %arg1[%c0, %c0_0, %c0_1] : memref<1x3x512xf32, #tpu.memory_space<vmem>>, vector<1x3x512xf32>
    %1 = vector.shape_cast %0 : vector<1x3x512xf32> to vector<3x512xf32>
    %2 = tpu.iota {dimensions = array<i32: 1>} : vector<1x512xi32>
    %3 = arith.sitofp %2 : vector<1x512xi32> to vector<1x512xf32>
    %4 = tpu.iota {dimensions = array<i32: 1>} : vector<1x128xi32>
    %cst = arith.constant 1.000000e+10 : f32
    %5 = vector.broadcast %cst : f32 to vector<1x512xf32>
    %c0_i32 = arith.constant 0 : i32
    %6 = vector.broadcast %c0_i32 : i32 to vector<1x128xi32>
    %c0_i32_2 = arith.constant 0 : i32
    %7 = vector.broadcast %c0_i32_2 : i32 to vector<1x1xi32>
    %c0_i32_3 = arith.constant 0 : i32
    %c128_i32 = arith.constant 128 : i32
    %8 = arith.addi %c0_i32_3, %c128_i32 : i32
    %c1_i32 = arith.constant 1 : i32
    %9:3 = scf.for %arg3 = %c0_i32_3 to %8 step %c1_i32 iter_args(%arg4 = %5, %arg5 = %7, %arg6 = %6) -> (vector<1x512xf32>, vector<1x1xi32>, vector<1x128xi32>)  : i32 {
      %13 = vector.broadcast %arg3 : i32 to vector<1x128xi32>
      %14 = arith.cmpi eq, %4, %13 : vector<1x128xi32>
      %15 = vector.shape_cast %arg5 : vector<1x1xi32> to vector<1x1xi32>
      %16 = vector.broadcast %15 : vector<1x1xi32> to vector<1x128xi32>
      %17 = arith.select %14, %16, %arg6 : vector<1x128xi1>, vector<1x128xi32>
      %18 = vector.broadcast %arg5 : vector<1x1xi32> to vector<1x512xi32>
      %19 = arith.cmpi eq, %2, %18 : vector<1x512xi32>
      %20 = arith.extui %19 : vector<1x512xi1> to vector<1x512xi32>
      %21 = arith.sitofp %20 : vector<1x512xi32> to vector<1x512xf32>
      %22 = vector.broadcast %21 : vector<1x512xf32> to vector<3x512xf32>
      %23 = arith.mulf %1, %22 : vector<3x512xf32>
      %cst_8 = arith.constant dense<0.000000e+00> : vector<3xf32>
      %24 = vector.multi_reduction <add>, %23, %cst_8 [1] : vector<3x512xf32> to vector<3xf32>
      %25 = vector.shape_cast %24 : vector<3xf32> to vector<3x1xf32>
      %26 = vector.broadcast %25 : vector<3x1xf32> to vector<3x512xf32>
      %27 = arith.subf %1, %26 : vector<3x512xf32>
      %28 = arith.mulf %27, %27 : vector<3x512xf32>
      %cst_9 = arith.constant dense<0.000000e+00> : vector<512xf32>
      %29 = vector.multi_reduction <add>, %28, %cst_9 [0] : vector<3x512xf32> to vector<512xf32>
      %30 = vector.shape_cast %29 : vector<512xf32> to vector<1x512xf32>
      %31 = arith.minimumf %arg4, %30 : vector<1x512xf32>
      %cst_10 = arith.constant dense<0xFF800000> : vector<1xf32>
      %32 = vector.multi_reduction <maximumf>, %31, %cst_10 [1] : vector<1x512xf32> to vector<1xf32>
      %33 = vector.shape_cast %32 : vector<1xf32> to vector<1x1xf32>
      %34 = vector.broadcast %33 : vector<1x1xf32> to vector<1x512xf32>
      %35 = arith.cmpf oeq, %31, %34 : vector<1x512xf32>
      %cst_11 = arith.constant 5.120000e+02 : f32
      %36 = vector.broadcast %cst_11 : f32 to vector<1x512xf32>
      %37 = arith.select %35, %3, %36 : vector<1x512xi1>, vector<1x512xf32>
      %cst_12 = arith.constant dense<0x7F800000> : vector<1xf32>
      %38 = vector.multi_reduction <minimumf>, %37, %cst_12 [1] : vector<1x512xf32> to vector<1xf32>
      %39 = vector.shape_cast %38 : vector<1xf32> to vector<1x1xf32>
      %40 = arith.fptosi %39 : vector<1x1xf32> to vector<1x1xi32>
      scf.yield %31, %40, %17 : vector<1x512xf32>, vector<1x1xi32>, vector<1x128xi32>
    }
    %c128_i32_4 = arith.constant 128 : i32
    %c0_5 = arith.constant 0 : index
    %c0_6 = arith.constant 0 : index
    %c0_7 = arith.constant 0 : index
    %10 = vector.load %arg2[%c0_5, %c0_6, %c0_7] : memref<1x1x128xi32, #tpu.memory_space<vmem>>, vector<1x1x128xi32>
    %11 = vector.shape_cast %10 : vector<1x1x128xi32> to vector<1x128xi32>
    %12 = vector.shape_cast %9#2 : vector<1x128xi32> to vector<1x1x128xi32>
    tpu.vector_store %arg2[%c0_5, %c0_6, %c0_7], %12 {strides = array<i32>} : memref<1x1x128xi32, #tpu.memory_space<vmem>>, vector<1x1x128xi32>,
    return
  }
  func.func @transform_0(%arg0: i32) -> (i32, i32, i32) {
    %c0_i32 = arith.constant 0 : i32
    %c0_i32_0 = arith.constant 0 : i32
    %c0_i32_1 = arith.constant 0 : i32
    return %arg0, %c0_i32, %c0_i32_0 : i32, i32, i32
  }
  func.func @transform_1(%arg0: i32) -> (i32, i32, i32) {
    %c0_i32 = arith.constant 0 : i32
    %c0_i32_0 = arith.constant 0 : i32
    %c0_i32_1 = arith.constant 0 : i32
    return %arg0, %c0_i32, %c0_i32_0 : i32, i32, i32
  }
}

module attributes {stable_mosaic.version = 11 : i64} {
  func.func @kernel(%arg0: i32, %arg1: memref<512x9xbf16, #tpu.memory_space<vmem>>, %arg2: memref<9x64xbf16, #tpu.memory_space<vmem>>, %arg3: memref<1x64xf32, #tpu.memory_space<vmem>>, %arg4: memref<64x64xbf16, #tpu.memory_space<vmem>>, %arg5: memref<1x64xf32, #tpu.memory_space<vmem>>, %arg6: memref<64x128xbf16, #tpu.memory_space<vmem>>, %arg7: memref<1x128xf32, #tpu.memory_space<vmem>>, %arg8: memref<512x128xbf16, #tpu.memory_space<vmem>>) attributes {dimension_semantics = [#tpu.dimension_semantics<parallel>], iteration_bounds = array<i64: 2>, scalar_prefetch = 0 : i64, scratch_operands = 0 : i64, tpu.core_type = #tpu.core_type<tc>, window_params = [{transform_indices = @transform_0, window_bounds = array<i64: 512, 9>}, {pipeline_mode = #tpu.pipeline_mode<synchronous>, transform_indices = @transform_1, window_bounds = array<i64: 9, 64>}, {pipeline_mode = #tpu.pipeline_mode<synchronous>, transform_indices = @transform_2, window_bounds = array<i64: 1, 64>}, {pipeline_mode = #tpu.pipeline_mode<synchronous>, transform_indices = @transform_3, window_bounds = array<i64: 64, 64>}, {pipeline_mode = #tpu.pipeline_mode<synchronous>, transform_indices = @transform_4, window_bounds = array<i64: 1, 64>}, {pipeline_mode = #tpu.pipeline_mode<synchronous>, transform_indices = @transform_5, window_bounds = array<i64: 64, 128>}, {pipeline_mode = #tpu.pipeline_mode<synchronous>, transform_indices = @transform_6, window_bounds = array<i64: 1, 128>}, {transform_indices = @transform_7, window_bounds = array<i64: 512, 128>}]} {
    %c0 = arith.constant 0 : index
    %c0_0 = arith.constant 0 : index
    %0 = vector.load %arg1[%c0, %c0_0] : memref<512x9xbf16, #tpu.memory_space<vmem>>, vector<512x9xbf16>
    %c0_1 = arith.constant 0 : index
    %c0_2 = arith.constant 0 : index
    %1 = vector.load %arg2[%c0_1, %c0_2] : memref<9x64xbf16, #tpu.memory_space<vmem>>, vector<9x64xbf16>
    %cst = arith.constant dense<0.000000e+00> : vector<512x64xf32>
    %2 = tpu.matmul %0, %1, %cst {dimension_numbers = #tpu.dot_dimension_numbers<[1], [0], [0], [1], [0, 0, 1, 1], [], []>} : vector<512x9xbf16>, vector<9x64xbf16>, vector<512x64xf32> -> vector<512x64xf32>
    %c0_3 = arith.constant 0 : index
    %c0_4 = arith.constant 0 : index
    %3 = vector.load %arg3[%c0_3, %c0_4] : memref<1x64xf32, #tpu.memory_space<vmem>>, vector<1x64xf32>
    %4 = vector.broadcast %3 : vector<1x64xf32> to vector<512x64xf32>
    %5 = arith.addf %2, %4 : vector<512x64xf32>
    %cst_5 = arith.constant 0.000000e+00 : f32
    %6 = vector.broadcast %cst_5 : f32 to vector<512x64xf32>
    %7 = arith.maximumf %5, %6 : vector<512x64xf32>
    %8 = arith.truncf %7 : vector<512x64xf32> to vector<512x64xbf16>
    %c0_6 = arith.constant 0 : index
    %c0_7 = arith.constant 0 : index
    %9 = vector.load %arg4[%c0_6, %c0_7] : memref<64x64xbf16, #tpu.memory_space<vmem>>, vector<64x64xbf16>
    %cst_8 = arith.constant dense<0.000000e+00> : vector<512x64xf32>
    %10 = tpu.matmul %8, %9, %cst_8 {dimension_numbers = #tpu.dot_dimension_numbers<[1], [0], [0], [1], [0, 0, 1, 1], [], []>} : vector<512x64xbf16>, vector<64x64xbf16>, vector<512x64xf32> -> vector<512x64xf32>
    %c0_9 = arith.constant 0 : index
    %c0_10 = arith.constant 0 : index
    %11 = vector.load %arg5[%c0_9, %c0_10] : memref<1x64xf32, #tpu.memory_space<vmem>>, vector<1x64xf32>
    %12 = vector.broadcast %11 : vector<1x64xf32> to vector<512x64xf32>
    %13 = arith.addf %10, %12 : vector<512x64xf32>
    %cst_11 = arith.constant 0.000000e+00 : f32
    %14 = vector.broadcast %cst_11 : f32 to vector<512x64xf32>
    %15 = arith.maximumf %13, %14 : vector<512x64xf32>
    %16 = arith.truncf %15 : vector<512x64xf32> to vector<512x64xbf16>
    %c0_12 = arith.constant 0 : index
    %c0_13 = arith.constant 0 : index
    %17 = vector.load %arg6[%c0_12, %c0_13] : memref<64x128xbf16, #tpu.memory_space<vmem>>, vector<64x128xbf16>
    %cst_14 = arith.constant dense<0.000000e+00> : vector<512x128xf32>
    %18 = tpu.matmul %16, %17, %cst_14 {dimension_numbers = #tpu.dot_dimension_numbers<[1], [0], [0], [1], [0, 0, 1, 1], [], []>} : vector<512x64xbf16>, vector<64x128xbf16>, vector<512x128xf32> -> vector<512x128xf32>
    %c0_15 = arith.constant 0 : index
    %c0_16 = arith.constant 0 : index
    %19 = vector.load %arg7[%c0_15, %c0_16] : memref<1x128xf32, #tpu.memory_space<vmem>>, vector<1x128xf32>
    %20 = vector.broadcast %19 : vector<1x128xf32> to vector<512x128xf32>
    %21 = arith.addf %18, %20 : vector<512x128xf32>
    %cst_17 = arith.constant 0.000000e+00 : f32
    %22 = vector.broadcast %cst_17 : f32 to vector<512x128xf32>
    %23 = arith.maximumf %21, %22 : vector<512x128xf32>
    %24 = arith.truncf %23 : vector<512x128xf32> to vector<512x128xbf16>
    %c0_18 = arith.constant 0 : index
    %c0_19 = arith.constant 0 : index
    %25 = vector.load %arg8[%c0_18, %c0_19] : memref<512x128xbf16, #tpu.memory_space<vmem>>, vector<512x128xbf16>
    tpu.vector_store %arg8[%c0_18, %c0_19], %24 {strides = array<i32>} : memref<512x128xbf16, #tpu.memory_space<vmem>>, vector<512x128xbf16>,
    return
  }
  func.func @transform_0(%arg0: i32) -> (i32, i32) {
    %c0_i32 = arith.constant 0 : i32
    %c0_i32_0 = arith.constant 0 : i32
    return %arg0, %c0_i32 : i32, i32
  }
  func.func @transform_1(%arg0: i32) -> (i32, i32) {
    %c0_i32 = arith.constant 0 : i32
    %c0_i32_0 = arith.constant 0 : i32
    %c0_i32_1 = arith.constant 0 : i32
    return %c0_i32, %c0_i32_0 : i32, i32
  }
  func.func @transform_2(%arg0: i32) -> (i32, i32) {
    %c0_i32 = arith.constant 0 : i32
    %c0_i32_0 = arith.constant 0 : i32
    %c0_i32_1 = arith.constant 0 : i32
    return %c0_i32, %c0_i32_0 : i32, i32
  }
  func.func @transform_3(%arg0: i32) -> (i32, i32) {
    %c0_i32 = arith.constant 0 : i32
    %c0_i32_0 = arith.constant 0 : i32
    %c0_i32_1 = arith.constant 0 : i32
    return %c0_i32, %c0_i32_0 : i32, i32
  }
  func.func @transform_4(%arg0: i32) -> (i32, i32) {
    %c0_i32 = arith.constant 0 : i32
    %c0_i32_0 = arith.constant 0 : i32
    %c0_i32_1 = arith.constant 0 : i32
    return %c0_i32, %c0_i32_0 : i32, i32
  }
  func.func @transform_5(%arg0: i32) -> (i32, i32) {
    %c0_i32 = arith.constant 0 : i32
    %c0_i32_0 = arith.constant 0 : i32
    %c0_i32_1 = arith.constant 0 : i32
    return %c0_i32, %c0_i32_0 : i32, i32
  }
  func.func @transform_6(%arg0: i32) -> (i32, i32) {
    %c0_i32 = arith.constant 0 : i32
    %c0_i32_0 = arith.constant 0 : i32
    %c0_i32_1 = arith.constant 0 : i32
    return %c0_i32, %c0_i32_0 : i32, i32
  }
  func.func @transform_7(%arg0: i32) -> (i32, i32) {
    %c0_i32 = arith.constant 0 : i32
    %c0_i32_0 = arith.constant 0 : i32
    return %arg0, %c0_i32 : i32, i32
  }
}

module attributes {stable_mosaic.version = 11 : i64} {
  func.func @kernel(%arg0: i32, %arg1: memref<128x128xbf16, #tpu.memory_space<vmem>>, %arg2: memref<128x128xbf16, #tpu.memory_space<vmem>>, %arg3: memref<1x128xf32, #tpu.memory_space<vmem>>, %arg4: memref<128x128xbf16, #tpu.memory_space<vmem>>, %arg5: memref<1x128xf32, #tpu.memory_space<vmem>>, %arg6: memref<128x128xbf16, #tpu.memory_space<vmem>>, %arg7: memref<1x128xf32, #tpu.memory_space<vmem>>, %arg8: memref<128x128xbf16, #tpu.memory_space<vmem>>) attributes {dimension_semantics = [#tpu.dimension_semantics<parallel>], iteration_bounds = array<i64: 2>, scalar_prefetch = 0 : i64, scratch_operands = 0 : i64, tpu.core_type = #tpu.core_type<tc>, window_params = [{transform_indices = @transform_0, window_bounds = array<i64: 128, 128>}, {pipeline_mode = #tpu.pipeline_mode<synchronous>, transform_indices = @transform_1, window_bounds = array<i64: 128, 128>}, {pipeline_mode = #tpu.pipeline_mode<synchronous>, transform_indices = @transform_2, window_bounds = array<i64: 1, 128>}, {pipeline_mode = #tpu.pipeline_mode<synchronous>, transform_indices = @transform_3, window_bounds = array<i64: 128, 128>}, {pipeline_mode = #tpu.pipeline_mode<synchronous>, transform_indices = @transform_4, window_bounds = array<i64: 1, 128>}, {pipeline_mode = #tpu.pipeline_mode<synchronous>, transform_indices = @transform_5, window_bounds = array<i64: 128, 128>}, {pipeline_mode = #tpu.pipeline_mode<synchronous>, transform_indices = @transform_6, window_bounds = array<i64: 1, 128>}, {transform_indices = @transform_7, window_bounds = array<i64: 128, 128>}]} {
    %c0 = arith.constant 0 : index
    %c0_0 = arith.constant 0 : index
    %0 = vector.load %arg1[%c0, %c0_0] : memref<128x128xbf16, #tpu.memory_space<vmem>>, vector<128x128xbf16>
    %c0_1 = arith.constant 0 : index
    %c0_2 = arith.constant 0 : index
    %1 = vector.load %arg2[%c0_1, %c0_2] : memref<128x128xbf16, #tpu.memory_space<vmem>>, vector<128x128xbf16>
    %cst = arith.constant dense<0.000000e+00> : vector<128x128xf32>
    %2 = tpu.matmul %0, %1, %cst {dimension_numbers = #tpu.dot_dimension_numbers<[1], [0], [0], [1], [0, 0, 1, 1], [], []>} : vector<128x128xbf16>, vector<128x128xbf16>, vector<128x128xf32> -> vector<128x128xf32>
    %c0_3 = arith.constant 0 : index
    %c0_4 = arith.constant 0 : index
    %3 = vector.load %arg3[%c0_3, %c0_4] : memref<1x128xf32, #tpu.memory_space<vmem>>, vector<1x128xf32>
    %4 = vector.broadcast %3 : vector<1x128xf32> to vector<128x128xf32>
    %5 = arith.addf %2, %4 : vector<128x128xf32>
    %cst_5 = arith.constant 0.000000e+00 : f32
    %6 = vector.broadcast %cst_5 : f32 to vector<128x128xf32>
    %7 = arith.maximumf %5, %6 : vector<128x128xf32>
    %8 = arith.truncf %7 : vector<128x128xf32> to vector<128x128xbf16>
    %c0_6 = arith.constant 0 : index
    %c0_7 = arith.constant 0 : index
    %9 = vector.load %arg4[%c0_6, %c0_7] : memref<128x128xbf16, #tpu.memory_space<vmem>>, vector<128x128xbf16>
    %cst_8 = arith.constant dense<0.000000e+00> : vector<128x128xf32>
    %10 = tpu.matmul %8, %9, %cst_8 {dimension_numbers = #tpu.dot_dimension_numbers<[1], [0], [0], [1], [0, 0, 1, 1], [], []>} : vector<128x128xbf16>, vector<128x128xbf16>, vector<128x128xf32> -> vector<128x128xf32>
    %c0_9 = arith.constant 0 : index
    %c0_10 = arith.constant 0 : index
    %11 = vector.load %arg5[%c0_9, %c0_10] : memref<1x128xf32, #tpu.memory_space<vmem>>, vector<1x128xf32>
    %12 = vector.broadcast %11 : vector<1x128xf32> to vector<128x128xf32>
    %13 = arith.addf %10, %12 : vector<128x128xf32>
    %cst_11 = arith.constant 0.000000e+00 : f32
    %14 = vector.broadcast %cst_11 : f32 to vector<128x128xf32>
    %15 = arith.maximumf %13, %14 : vector<128x128xf32>
    %16 = arith.truncf %15 : vector<128x128xf32> to vector<128x128xbf16>
    %c0_12 = arith.constant 0 : index
    %c0_13 = arith.constant 0 : index
    %17 = vector.load %arg6[%c0_12, %c0_13] : memref<128x128xbf16, #tpu.memory_space<vmem>>, vector<128x128xbf16>
    %cst_14 = arith.constant dense<0.000000e+00> : vector<128x128xf32>
    %18 = tpu.matmul %16, %17, %cst_14 {dimension_numbers = #tpu.dot_dimension_numbers<[1], [0], [0], [1], [0, 0, 1, 1], [], []>} : vector<128x128xbf16>, vector<128x128xbf16>, vector<128x128xf32> -> vector<128x128xf32>
    %c0_15 = arith.constant 0 : index
    %c0_16 = arith.constant 0 : index
    %19 = vector.load %arg7[%c0_15, %c0_16] : memref<1x128xf32, #tpu.memory_space<vmem>>, vector<1x128xf32>
    %20 = vector.broadcast %19 : vector<1x128xf32> to vector<128x128xf32>
    %21 = arith.addf %18, %20 : vector<128x128xf32>
    %cst_17 = arith.constant 0.000000e+00 : f32
    %22 = vector.broadcast %cst_17 : f32 to vector<128x128xf32>
    %23 = arith.maximumf %21, %22 : vector<128x128xf32>
    %24 = arith.truncf %23 : vector<128x128xf32> to vector<128x128xbf16>
    %c0_18 = arith.constant 0 : index
    %c0_19 = arith.constant 0 : index
    %25 = vector.load %arg8[%c0_18, %c0_19] : memref<128x128xbf16, #tpu.memory_space<vmem>>, vector<128x128xbf16>
    tpu.vector_store %arg8[%c0_18, %c0_19], %24 {strides = array<i32>} : memref<128x128xbf16, #tpu.memory_space<vmem>>, vector<128x128xbf16>,
    return
  }
  func.func @transform_0(%arg0: i32) -> (i32, i32) {
    %c0_i32 = arith.constant 0 : i32
    %c0_i32_0 = arith.constant 0 : i32
    return %arg0, %c0_i32 : i32, i32
  }
  func.func @transform_1(%arg0: i32) -> (i32, i32) {
    %c0_i32 = arith.constant 0 : i32
    %c0_i32_0 = arith.constant 0 : i32
    %c0_i32_1 = arith.constant 0 : i32
    return %c0_i32, %c0_i32_0 : i32, i32
  }
  func.func @transform_2(%arg0: i32) -> (i32, i32) {
    %c0_i32 = arith.constant 0 : i32
    %c0_i32_0 = arith.constant 0 : i32
    %c0_i32_1 = arith.constant 0 : i32
    return %c0_i32, %c0_i32_0 : i32, i32
  }
  func.func @transform_3(%arg0: i32) -> (i32, i32) {
    %c0_i32 = arith.constant 0 : i32
    %c0_i32_0 = arith.constant 0 : i32
    %c0_i32_1 = arith.constant 0 : i32
    return %c0_i32, %c0_i32_0 : i32, i32
  }
  func.func @transform_4(%arg0: i32) -> (i32, i32) {
    %c0_i32 = arith.constant 0 : i32
    %c0_i32_0 = arith.constant 0 : i32
    %c0_i32_1 = arith.constant 0 : i32
    return %c0_i32, %c0_i32_0 : i32, i32
  }
  func.func @transform_5(%arg0: i32) -> (i32, i32) {
    %c0_i32 = arith.constant 0 : i32
    %c0_i32_0 = arith.constant 0 : i32
    %c0_i32_1 = arith.constant 0 : i32
    return %c0_i32, %c0_i32_0 : i32, i32
  }
  func.func @transform_6(%arg0: i32) -> (i32, i32) {
    %c0_i32 = arith.constant 0 : i32
    %c0_i32_0 = arith.constant 0 : i32
    %c0_i32_1 = arith.constant 0 : i32
    return %c0_i32, %c0_i32_0 : i32, i32
  }
  func.func @transform_7(%arg0: i32) -> (i32, i32) {
    %c0_i32 = arith.constant 0 : i32
    %c0_i32_0 = arith.constant 0 : i32
    return %arg0, %c0_i32 : i32, i32
  }
}

module attributes {stable_mosaic.version = 11 : i64} {
  func.func @kernel(%arg0: i32, %arg1: memref<512x128xbf16, #tpu.memory_space<vmem>>, %arg2: memref<512x128xbf16, #tpu.memory_space<vmem>>, %arg3: memref<128x256xbf16, #tpu.memory_space<vmem>>, %arg4: memref<128x256xbf16, #tpu.memory_space<vmem>>, %arg5: memref<1x256xf32, #tpu.memory_space<vmem>>, %arg6: memref<256x256xbf16, #tpu.memory_space<vmem>>, %arg7: memref<1x256xf32, #tpu.memory_space<vmem>>, %arg8: memref<512x256xf32, #tpu.memory_space<vmem>>) attributes {dimension_semantics = [#tpu.dimension_semantics<parallel>], iteration_bounds = array<i64: 2>, scalar_prefetch = 0 : i64, scratch_operands = 0 : i64, tpu.core_type = #tpu.core_type<tc>, window_params = [{transform_indices = @transform_0, window_bounds = array<i64: 512, 128>}, {transform_indices = @transform_1, window_bounds = array<i64: 512, 128>}, {pipeline_mode = #tpu.pipeline_mode<synchronous>, transform_indices = @transform_2, window_bounds = array<i64: 128, 256>}, {pipeline_mode = #tpu.pipeline_mode<synchronous>, transform_indices = @transform_3, window_bounds = array<i64: 128, 256>}, {pipeline_mode = #tpu.pipeline_mode<synchronous>, transform_indices = @transform_4, window_bounds = array<i64: 1, 256>}, {pipeline_mode = #tpu.pipeline_mode<synchronous>, transform_indices = @transform_5, window_bounds = array<i64: 256, 256>}, {pipeline_mode = #tpu.pipeline_mode<synchronous>, transform_indices = @transform_6, window_bounds = array<i64: 1, 256>}, {transform_indices = @transform_7, window_bounds = array<i64: 512, 256>}]} {
    %c0 = arith.constant 0 : index
    %c0_0 = arith.constant 0 : index
    %0 = vector.load %arg1[%c0, %c0_0] : memref<512x128xbf16, #tpu.memory_space<vmem>>, vector<512x128xbf16>
    %c0_1 = arith.constant 0 : index
    %c0_2 = arith.constant 0 : index
    %1 = vector.load %arg3[%c0_1, %c0_2] : memref<128x256xbf16, #tpu.memory_space<vmem>>, vector<128x256xbf16>
    %cst = arith.constant dense<0.000000e+00> : vector<512x256xf32>
    %2 = tpu.matmul %0, %1, %cst {dimension_numbers = #tpu.dot_dimension_numbers<[1], [0], [0], [1], [0, 0, 1, 1], [], []>} : vector<512x128xbf16>, vector<128x256xbf16>, vector<512x256xf32> -> vector<512x256xf32>
    %c0_3 = arith.constant 0 : index
    %c0_4 = arith.constant 0 : index
    %3 = vector.load %arg2[%c0_3, %c0_4] : memref<512x128xbf16, #tpu.memory_space<vmem>>, vector<512x128xbf16>
    %c0_5 = arith.constant 0 : index
    %c0_6 = arith.constant 0 : index
    %4 = vector.load %arg4[%c0_5, %c0_6] : memref<128x256xbf16, #tpu.memory_space<vmem>>, vector<128x256xbf16>
    %cst_7 = arith.constant dense<0.000000e+00> : vector<512x256xf32>
    %5 = tpu.matmul %3, %4, %cst_7 {dimension_numbers = #tpu.dot_dimension_numbers<[1], [0], [0], [1], [0, 0, 1, 1], [], []>} : vector<512x128xbf16>, vector<128x256xbf16>, vector<512x256xf32> -> vector<512x256xf32>
    %6 = arith.addf %2, %5 : vector<512x256xf32>
    %c0_8 = arith.constant 0 : index
    %c0_9 = arith.constant 0 : index
    %7 = vector.load %arg5[%c0_8, %c0_9] : memref<1x256xf32, #tpu.memory_space<vmem>>, vector<1x256xf32>
    %8 = vector.broadcast %7 : vector<1x256xf32> to vector<512x256xf32>
    %9 = arith.addf %6, %8 : vector<512x256xf32>
    %cst_10 = arith.constant 0.000000e+00 : f32
    %10 = vector.broadcast %cst_10 : f32 to vector<512x256xf32>
    %11 = arith.maximumf %9, %10 : vector<512x256xf32>
    %12 = arith.truncf %11 : vector<512x256xf32> to vector<512x256xbf16>
    %c0_11 = arith.constant 0 : index
    %c0_12 = arith.constant 0 : index
    %13 = vector.load %arg6[%c0_11, %c0_12] : memref<256x256xbf16, #tpu.memory_space<vmem>>, vector<256x256xbf16>
    %cst_13 = arith.constant dense<0.000000e+00> : vector<512x256xf32>
    %14 = tpu.matmul %12, %13, %cst_13 {dimension_numbers = #tpu.dot_dimension_numbers<[1], [0], [0], [1], [0, 0, 1, 1], [], []>} : vector<512x256xbf16>, vector<256x256xbf16>, vector<512x256xf32> -> vector<512x256xf32>
    %c0_14 = arith.constant 0 : index
    %c0_15 = arith.constant 0 : index
    %15 = vector.load %arg7[%c0_14, %c0_15] : memref<1x256xf32, #tpu.memory_space<vmem>>, vector<1x256xf32>
    %16 = vector.broadcast %15 : vector<1x256xf32> to vector<512x256xf32>
    %17 = arith.addf %14, %16 : vector<512x256xf32>
    %cst_16 = arith.constant 0.000000e+00 : f32
    %18 = vector.broadcast %cst_16 : f32 to vector<512x256xf32>
    %19 = arith.maximumf %17, %18 : vector<512x256xf32>
    %c0_17 = arith.constant 0 : index
    %c0_18 = arith.constant 0 : index
    %20 = vector.load %arg8[%c0_17, %c0_18] : memref<512x256xf32, #tpu.memory_space<vmem>>, vector<512x256xf32>
    tpu.vector_store %arg8[%c0_17, %c0_18], %19 {strides = array<i32>} : memref<512x256xf32, #tpu.memory_space<vmem>>, vector<512x256xf32>,
    return
  }
  func.func @transform_0(%arg0: i32) -> (i32, i32) {
    %c0_i32 = arith.constant 0 : i32
    %c0_i32_0 = arith.constant 0 : i32
    return %arg0, %c0_i32 : i32, i32
  }
  func.func @transform_1(%arg0: i32) -> (i32, i32) {
    %c0_i32 = arith.constant 0 : i32
    %c0_i32_0 = arith.constant 0 : i32
    return %arg0, %c0_i32 : i32, i32
  }
  func.func @transform_2(%arg0: i32) -> (i32, i32) {
    %c0_i32 = arith.constant 0 : i32
    %c0_i32_0 = arith.constant 0 : i32
    %c0_i32_1 = arith.constant 0 : i32
    return %c0_i32, %c0_i32_0 : i32, i32
  }
  func.func @transform_3(%arg0: i32) -> (i32, i32) {
    %c0_i32 = arith.constant 0 : i32
    %c0_i32_0 = arith.constant 0 : i32
    %c0_i32_1 = arith.constant 0 : i32
    return %c0_i32, %c0_i32_0 : i32, i32
  }
  func.func @transform_4(%arg0: i32) -> (i32, i32) {
    %c0_i32 = arith.constant 0 : i32
    %c0_i32_0 = arith.constant 0 : i32
    %c0_i32_1 = arith.constant 0 : i32
    return %c0_i32, %c0_i32_0 : i32, i32
  }
  func.func @transform_5(%arg0: i32) -> (i32, i32) {
    %c0_i32 = arith.constant 0 : i32
    %c0_i32_0 = arith.constant 0 : i32
    %c0_i32_1 = arith.constant 0 : i32
    return %c0_i32, %c0_i32_0 : i32, i32
  }
  func.func @transform_6(%arg0: i32) -> (i32, i32) {
    %c0_i32 = arith.constant 0 : i32
    %c0_i32_0 = arith.constant 0 : i32
    %c0_i32_1 = arith.constant 0 : i32
    return %c0_i32, %c0_i32_0 : i32, i32
  }
  func.func @transform_7(%arg0: i32) -> (i32, i32) {
    %c0_i32 = arith.constant 0 : i32
    %c0_i32_0 = arith.constant 0 : i32
    return %arg0, %c0_i32 : i32, i32
  }
}

module attributes {stable_mosaic.version = 11 : i64} {
  func.func @kernel(%arg0: i32, %arg1: memref<512x256xbf16, #tpu.memory_space<vmem>>, %arg2: memref<512x9xbf16, #tpu.memory_space<vmem>>, %arg3: memref<256x128xbf16, #tpu.memory_space<vmem>>, %arg4: memref<9x128xbf16, #tpu.memory_space<vmem>>, %arg5: memref<1x128xf32, #tpu.memory_space<vmem>>, %arg6: memref<128x128xbf16, #tpu.memory_space<vmem>>, %arg7: memref<1x128xf32, #tpu.memory_space<vmem>>, %arg8: memref<512x128xf32, #tpu.memory_space<vmem>>) attributes {dimension_semantics = [#tpu.dimension_semantics<parallel>], iteration_bounds = array<i64: 4>, scalar_prefetch = 0 : i64, scratch_operands = 0 : i64, tpu.core_type = #tpu.core_type<tc>, window_params = [{transform_indices = @transform_0, window_bounds = array<i64: 512, 256>}, {transform_indices = @transform_1, window_bounds = array<i64: 512, 9>}, {pipeline_mode = #tpu.pipeline_mode<synchronous>, transform_indices = @transform_2, window_bounds = array<i64: 256, 128>}, {pipeline_mode = #tpu.pipeline_mode<synchronous>, transform_indices = @transform_3, window_bounds = array<i64: 9, 128>}, {pipeline_mode = #tpu.pipeline_mode<synchronous>, transform_indices = @transform_4, window_bounds = array<i64: 1, 128>}, {pipeline_mode = #tpu.pipeline_mode<synchronous>, transform_indices = @transform_5, window_bounds = array<i64: 128, 128>}, {pipeline_mode = #tpu.pipeline_mode<synchronous>, transform_indices = @transform_6, window_bounds = array<i64: 1, 128>}, {transform_indices = @transform_7, window_bounds = array<i64: 512, 128>}]} {
    %c0 = arith.constant 0 : index
    %c0_0 = arith.constant 0 : index
    %0 = vector.load %arg1[%c0, %c0_0] : memref<512x256xbf16, #tpu.memory_space<vmem>>, vector<512x256xbf16>
    %c0_1 = arith.constant 0 : index
    %c0_2 = arith.constant 0 : index
    %1 = vector.load %arg3[%c0_1, %c0_2] : memref<256x128xbf16, #tpu.memory_space<vmem>>, vector<256x128xbf16>
    %cst = arith.constant dense<0.000000e+00> : vector<512x128xf32>
    %2 = tpu.matmul %0, %1, %cst {dimension_numbers = #tpu.dot_dimension_numbers<[1], [0], [0], [1], [0, 0, 1, 1], [], []>} : vector<512x256xbf16>, vector<256x128xbf16>, vector<512x128xf32> -> vector<512x128xf32>
    %c0_3 = arith.constant 0 : index
    %c0_4 = arith.constant 0 : index
    %3 = vector.load %arg2[%c0_3, %c0_4] : memref<512x9xbf16, #tpu.memory_space<vmem>>, vector<512x9xbf16>
    %c0_5 = arith.constant 0 : index
    %c0_6 = arith.constant 0 : index
    %4 = vector.load %arg4[%c0_5, %c0_6] : memref<9x128xbf16, #tpu.memory_space<vmem>>, vector<9x128xbf16>
    %cst_7 = arith.constant dense<0.000000e+00> : vector<512x128xf32>
    %5 = tpu.matmul %3, %4, %cst_7 {dimension_numbers = #tpu.dot_dimension_numbers<[1], [0], [0], [1], [0, 0, 1, 1], [], []>} : vector<512x9xbf16>, vector<9x128xbf16>, vector<512x128xf32> -> vector<512x128xf32>
    %6 = arith.addf %2, %5 : vector<512x128xf32>
    %c0_8 = arith.constant 0 : index
    %c0_9 = arith.constant 0 : index
    %7 = vector.load %arg5[%c0_8, %c0_9] : memref<1x128xf32, #tpu.memory_space<vmem>>, vector<1x128xf32>
    %8 = vector.broadcast %7 : vector<1x128xf32> to vector<512x128xf32>
    %9 = arith.addf %6, %8 : vector<512x128xf32>
    %cst_10 = arith.constant 0.000000e+00 : f32
    %10 = vector.broadcast %cst_10 : f32 to vector<512x128xf32>
    %11 = arith.maximumf %9, %10 : vector<512x128xf32>
    %12 = arith.truncf %11 : vector<512x128xf32> to vector<512x128xbf16>
    %c0_11 = arith.constant 0 : index
    %c0_12 = arith.constant 0 : index
    %13 = vector.load %arg6[%c0_11, %c0_12] : memref<128x128xbf16, #tpu.memory_space<vmem>>, vector<128x128xbf16>
    %cst_13 = arith.constant dense<0.000000e+00> : vector<512x128xf32>
    %14 = tpu.matmul %12, %13, %cst_13 {dimension_numbers = #tpu.dot_dimension_numbers<[1], [0], [0], [1], [0, 0, 1, 1], [], []>} : vector<512x128xbf16>, vector<128x128xbf16>, vector<512x128xf32> -> vector<512x128xf32>
    %c0_14 = arith.constant 0 : index
    %c0_15 = arith.constant 0 : index
    %15 = vector.load %arg7[%c0_14, %c0_15] : memref<1x128xf32, #tpu.memory_space<vmem>>, vector<1x128xf32>
    %16 = vector.broadcast %15 : vector<1x128xf32> to vector<512x128xf32>
    %17 = arith.addf %14, %16 : vector<512x128xf32>
    %cst_16 = arith.constant 0.000000e+00 : f32
    %18 = vector.broadcast %cst_16 : f32 to vector<512x128xf32>
    %19 = arith.maximumf %17, %18 : vector<512x128xf32>
    %c0_17 = arith.constant 0 : index
    %c0_18 = arith.constant 0 : index
    %20 = vector.load %arg8[%c0_17, %c0_18] : memref<512x128xf32, #tpu.memory_space<vmem>>, vector<512x128xf32>
    tpu.vector_store %arg8[%c0_17, %c0_18], %19 {strides = array<i32>} : memref<512x128xf32, #tpu.memory_space<vmem>>, vector<512x128xf32>,
    return
  }
  func.func @transform_0(%arg0: i32) -> (i32, i32) {
    %c0_i32 = arith.constant 0 : i32
    %c0_i32_0 = arith.constant 0 : i32
    return %arg0, %c0_i32 : i32, i32
  }
  func.func @transform_1(%arg0: i32) -> (i32, i32) {
    %c0_i32 = arith.constant 0 : i32
    %c0_i32_0 = arith.constant 0 : i32
    return %arg0, %c0_i32 : i32, i32
  }
  func.func @transform_2(%arg0: i32) -> (i32, i32) {
    %c0_i32 = arith.constant 0 : i32
    %c0_i32_0 = arith.constant 0 : i32
    %c0_i32_1 = arith.constant 0 : i32
    return %c0_i32, %c0_i32_0 : i32, i32
  }
  func.func @transform_3(%arg0: i32) -> (i32, i32) {
    %c0_i32 = arith.constant 0 : i32
    %c0_i32_0 = arith.constant 0 : i32
    %c0_i32_1 = arith.constant 0 : i32
    return %c0_i32, %c0_i32_0 : i32, i32
  }
  func.func @transform_4(%arg0: i32) -> (i32, i32) {
    %c0_i32 = arith.constant 0 : i32
    %c0_i32_0 = arith.constant 0 : i32
    %c0_i32_1 = arith.constant 0 : i32
    return %c0_i32, %c0_i32_0 : i32, i32
  }
  func.func @transform_5(%arg0: i32) -> (i32, i32) {
    %c0_i32 = arith.constant 0 : i32
    %c0_i32_0 = arith.constant 0 : i32
    %c0_i32_1 = arith.constant 0 : i32
    return %c0_i32, %c0_i32_0 : i32, i32
  }
  func.func @transform_6(%arg0: i32) -> (i32, i32) {
    %c0_i32 = arith.constant 0 : i32
    %c0_i32_0 = arith.constant 0 : i32
    %c0_i32_1 = arith.constant 0 : i32
    return %c0_i32, %c0_i32_0 : i32, i32
  }
  func.func @transform_7(%arg0: i32) -> (i32, i32) {
    %c0_i32 = arith.constant 0 : i32
    %c0_i32_0 = arith.constant 0 : i32
    return %arg0, %c0_i32 : i32, i32
  }
}

</mosaic_0001>

<llo_original>
// kernel: custom-call.8
$region0: #{custom-call.8}
  %s0 = inlined_call_operand.vmem [shape: f32[2,1024,3], index: 0, kind: output, shape index: {}]

// kernel: pointnetpp_encoder_fp_forward.6
$region0: #{pointnetpp_encoder_fp_forward.6}
  #allocation0 [shape = 'u32[]', space=smem, size = 0x4, offset = 0x4, fixed_abs, tag = 'smem constant byte address 0x4 - core index']
  #allocation1 [shape = 'u32[72,128]{1,0:T(1,128)}', space=vmem, size = 0x9000, scoped, tag = 'internal scratch']
  %s0 = inlined_call_operand.vmem [shape: f32[2,3,1024], index: 0, kind: input, shape index: {}]
  %s1 = inlined_call_operand.vmem [shape: s32[2,1,512], index: 1, kind: output, shape index: {}]
  %s2 = sld [smem:[#allocation0]]
  $region44: #{pointnetpp_encoder_fp_forward.6} parent=0
    _
  %s4 = ssub.s32 1, %s2
  %s5 = scalar_select 0, %s4, %s2
  loop: start=0, step=1, limit=4
  $region2: #{pointnetpp_encoder_fp_forward.6} parent=0 // loop_pre_header
    _
  $region3: #{pointnetpp_encoder_fp_forward.6} parent=0 // loop_header
    %s7 = sphi 0, %s11
    %p8 = scmp.ge.s32.totalorder %s7, 4
    %s17 = sphi 0, %s19
    %s20 = sphi 0, %s17
    %s21 = sphi 0, %s20
    %s37 = sphi 0, %s21
    %s43 = sphi 0, %s45
    %s46 = sphi 0, %s43
    %s47 = sphi 0, %s46
    %s63 = sphi 0, %s47
  $region4: #{pointnetpp_encoder_fp_forward.6} parent=0 // loop_header_branch
    %10 = sbr.rel (%p8) target = $region8
  $region5: #{pointnetpp_encoder_fp_forward.6} parent=0 // loop_body
    %s12 = ssub.s32 %s7, 1
    %s13 = ssub.s32 %s7, 2
    %s14 = sadd.s32 %s7, 1
    %s15 = ssub.s32 %s7, %s14
    %p16 = scmp.eq.s32.totalorder %s15, 0
    %s18 = sadd.s32 %s17, 1
    %s19 = scalar_select %p16, %s17, %s18
    %p22 = pneg %p16
    %p23 = scmp.eq.s32.totalorder %s7, 1
    %p24 = por %p22, %p23
    %p25 = scmp.ne.s32.totalorder %s17, %s20
    %p26 = scmp.eq.s32.totalorder %s7, 0
    %p27 = por %p25, %p26
    %p28 = scmp.ne.s32.totalorder %s17, %s20
    %p29 = scmp.eq.s32.totalorder %s12, 1
    %p30 = por %p28, %p29
    %p31 = scmp.ne.s32.totalorder %s20, %s21
    %p32 = scmp.eq.s32.totalorder %s12, 0
    %p33 = por %p31, %p32
    %p34 = scmp.ne.s32.totalorder %s20, %s21
    %p35 = scmp.eq.s32.totalorder %s13, 1
    %p36 = por %p34, %p35
    %p38 = scmp.ne.s32.totalorder %s21, %s37
    %p39 = scmp.eq.s32.totalorder %s13, 0
    %p40 = por %p38, %p39
    %s41 = ssub.s32 %s7, %s14
    %p42 = scmp.eq.s32.totalorder %s41, 0
    %s44 = sadd.s32 %s43, 1
    %s45 = scalar_select %p42, %s43, %s44
    %p48 = pneg %p42
    %p49 = scmp.eq.s32.totalorder %s7, 1
    %p50 = por %p48, %p49
    %p51 = scmp.ne.s32.totalorder %s43, %s46
    %p52 = scmp.eq.s32.totalorder %s7, 0
    %p53 = por %p51, %p52
    %p54 = scmp.ne.s32.totalorder %s43, %s46
    %p55 = scmp.eq.s32.totalorder %s12, 1
    %p56 = por %p54, %p55
    %p57 = scmp.ne.s32.totalorder %s46, %s47
    %p58 = scmp.eq.s32.totalorder %s12, 0
    %p59 = por %p57, %p58
    %p60 = scmp.ne.s32.totalorder %s46, %s47
    %p61 = scmp.eq.s32.totalorder %s13, 1
    %p62 = por %p60, %p61
    %p64 = scmp.ne.s32.totalorder %s47, %s63
    %p65 = scmp.eq.s32.totalorder %s13, 0
    %p66 = por %p64, %p65
    %p67 = scmp.le.s32.totalorder 1, %s7
    %p68 = scmp.lt.s32.totalorder %s7, 3
    %p69 = pnand %p67, %p68
    %p70 = pneg %p69
    // Predicated region
    $region9: #{pointnetpp_encoder_fp_forward.6} parent=5 // pred_check
      _
    $region10: #{pointnetpp_encoder_fp_forward.6} parent=5 // pred_check_branch
      %72 = sbr.rel (%p69) target = $region12
    $region11: #{pointnetpp_encoder_fp_forward.6} parent=5 // pred_region
      %s73 = ssub.s32 %s7, 1
    $region12: #{pointnetpp_encoder_fp_forward.6} parent=5 // pred_fallthru
      _
    %p74 = scmp.lt.s32.totalorder %s7, 2
    // Predicated region
    $region13: #{pointnetpp_encoder_fp_forward.6} parent=5 // pred_check
      %p75 = pneg %p74
    $region14: #{pointnetpp_encoder_fp_forward.6} parent=5 // pred_check_branch
      %77 = sbr.rel (%p75) target = $region16
    $region15: #{pointnetpp_encoder_fp_forward.6} parent=5 // pred_region
      // Predicated region
      $region17: #{pointnetpp_encoder_fp_forward.6} parent=15 // pred_check
        %p78 = pneg %p27
      $region18: #{pointnetpp_encoder_fp_forward.6} parent=15 // pred_check_branch
        %80 = sbr.rel (%p78) target = $region20
      $region19: #{pointnetpp_encoder_fp_forward.6} parent=15 // pred_region
        %p81 = scmp.lt.s32.totalorder %s7, 1
        %s82 = scalar_select %p81, %s7, 1
        %s83 = smul.addr %s82, 8
        %s84 = smul.addr %s83, 4
        %s85 = scalar_lea.vmem %s0, %s84
      $region20: #{pointnetpp_encoder_fp_forward.6} parent=15 // pred_fallthru
        _
    $region16: #{pointnetpp_encoder_fp_forward.6} parent=5 // pred_fallthru
      _
    %p86 = scmp.le.s32.totalorder 1, %s7
    %p87 = scmp.lt.s32.totalorder %s7, 3
    %p88 = pnand %p86, %p87
    %p89 = pneg %p88
    // Predicated region
    $region21: #{pointnetpp_encoder_fp_forward.6} parent=5 // pred_check
      _
    $region22: #{pointnetpp_encoder_fp_forward.6} parent=5 // pred_check_branch
      %91 = sbr.rel (%p88) target = $region24
    $region23: #{pointnetpp_encoder_fp_forward.6} parent=5 // pred_region
      %s92 = ssub.s32 %s7, 1
      %p93 = scmp.lt.s32.totalorder %s12, 1
      %s94 = scalar_select %p93, %s12, 1
      %s95 = smul.addr %s94, 8
      %s96 = smul.addr %s95, 4
      %s97 = scalar_lea.vmem %s0, %s96
      %p98 = pneg %p33
      %p99 = pneg %p30
      %p100 = pneg %p59
      %p101 = pneg %p56
      %p102 = scmp.lt.s32.totalorder %s12, 1
      %s103 = scalar_select %p102, %s12, 1
      %s104 = smul.addr %s103, 4
      %s105 = scalar_lea.vmem %s1, %s104
      %p106 = scmp.lt.s32.totalorder %s12, 1
      %s107 = scalar_select %p106, %s12, 1
      %s108 = smul.addr %s107, 8
      %s109 = smul.addr %s108, 4
      %s110 = scalar_lea.vmem %s0, %s109
      %p111 = scmp.lt.s32.totalorder %s12, 1
      %s112 = scalar_select %p111, %s12, 1
      %s113 = smul.addr %s112, 4
      %s114 = scalar_lea.vmem %s1, %s113
      %v115 = vld [vmem:[%s110] sm:$0x77]
      %v116 = vld [vmem:[%s110 + $0x8] sm:$0x77]
      %v117 = vld [vmem:[%s110 + $0x10] sm:$0x77]
      %v118 = vld [vmem:[%s110 + $0x18] sm:$0x77]
      %v119 = vlaneseq
      %v120 = vand.u32 %v119, 127
      %v121 = vadd.s32 %v120, 128
      %v122 = vadd.s32 %v120, 256
      %v123 = vadd.s32 %v120, 384
      %v124 = vadd.s32 %v120, 512
      %v125 = vadd.s32 %v120, 640
      %v126 = vadd.s32 %v120, 768
      %v127 = vadd.s32 %v120, 896
      %v128 = vcvt.s32.f32 %v120
      %v129 = vcvt.s32.f32 %v121
      %v130 = vcvt.s32.f32 %v122
      %v131 = vcvt.s32.f32 %v123
      %v132 = vcvt.s32.f32 %v124
      %v133 = vcvt.s32.f32 %v125
      %v134 = vcvt.s32.f32 %v126
      %v135 = vcvt.s32.f32 %v127
      loop: start=0, step=1, limit=512
      $region25: #{pointnetpp_encoder_fp_forward.6} parent=23 // loop_pre_header
        _
      $region26: #{pointnetpp_encoder_fp_forward.6} parent=23 // loop_header
        %s137 = sphi 0, %s141
        %p138 = scmp.ge.s32.totalorder %s137, 512
        %v142 = vphi 1e+10, %v355
        %v143 = vphi 1e+10, %v356
        %v144 = vphi 1e+10, %v357
        %v145 = vphi 1e+10, %v358
        %v146 = vphi 1e+10, %v359
        %v147 = vphi 1e+10, %v360
        %v148 = vphi 1e+10, %v361
        %v149 = vphi 1e+10, %v362
        %v150 = vphi 0, %v397
        %v151 = vphi 0, %v160
        %v152 = vphi 0, %v161
        %v153 = vphi 0, %v162
        %v154 = vphi 0, %v163
      $region27: #{pointnetpp_encoder_fp_forward.6} parent=23 // loop_header_branch
        %140 = sbr.rel (%p138) target = $region31
      $region28: #{pointnetpp_encoder_fp_forward.6} parent=23 // loop_body
        %v155 = vstv %s137
        %vm156 = vcmp.eq.s32.totalorder %v120, %v155
        %vm157 = vcmp.eq.s32.totalorder %v121, %v155
        %vm158 = vcmp.eq.s32.totalorder %v122, %v155
        %vm159 = vcmp.eq.s32.totalorder %v123, %v155
        %v160 = vsel %vm156, %v150, %v151
        %v161 = vsel %vm157, %v150, %v152
        %v162 = vsel %vm158, %v150, %v153
        %v163 = vsel %vm159, %v150, %v154
        %vm164 = vcmp.eq.s32.totalorder %v120, %v150
        %vm165 = vcmp.eq.s32.totalorder %v121, %v150
        %vm166 = vcmp.eq.s32.totalorder %v122, %v150
        %vm167 = vcmp.eq.s32.totalorder %v123, %v150
        %vm168 = vcmp.eq.s32.totalorder %v124, %v150
        %vm169 = vcmp.eq.s32.totalorder %v125, %v150
        %vm170 = vcmp.eq.s32.totalorder %v126, %v150
        %vm171 = vcmp.eq.s32.totalorder %v127, %v150
        %v172 = vsel %vm164, 1, 0
        %v173 = vsel %vm165, 1, 0
        %v174 = vsel %vm166, 1, 0
        %v175 = vsel %vm167, 1, 0
        %v176 = vsel %vm168, 1, 0
        %v177 = vsel %vm169, 1, 0
        %v178 = vsel %vm170, 1, 0
        %v179 = vsel %vm171, 1, 0
        %v180 = vcvt.s32.f32 %v172
        %v181 = vcvt.s32.f32 %v173
        %v182 = vcvt.s32.f32 %v174
        %v183 = vcvt.s32.f32 %v175
        %v184 = vcvt.s32.f32 %v176
        %v185 = vcvt.s32.f32 %v177
        %v186 = vcvt.s32.f32 %v178
        %v187 = vcvt.s32.f32 %v179
        %v196 = vrot.slane %v181, 4
        %v197 = vrot.slane %v183, 4
        %v198 = vrot.slane %v185, 4
        %v199 = vrot.slane %v187, 4
        %vm200 = vcmask 1043456
        %v201 = vsel %vm200, %v180, %v196
        %v202 = vsel %vm200, %v182, %v197
        %v203 = vsel %vm200, %v184, %v198
        %v204 = vsel %vm200, %v186, %v199
        %v209 = vmul.f32 %v115, %v201
        %v210 = vmul.f32 %v116, %v202
        %v211 = vmul.f32 %v117, %v203
        %v212 = vmul.f32 %v118, %v204
        %217 = vst [vmem:[#allocation1] ss:$2 sm:$0xff] %v209
        %s218 = scalar_lea.vmem [#allocation1], 16
        %219 = vst [vmem:[%s218] ss:$2 sm:$0xff] %v210
        %s220 = scalar_lea.vmem [#allocation1], 32
        %221 = vst [vmem:[%s220] ss:$2 sm:$0xff] %v211
        %s222 = scalar_lea.vmem [#allocation1], 48
        %223 = vst [vmem:[%s222] ss:$2 sm:$0xff] %v212
        %v224 = vld.sshfl [vmem:[#allocation1] sm:$0xff pattern:$0x75316420]
        %v225 = vld.sshfl [vmem:[#allocation1 + $0x8] sm:$0xff pattern:$0x75316420]
        %v226 = vld.sshfl [vmem:[#allocation1 + $0x10] sm:$0xff pattern:$0x75316420]
        %v227 = vld.sshfl [vmem:[#allocation1 + $0x18] sm:$0xff pattern:$0x75316420]
        %v228 = vld.sshfl [vmem:[#allocation1 + $0x20] sm:$0xff pattern:$0x75316420]
        %v229 = vld.sshfl [vmem:[#allocation1 + $0x28] sm:$0xff pattern:$0x75316420]
        %v230 = vld.sshfl [vmem:[#allocation1 + $0x30] sm:$0xff pattern:$0x75316420]
        %v231 = vld.sshfl [vmem:[#allocation1 + $0x38] sm:$0xff pattern:$0x75316420]
        %vm240 = vcmask 1042432
        %v241 = vsel %vm240, %v224, 0.0
        %v242 = vsel %vm240, %v225, 0.0
        %v243 = vadd.f32 %v241, %v242
        %v244 = vsel %vm240, %v226, 0.0
        %v245 = vadd.f32 %v243, %v244
        %v246 = vsel %vm240, %v227, 0.0
        %v247 = vadd.f32 %v245, %v246
        %v248 = vsel %vm240, %v228, 0.0
        %v249 = vadd.f32 %v247, %v248
        %v250 = vsel %vm240, %v229, 0.0
        %v251 = vadd.f32 %v249, %v250
        %v252 = vsel %vm240, %v230, 0.0
        %v253 = vadd.f32 %v251, %v252
        %v254 = vsel %vm240, %v231, 0.0
        %v255 = vadd.f32 %v253, %v254
        %256 = vadd.xlane.f32.xlu0 %v255
        %v257 = vpop.xlane.xlu0 %256
        %v260 = vunpack.c.l.s4 839922192
        %v261 = vunpack.c.0.s8 %v260
        %v262 = vperm.slane %v257, %v261
        %v264 = vsub.f32 %v115, %v262
        %v265 = vsub.f32 %v116, %v262
        %v266 = vsub.f32 %v117, %v262
        %v267 = vsub.f32 %v118, %v262
        %v268 = vmul.f32 %v264, %v264
        %v269 = vmul.f32 %v265, %v265
        %v270 = vmul.f32 %v266, %v266
        %v271 = vmul.f32 %v267, %v267
        %276 = vst [vmem:[#allocation1] ss:$2 sm:$0xff] %v268
        %s277 = scalar_lea.vmem [#allocation1], 16
        %278 = vst [vmem:[%s277] ss:$2 sm:$0xff] %v269
        %s279 = scalar_lea.vmem [#allocation1], 32
        %280 = vst [vmem:[%s279] ss:$2 sm:$0xff] %v270
        %s281 = scalar_lea.vmem [#allocation1], 48
        %282 = vst [vmem:[%s281] ss:$2 sm:$0xff] %v271
        %v283 = vld.sshfl [vmem:[#allocation1] sm:$0xff pattern:$0x75316420]
        %v284 = vld.sshfl [vmem:[#allocation1 + $0x8] sm:$0xff pattern:$0x75316420]
        %v285 = vld.sshfl [vmem:[#allocation1 + $0x10] sm:$0xff pattern:$0x75316420]
        %v286 = vld.sshfl [vmem:[#allocation1 + $0x18] sm:$0xff pattern:$0x75316420]
        %v287 = vld.sshfl [vmem:[#allocation1 + $0x20] sm:$0xff pattern:$0x75316420]
        %v288 = vld.sshfl [vmem:[#allocation1 + $0x28] sm:$0xff pattern:$0x75316420]
        %v289 = vld.sshfl [vmem:[#allocation1 + $0x30] sm:$0xff pattern:$0x75316420]
        %v290 = vld.sshfl [vmem:[#allocation1 + $0x38] sm:$0xff pattern:$0x75316420]
        %v299 = vsel %vm240, %v283, 0.0
        %v300 = vrot.slane %v299, 4
        %v301 = vadd.f32 %v299, %v300
        %v302 = vrot.slane %v301, 2
        %v303 = vadd.f32 %v301, %v302
        %v304 = vrot.slane %v303, 1
        %v305 = vadd.f32 %v303, %v304
        %v306 = vsel %vm240, %v284, 0.0
        %v307 = vrot.slane %v306, 4
        %v308 = vadd.f32 %v306, %v307
        %v309 = vrot.slane %v308, 2
        %v310 = vadd.f32 %v308, %v309
        %v311 = vrot.slane %v310, 1
        %v312 = vadd.f32 %v310, %v311
        %v313 = vsel %vm240, %v285, 0.0
        %v314 = vrot.slane %v313, 4
        %v315 = vadd.f32 %v313, %v314
        %v316 = vrot.slane %v315, 2
        %v317 = vadd.f32 %v315, %v316
        %v318 = vrot.slane %v317, 1
        %v319 = vadd.f32 %v317, %v318
        %v320 = vsel %vm240, %v286, 0.0
        %v321 = vrot.slane %v320, 4
        %v322 = vadd.f32 %v320, %v321
        %v323 = vrot.slane %v322, 2
        %v324 = vadd.f32 %v322, %v323
        %v325 = vrot.slane %v324, 1
        %v326 = vadd.f32 %v324, %v325
        %v327 = vsel %vm240, %v287, 0.0
        %v328 = vrot.slane %v327, 4
        %v329 = vadd.f32 %v327, %v328
        %v330 = vrot.slane %v329, 2
        %v331 = vadd.f32 %v329, %v330
        %v332 = vrot.slane %v331, 1
        %v333 = vadd.f32 %v331, %v332
        %v334 = vsel %vm240, %v288, 0.0
        %v335 = vrot.slane %v334, 4
        %v336 = vadd.f32 %v334, %v335
        %v337 = vrot.slane %v336, 2
        %v338 = vadd.f32 %v336, %v337
        %v339 = vrot.slane %v338, 1
        %v340 = vadd.f32 %v338, %v339
        %v341 = vsel %vm240, %v289, 0.0
        %v342 = vrot.slane %v341, 4
        %v343 = vadd.f32 %v341, %v342
        %v344 = vrot.slane %v343, 2
        %v345 = vadd.f32 %v343, %v344
        %v346 = vrot.slane %v345, 1
        %v347 = vadd.f32 %v345, %v346
        %v348 = vsel %vm240, %v290, 0.0
        %v349 = vrot.slane %v348, 4
        %v350 = vadd.f32 %v348, %v349
        %v351 = vrot.slane %v350, 2
        %v352 = vadd.f32 %v350, %v351
        %v353 = vrot.slane %v352, 1
        %v354 = vadd.f32 %v352, %v353
        %v355 = vmin.f32 %v142, %v305
        %v356 = vmin.f32 %v143, %v312
        %v357 = vmin.f32 %v144, %v319
        %v358 = vmin.f32 %v145, %v326
        %v359 = vmin.f32 %v146, %v333
        %v360 = vmin.f32 %v147, %v340
        %v361 = vmin.f32 %v148, %v347
        %v362 = vmin.f32 %v149, %v354
        %v363 = vmax.f32 %v355, %v359
        %v364 = vmax.f32 %v356, %v360
        %v365 = vmax.f32 %v357, %v361
        %v366 = vmax.f32 %v358, %v362
        %v367 = vmax.f32 %v363, %v364
        %v368 = vmax.f32 %v365, %v366
        %v369 = vmax.f32 %v367, %v368
        %370 = vmax.xlane.f32.xlu0 %v369
        %v371 = vpop.xlane.xlu0 %370
        %vm372 = vcmp.eq.f32.partialorder %v355, %v371
        %vm373 = vcmp.eq.f32.partialorder %v356, %v371
        %vm374 = vcmp.eq.f32.partialorder %v357, %v371
        %vm375 = vcmp.eq.f32.partialorder %v358, %v371
        %vm376 = vcmp.eq.f32.partialorder %v359, %v371
        %vm377 = vcmp.eq.f32.partialorder %v360, %v371
        %vm378 = vcmp.eq.f32.partialorder %v361, %v371
        %vm379 = vcmp.eq.f32.partialorder %v362, %v371
        %v380 = vsel %vm372, %v128, 1024.0
        %v381 = vsel %vm373, %v129, 1024.0
        %v382 = vsel %vm374, %v130, 1024.0
        %v383 = vsel %vm375, %v131, 1024.0
        %v384 = vsel %vm376, %v132, 1024.0
        %v385 = vsel %vm377, %v133, 1024.0
        %v386 = vsel %vm378, %v134, 1024.0
        %v387 = vsel %vm379, %v135, 1024.0
        %v388 = vmin.f32 %v380, %v384
        %v389 = vmin.f32 %v381, %v385
        %v390 = vmin.f32 %v382, %v386
        %v391 = vmin.f32 %v383, %v387
        %v392 = vmin.f32 %v388, %v389
        %v393 = vmin.f32 %v390, %v391
        %v394 = vmin.f32 %v392, %v393
        %395 = vmin.xlane.f32.xlu0 %v394
        %v396 = vpop.xlane.xlu0 %395
        %v397 = vcvt.f32.s32.to.zero.pseudo %v396
      $region29: #{pointnetpp_encoder_fp_forward.6} parent=23 // loop_footer
        %s141 = sadd.s32 1, %s137
      $region30: #{pointnetpp_encoder_fp_forward.6} parent=23 // loop_footer_branch
        %136 = sbr.rel target = $region26
      $region31: #{pointnetpp_encoder_fp_forward.6} parent=23 // loop_exit
        _
      %v398 = vrot.slane %v152, 7
      %v399 = vrot.slane %v153, 6
      %v400 = vrot.slane %v154, 5
      %vm401 = vcmask 1040384
      %v402 = vsel %vm401, %v151, %v398
      %vm403 = vcmask 1042434
      %v404 = vsel %vm403, %v399, %v400
      %vm405 = vcmask 1041408
      %v406 = vsel %vm405, %v402, %v404
      %v407 = vlaneseq
      %vm408 = vcmp.ge.s32.totalorder %v407, 0
      %vm409 = vcmp.lt.s32.totalorder %v407, 512
      %vm410 = vmand %vm408, %vm409
      %411 = vst.msk [vmem:[%s114] sm:$0xf] %vm410, %v406
      %p412 = scmp.lt.s32.totalorder %s12, 1
      %s413 = scalar_select %p412, %s12, 1
      %s414 = smul.addr %s413, 4
      %s415 = scalar_lea.vmem %s1, %s414
      // Predicated region
      $region32: #{pointnetpp_encoder_fp_forward.6} parent=23 // pred_check
        %p416 = pneg %p56
      $region33: #{pointnetpp_encoder_fp_forward.6} parent=23 // pred_check_branch
        %418 = sbr.rel (%p416) target = $region35
      $region34: #{pointnetpp_encoder_fp_forward.6} parent=23 // pred_region
        _
      $region35: #{pointnetpp_encoder_fp_forward.6} parent=23 // pred_fallthru
        _
    $region24: #{pointnetpp_encoder_fp_forward.6} parent=5 // pred_fallthru
      _
    %p419 = scmp.le.s32.totalorder 2, %s7
    // Predicated region
    $region36: #{pointnetpp_encoder_fp_forward.6} parent=5 // pred_check
      %p420 = pneg %p419
    $region37: #{pointnetpp_encoder_fp_forward.6} parent=5 // pred_check_branch
      %422 = sbr.rel (%p420) target = $region39
    $region38: #{pointnetpp_encoder_fp_forward.6} parent=5 // pred_region
      %s423 = ssub.s32 %s7, 2
      // Predicated region
      $region40: #{pointnetpp_encoder_fp_forward.6} parent=38 // pred_check
        %p424 = pneg %p62
      $region41: #{pointnetpp_encoder_fp_forward.6} parent=38 // pred_check_branch
        %426 = sbr.rel (%p424) target = $region43
      $region42: #{pointnetpp_encoder_fp_forward.6} parent=38 // pred_region
        %p427 = scmp.lt.s32.totalorder %s13, 1
        %s428 = scalar_select %p427, %s13, 1
        %s429 = smul.addr %s428, 4
        %s430 = scalar_lea.vmem %s1, %s429
      $region43: #{pointnetpp_encoder_fp_forward.6} parent=38 // pred_fallthru
        _
    $region39: #{pointnetpp_encoder_fp_forward.6} parent=5 // pred_fallthru
      _
  $region6: #{pointnetpp_encoder_fp_forward.6} parent=0 // loop_footer
    %s11 = sadd.s32 1, %s7
  $region7: #{pointnetpp_encoder_fp_forward.6} parent=0 // loop_footer_branch
    %6 = sbr.rel target = $region3
  $region8: #{pointnetpp_encoder_fp_forward.6} parent=0 // loop_exit
    _

// kernel: pointnetpp_encoder_fp_forward.8
$region0: #{pointnetpp_encoder_fp_forward.8}
  #allocation0 [shape = 'u32[]', space=smem, size = 0x4, offset = 0x4, fixed_abs, tag = 'smem constant byte address 0x4 - core index']
  #allocation1 [shape = 'u32[72,128]{1,0:T(1,128)}', space=vmem, size = 0x9000, scoped, tag = 'internal scratch']
  %s0 = inlined_call_operand.vmem [shape: f32[2,3,512], index: 0, kind: input, shape index: {}]
  %s1 = inlined_call_operand.vmem [shape: s32[2,1,128], index: 1, kind: output, shape index: {}]
  %s2 = sld [smem:[#allocation0]]
  $region44: #{pointnetpp_encoder_fp_forward.8} parent=0
    _
  %s4 = ssub.s32 1, %s2
  %s5 = scalar_select 0, %s4, %s2
  loop: start=0, step=1, limit=4
  $region2: #{pointnetpp_encoder_fp_forward.8} parent=0 // loop_pre_header
    _
  $region3: #{pointnetpp_encoder_fp_forward.8} parent=0 // loop_header
    %s7 = sphi 0, %s11
    %p8 = scmp.ge.s32.totalorder %s7, 4
    %s17 = sphi 0, %s19
    %s20 = sphi 0, %s17
    %s21 = sphi 0, %s20
    %s37 = sphi 0, %s21
    %s43 = sphi 0, %s45
    %s46 = sphi 0, %s43
    %s47 = sphi 0, %s46
    %s63 = sphi 0, %s47
  $region4: #{pointnetpp_encoder_fp_forward.8} parent=0 // loop_header_branch
    %10 = sbr.rel (%p8) target = $region8
  $region5: #{pointnetpp_encoder_fp_forward.8} parent=0 // loop_body
    %s12 = ssub.s32 %s7, 1
    %s13 = ssub.s32 %s7, 2
    %s14 = sadd.s32 %s7, 1
    %s15 = ssub.s32 %s7, %s14
    %p16 = scmp.eq.s32.totalorder %s15, 0
    %s18 = sadd.s32 %s17, 1
    %s19 = scalar_select %p16, %s17, %s18
    %p22 = pneg %p16
    %p23 = scmp.eq.s32.totalorder %s7, 1
    %p24 = por %p22, %p23
    %p25 = scmp.ne.s32.totalorder %s17, %s20
    %p26 = scmp.eq.s32.totalorder %s7, 0
    %p27 = por %p25, %p26
    %p28 = scmp.ne.s32.totalorder %s17, %s20
    %p29 = scmp.eq.s32.totalorder %s12, 1
    %p30 = por %p28, %p29
    %p31 = scmp.ne.s32.totalorder %s20, %s21
    %p32 = scmp.eq.s32.totalorder %s12, 0
    %p33 = por %p31, %p32
    %p34 = scmp.ne.s32.totalorder %s20, %s21
    %p35 = scmp.eq.s32.totalorder %s13, 1
    %p36 = por %p34, %p35
    %p38 = scmp.ne.s32.totalorder %s21, %s37
    %p39 = scmp.eq.s32.totalorder %s13, 0
    %p40 = por %p38, %p39
    %s41 = ssub.s32 %s7, %s14
    %p42 = scmp.eq.s32.totalorder %s41, 0
    %s44 = sadd.s32 %s43, 1
    %s45 = scalar_select %p42, %s43, %s44
    %p48 = pneg %p42
    %p49 = scmp.eq.s32.totalorder %s7, 1
    %p50 = por %p48, %p49
    %p51 = scmp.ne.s32.totalorder %s43, %s46
    %p52 = scmp.eq.s32.totalorder %s7, 0
    %p53 = por %p51, %p52
    %p54 = scmp.ne.s32.totalorder %s43, %s46
    %p55 = scmp.eq.s32.totalorder %s12, 1
    %p56 = por %p54, %p55
    %p57 = scmp.ne.s32.totalorder %s46, %s47
    %p58 = scmp.eq.s32.totalorder %s12, 0
    %p59 = por %p57, %p58
    %p60 = scmp.ne.s32.totalorder %s46, %s47
    %p61 = scmp.eq.s32.totalorder %s13, 1
    %p62 = por %p60, %p61
    %p64 = scmp.ne.s32.totalorder %s47, %s63
    %p65 = scmp.eq.s32.totalorder %s13, 0
    %p66 = por %p64, %p65
    %p67 = scmp.le.s32.totalorder 1, %s7
    %p68 = scmp.lt.s32.totalorder %s7, 3
    %p69 = pnand %p67, %p68
    %p70 = pneg %p69
    // Predicated region
    $region9: #{pointnetpp_encoder_fp_forward.8} parent=5 // pred_check
      _
    $region10: #{pointnetpp_encoder_fp_forward.8} parent=5 // pred_check_branch
      %72 = sbr.rel (%p69) target = $region12
    $region11: #{pointnetpp_encoder_fp_forward.8} parent=5 // pred_region
      %s73 = ssub.s32 %s7, 1
    $region12: #{pointnetpp_encoder_fp_forward.8} parent=5 // pred_fallthru
      _
    %p74 = scmp.lt.s32.totalorder %s7, 2
    // Predicated region
    $region13: #{pointnetpp_encoder_fp_forward.8} parent=5 // pred_check
      %p75 = pneg %p74
    $region14: #{pointnetpp_encoder_fp_forward.8} parent=5 // pred_check_branch
      %77 = sbr.rel (%p75) target = $region16
    $region15: #{pointnetpp_encoder_fp_forward.8} parent=5 // pred_region
      // Predicated region
      $region17: #{pointnetpp_encoder_fp_forward.8} parent=15 // pred_check
        %p78 = pneg %p27
      $region18: #{pointnetpp_encoder_fp_forward.8} parent=15 // pred_check_branch
        %80 = sbr.rel (%p78) target = $region20
      $region19: #{pointnetpp_encoder_fp_forward.8} parent=15 // pred_region
        %p81 = scmp.lt.s32.totalorder %s7, 1
        %s82 = scalar_select %p81, %s7, 1
        %s83 = smul.addr %s82, 4
        %s84 = smul.addr %s83, 4
        %s85 = scalar_lea.vmem %s0, %s84
      $region20: #{pointnetpp_encoder_fp_forward.8} parent=15 // pred_fallthru
        _
    $region16: #{pointnetpp_encoder_fp_forward.8} parent=5 // pred_fallthru
      _
    %p86 = scmp.le.s32.totalorder 1, %s7
    %p87 = scmp.lt.s32.totalorder %s7, 3
    %p88 = pnand %p86, %p87
    %p89 = pneg %p88
    // Predicated region
    $region21: #{pointnetpp_encoder_fp_forward.8} parent=5 // pred_check
      _
    $region22: #{pointnetpp_encoder_fp_forward.8} parent=5 // pred_check_branch
      %91 = sbr.rel (%p88) target = $region24
    $region23: #{pointnetpp_encoder_fp_forward.8} parent=5 // pred_region
      %s92 = ssub.s32 %s7, 1
      %p93 = scmp.lt.s32.totalorder %s12, 1
      %s94 = scalar_select %p93, %s12, 1
      %s95 = smul.addr %s94, 4
      %s96 = smul.addr %s95, 4
      %s97 = scalar_lea.vmem %s0, %s96
      %p98 = pneg %p33
      %p99 = pneg %p30
      %p100 = pneg %p59
      %p101 = pneg %p56
      %p102 = scmp.lt.s32.totalorder %s12, 1
      %s103 = scalar_select %p102, %s12, 1
      %s104 = scalar_lea.vmem %s1, %s103
      %p105 = scmp.lt.s32.totalorder %s12, 1
      %s106 = scalar_select %p105, %s12, 1
      %s107 = smul.addr %s106, 4
      %s108 = smul.addr %s107, 4
      %s109 = scalar_lea.vmem %s0, %s108
      %p110 = scmp.lt.s32.totalorder %s12, 1
      %s111 = scalar_select %p110, %s12, 1
      %s112 = scalar_lea.vmem %s1, %s111
      %v113 = vld [vmem:[%s109] sm:$0x77]
      %v114 = vld [vmem:[%s109 + $0x8] sm:$0x77]
      %v115 = vlaneseq
      %v116 = vand.u32 %v115, 127
      %v117 = vadd.s32 %v116, 128
      %v118 = vadd.s32 %v116, 256
      %v119 = vadd.s32 %v116, 384
      %v120 = vcvt.s32.f32 %v116
      %v121 = vcvt.s32.f32 %v117
      %v122 = vcvt.s32.f32 %v118
      %v123 = vcvt.s32.f32 %v119
      loop: start=0, step=1, limit=128
      $region25: #{pointnetpp_encoder_fp_forward.8} parent=23 // loop_pre_header
        _
      $region26: #{pointnetpp_encoder_fp_forward.8} parent=23 // loop_header
        %s125 = sphi 0, %s129
        %p126 = scmp.ge.s32.totalorder %s125, 128
        %v130 = vphi 1e+10, %v238
        %v131 = vphi 1e+10, %v239
        %v132 = vphi 1e+10, %v240
        %v133 = vphi 1e+10, %v241
        %v134 = vphi 0, %v260
        %v135 = vphi 0, %v138
      $region27: #{pointnetpp_encoder_fp_forward.8} parent=23 // loop_header_branch
        %128 = sbr.rel (%p126) target = $region31
      $region28: #{pointnetpp_encoder_fp_forward.8} parent=23 // loop_body
        %v136 = vstv %s125
        %vm137 = vcmp.eq.s32.totalorder %v116, %v136
        %v138 = vsel %vm137, %v134, %v135
        %vm139 = vcmp.eq.s32.totalorder %v116, %v134
        %vm140 = vcmp.eq.s32.totalorder %v117, %v134
        %vm141 = vcmp.eq.s32.totalorder %v118, %v134
        %vm142 = vcmp.eq.s32.totalorder %v119, %v134
        %v143 = vsel %vm139, 1, 0
        %v144 = vsel %vm140, 1, 0
        %v145 = vsel %vm141, 1, 0
        %v146 = vsel %vm142, 1, 0
        %v147 = vcvt.s32.f32 %v143
        %v148 = vcvt.s32.f32 %v144
        %v149 = vcvt.s32.f32 %v145
        %v150 = vcvt.s32.f32 %v146
        %v155 = vrot.slane %v148, 4
        %v156 = vrot.slane %v150, 4
        %vm157 = vcmask 1043456
        %v158 = vsel %vm157, %v147, %v155
        %v159 = vsel %vm157, %v149, %v156
        %v162 = vmul.f32 %v113, %v158
        %v163 = vmul.f32 %v114, %v159
        %166 = vst [vmem:[#allocation1] ss:$2 sm:$0xff] %v162
        %s167 = scalar_lea.vmem [#allocation1], 16
        %168 = vst [vmem:[%s167] ss:$2 sm:$0xff] %v163
        %v169 = vld.sshfl [vmem:[#allocation1] sm:$0xff pattern:$0x75316420]
        %v170 = vld.sshfl [vmem:[#allocation1 + $0x8] sm:$0xff pattern:$0x75316420]
        %v171 = vld.sshfl [vmem:[#allocation1 + $0x10] sm:$0xff pattern:$0x75316420]
        %v172 = vld.sshfl [vmem:[#allocation1 + $0x18] sm:$0xff pattern:$0x75316420]
        %vm177 = vcmask 1042432
        %v178 = vsel %vm177, %v169, 0.0
        %v179 = vsel %vm177, %v170, 0.0
        %v180 = vadd.f32 %v178, %v179
        %v181 = vsel %vm177, %v171, 0.0
        %v182 = vadd.f32 %v180, %v181
        %v183 = vsel %vm177, %v172, 0.0
        %v184 = vadd.f32 %v182, %v183
        %185 = vadd.xlane.f32.xlu0 %v184
        %v186 = vpop.xlane.xlu0 %185
        %v189 = vunpack.c.l.s4 839922192
        %v190 = vunpack.c.0.s8 %v189
        %v191 = vperm.slane %v186, %v190
        %v193 = vsub.f32 %v113, %v191
        %v194 = vsub.f32 %v114, %v191
        %v195 = vmul.f32 %v193, %v193
        %v196 = vmul.f32 %v194, %v194
        %199 = vst [vmem:[#allocation1] ss:$2 sm:$0xff] %v195
        %s200 = scalar_lea.vmem [#allocation1], 16
        %201 = vst [vmem:[%s200] ss:$2 sm:$0xff] %v196
        %v202 = vld.sshfl [vmem:[#allocation1] sm:$0xff pattern:$0x75316420]
        %v203 = vld.sshfl [vmem:[#allocation1 + $0x8] sm:$0xff pattern:$0x75316420]
        %v204 = vld.sshfl [vmem:[#allocation1 + $0x10] sm:$0xff pattern:$0x75316420]
        %v205 = vld.sshfl [vmem:[#allocation1 + $0x18] sm:$0xff pattern:$0x75316420]
        %v210 = vsel %vm177, %v202, 0.0
        %v211 = vrot.slane %v210, 4
        %v212 = vadd.f32 %v210, %v211
        %v213 = vrot.slane %v212, 2
        %v214 = vadd.f32 %v212, %v213
        %v215 = vrot.slane %v214, 1
        %v216 = vadd.f32 %v214, %v215
        %v217 = vsel %vm177, %v203, 0.0
        %v218 = vrot.slane %v217, 4
        %v219 = vadd.f32 %v217, %v218
        %v220 = vrot.slane %v219, 2
        %v221 = vadd.f32 %v219, %v220
        %v222 = vrot.slane %v221, 1
        %v223 = vadd.f32 %v221, %v222
        %v224 = vsel %vm177, %v204, 0.0
        %v225 = vrot.slane %v224, 4
        %v226 = vadd.f32 %v224, %v225
        %v227 = vrot.slane %v226, 2
        %v228 = vadd.f32 %v226, %v227
        %v229 = vrot.slane %v228, 1
        %v230 = vadd.f32 %v228, %v229
        %v231 = vsel %vm177, %v205, 0.0
        %v232 = vrot.slane %v231, 4
        %v233 = vadd.f32 %v231, %v232
        %v234 = vrot.slane %v233, 2
        %v235 = vadd.f32 %v233, %v234
        %v236 = vrot.slane %v235, 1
        %v237 = vadd.f32 %v235, %v236
        %v238 = vmin.f32 %v130, %v216
        %v239 = vmin.f32 %v131, %v223
        %v240 = vmin.f32 %v132, %v230
        %v241 = vmin.f32 %v133, %v237
        %v242 = vmax.f32 %v238, %v239
        %v243 = vmax.f32 %v240, %v241
        %v244 = vmax.f32 %v242, %v243
        %245 = vmax.xlane.f32.xlu0 %v244
        %v246 = vpop.xlane.xlu0 %245
        %vm247 = vcmp.eq.f32.partialorder %v238, %v246
        %vm248 = vcmp.eq.f32.partialorder %v239, %v246
        %vm249 = vcmp.eq.f32.partialorder %v240, %v246
        %vm250 = vcmp.eq.f32.partialorder %v241, %v246
        %v251 = vsel %vm247, %v120, 512.0
        %v252 = vsel %vm248, %v121, 512.0
        %v253 = vsel %vm249, %v122, 512.0
        %v254 = vsel %vm250, %v123, 512.0
        %v255 = vmin.f32 %v251, %v252
        %v256 = vmin.f32 %v253, %v254
        %v257 = vmin.f32 %v255, %v256
        %258 = vmin.xlane.f32.xlu0 %v257
        %v259 = vpop.xlane.xlu0 %258
        %v260 = vcvt.f32.s32.to.zero.pseudo %v259
      $region29: #{pointnetpp_encoder_fp_forward.8} parent=23 // loop_footer
        %s129 = sadd.s32 1, %s125
      $region30: #{pointnetpp_encoder_fp_forward.8} parent=23 // loop_footer_branch
        %124 = sbr.rel target = $region26
      $region31: #{pointnetpp_encoder_fp_forward.8} parent=23 // loop_exit
        _
      %261 = vst [vmem:[%s112] sm:$0x1] %v135
      %p262 = scmp.lt.s32.totalorder %s12, 1
      %s263 = scalar_select %p262, %s12, 1
      %s264 = scalar_lea.vmem %s1, %s263
      // Predicated region
      $region32: #{pointnetpp_encoder_fp_forward.8} parent=23 // pred_check
        %p265 = pneg %p56
      $region33: #{pointnetpp_encoder_fp_forward.8} parent=23 // pred_check_branch
        %267 = sbr.rel (%p265) target = $region35
      $region34: #{pointnetpp_encoder_fp_forward.8} parent=23 // pred_region
        _
      $region35: #{pointnetpp_encoder_fp_forward.8} parent=23 // pred_fallthru
        _
    $region24: #{pointnetpp_encoder_fp_forward.8} parent=5 // pred_fallthru
      _
    %p268 = scmp.le.s32.totalorder 2, %s7
    // Predicated region
    $region36: #{pointnetpp_encoder_fp_forward.8} parent=5 // pred_check
      %p269 = pneg %p268
    $region37: #{pointnetpp_encoder_fp_forward.8} parent=5 // pred_check_branch
      %271 = sbr.rel (%p269) target = $region39
    $region38: #{pointnetpp_encoder_fp_forward.8} parent=5 // pred_region
      %s272 = ssub.s32 %s7, 2
      // Predicated region
      $region40: #{pointnetpp_encoder_fp_forward.8} parent=38 // pred_check
        %p273 = pneg %p62
      $region41: #{pointnetpp_encoder_fp_forward.8} parent=38 // pred_check_branch
        %275 = sbr.rel (%p273) target = $region43
      $region42: #{pointnetpp_encoder_fp_forward.8} parent=38 // pred_region
        %p276 = scmp.lt.s32.totalorder %s13, 1
        %s277 = scalar_select %p276, %s13, 1
        %s278 = scalar_lea.vmem %s1, %s277
      $region43: #{pointnetpp_encoder_fp_forward.8} parent=38 // pred_fallthru
        _
    $region39: #{pointnetpp_encoder_fp_forward.8} parent=5 // pred_fallthru
      _
  $region6: #{pointnetpp_encoder_fp_forward.8} parent=0 // loop_footer
    %s11 = sadd.s32 1, %s7
  $region7: #{pointnetpp_encoder_fp_forward.8} parent=0 // loop_footer_branch
    %6 = sbr.rel target = $region3
  $region8: #{pointnetpp_encoder_fp_forward.8} parent=0 // loop_exit
    _

// kernel: neg.1
$region0: #{neg.1}
  #allocation0 [shape = 's32[1]{0}', space=sflag, size = 0x4, scoped, tag = 'scoped memory for neg.1']
  %s0 = inlined_call_operand.vmem [shape: f32[2,1024,1024], index: 0, kind: input, shape index: {}]
  %s1 = inlined_call_operand.vmem [shape: f32[2,1024,1024], index: 1, kind: output, shape index: {}]
  loop: start=0, step=1, limit=26
  $region2: #{neg.1} parent=0 // loop_pre_header
    _
  $region3: #{neg.1} parent=0 // loop_header
    %s3 = sphi 0, %s7
    %p4 = scmp.ge.s32.totalorder %s3, 26
    %s18 = sphi 0, %s61
    %s19 = sphi 0, %s57
    %s20 = sphi 0, %s53
    %s21 = sphi 0, %s18
    %s22 = sphi 0, %s19
    %s23 = sphi 0, %s20
    %s24 = sphi 0, %s21
    %s25 = sphi 0, %s22
    %s26 = sphi 0, %s23
    %s27 = sphi 0, %s24
    %s28 = sphi 0, %s25
    %s29 = sphi 0, %s26
    %s30 = sphi 0, %s27
    %s31 = sphi 0, %s28
    %s32 = sphi 0, %s29
    %s33 = sphi 0, %s30
    %s34 = sphi 0, %s31
    %s35 = sphi 0, %s32
    %s36 = sphi 0, %s33
    %s37 = sphi 0, %s34
    %s38 = sphi 0, %s35
    %s39 = sphi 0, %s36
    %s40 = sphi 0, %s37
    %s41 = sphi 0, %s38
    %s42 = sphi 0, %s39
    %s43 = sphi 0, %s40
    %s44 = sphi 0, %s41
    %s45 = sphi 0, %s42
    %s46 = sphi 0, %s43
    %s47 = sphi 0, %s44
    %s48 = sphi 0, %s45
    %s49 = sphi 0, %s46
    %s50 = sphi 0, %s47
  $region4: #{neg.1} parent=0 // loop_header_branch
    %6 = sbr.rel (%p4) target = $region8
  $region5: #{neg.1} parent=0 // loop_body
    %s8 = ssub.s32 %s3, 1
    %s9 = ssub.s32 %s3, 2
    %s10 = ssub.s32 %s3, 3
    %s11 = ssub.s32 %s3, 4
    %s12 = ssub.s32 %s3, 5
    %s13 = ssub.s32 %s3, 6
    %s14 = ssub.s32 %s3, 7
    %s15 = ssub.s32 %s3, 8
    %s16 = ssub.s32 %s3, 9
    %s17 = ssub.s32 %s3, 10
    %s51 = sadd.s32 1, %s20
    %p52 = scmp.ge.s32.totalorder %s51, 1
    %s53 = scalar_select %p52, 0, %s51
    %s54 = sadd.s32 1, %s19
    %s55 = scalar_select %p52, %s54, %s19
    %p56 = scmp.ge.s32.totalorder %s55, 8
    %s57 = scalar_select %p56, 0, %s55
    %s58 = sadd.s32 1, %s18
    %s59 = scalar_select %p56, %s58, %s18
    %p60 = scmp.ge.s32.totalorder %s59, 2
    %s61 = scalar_select %p60, 0, %s59
    %p62 = scmp.le.s32.totalorder 5, %s3
    %p63 = scmp.lt.s32.totalorder %s3, 21
    %p64 = pnand %p62, %p63
    %p65 = pneg %p64
    // Predicated region
    $region9: #{neg.1} parent=5 // pred_check
      _
    $region10: #{neg.1} parent=5 // pred_check_branch
      %67 = sbr.rel (%p64) target = $region12
    $region11: #{neg.1} parent=5 // pred_region
      %s68 = ssub.s32 %s3, 5
    $region12: #{neg.1} parent=5 // pred_fallthru
      _
    %p69 = scmp.lt.s32.totalorder %s3, 16
    // Predicated region
    $region13: #{neg.1} parent=5 // pred_check
      %p70 = pneg %p69
    $region14: #{neg.1} parent=5 // pred_check_branch
      %72 = sbr.rel (%p70) target = $region16
    $region15: #{neg.1} parent=5 // pred_region
      %s73 = smul.u32 16, %s19
      %s74 = smul.u32 8, %s20
      %p75 = scmp.lt.s32.totalorder %s18, 1
      %s76 = scalar_select %p75, %s18, 1
      %p77 = scmp.lt.s32.totalorder %s73, 127
      %s78 = scalar_select %p77, %s73, 127
      %p79 = scmp.lt.s32.totalorder %s74, 7
      %s80 = scalar_select %p79, %s74, 7
      %s81 = smul.addr %s78, 8
      %s82 = sadd.s32 %s80, %s81
      %s83 = smul.addr %s76, 1024
      %s84 = sadd.s32 %s82, %s83
      %s85 = smul.addr %s84, 8
      %s86 = scalar_lea.vmem %s0, %s85
      %s87 = smul.u32 16, %s19
      %s88 = smul.u32 8, %s20
    $region16: #{neg.1} parent=5 // pred_fallthru
      _
    %p89 = scmp.le.s32.totalorder 5, %s3
    %p90 = scmp.lt.s32.totalorder %s3, 21
    %p91 = pnand %p89, %p90
    %p92 = pneg %p91
    // Predicated region
    $region17: #{neg.1} parent=5 // pred_check
      _
    $region18: #{neg.1} parent=5 // pred_check_branch
      %94 = sbr.rel (%p91) target = $region20
    $region19: #{neg.1} parent=5 // pred_region
      %s95 = ssub.s32 %s3, 5
      %s96 = smul.u32 16, %s34
      %s97 = smul.u32 8, %s35
      %p98 = scmp.lt.s32.totalorder %s33, 1
      %s99 = scalar_select %p98, %s33, 1
      %p100 = scmp.lt.s32.totalorder %s96, 127
      %s101 = scalar_select %p100, %s96, 127
      %p102 = scmp.lt.s32.totalorder %s97, 7
      %s103 = scalar_select %p102, %s97, 7
      %s104 = smul.addr %s101, 8
      %s105 = sadd.s32 %s103, %s104
      %s106 = smul.addr %s99, 1024
      %s107 = sadd.s32 %s105, %s106
      %s108 = smul.addr %s107, 8
      %s109 = scalar_lea.vmem %s0, %s108
      %s110 = smul.u32 16, %s34
      %s111 = smul.u32 8, %s35
      %p112 = scmp.lt.s32.totalorder %s33, 1
      %s113 = scalar_select %p112, %s33, 1
      %p114 = scmp.lt.s32.totalorder %s110, 127
      %s115 = scalar_select %p114, %s110, 127
      %p116 = scmp.lt.s32.totalorder %s111, 7
      %s117 = scalar_select %p116, %s111, 7
      %s118 = smul.addr %s115, 8
      %s119 = sadd.s32 %s117, %s118
      %s120 = smul.addr %s113, 1024
      %s121 = sadd.s32 %s119, %s120
      %s122 = smul.addr %s121, 8
      %s123 = scalar_lea.vmem %s1, %s122
      %s124 = smul.u32 16, %s34
      %s125 = smul.u32 8, %s35
      %s126 = smul.u32 16, %s34
      %s127 = smul.u32 8, %s35
      %p128 = scmp.lt.s32.totalorder %s33, 1
      %s129 = scalar_select %p128, %s33, 1
      %p130 = scmp.lt.s32.totalorder %s126, 127
      %s131 = scalar_select %p130, %s126, 127
      %p132 = scmp.lt.s32.totalorder %s127, 7
      %s133 = scalar_select %p132, %s127, 7
      %s134 = smul.addr %s131, 8
      %s135 = sadd.s32 %s133, %s134
      %s136 = smul.addr %s129, 1024
      %s137 = sadd.s32 %s135, %s136
      %s138 = smul.addr %s137, 8
      %s139 = scalar_lea.vmem %s0, %s138
      %s140 = smul.u32 16, %s34
      %s141 = smul.u32 8, %s35
      %s142 = smul.u32 16, %s34
      %s143 = smul.u32 8, %s35
      %p144 = scmp.lt.s32.totalorder %s33, 1
      %s145 = scalar_select %p144, %s33, 1
      %p146 = scmp.lt.s32.totalorder %s142, 127
      %s147 = scalar_select %p146, %s142, 127
      %p148 = scmp.lt.s32.totalorder %s143, 7
      %s149 = scalar_select %p148, %s143, 7
      %s150 = smul.addr %s147, 8
      %s151 = sadd.s32 %s149, %s150
      %s152 = smul.addr %s145, 1024
      %s153 = sadd.s32 %s151, %s152
      %s154 = smul.addr %s153, 8
      %s155 = scalar_lea.vmem %s1, %s154
      %s156 = smul.u32 16, %s34
      %s157 = smul.u32 8, %s35
      %v158 = vld [vmem:[%s139] sm:$0xff]
      %159 = xla_tuple %v158
      %160 = xla_tuple %159
      %v161 = vxor.u32 %v158, 2147483648
      %162 = xla_tuple %v161
      %163 = vst [vmem:[%s155] sm:$0xff] %v161
      %s164 = scalar_lea.vmem %s139, 64
      %v165 = vld [vmem:[%s164] sm:$0xff]
      %166 = xla_tuple %v165
      %167 = xla_tuple %166
      %v168 = vxor.u32 %v165, 2147483648
      %169 = xla_tuple %v168
      %s170 = scalar_lea.vmem %s155, 64
      %171 = vst [vmem:[%s170] sm:$0xff] %v168
      %s172 = scalar_lea.vmem %s139, 128
      %v173 = vld [vmem:[%s172] sm:$0xff]
      %174 = xla_tuple %v173
      %175 = xla_tuple %174
      %v176 = vxor.u32 %v173, 2147483648
      %177 = xla_tuple %v176
      %s178 = scalar_lea.vmem %s155, 128
      %179 = vst [vmem:[%s178] sm:$0xff] %v176
      %s180 = scalar_lea.vmem %s139, 192
      %v181 = vld [vmem:[%s180] sm:$0xff]
      %182 = xla_tuple %v181
      %183 = xla_tuple %182
      %v184 = vxor.u32 %v181, 2147483648
      %185 = xla_tuple %v184
      %s186 = scalar_lea.vmem %s155, 192
      %187 = vst [vmem:[%s186] sm:$0xff] %v184
      %s188 = scalar_lea.vmem %s139, 256
      %v189 = vld [vmem:[%s188] sm:$0xff]
      %190 = xla_tuple %v189
      %191 = xla_tuple %190
      %v192 = vxor.u32 %v189, 2147483648
      %193 = xla_tuple %v192
      %s194 = scalar_lea.vmem %s155, 256
      %195 = vst [vmem:[%s194] sm:$0xff] %v192
      %s196 = scalar_lea.vmem %s139, 320
      %v197 = vld [vmem:[%s196] sm:$0xff]
      %198 = xla_tuple %v197
      %199 = xla_tuple %198
      %v200 = vxor.u32 %v197, 2147483648
      %201 = xla_tuple %v200
      %s202 = scalar_lea.vmem %s155, 320
      %203 = vst [vmem:[%s202] sm:$0xff] %v200
      %s204 = scalar_lea.vmem %s139, 384
      %v205 = vld [vmem:[%s204] sm:$0xff]
      %206 = xla_tuple %v205
      %207 = xla_tuple %206
      %v208 = vxor.u32 %v205, 2147483648
      %209 = xla_tuple %v208
      %s210 = scalar_lea.vmem %s155, 384
      %211 = vst [vmem:[%s210] sm:$0xff] %v208
      %s212 = scalar_lea.vmem %s139, 448
      %v213 = vld [vmem:[%s212] sm:$0xff]
      %214 = xla_tuple %v213
      %215 = xla_tuple %214
      %v216 = vxor.u32 %v213, 2147483648
      %217 = xla_tuple %v216
      %s218 = scalar_lea.vmem %s155, 448
      %219 = vst [vmem:[%s218] sm:$0xff] %v216
      %s220 = scalar_lea.vmem %s139, 512
      %v221 = vld [vmem:[%s220] sm:$0xff]
      %222 = xla_tuple %v221
      %223 = xla_tuple %222
      %v224 = vxor.u32 %v221, 2147483648
      %225 = xla_tuple %v224
      %s226 = scalar_lea.vmem %s155, 512
      %227 = vst [vmem:[%s226] sm:$0xff] %v224
      %s228 = scalar_lea.vmem %s139, 576
      %v229 = vld [vmem:[%s228] sm:$0xff]
      %230 = xla_tuple %v229
      %231 = xla_tuple %230
      %v232 = vxor.u32 %v229, 2147483648
      %233 = xla_tuple %v232
      %s234 = scalar_lea.vmem %s155, 576
      %235 = vst [vmem:[%s234] sm:$0xff] %v232
      %s236 = scalar_lea.vmem %s139, 640
      %v237 = vld [vmem:[%s236] sm:$0xff]
      %238 = xla_tuple %v237
      %239 = xla_tuple %238
      %v240 = vxor.u32 %v237, 2147483648
      %241 = xla_tuple %v240
      %s242 = scalar_lea.vmem %s155, 640
      %243 = vst [vmem:[%s242] sm:$0xff] %v240
      %s244 = scalar_lea.vmem %s139, 704
      %v245 = vld [vmem:[%s244] sm:$0xff]
      %246 = xla_tuple %v245
      %247 = xla_tuple %246
      %v248 = vxor.u32 %v245, 2147483648
      %249 = xla_tuple %v248
      %s250 = scalar_lea.vmem %s155, 704
      %251 = vst [vmem:[%s250] sm:$0xff] %v248
      %s252 = scalar_lea.vmem %s139, 768
      %v253 = vld [vmem:[%s252] sm:$0xff]
      %254 = xla_tuple %v253
      %255 = xla_tuple %254
      %v256 = vxor.u32 %v253, 2147483648
      %257 = xla_tuple %v256
      %s258 = scalar_lea.vmem %s155, 768
      %259 = vst [vmem:[%s258] sm:$0xff] %v256
      %s260 = scalar_lea.vmem %s139, 832
      %v261 = vld [vmem:[%s260] sm:$0xff]
      %262 = xla_tuple %v261
      %263 = xla_tuple %262
      %v264 = vxor.u32 %v261, 2147483648
      %265 = xla_tuple %v264
      %s266 = scalar_lea.vmem %s155, 832
      %267 = vst [vmem:[%s266] sm:$0xff] %v264
      %s268 = scalar_lea.vmem %s139, 896
      %v269 = vld [vmem:[%s268] sm:$0xff]
      %270 = xla_tuple %v269
      %271 = xla_tuple %270
      %v272 = vxor.u32 %v269, 2147483648
      %273 = xla_tuple %v272
      %s274 = scalar_lea.vmem %s155, 896
      %275 = vst [vmem:[%s274] sm:$0xff] %v272
      %s276 = scalar_lea.vmem %s139, 960
      %v277 = vld [vmem:[%s276] sm:$0xff]
      %278 = xla_tuple %v277
      %279 = xla_tuple %278
      %v280 = vxor.u32 %v277, 2147483648
      %281 = xla_tuple %v280
      %s282 = scalar_lea.vmem %s155, 960
      %283 = vst [vmem:[%s282] sm:$0xff] %v280
      %s284 = scalar_lea.vmem %s139, 8
      %v285 = vld [vmem:[%s284] sm:$0xff]
      %286 = xla_tuple %v285
      %287 = xla_tuple %286
      %v288 = vxor.u32 %v285, 2147483648
      %289 = xla_tuple %v288
      %s290 = scalar_lea.vmem %s155, 8
      %291 = vst [vmem:[%s290] sm:$0xff] %v288
      %s292 = scalar_lea.vmem %s139, 72
      %v293 = vld [vmem:[%s292] sm:$0xff]
      %294 = xla_tuple %v293
      %295 = xla_tuple %294
      %v296 = vxor.u32 %v293, 2147483648
      %297 = xla_tuple %v296
      %s298 = scalar_lea.vmem %s155, 72
      %299 = vst [vmem:[%s298] sm:$0xff] %v296
      %s300 = scalar_lea.vmem %s139, 136
      %v301 = vld [vmem:[%s300] sm:$0xff]
      %302 = xla_tuple %v301
      %303 = xla_tuple %302
      %v304 = vxor.u32 %v301, 2147483648
      %305 = xla_tuple %v304
      %s306 = scalar_lea.vmem %s155, 136
      %307 = vst [vmem:[%s306] sm:$0xff] %v304
      %s308 = scalar_lea.vmem %s139, 200
      %v309 = vld [vmem:[%s308] sm:$0xff]
      %310 = xla_tuple %v309
      %311 = xla_tuple %310
      %v312 = vxor.u32 %v309, 2147483648
      %313 = xla_tuple %v312
      %s314 = scalar_lea.vmem %s155, 200
      %315 = vst [vmem:[%s314] sm:$0xff] %v312
      %s316 = scalar_lea.vmem %s139, 264
      %v317 = vld [vmem:[%s316] sm:$0xff]
      %318 = xla_tuple %v317
      %319 = xla_tuple %318
      %v320 = vxor.u32 %v317, 2147483648
      %321 = xla_tuple %v320
      %s322 = scalar_lea.vmem %s155, 264
      %323 = vst [vmem:[%s322] sm:$0xff] %v320
      %s324 = scalar_lea.vmem %s139, 328
      %v325 = vld [vmem:[%s324] sm:$0xff]
      %326 = xla_tuple %v325
      %327 = xla_tuple %326
      %v328 = vxor.u32 %v325, 2147483648
      %329 = xla_tuple %v328
      %s330 = scalar_lea.vmem %s155, 328
      %331 = vst [vmem:[%s330] sm:$0xff] %v328
      %s332 = scalar_lea.vmem %s139, 392
      %v333 = vld [vmem:[%s332] sm:$0xff]
      %334 = xla_tuple %v333
      %335 = xla_tuple %334
      %v336 = vxor.u32 %v333, 2147483648
      %337 = xla_tuple %v336
      %s338 = scalar_lea.vmem %s155, 392
      %339 = vst [vmem:[%s338] sm:$0xff] %v336
      %s340 = scalar_lea.vmem %s139, 456
      %v341 = vld [vmem:[%s340] sm:$0xff]
      %342 = xla_tuple %v341
      %343 = xla_tuple %342
      %v344 = vxor.u32 %v341, 2147483648
      %345 = xla_tuple %v344
      %s346 = scalar_lea.vmem %s155, 456
      %347 = vst [vmem:[%s346] sm:$0xff] %v344
      %s348 = scalar_lea.vmem %s139, 520
      %v349 = vld [vmem:[%s348] sm:$0xff]
      %350 = xla_tuple %v349
      %351 = xla_tuple %350
      %v352 = vxor.u32 %v349, 2147483648
      %353 = xla_tuple %v352
      %s354 = scalar_lea.vmem %s155, 520
      %355 = vst [vmem:[%s354] sm:$0xff] %v352
      %s356 = scalar_lea.vmem %s139, 584
      %v357 = vld [vmem:[%s356] sm:$0xff]
      %358 = xla_tuple %v357
      %359 = xla_tuple %358
      %v360 = vxor.u32 %v357, 2147483648
      %361 = xla_tuple %v360
      %s362 = scalar_lea.vmem %s155, 584
      %363 = vst [vmem:[%s362] sm:$0xff] %v360
      %s364 = scalar_lea.vmem %s139, 648
      %v365 = vld [vmem:[%s364] sm:$0xff]
      %366 = xla_tuple %v365
      %367 = xla_tuple %366
      %v368 = vxor.u32 %v365, 2147483648
      %369 = xla_tuple %v368
      %s370 = scalar_lea.vmem %s155, 648
      %371 = vst [vmem:[%s370] sm:$0xff] %v368
      %s372 = scalar_lea.vmem %s139, 712
      %v373 = vld [vmem:[%s372] sm:$0xff]
      %374 = xla_tuple %v373
      %375 = xla_tuple %374
      %v376 = vxor.u32 %v373, 2147483648
      %377 = xla_tuple %v376
      %s378 = scalar_lea.vmem %s155, 712
      %379 = vst [vmem:[%s378] sm:$0xff] %v376
      %s380 = scalar_lea.vmem %s139, 776
      %v381 = vld [vmem:[%s380] sm:$0xff]
      %382 = xla_tuple %v381
      %383 = xla_tuple %382
      %v384 = vxor.u32 %v381, 2147483648
      %385 = xla_tuple %v384
      %s386 = scalar_lea.vmem %s155, 776
      %387 = vst [vmem:[%s386] sm:$0xff] %v384
      %s388 = scalar_lea.vmem %s139, 840
      %v389 = vld [vmem:[%s388] sm:$0xff]
      %390 = xla_tuple %v389
      %391 = xla_tuple %390
      %v392 = vxor.u32 %v389, 2147483648
      %393 = xla_tuple %v392
      %s394 = scalar_lea.vmem %s155, 840
      %395 = vst [vmem:[%s394] sm:$0xff] %v392
      %s396 = scalar_lea.vmem %s139, 904
      %v397 = vld [vmem:[%s396] sm:$0xff]
      %398 = xla_tuple %v397
      %399 = xla_tuple %398
      %v400 = vxor.u32 %v397, 2147483648
      %401 = xla_tuple %v400
      %s402 = scalar_lea.vmem %s155, 904
      %403 = vst [vmem:[%s402] sm:$0xff] %v400
      %s404 = scalar_lea.vmem %s139, 968
      %v405 = vld [vmem:[%s404] sm:$0xff]
      %406 = xla_tuple %v405
      %407 = xla_tuple %406
      %v408 = vxor.u32 %v405, 2147483648
      %409 = xla_tuple %v408
      %s410 = scalar_lea.vmem %s155, 968
      %411 = vst [vmem:[%s410] sm:$0xff] %v408
      %s412 = scalar_lea.vmem %s139, 16
      %v413 = vld [vmem:[%s412] sm:$0xff]
      %414 = xla_tuple %v413
      %415 = xla_tuple %414
      %v416 = vxor.u32 %v413, 2147483648
      %417 = xla_tuple %v416
      %s418 = scalar_lea.vmem %s155, 16
      %419 = vst [vmem:[%s418] sm:$0xff] %v416
      %s420 = scalar_lea.vmem %s139, 80
      %v421 = vld [vmem:[%s420] sm:$0xff]
      %422 = xla_tuple %v421
      %423 = xla_tuple %422
      %v424 = vxor.u32 %v421, 2147483648
      %425 = xla_tuple %v424
      %s426 = scalar_lea.vmem %s155, 80
      %427 = vst [vmem:[%s426] sm:$0xff] %v424
      %s428 = scalar_lea.vmem %s139, 144
      %v429 = vld [vmem:[%s428] sm:$0xff]
      %430 = xla_tuple %v429
      %431 = xla_tuple %430
      %v432 = vxor.u32 %v429, 2147483648
      %433 = xla_tuple %v432
      %s434 = scalar_lea.vmem %s155, 144
      %435 = vst [vmem:[%s434] sm:$0xff] %v432
      %s436 = scalar_lea.vmem %s139, 208
      %v437 = vld [vmem:[%s436] sm:$0xff]
      %438 = xla_tuple %v437
      %439 = xla_tuple %438
      %v440 = vxor.u32 %v437, 2147483648
      %441 = xla_tuple %v440
      %s442 = scalar_lea.vmem %s155, 208
      %443 = vst [vmem:[%s442] sm:$0xff] %v440
      %s444 = scalar_lea.vmem %s139, 272
      %v445 = vld [vmem:[%s444] sm:$0xff]
      %446 = xla_tuple %v445
      %447 = xla_tuple %446
      %v448 = vxor.u32 %v445, 2147483648
      %449 = xla_tuple %v448
      %s450 = scalar_lea.vmem %s155, 272
      %451 = vst [vmem:[%s450] sm:$0xff] %v448
      %s452 = scalar_lea.vmem %s139, 336
      %v453 = vld [vmem:[%s452] sm:$0xff]
      %454 = xla_tuple %v453
      %455 = xla_tuple %454
      %v456 = vxor.u32 %v453, 2147483648
      %457 = xla_tuple %v456
      %s458 = scalar_lea.vmem %s155, 336
      %459 = vst [vmem:[%s458] sm:$0xff] %v456
      %s460 = scalar_lea.vmem %s139, 400
      %v461 = vld [vmem:[%s460] sm:$0xff]
      %462 = xla_tuple %v461
      %463 = xla_tuple %462
      %v464 = vxor.u32 %v461, 2147483648
      %465 = xla_tuple %v464
      %s466 = scalar_lea.vmem %s155, 400
      %467 = vst [vmem:[%s466] sm:$0xff] %v464
      %s468 = scalar_lea.vmem %s139, 464
      %v469 = vld [vmem:[%s468] sm:$0xff]
      %470 = xla_tuple %v469
      %471 = xla_tuple %470
      %v472 = vxor.u32 %v469, 2147483648
      %473 = xla_tuple %v472
      %s474 = scalar_lea.vmem %s155, 464
      %475 = vst [vmem:[%s474] sm:$0xff] %v472
      %s476 = scalar_lea.vmem %s139, 528
      %v477 = vld [vmem:[%s476] sm:$0xff]
      %478 = xla_tuple %v477
      %479 = xla_tuple %478
      %v480 = vxor.u32 %v477, 2147483648
      %481 = xla_tuple %v480
      %s482 = scalar_lea.vmem %s155, 528
      %483 = vst [vmem:[%s482] sm:$0xff] %v480
      %s484 = scalar_lea.vmem %s139, 592
      %v485 = vld [vmem:[%s484] sm:$0xff]
      %486 = xla_tuple %v485
      %487 = xla_tuple %486
      %v488 = vxor.u32 %v485, 2147483648
      %489 = xla_tuple %v488
      %s490 = scalar_lea.vmem %s155, 592
      %491 = vst [vmem:[%s490] sm:$0xff] %v488
      %s492 = scalar_lea.vmem %s139, 656
      %v493 = vld [vmem:[%s492] sm:$0xff]
      %494 = xla_tuple %v493
      %495 = xla_tuple %494
      %v496 = vxor.u32 %v493, 2147483648
      %497 = xla_tuple %v496
      %s498 = scalar_lea.vmem %s155, 656
      %499 = vst [vmem:[%s498] sm:$0xff] %v496
      %s500 = scalar_lea.vmem %s139, 720
      %v501 = vld [vmem:[%s500] sm:$0xff]
      %502 = xla_tuple %v501
      %503 = xla_tuple %502
      %v504 = vxor.u32 %v501, 2147483648
      %505 = xla_tuple %v504
      %s506 = scalar_lea.vmem %s155, 720
      %507 = vst [vmem:[%s506] sm:$0xff] %v504
      %s508 = scalar_lea.vmem %s139, 784
      %v509 = vld [vmem:[%s508] sm:$0xff]
      %510 = xla_tuple %v509
      %511 = xla_tuple %510
      %v512 = vxor.u32 %v509, 2147483648
      %513 = xla_tuple %v512
      %s514 = scalar_lea.vmem %s155, 784
      %515 = vst [vmem:[%s514] sm:$0xff] %v512
      %s516 = scalar_lea.vmem %s139, 848
      %v517 = vld [vmem:[%s516] sm:$0xff]
      %518 = xla_tuple %v517
      %519 = xla_tuple %518
      %v520 = vxor.u32 %v517, 2147483648
      %521 = xla_tuple %v520
      %s522 = scalar_lea.vmem %s155, 848
      %523 = vst [vmem:[%s522] sm:$0xff] %v520
      %s524 = scalar_lea.vmem %s139, 912
      %v525 = vld [vmem:[%s524] sm:$0xff]
      %526 = xla_tuple %v525
      %527 = xla_tuple %526
      %v528 = vxor.u32 %v525, 2147483648
      %529 = xla_tuple %v528
      %s530 = scalar_lea.vmem %s155, 912
      %531 = vst [vmem:[%s530] sm:$0xff] %v528
      %s532 = scalar_lea.vmem %s139, 976
      %v533 = vld [vmem:[%s532] sm:$0xff]
      %534 = xla_tuple %v533
      %535 = xla_tuple %534
      %v536 = vxor.u32 %v533, 2147483648
      %537 = xla_tuple %v536
      %s538 = scalar_lea.vmem %s155, 976
      %539 = vst [vmem:[%s538] sm:$0xff] %v536
      %s540 = scalar_lea.vmem %s139, 24
      %v541 = vld [vmem:[%s540] sm:$0xff]
      %542 = xla_tuple %v541
      %543 = xla_tuple %542
      %v544 = vxor.u32 %v541, 2147483648
      %545 = xla_tuple %v544
      %s546 = scalar_lea.vmem %s155, 24
      %547 = vst [vmem:[%s546] sm:$0xff] %v544
      %s548 = scalar_lea.vmem %s139, 88
      %v549 = vld [vmem:[%s548] sm:$0xff]
      %550 = xla_tuple %v549
      %551 = xla_tuple %550
      %v552 = vxor.u32 %v549, 2147483648
      %553 = xla_tuple %v552
      %s554 = scalar_lea.vmem %s155, 88
      %555 = vst [vmem:[%s554] sm:$0xff] %v552
      %s556 = scalar_lea.vmem %s139, 152
      %v557 = vld [vmem:[%s556] sm:$0xff]
      %558 = xla_tuple %v557
      %559 = xla_tuple %558
      %v560 = vxor.u32 %v557, 2147483648
      %561 = xla_tuple %v560
      %s562 = scalar_lea.vmem %s155, 152
      %563 = vst [vmem:[%s562] sm:$0xff] %v560
      %s564 = scalar_lea.vmem %s139, 216
      %v565 = vld [vmem:[%s564] sm:$0xff]
      %566 = xla_tuple %v565
      %567 = xla_tuple %566
      %v568 = vxor.u32 %v565, 2147483648
      %569 = xla_tuple %v568
      %s570 = scalar_lea.vmem %s155, 216
      %571 = vst [vmem:[%s570] sm:$0xff] %v568
      %s572 = scalar_lea.vmem %s139, 280
      %v573 = vld [vmem:[%s572] sm:$0xff]
      %574 = xla_tuple %v573
      %575 = xla_tuple %574
      %v576 = vxor.u32 %v573, 2147483648
      %577 = xla_tuple %v576
      %s578 = scalar_lea.vmem %s155, 280
      %579 = vst [vmem:[%s578] sm:$0xff] %v576
      %s580 = scalar_lea.vmem %s139, 344
      %v581 = vld [vmem:[%s580] sm:$0xff]
      %582 = xla_tuple %v581
      %583 = xla_tuple %582
      %v584 = vxor.u32 %v581, 2147483648
      %585 = xla_tuple %v584
      %s586 = scalar_lea.vmem %s155, 344
      %587 = vst [vmem:[%s586] sm:$0xff] %v584
      %s588 = scalar_lea.vmem %s139, 408
      %v589 = vld [vmem:[%s588] sm:$0xff]
      %590 = xla_tuple %v589
      %591 = xla_tuple %590
      %v592 = vxor.u32 %v589, 2147483648
      %593 = xla_tuple %v592
      %s594 = scalar_lea.vmem %s155, 408
      %595 = vst [vmem:[%s594] sm:$0xff] %v592
      %s596 = scalar_lea.vmem %s139, 472
      %v597 = vld [vmem:[%s596] sm:$0xff]
      %598 = xla_tuple %v597
      %599 = xla_tuple %598
      %v600 = vxor.u32 %v597, 2147483648
      %601 = xla_tuple %v600
      %s602 = scalar_lea.vmem %s155, 472
      %603 = vst [vmem:[%s602] sm:$0xff] %v600
      %s604 = scalar_lea.vmem %s139, 536
      %v605 = vld [vmem:[%s604] sm:$0xff]
      %606 = xla_tuple %v605
      %607 = xla_tuple %606
      %v608 = vxor.u32 %v605, 2147483648
      %609 = xla_tuple %v608
      %s610 = scalar_lea.vmem %s155, 536
      %611 = vst [vmem:[%s610] sm:$0xff] %v608
      %s612 = scalar_lea.vmem %s139, 600
      %v613 = vld [vmem:[%s612] sm:$0xff]
      %614 = xla_tuple %v613
      %615 = xla_tuple %614
      %v616 = vxor.u32 %v613, 2147483648
      %617 = xla_tuple %v616
      %s618 = scalar_lea.vmem %s155, 600
      %619 = vst [vmem:[%s618] sm:$0xff] %v616
      %s620 = scalar_lea.vmem %s139, 664
      %v621 = vld [vmem:[%s620] sm:$0xff]
      %622 = xla_tuple %v621
      %623 = xla_tuple %622
      %v624 = vxor.u32 %v621, 2147483648
      %625 = xla_tuple %v624
      %s626 = scalar_lea.vmem %s155, 664
      %627 = vst [vmem:[%s626] sm:$0xff] %v624
      %s628 = scalar_lea.vmem %s139, 728
      %v629 = vld [vmem:[%s628] sm:$0xff]
      %630 = xla_tuple %v629
      %631 = xla_tuple %630
      %v632 = vxor.u32 %v629, 2147483648
      %633 = xla_tuple %v632
      %s634 = scalar_lea.vmem %s155, 728
      %635 = vst [vmem:[%s634] sm:$0xff] %v632
      %s636 = scalar_lea.vmem %s139, 792
      %v637 = vld [vmem:[%s636] sm:$0xff]
      %638 = xla_tuple %v637
      %639 = xla_tuple %638
      %v640 = vxor.u32 %v637, 2147483648
      %641 = xla_tuple %v640
      %s642 = scalar_lea.vmem %s155, 792
      %643 = vst [vmem:[%s642] sm:$0xff] %v640
      %s644 = scalar_lea.vmem %s139, 856
      %v645 = vld [vmem:[%s644] sm:$0xff]
      %646 = xla_tuple %v645
      %647 = xla_tuple %646
      %v648 = vxor.u32 %v645, 2147483648
      %649 = xla_tuple %v648
      %s650 = scalar_lea.vmem %s155, 856
      %651 = vst [vmem:[%s650] sm:$0xff] %v648
      %s652 = scalar_lea.vmem %s139, 920
      %v653 = vld [vmem:[%s652] sm:$0xff]
      %654 = xla_tuple %v653
      %655 = xla_tuple %654
      %v656 = vxor.u32 %v653, 2147483648
      %657 = xla_tuple %v656
      %s658 = scalar_lea.vmem %s155, 920
      %659 = vst [vmem:[%s658] sm:$0xff] %v656
      %s660 = scalar_lea.vmem %s139, 984
      %v661 = vld [vmem:[%s660] sm:$0xff]
      %662 = xla_tuple %v661
      %663 = xla_tuple %662
      %v664 = vxor.u32 %v661, 2147483648
      %665 = xla_tuple %v664
      %s666 = scalar_lea.vmem %s155, 984
      %667 = vst [vmem:[%s666] sm:$0xff] %v664
      %s668 = scalar_lea.vmem %s139, 32
      %v669 = vld [vmem:[%s668] sm:$0xff]
      %670 = xla_tuple %v669
      %671 = xla_tuple %670
      %v672 = vxor.u32 %v669, 2147483648
      %673 = xla_tuple %v672
      %s674 = scalar_lea.vmem %s155, 32
      %675 = vst [vmem:[%s674] sm:$0xff] %v672
      %s676 = scalar_lea.vmem %s139, 96
      %v677 = vld [vmem:[%s676] sm:$0xff]
      %678 = xla_tuple %v677
      %679 = xla_tuple %678
      %v680 = vxor.u32 %v677, 2147483648
      %681 = xla_tuple %v680
      %s682 = scalar_lea.vmem %s155, 96
      %683 = vst [vmem:[%s682] sm:$0xff] %v680
      %s684 = scalar_lea.vmem %s139, 160
      %v685 = vld [vmem:[%s684] sm:$0xff]
      %686 = xla_tuple %v685
      %687 = xla_tuple %686
      %v688 = vxor.u32 %v685, 2147483648
      %689 = xla_tuple %v688
      %s690 = scalar_lea.vmem %s155, 160
      %691 = vst [vmem:[%s690] sm:$0xff] %v688
      %s692 = scalar_lea.vmem %s139, 224
      %v693 = vld [vmem:[%s692] sm:$0xff]
      %694 = xla_tuple %v693
      %695 = xla_tuple %694
      %v696 = vxor.u32 %v693, 2147483648
      %697 = xla_tuple %v696
      %s698 = scalar_lea.vmem %s155, 224
      %699 = vst [vmem:[%s698] sm:$0xff] %v696
      %s700 = scalar_lea.vmem %s139, 288
      %v701 = vld [vmem:[%s700] sm:$0xff]
      %702 = xla_tuple %v701
      %703 = xla_tuple %702
      %v704 = vxor.u32 %v701, 2147483648
      %705 = xla_tuple %v704
      %s706 = scalar_lea.vmem %s155, 288
      %707 = vst [vmem:[%s706] sm:$0xff] %v704
      %s708 = scalar_lea.vmem %s139, 352
      %v709 = vld [vmem:[%s708] sm:$0xff]
      %710 = xla_tuple %v709
      %711 = xla_tuple %710
      %v712 = vxor.u32 %v709, 2147483648
      %713 = xla_tuple %v712
      %s714 = scalar_lea.vmem %s155, 352
      %715 = vst [vmem:[%s714] sm:$0xff] %v712
      %s716 = scalar_lea.vmem %s139, 416
      %v717 = vld [vmem:[%s716] sm:$0xff]
      %718 = xla_tuple %v717
      %719 = xla_tuple %718
      %v720 = vxor.u32 %v717, 2147483648
      %721 = xla_tuple %v720
      %s722 = scalar_lea.vmem %s155, 416
      %723 = vst [vmem:[%s722] sm:$0xff] %v720
      %s724 = scalar_lea.vmem %s139, 480
      %v725 = vld [vmem:[%s724] sm:$0xff]
      %726 = xla_tuple %v725
      %727 = xla_tuple %726
      %v728 = vxor.u32 %v725, 2147483648
      %729 = xla_tuple %v728
      %s730 = scalar_lea.vmem %s155, 480
      %731 = vst [vmem:[%s730] sm:$0xff] %v728
      %s732 = scalar_lea.vmem %s139, 544
      %v733 = vld [vmem:[%s732] sm:$0xff]
      %734 = xla_tuple %v733
      %735 = xla_tuple %734
      %v736 = vxor.u32 %v733, 2147483648
      %737 = xla_tuple %v736
      %s738 = scalar_lea.vmem %s155, 544
      %739 = vst [vmem:[%s738] sm:$0xff] %v736
      %s740 = scalar_lea.vmem %s139, 608
      %v741 = vld [vmem:[%s740] sm:$0xff]
      %742 = xla_tuple %v741
      %743 = xla_tuple %742
      %v744 = vxor.u32 %v741, 2147483648
      %745 = xla_tuple %v744
      %s746 = scalar_lea.vmem %s155, 608
      %747 = vst [vmem:[%s746] sm:$0xff] %v744
      %s748 = scalar_lea.vmem %s139, 672
      %v749 = vld [vmem:[%s748] sm:$0xff]
      %750 = xla_tuple %v749
      %751 = xla_tuple %750
      %v752 = vxor.u32 %v749, 2147483648
      %753 = xla_tuple %v752
      %s754 = scalar_lea.vmem %s155, 672
      %755 = vst [vmem:[%s754] sm:$0xff] %v752
      %s756 = scalar_lea.vmem %s139, 736
      %v757 = vld [vmem:[%s756] sm:$0xff]
      %758 = xla_tuple %v757
      %759 = xla_tuple %758
      %v760 = vxor.u32 %v757, 2147483648
      %761 = xla_tuple %v760
      %s762 = scalar_lea.vmem %s155, 736
      %763 = vst [vmem:[%s762] sm:$0xff] %v760
      %s764 = scalar_lea.vmem %s139, 800
      %v765 = vld [vmem:[%s764] sm:$0xff]
      %766 = xla_tuple %v765
      %767 = xla_tuple %766
      %v768 = vxor.u32 %v765, 2147483648
      %769 = xla_tuple %v768
      %s770 = scalar_lea.vmem %s155, 800
      %771 = vst [vmem:[%s770] sm:$0xff] %v768
      %s772 = scalar_lea.vmem %s139, 864
      %v773 = vld [vmem:[%s772] sm:$0xff]
      %774 = xla_tuple %v773
      %775 = xla_tuple %774
      %v776 = vxor.u32 %v773, 2147483648
      %777 = xla_tuple %v776
      %s778 = scalar_lea.vmem %s155, 864
      %779 = vst [vmem:[%s778] sm:$0xff] %v776
      %s780 = scalar_lea.vmem %s139, 928
      %v781 = vld [vmem:[%s780] sm:$0xff]
      %782 = xla_tuple %v781
      %783 = xla_tuple %782
      %v784 = vxor.u32 %v781, 2147483648
      %785 = xla_tuple %v784
      %s786 = scalar_lea.vmem %s155, 928
      %787 = vst [vmem:[%s786] sm:$0xff] %v784
      %s788 = scalar_lea.vmem %s139, 992
      %v789 = vld [vmem:[%s788] sm:$0xff]
      %790 = xla_tuple %v789
      %791 = xla_tuple %790
      %v792 = vxor.u32 %v789, 2147483648
      %793 = xla_tuple %v792
      %s794 = scalar_lea.vmem %s155, 992
      %795 = vst [vmem:[%s794] sm:$0xff] %v792
      %s796 = scalar_lea.vmem %s139, 40
      %v797 = vld [vmem:[%s796] sm:$0xff]
      %798 = xla_tuple %v797
      %799 = xla_tuple %798
      %v800 = vxor.u32 %v797, 2147483648
      %801 = xla_tuple %v800
      %s802 = scalar_lea.vmem %s155, 40
      %803 = vst [vmem:[%s802] sm:$0xff] %v800
      %s804 = scalar_lea.vmem %s139, 104
      %v805 = vld [vmem:[%s804] sm:$0xff]
      %806 = xla_tuple %v805
      %807 = xla_tuple %806
      %v808 = vxor.u32 %v805, 2147483648
      %809 = xla_tuple %v808
      %s810 = scalar_lea.vmem %s155, 104
      %811 = vst [vmem:[%s810] sm:$0xff] %v808
      %s812 = scalar_lea.vmem %s139, 168
      %v813 = vld [vmem:[%s812] sm:$0xff]
      %814 = xla_tuple %v813
      %815 = xla_tuple %814
      %v816 = vxor.u32 %v813, 2147483648
      %817 = xla_tuple %v816
      %s818 = scalar_lea.vmem %s155, 168
      %819 = vst [vmem:[%s818] sm:$0xff] %v816
      %s820 = scalar_lea.vmem %s139, 232
      %v821 = vld [vmem:[%s820] sm:$0xff]
      %822 = xla_tuple %v821
      %823 = xla_tuple %822
      %v824 = vxor.u32 %v821, 2147483648
      %825 = xla_tuple %v824
      %s826 = scalar_lea.vmem %s155, 232
      %827 = vst [vmem:[%s826] sm:$0xff] %v824
      %s828 = scalar_lea.vmem %s139, 296
      %v829 = vld [vmem:[%s828] sm:$0xff]
      %830 = xla_tuple %v829
      %831 = xla_tuple %830
      %v832 = vxor.u32 %v829, 2147483648
      %833 = xla_tuple %v832
      %s834 = scalar_lea.vmem %s155, 296
      %835 = vst [vmem:[%s834] sm:$0xff] %v832
      %s836 = scalar_lea.vmem %s139, 360
      %v837 = vld [vmem:[%s836] sm:$0xff]
      %838 = xla_tuple %v837
      %839 = xla_tuple %838
      %v840 = vxor.u32 %v837, 2147483648
      %841 = xla_tuple %v840
      %s842 = scalar_lea.vmem %s155, 360
      %843 = vst [vmem:[%s842] sm:$0xff] %v840
      %s844 = scalar_lea.vmem %s139, 424
      %v845 = vld [vmem:[%s844] sm:$0xff]
      %846 = xla_tuple %v845
      %847 = xla_tuple %846
      %v848 = vxor.u32 %v845, 2147483648
      %849 = xla_tuple %v848
      %s850 = scalar_lea.vmem %s155, 424
      %851 = vst [vmem:[%s850] sm:$0xff] %v848
      %s852 = scalar_lea.vmem %s139, 488
      %v853 = vld [vmem:[%s852] sm:$0xff]
      %854 = xla_tuple %v853
      %855 = xla_tuple %854
      %v856 = vxor.u32 %v853, 2147483648
      %857 = xla_tuple %v856
      %s858 = scalar_lea.vmem %s155, 488
      %859 = vst [vmem:[%s858] sm:$0xff] %v856
      %s860 = scalar_lea.vmem %s139, 552
      %v861 = vld [vmem:[%s860] sm:$0xff]
      %862 = xla_tuple %v861
      %863 = xla_tuple %862
      %v864 = vxor.u32 %v861, 2147483648
      %865 = xla_tuple %v864
      %s866 = scalar_lea.vmem %s155, 552
      %867 = vst [vmem:[%s866] sm:$0xff] %v864
      %s868 = scalar_lea.vmem %s139, 616
      %v869 = vld [vmem:[%s868] sm:$0xff]
      %870 = xla_tuple %v869
      %871 = xla_tuple %870
      %v872 = vxor.u32 %v869, 2147483648
      %873 = xla_tuple %v872
      %s874 = scalar_lea.vmem %s155, 616
      %875 = vst [vmem:[%s874] sm:$0xff] %v872
      %s876 = scalar_lea.vmem %s139, 680
      %v877 = vld [vmem:[%s876] sm:$0xff]
      %878 = xla_tuple %v877
      %879 = xla_tuple %878
      %v880 = vxor.u32 %v877, 2147483648
      %881 = xla_tuple %v880
      %s882 = scalar_lea.vmem %s155, 680
      %883 = vst [vmem:[%s882] sm:$0xff] %v880
      %s884 = scalar_lea.vmem %s139, 744
      %v885 = vld [vmem:[%s884] sm:$0xff]
      %886 = xla_tuple %v885
      %887 = xla_tuple %886
      %v888 = vxor.u32 %v885, 2147483648
      %889 = xla_tuple %v888
      %s890 = scalar_lea.vmem %s155, 744
      %891 = vst [vmem:[%s890] sm:$0xff] %v888
      %s892 = scalar_lea.vmem %s139, 808
      %v893 = vld [vmem:[%s892] sm:$0xff]
      %894 = xla_tuple %v893
      %895 = xla_tuple %894
      %v896 = vxor.u32 %v893, 2147483648
      %897 = xla_tuple %v896
      %s898 = scalar_lea.vmem %s155, 808
      %899 = vst [vmem:[%s898] sm:$0xff] %v896
      %s900 = scalar_lea.vmem %s139, 872
      %v901 = vld [vmem:[%s900] sm:$0xff]
      %902 = xla_tuple %v901
      %903 = xla_tuple %902
      %v904 = vxor.u32 %v901, 2147483648
      %905 = xla_tuple %v904
      %s906 = scalar_lea.vmem %s155, 872
      %907 = vst [vmem:[%s906] sm:$0xff] %v904
      %s908 = scalar_lea.vmem %s139, 936
      %v909 = vld [vmem:[%s908] sm:$0xff]
      %910 = xla_tuple %v909
      %911 = xla_tuple %910
      %v912 = vxor.u32 %v909, 2147483648
      %913 = xla_tuple %v912
      %s914 = scalar_lea.vmem %s155, 936
      %915 = vst [vmem:[%s914] sm:$0xff] %v912
      %s916 = scalar_lea.vmem %s139, 1000
      %v917 = vld [vmem:[%s916] sm:$0xff]
      %918 = xla_tuple %v917
      %919 = xla_tuple %918
      %v920 = vxor.u32 %v917, 2147483648
      %921 = xla_tuple %v920
      %s922 = scalar_lea.vmem %s155, 1000
      %923 = vst [vmem:[%s922] sm:$0xff] %v920
      %s924 = scalar_lea.vmem %s139, 48
      %v925 = vld [vmem:[%s924] sm:$0xff]
      %926 = xla_tuple %v925
      %927 = xla_tuple %926
      %v928 = vxor.u32 %v925, 2147483648
      %929 = xla_tuple %v928
      %s930 = scalar_lea.vmem %s155, 48
      %931 = vst [vmem:[%s930] sm:$0xff] %v928
      %s932 = scalar_lea.vmem %s139, 112
      %v933 = vld [vmem:[%s932] sm:$0xff]
      %934 = xla_tuple %v933
      %935 = xla_tuple %934
      %v936 = vxor.u32 %v933, 2147483648
      %937 = xla_tuple %v936
      %s938 = scalar_lea.vmem %s155, 112
      %939 = vst [vmem:[%s938] sm:$0xff] %v936
      %s940 = scalar_lea.vmem %s139, 176
      %v941 = vld [vmem:[%s940] sm:$0xff]
      %942 = xla_tuple %v941
      %943 = xla_tuple %942
      %v944 = vxor.u32 %v941, 2147483648
      %945 = xla_tuple %v944
      %s946 = scalar_lea.vmem %s155, 176
      %947 = vst [vmem:[%s946] sm:$0xff] %v944
      %s948 = scalar_lea.vmem %s139, 240
      %v949 = vld [vmem:[%s948] sm:$0xff]
      %950 = xla_tuple %v949
      %951 = xla_tuple %950
      %v952 = vxor.u32 %v949, 2147483648
      %953 = xla_tuple %v952
      %s954 = scalar_lea.vmem %s155, 240
      %955 = vst [vmem:[%s954] sm:$0xff] %v952
      %s956 = scalar_lea.vmem %s139, 304
      %v957 = vld [vmem:[%s956] sm:$0xff]
      %958 = xla_tuple %v957
      %959 = xla_tuple %958
      %v960 = vxor.u32 %v957, 2147483648
      %961 = xla_tuple %v960
      %s962 = scalar_lea.vmem %s155, 304
      %963 = vst [vmem:[%s962] sm:$0xff] %v960
      %s964 = scalar_lea.vmem %s139, 368
      %v965 = vld [vmem:[%s964] sm:$0xff]
      %966 = xla_tuple %v965
      %967 = xla_tuple %966
      %v968 = vxor.u32 %v965, 2147483648
      %969 = xla_tuple %v968
      %s970 = scalar_lea.vmem %s155, 368
      %971 = vst [vmem:[%s970] sm:$0xff] %v968
      %s972 = scalar_lea.vmem %s139, 432
      %v973 = vld [vmem:[%s972] sm:$0xff]
      %974 = xla_tuple %v973
      %975 = xla_tuple %974
      %v976 = vxor.u32 %v973, 2147483648
      %977 = xla_tuple %v976
      %s978 = scalar_lea.vmem %s155, 432
      %979 = vst [vmem:[%s978] sm:$0xff] %v976
      %s980 = scalar_lea.vmem %s139, 496
      %v981 = vld [vmem:[%s980] sm:$0xff]
      %982 = xla_tuple %v981
      %983 = xla_tuple %982
      %v984 = vxor.u32 %v981, 2147483648
      %985 = xla_tuple %v984
      %s986 = scalar_lea.vmem %s155, 496
      %987 = vst [vmem:[%s986] sm:$0xff] %v984
      %s988 = scalar_lea.vmem %s139, 560
      %v989 = vld [vmem:[%s988] sm:$0xff]
      %990 = xla_tuple %v989
      %991 = xla_tuple %990
      %v992 = vxor.u32 %v989, 2147483648
      %993 = xla_tuple %v992
      %s994 = scalar_lea.vmem %s155, 560
      %995 = vst [vmem:[%s994] sm:$0xff] %v992
      %s996 = scalar_lea.vmem %s139, 624
      %v997 = vld [vmem:[%s996] sm:$0xff]
      %998 = xla_tuple %v997
      %999 = xla_tuple %998
      %v1000 = vxor.u32 %v997, 2147483648
      %1001 = xla_tuple %v1000
      %s1002 = scalar_lea.vmem %s155, 624
      %1003 = vst [vmem:[%s1002] sm:$0xff] %v1000
      %s1004 = scalar_lea.vmem %s139, 688
      %v1005 = vld [vmem:[%s1004] sm:$0xff]
      %1006 = xla_tuple %v1005
      %1007 = xla_tuple %1006
      %v1008 = vxor.u32 %v1005, 2147483648
      %1009 = xla_tuple %v1008
      %s1010 = scalar_lea.vmem %s155, 688
      %1011 = vst [vmem:[%s1010] sm:$0xff] %v1008
      %s1012 = scalar_lea.vmem %s139, 752
      %v1013 = vld [vmem:[%s1012] sm:$0xff]
      %1014 = xla_tuple %v1013
      %1015 = xla_tuple %1014
      %v1016 = vxor.u32 %v1013, 2147483648
      %1017 = xla_tuple %v1016
      %s1018 = scalar_lea.vmem %s155, 752
      %1019 = vst [vmem:[%s1018] sm:$0xff] %v1016
      %s1020 = scalar_lea.vmem %s139, 816
      %v1021 = vld [vmem:[%s1020] sm:$0xff]
      %1022 = xla_tuple %v1021
      %1023 = xla_tuple %1022
      %v1024 = vxor.u32 %v1021, 2147483648
      %1025 = xla_tuple %v1024
      %s1026 = scalar_lea.vmem %s155, 816
      %1027 = vst [vmem:[%s1026] sm:$0xff] %v1024
      %s1028 = scalar_lea.vmem %s139, 880
      %v1029 = vld [vmem:[%s1028] sm:$0xff]
      %1030 = xla_tuple %v1029
      %1031 = xla_tuple %1030
      %v1032 = vxor.u32 %v1029, 2147483648
      %1033 = xla_tuple %v1032
      %s1034 = scalar_lea.vmem %s155, 880
      %1035 = vst [vmem:[%s1034] sm:$0xff] %v1032
      %s1036 = scalar_lea.vmem %s139, 944
      %v1037 = vld [vmem:[%s1036] sm:$0xff]
      %1038 = xla_tuple %v1037
      %1039 = xla_tuple %1038
      %v1040 = vxor.u32 %v1037, 2147483648
      %1041 = xla_tuple %v1040
      %s1042 = scalar_lea.vmem %s155, 944
      %1043 = vst [vmem:[%s1042] sm:$0xff] %v1040
      %s1044 = scalar_lea.vmem %s139, 1008
      %v1045 = vld [vmem:[%s1044] sm:$0xff]
      %1046 = xla_tuple %v1045
      %1047 = xla_tuple %1046
      %v1048 = vxor.u32 %v1045, 2147483648
      %1049 = xla_tuple %v1048
      %s1050 = scalar_lea.vmem %s155, 1008
      %1051 = vst [vmem:[%s1050] sm:$0xff] %v1048
      %s1052 = scalar_lea.vmem %s139, 56
      %v1053 = vld [vmem:[%s1052] sm:$0xff]
      %1054 = xla_tuple %v1053
      %1055 = xla_tuple %1054
      %v1056 = vxor.u32 %v1053, 2147483648
      %1057 = xla_tuple %v1056
      %s1058 = scalar_lea.vmem %s155, 56
      %1059 = vst [vmem:[%s1058] sm:$0xff] %v1056
      %s1060 = scalar_lea.vmem %s139, 120
      %v1061 = vld [vmem:[%s1060] sm:$0xff]
      %1062 = xla_tuple %v1061
      %1063 = xla_tuple %1062
      %v1064 = vxor.u32 %v1061, 2147483648
      %1065 = xla_tuple %v1064
      %s1066 = scalar_lea.vmem %s155, 120
      %1067 = vst [vmem:[%s1066] sm:$0xff] %v1064
      %s1068 = scalar_lea.vmem %s139, 184
      %v1069 = vld [vmem:[%s1068] sm:$0xff]
      %1070 = xla_tuple %v1069
      %1071 = xla_tuple %1070
      %v1072 = vxor.u32 %v1069, 2147483648
      %1073 = xla_tuple %v1072
      %s1074 = scalar_lea.vmem %s155, 184
      %1075 = vst [vmem:[%s1074] sm:$0xff] %v1072
      %s1076 = scalar_lea.vmem %s139, 248
      %v1077 = vld [vmem:[%s1076] sm:$0xff]
      %1078 = xla_tuple %v1077
      %1079 = xla_tuple %1078
      %v1080 = vxor.u32 %v1077, 2147483648
      %1081 = xla_tuple %v1080
      %s1082 = scalar_lea.vmem %s155, 248
      %1083 = vst [vmem:[%s1082] sm:$0xff] %v1080
      %s1084 = scalar_lea.vmem %s139, 312
      %v1085 = vld [vmem:[%s1084] sm:$0xff]
      %1086 = xla_tuple %v1085
      %1087 = xla_tuple %1086
      %v1088 = vxor.u32 %v1085, 2147483648
      %1089 = xla_tuple %v1088
      %s1090 = scalar_lea.vmem %s155, 312
      %1091 = vst [vmem:[%s1090] sm:$0xff] %v1088
      %s1092 = scalar_lea.vmem %s139, 376
      %v1093 = vld [vmem:[%s1092] sm:$0xff]
      %1094 = xla_tuple %v1093
      %1095 = xla_tuple %1094
      %v1096 = vxor.u32 %v1093, 2147483648
      %1097 = xla_tuple %v1096
      %s1098 = scalar_lea.vmem %s155, 376
      %1099 = vst [vmem:[%s1098] sm:$0xff] %v1096
      %s1100 = scalar_lea.vmem %s139, 440
      %v1101 = vld [vmem:[%s1100] sm:$0xff]
      %1102 = xla_tuple %v1101
      %1103 = xla_tuple %1102
      %v1104 = vxor.u32 %v1101, 2147483648
      %1105 = xla_tuple %v1104
      %s1106 = scalar_lea.vmem %s155, 440
      %1107 = vst [vmem:[%s1106] sm:$0xff] %v1104
      %s1108 = scalar_lea.vmem %s139, 504
      %v1109 = vld [vmem:[%s1108] sm:$0xff]
      %1110 = xla_tuple %v1109
      %1111 = xla_tuple %1110
      %v1112 = vxor.u32 %v1109, 2147483648
      %1113 = xla_tuple %v1112
      %s1114 = scalar_lea.vmem %s155, 504
      %1115 = vst [vmem:[%s1114] sm:$0xff] %v1112
      %s1116 = scalar_lea.vmem %s139, 568
      %v1117 = vld [vmem:[%s1116] sm:$0xff]
      %1118 = xla_tuple %v1117
      %1119 = xla_tuple %1118
      %v1120 = vxor.u32 %v1117, 2147483648
      %1121 = xla_tuple %v1120
      %s1122 = scalar_lea.vmem %s155, 568
      %1123 = vst [vmem:[%s1122] sm:$0xff] %v1120
      %s1124 = scalar_lea.vmem %s139, 632
      %v1125 = vld [vmem:[%s1124] sm:$0xff]
      %1126 = xla_tuple %v1125
      %1127 = xla_tuple %1126
      %v1128 = vxor.u32 %v1125, 2147483648
      %1129 = xla_tuple %v1128
      %s1130 = scalar_lea.vmem %s155, 632
      %1131 = vst [vmem:[%s1130] sm:$0xff] %v1128
      %s1132 = scalar_lea.vmem %s139, 696
      %v1133 = vld [vmem:[%s1132] sm:$0xff]
      %1134 = xla_tuple %v1133
      %1135 = xla_tuple %1134
      %v1136 = vxor.u32 %v1133, 2147483648
      %1137 = xla_tuple %v1136
      %s1138 = scalar_lea.vmem %s155, 696
      %1139 = vst [vmem:[%s1138] sm:$0xff] %v1136
      %s1140 = scalar_lea.vmem %s139, 760
      %v1141 = vld [vmem:[%s1140] sm:$0xff]
      %1142 = xla_tuple %v1141
      %1143 = xla_tuple %1142
      %v1144 = vxor.u32 %v1141, 2147483648
      %1145 = xla_tuple %v1144
      %s1146 = scalar_lea.vmem %s155, 760
      %1147 = vst [vmem:[%s1146] sm:$0xff] %v1144
      %s1148 = scalar_lea.vmem %s139, 824
      %v1149 = vld [vmem:[%s1148] sm:$0xff]
      %1150 = xla_tuple %v1149
      %1151 = xla_tuple %1150
      %v1152 = vxor.u32 %v1149, 2147483648
      %1153 = xla_tuple %v1152
      %s1154 = scalar_lea.vmem %s155, 824
      %1155 = vst [vmem:[%s1154] sm:$0xff] %v1152
      %s1156 = scalar_lea.vmem %s139, 888
      %v1157 = vld [vmem:[%s1156] sm:$0xff]
      %1158 = xla_tuple %v1157
      %1159 = xla_tuple %1158
      %v1160 = vxor.u32 %v1157, 2147483648
      %1161 = xla_tuple %v1160
      %s1162 = scalar_lea.vmem %s155, 888
      %1163 = vst [vmem:[%s1162] sm:$0xff] %v1160
      %s1164 = scalar_lea.vmem %s139, 952
      %v1165 = vld [vmem:[%s1164] sm:$0xff]
      %1166 = xla_tuple %v1165
      %1167 = xla_tuple %1166
      %v1168 = vxor.u32 %v1165, 2147483648
      %1169 = xla_tuple %v1168
      %s1170 = scalar_lea.vmem %s155, 952
      %1171 = vst [vmem:[%s1170] sm:$0xff] %v1168
      %s1172 = scalar_lea.vmem %s139, 1016
      %v1173 = vld [vmem:[%s1172] sm:$0xff]
      %1174 = xla_tuple %v1173
      %1175 = xla_tuple %1174
      %v1176 = vxor.u32 %v1173, 2147483648
      %1177 = xla_tuple %v1176
      %s1178 = scalar_lea.vmem %s155, 1016
      %1179 = vst [vmem:[%s1178] sm:$0xff] %v1176
      %s1180 = smul.u32 16, %s34
      %s1181 = smul.u32 8, %s35
      %p1182 = scmp.lt.s32.totalorder %s33, 1
      %s1183 = scalar_select %p1182, %s33, 1
      %p1184 = scmp.lt.s32.totalorder %s1180, 127
      %s1185 = scalar_select %p1184, %s1180, 127
      %p1186 = scmp.lt.s32.totalorder %s1181, 7
      %s1187 = scalar_select %p1186, %s1181, 7
      %s1188 = smul.addr %s1185, 8
      %s1189 = sadd.s32 %s1187, %s1188
      %s1190 = smul.addr %s1183, 1024
      %s1191 = sadd.s32 %s1189, %s1190
      %s1192 = smul.addr %s1191, 8
      %s1193 = scalar_lea.vmem %s1, %s1192
      %s1194 = smul.u32 16, %s34
      %s1195 = smul.u32 8, %s35
    $region20: #{neg.1} parent=5 // pred_fallthru
      _
    %p1196 = scmp.le.s32.totalorder 10, %s3
    // Predicated region
    $region21: #{neg.1} parent=5 // pred_check
      %p1197 = pneg %p1196
    $region22: #{neg.1} parent=5 // pred_check_branch
      %1199 = sbr.rel (%p1197) target = $region24
    $region23: #{neg.1} parent=5 // pred_region
      %s1200 = ssub.s32 %s3, 10
      %s1201 = smul.u32 16, %s49
      %s1202 = smul.u32 8, %s50
      %p1203 = scmp.lt.s32.totalorder %s48, 1
      %s1204 = scalar_select %p1203, %s48, 1
      %p1205 = scmp.lt.s32.totalorder %s1201, 127
      %s1206 = scalar_select %p1205, %s1201, 127
      %p1207 = scmp.lt.s32.totalorder %s1202, 7
      %s1208 = scalar_select %p1207, %s1202, 7
      %s1209 = smul.addr %s1206, 8
      %s1210 = sadd.s32 %s1208, %s1209
      %s1211 = smul.addr %s1204, 1024
      %s1212 = sadd.s32 %s1210, %s1211
      %s1213 = smul.addr %s1212, 8
      %s1214 = scalar_lea.vmem %s1, %s1213
    $region24: #{neg.1} parent=5 // pred_fallthru
      _
  $region6: #{neg.1} parent=0 // loop_footer
    %s7 = sadd.s32 1, %s3
  $region7: #{neg.1} parent=0 // loop_footer_branch
    %2 = sbr.rel target = $region3
  $region8: #{neg.1} parent=0 // loop_exit
    _

// kernel: pointnetpp_encoder_fp_forward.7
$region0: #{pointnetpp_encoder_fp_forward.7}
  #allocation0 [shape = 'u32[]', space=smem, size = 0x4, offset = 0x4, fixed_abs, tag = 'smem constant byte address 0x4 - core index']
  #allocation1 [shape = 'u32[72,128]{1,0:T(1,128)}', space=vmem, size = 0x9000, scoped, tag = 'internal scratch']
  %s0 = inlined_call_operand.vmem [shape: bf16[1024,9], index: 0, kind: input, shape index: {}]
  %s1 = inlined_call_operand.vmem [shape: bf16[9,64], index: 1, kind: input, shape index: {}]
  %s2 = inlined_call_operand.vmem [shape: f32[1,64], index: 2, kind: input, shape index: {}]
  %s3 = inlined_call_operand.vmem [shape: bf16[64,64], index: 3, kind: input, shape index: {}]
  %s4 = inlined_call_operand.vmem [shape: f32[1,64], index: 4, kind: input, shape index: {}]
  %s5 = inlined_call_operand.vmem [shape: bf16[64,128], index: 5, kind: input, shape index: {}]
  %s6 = inlined_call_operand.vmem [shape: f32[1,128], index: 6, kind: input, shape index: {}]
  %s7 = inlined_call_operand.vmem [shape: bf16[1024,128], index: 7, kind: output, shape index: {}]
  %s8 = sld [smem:[#allocation0]]
  $region61: #{pointnetpp_encoder_fp_forward.7} parent=0
    _
  %s10 = ssub.s32 1, %s8
  %s11 = scalar_select 0, %s10, %s8
  loop: start=0, step=1, limit=4
  $region2: #{pointnetpp_encoder_fp_forward.7} parent=0 // loop_pre_header
    _
  $region3: #{pointnetpp_encoder_fp_forward.7} parent=0 // loop_header
    %s13 = sphi 0, %s17
    %p14 = scmp.ge.s32.totalorder %s13, 4
    %s23 = sphi 0, %s25
    %s26 = sphi 0, %s23
    %s27 = sphi 0, %s26
    %s43 = sphi 0, %s27
    %s47 = sphi 0, %s47
    %s49 = sphi 0, %s47
    %s50 = sphi 0, %s49
    %s64 = sphi 0, %s50
    %s68 = sphi 0, %s68
    %s70 = sphi 0, %s68
    %s71 = sphi 0, %s70
    %s85 = sphi 0, %s71
    %s89 = sphi 0, %s89
    %s91 = sphi 0, %s89
    %s92 = sphi 0, %s91
    %s106 = sphi 0, %s92
    %s110 = sphi 0, %s110
    %s112 = sphi 0, %s110
    %s113 = sphi 0, %s112
    %s127 = sphi 0, %s113
    %s131 = sphi 0, %s131
    %s133 = sphi 0, %s131
    %s134 = sphi 0, %s133
    %s148 = sphi 0, %s134
    %s152 = sphi 0, %s152
    %s154 = sphi 0, %s152
    %s155 = sphi 0, %s154
    %s169 = sphi 0, %s155
    %s175 = sphi 0, %s177
    %s178 = sphi 0, %s175
    %s179 = sphi 0, %s178
    %s195 = sphi 0, %s179
  $region4: #{pointnetpp_encoder_fp_forward.7} parent=0 // loop_header_branch
    %16 = sbr.rel (%p14) target = $region8
  $region5: #{pointnetpp_encoder_fp_forward.7} parent=0 // loop_body
    %s18 = ssub.s32 %s13, 1
    %s19 = ssub.s32 %s13, 2
    %s20 = sadd.s32 %s13, 1
    %s21 = ssub.s32 %s13, %s20
    %p22 = scmp.eq.s32.totalorder %s21, 0
    %s24 = sadd.s32 %s23, 1
    %s25 = scalar_select %p22, %s23, %s24
    %p28 = pneg %p22
    %p29 = scmp.eq.s32.totalorder %s13, 1
    %p30 = por %p28, %p29
    %p31 = scmp.ne.s32.totalorder %s23, %s26
    %p32 = scmp.eq.s32.totalorder %s13, 0
    %p33 = por %p31, %p32
    %p34 = scmp.ne.s32.totalorder %s23, %s26
    %p35 = scmp.eq.s32.totalorder %s18, 1
    %p36 = por %p34, %p35
    %p37 = scmp.ne.s32.totalorder %s26, %s27
    %p38 = scmp.eq.s32.totalorder %s18, 0
    %p39 = por %p37, %p38
    %p40 = scmp.ne.s32.totalorder %s26, %s27
    %p41 = scmp.eq.s32.totalorder %s19, 1
    %p42 = por %p40, %p41
    %p44 = scmp.ne.s32.totalorder %s27, %s43
    %p45 = scmp.eq.s32.totalorder %s19, 0
    %p46 = por %p44, %p45
    %s48 = sadd.s32 %s47, 1
    %p51 = scmp.eq.s32.totalorder %s13, 1
    %p52 = scmp.ne.s32.totalorder %s47, %s49
    %p53 = scmp.eq.s32.totalorder %s13, 0
    %p54 = por %p52, %p53
    %p55 = scmp.ne.s32.totalorder %s47, %s49
    %p56 = scmp.eq.s32.totalorder %s18, 1
    %p57 = por %p55, %p56
    %p58 = scmp.ne.s32.totalorder %s49, %s50
    %p59 = scmp.eq.s32.totalorder %s18, 0
    %p60 = por %p58, %p59
    %p61 = scmp.ne.s32.totalorder %s49, %s50
    %p62 = scmp.eq.s32.totalorder %s19, 1
    %p63 = por %p61, %p62
    %p65 = scmp.ne.s32.totalorder %s50, %s64
    %p66 = scmp.eq.s32.totalorder %s19, 0
    %p67 = por %p65, %p66
    %s69 = sadd.s32 %s68, 1
    %p72 = scmp.eq.s32.totalorder %s13, 1
    %p73 = scmp.ne.s32.totalorder %s68, %s70
    %p74 = scmp.eq.s32.totalorder %s13, 0
    %p75 = por %p73, %p74
    %p76 = scmp.ne.s32.totalorder %s68, %s70
    %p77 = scmp.eq.s32.totalorder %s18, 1
    %p78 = por %p76, %p77
    %p79 = scmp.ne.s32.totalorder %s70, %s71
    %p80 = scmp.eq.s32.totalorder %s18, 0
    %p81 = por %p79, %p80
    %p82 = scmp.ne.s32.totalorder %s70, %s71
    %p83 = scmp.eq.s32.totalorder %s19, 1
    %p84 = por %p82, %p83
    %p86 = scmp.ne.s32.totalorder %s71, %s85
    %p87 = scmp.eq.s32.totalorder %s19, 0
    %p88 = por %p86, %p87
    %s90 = sadd.s32 %s89, 1
    %p93 = scmp.eq.s32.totalorder %s13, 1
    %p94 = scmp.ne.s32.totalorder %s89, %s91
    %p95 = scmp.eq.s32.totalorder %s13, 0
    %p96 = por %p94, %p95
    %p97 = scmp.ne.s32.totalorder %s89, %s91
    %p98 = scmp.eq.s32.totalorder %s18, 1
    %p99 = por %p97, %p98
    %p100 = scmp.ne.s32.totalorder %s91, %s92
    %p101 = scmp.eq.s32.totalorder %s18, 0
    %p102 = por %p100, %p101
    %p103 = scmp.ne.s32.totalorder %s91, %s92
    %p104 = scmp.eq.s32.totalorder %s19, 1
    %p105 = por %p103, %p104
    %p107 = scmp.ne.s32.totalorder %s92, %s106
    %p108 = scmp.eq.s32.totalorder %s19, 0
    %p109 = por %p107, %p108
    %s111 = sadd.s32 %s110, 1
    %p114 = scmp.eq.s32.totalorder %s13, 1
    %p115 = scmp.ne.s32.totalorder %s110, %s112
    %p116 = scmp.eq.s32.totalorder %s13, 0
    %p117 = por %p115, %p116
    %p118 = scmp.ne.s32.totalorder %s110, %s112
    %p119 = scmp.eq.s32.totalorder %s18, 1
    %p120 = por %p118, %p119
    %p121 = scmp.ne.s32.totalorder %s112, %s113
    %p122 = scmp.eq.s32.totalorder %s18, 0
    %p123 = por %p121, %p122
    %p124 = scmp.ne.s32.totalorder %s112, %s113
    %p125 = scmp.eq.s32.totalorder %s19, 1
    %p126 = por %p124, %p125
    %p128 = scmp.ne.s32.totalorder %s113, %s127
    %p129 = scmp.eq.s32.totalorder %s19, 0
    %p130 = por %p128, %p129
    %s132 = sadd.s32 %s131, 1
    %p135 = scmp.eq.s32.totalorder %s13, 1
    %p136 = scmp.ne.s32.totalorder %s131, %s133
    %p137 = scmp.eq.s32.totalorder %s13, 0
    %p138 = por %p136, %p137
    %p139 = scmp.ne.s32.totalorder %s131, %s133
    %p140 = scmp.eq.s32.totalorder %s18, 1
    %p141 = por %p139, %p140
    %p142 = scmp.ne.s32.totalorder %s133, %s134
    %p143 = scmp.eq.s32.totalorder %s18, 0
    %p144 = por %p142, %p143
    %p145 = scmp.ne.s32.totalorder %s133, %s134
    %p146 = scmp.eq.s32.totalorder %s19, 1
    %p147 = por %p145, %p146
    %p149 = scmp.ne.s32.totalorder %s134, %s148
    %p150 = scmp.eq.s32.totalorder %s19, 0
    %p151 = por %p149, %p150
    %s153 = sadd.s32 %s152, 1
    %p156 = scmp.eq.s32.totalorder %s13, 1
    %p157 = scmp.ne.s32.totalorder %s152, %s154
    %p158 = scmp.eq.s32.totalorder %s13, 0
    %p159 = por %p157, %p158
    %p160 = scmp.ne.s32.totalorder %s152, %s154
    %p161 = scmp.eq.s32.totalorder %s18, 1
    %p162 = por %p160, %p161
    %p163 = scmp.ne.s32.totalorder %s154, %s155
    %p164 = scmp.eq.s32.totalorder %s18, 0
    %p165 = por %p163, %p164
    %p166 = scmp.ne.s32.totalorder %s154, %s155
    %p167 = scmp.eq.s32.totalorder %s19, 1
    %p168 = por %p166, %p167
    %p170 = scmp.ne.s32.totalorder %s155, %s169
    %p171 = scmp.eq.s32.totalorder %s19, 0
    %p172 = por %p170, %p171
    %s173 = ssub.s32 %s13, %s20
    %p174 = scmp.eq.s32.totalorder %s173, 0
    %s176 = sadd.s32 %s175, 1
    %s177 = scalar_select %p174, %s175, %s176
    %p180 = pneg %p174
    %p181 = scmp.eq.s32.totalorder %s13, 1
    %p182 = por %p180, %p181
    %p183 = scmp.ne.s32.totalorder %s175, %s178
    %p184 = scmp.eq.s32.totalorder %s13, 0
    %p185 = por %p183, %p184
    %p186 = scmp.ne.s32.totalorder %s175, %s178
    %p187 = scmp.eq.s32.totalorder %s18, 1
    %p188 = por %p186, %p187
    %p189 = scmp.ne.s32.totalorder %s178, %s179
    %p190 = scmp.eq.s32.totalorder %s18, 0
    %p191 = por %p189, %p190
    %p192 = scmp.ne.s32.totalorder %s178, %s179
    %p193 = scmp.eq.s32.totalorder %s19, 1
    %p194 = por %p192, %p193
    %p196 = scmp.ne.s32.totalorder %s179, %s195
    %p197 = scmp.eq.s32.totalorder %s19, 0
    %p198 = por %p196, %p197
    %p199 = scmp.le.s32.totalorder 1, %s13
    %p200 = scmp.lt.s32.totalorder %s13, 3
    %p201 = pnand %p199, %p200
    %p202 = pneg %p201
    // Predicated region
    $region9: #{pointnetpp_encoder_fp_forward.7} parent=5 // pred_check
      _
    $region10: #{pointnetpp_encoder_fp_forward.7} parent=5 // pred_check_branch
      %204 = sbr.rel (%p201) target = $region12
    $region11: #{pointnetpp_encoder_fp_forward.7} parent=5 // pred_region
      %s205 = ssub.s32 %s13, 1
      // Predicated region
      $region13: #{pointnetpp_encoder_fp_forward.7} parent=11 // pred_check
        %p206 = pneg %p60
      $region14: #{pointnetpp_encoder_fp_forward.7} parent=11 // pred_check_branch
        %208 = sbr.rel (%p206) target = $region16
      $region15: #{pointnetpp_encoder_fp_forward.7} parent=11 // pred_region
        _
      $region16: #{pointnetpp_encoder_fp_forward.7} parent=11 // pred_fallthru
        _
      // Predicated region
      $region17: #{pointnetpp_encoder_fp_forward.7} parent=11 // pred_check
        %p209 = pneg %p81
      $region18: #{pointnetpp_encoder_fp_forward.7} parent=11 // pred_check_branch
        %211 = sbr.rel (%p209) target = $region20
      $region19: #{pointnetpp_encoder_fp_forward.7} parent=11 // pred_region
        _
      $region20: #{pointnetpp_encoder_fp_forward.7} parent=11 // pred_fallthru
        _
      // Predicated region
      $region21: #{pointnetpp_encoder_fp_forward.7} parent=11 // pred_check
        %p212 = pneg %p102
      $region22: #{pointnetpp_encoder_fp_forward.7} parent=11 // pred_check_branch
        %214 = sbr.rel (%p212) target = $region24
      $region23: #{pointnetpp_encoder_fp_forward.7} parent=11 // pred_region
        _
      $region24: #{pointnetpp_encoder_fp_forward.7} parent=11 // pred_fallthru
        _
      // Predicated region
      $region25: #{pointnetpp_encoder_fp_forward.7} parent=11 // pred_check
        %p215 = pneg %p123
      $region26: #{pointnetpp_encoder_fp_forward.7} parent=11 // pred_check_branch
        %217 = sbr.rel (%p215) target = $region28
      $region27: #{pointnetpp_encoder_fp_forward.7} parent=11 // pred_region
        _
      $region28: #{pointnetpp_encoder_fp_forward.7} parent=11 // pred_fallthru
        _
      // Predicated region
      $region29: #{pointnetpp_encoder_fp_forward.7} parent=11 // pred_check
        %p218 = pneg %p144
      $region30: #{pointnetpp_encoder_fp_forward.7} parent=11 // pred_check_branch
        %220 = sbr.rel (%p218) target = $region32
      $region31: #{pointnetpp_encoder_fp_forward.7} parent=11 // pred_region
        _
      $region32: #{pointnetpp_encoder_fp_forward.7} parent=11 // pred_fallthru
        _
      // Predicated region
      $region33: #{pointnetpp_encoder_fp_forward.7} parent=11 // pred_check
        %p221 = pneg %p165
      $region34: #{pointnetpp_encoder_fp_forward.7} parent=11 // pred_check_branch
        %223 = sbr.rel (%p221) target = $region36
      $region35: #{pointnetpp_encoder_fp_forward.7} parent=11 // pred_region
        _
      $region36: #{pointnetpp_encoder_fp_forward.7} parent=11 // pred_fallthru
        _
    $region12: #{pointnetpp_encoder_fp_forward.7} parent=5 // pred_fallthru
      _
    %p224 = scmp.lt.s32.totalorder %s13, 2
    // Predicated region
    $region37: #{pointnetpp_encoder_fp_forward.7} parent=5 // pred_check
      %p225 = pneg %p224
    $region38: #{pointnetpp_encoder_fp_forward.7} parent=5 // pred_check_branch
      %227 = sbr.rel (%p225) target = $region40
    $region39: #{pointnetpp_encoder_fp_forward.7} parent=5 // pred_region
      // Predicated region
      $region41: #{pointnetpp_encoder_fp_forward.7} parent=39 // pred_check
        %p228 = pneg %p33
      $region42: #{pointnetpp_encoder_fp_forward.7} parent=39 // pred_check_branch
        %230 = sbr.rel (%p228) target = $region44
      $region43: #{pointnetpp_encoder_fp_forward.7} parent=39 // pred_region
        %s231 = smul.u32 64, %s13
        %p232 = scmp.lt.s32.totalorder %s231, 127
        %s233 = scalar_select %p232, %s231, 127
        %s234 = smul.addr %s233, 4
        %s235 = scalar_lea.vmem %s0, %s234
        %s236 = smul.u32 64, %s13
      $region44: #{pointnetpp_encoder_fp_forward.7} parent=39 // pred_fallthru
        _
    $region40: #{pointnetpp_encoder_fp_forward.7} parent=5 // pred_fallthru
      _
    %p237 = scmp.le.s32.totalorder 1, %s13
    %p238 = scmp.lt.s32.totalorder %s13, 3
    %p239 = pnand %p237, %p238
    %p240 = pneg %p239
    // Predicated region
    $region45: #{pointnetpp_encoder_fp_forward.7} parent=5 // pred_check
      _
    $region46: #{pointnetpp_encoder_fp_forward.7} parent=5 // pred_check_branch
      %242 = sbr.rel (%p239) target = $region48
    $region47: #{pointnetpp_encoder_fp_forward.7} parent=5 // pred_region
      %s243 = ssub.s32 %s13, 1
      %s244 = smul.u32 64, %s18
      %p245 = scmp.lt.s32.totalorder %s244, 127
      %s246 = scalar_select %p245, %s244, 127
      %s247 = smul.addr %s246, 4
      %s248 = scalar_lea.vmem %s0, %s247
      %p249 = pneg %p39
      %p250 = pneg %p36
      %p251 = pneg %p60
      %p252 = pneg %p57
      %p253 = pneg %p81
      %p254 = pneg %p78
      %p255 = pneg %p102
      %p256 = pneg %p99
      %p257 = pneg %p123
      %p258 = pneg %p120
      %p259 = pneg %p144
      %p260 = pneg %p141
      %p261 = pneg %p165
      %p262 = pneg %p162
      %p263 = pneg %p191
      %p264 = pneg %p188
      %s265 = smul.u32 64, %s18
      %p266 = scmp.lt.s32.totalorder %s265, 127
      %s267 = scalar_select %p266, %s265, 127
      %s268 = smul.addr %s267, 4
      %s269 = scalar_lea.vmem %s7, %s268
      %s270 = smul.u32 64, %s18
      %p271 = scmp.lt.s32.totalorder %s270, 127
      %s272 = scalar_select %p271, %s270, 127
      %s273 = smul.addr %s272, 4
      %s274 = scalar_lea.vmem %s0, %s273
      %s275 = smul.u32 64, %s18
      %s276 = smul.u32 64, %s18
      %p277 = scmp.lt.s32.totalorder %s276, 127
      %s278 = scalar_select %p277, %s276, 127
      %s279 = smul.addr %s278, 4
      %s280 = scalar_lea.vmem %s7, %s279
      %s281 = smul.u32 64, %s18
      %v283 = vld [vmem:[%s274] sm:$0xf]
      %v284 = vld [vmem:[%s274 + $0x4] sm:$0xf]
      %v285 = vld [vmem:[%s274 + $0x8] sm:$0xf]
      %v286 = vld [vmem:[%s274 + $0xc] sm:$0xf]
      %v287 = vld [vmem:[%s274 + $0x10] sm:$0xf]
      %v288 = vld [vmem:[%s274 + $0x14] sm:$0xf]
      %v289 = vld [vmem:[%s274 + $0x18] sm:$0xf]
      %v290 = vld [vmem:[%s274 + $0x1c] sm:$0xf]
      %v291 = vld [vmem:[%s274 + $0x20] sm:$0xf]
      %v292 = vld [vmem:[%s274 + $0x24] sm:$0xf]
      %v293 = vld [vmem:[%s274 + $0x28] sm:$0xf]
      %v294 = vld [vmem:[%s274 + $0x2c] sm:$0xf]
      %v295 = vld [vmem:[%s274 + $0x30] sm:$0xf]
      %v296 = vld [vmem:[%s274 + $0x34] sm:$0xf]
      %v297 = vld [vmem:[%s274 + $0x38] sm:$0xf]
      %v298 = vld [vmem:[%s274 + $0x3c] sm:$0xf]
      %v299 = vld [vmem:[%s274 + $0x40] sm:$0xf]
      %v300 = vld [vmem:[%s274 + $0x44] sm:$0xf]
      %v301 = vld [vmem:[%s274 + $0x48] sm:$0xf]
      %v302 = vld [vmem:[%s274 + $0x4c] sm:$0xf]
      %v303 = vld [vmem:[%s274 + $0x50] sm:$0xf]
      %v304 = vld [vmem:[%s274 + $0x54] sm:$0xf]
      %v305 = vld [vmem:[%s274 + $0x58] sm:$0xf]
      %v306 = vld [vmem:[%s274 + $0x5c] sm:$0xf]
      %v307 = vld [vmem:[%s274 + $0x60] sm:$0xf]
      %v308 = vld [vmem:[%s274 + $0x64] sm:$0xf]
      %v309 = vld [vmem:[%s274 + $0x68] sm:$0xf]
      %v310 = vld [vmem:[%s274 + $0x6c] sm:$0xf]
      %v311 = vld [vmem:[%s274 + $0x70] sm:$0xf]
      %v312 = vld [vmem:[%s274 + $0x74] sm:$0xf]
      %v313 = vld [vmem:[%s274 + $0x78] sm:$0xf]
      %v314 = vld [vmem:[%s274 + $0x7c] sm:$0xf]
      %v315 = vld [vmem:[%s274 + $0x80] sm:$0xf]
      %v316 = vld [vmem:[%s274 + $0x84] sm:$0xf]
      %v317 = vld [vmem:[%s274 + $0x88] sm:$0xf]
      %v318 = vld [vmem:[%s274 + $0x8c] sm:$0xf]
      %v319 = vld [vmem:[%s274 + $0x90] sm:$0xf]
      %v320 = vld [vmem:[%s274 + $0x94] sm:$0xf]
      %v321 = vld [vmem:[%s274 + $0x98] sm:$0xf]
      %v322 = vld [vmem:[%s274 + $0x9c] sm:$0xf]
      %v323 = vld [vmem:[%s274 + $0xa0] sm:$0xf]
      %v324 = vld [vmem:[%s274 + $0xa4] sm:$0xf]
      %v325 = vld [vmem:[%s274 + $0xa8] sm:$0xf]
      %v326 = vld [vmem:[%s274 + $0xac] sm:$0xf]
      %v327 = vld [vmem:[%s274 + $0xb0] sm:$0xf]
      %v328 = vld [vmem:[%s274 + $0xb4] sm:$0xf]
      %v329 = vld [vmem:[%s274 + $0xb8] sm:$0xf]
      %v330 = vld [vmem:[%s274 + $0xbc] sm:$0xf]
      %v331 = vld [vmem:[%s274 + $0xc0] sm:$0xf]
      %v332 = vld [vmem:[%s274 + $0xc4] sm:$0xf]
      %v333 = vld [vmem:[%s274 + $0xc8] sm:$0xf]
      %v334 = vld [vmem:[%s274 + $0xcc] sm:$0xf]
      %v335 = vld [vmem:[%s274 + $0xd0] sm:$0xf]
      %v336 = vld [vmem:[%s274 + $0xd4] sm:$0xf]
      %v337 = vld [vmem:[%s274 + $0xd8] sm:$0xf]
      %v338 = vld [vmem:[%s274 + $0xdc] sm:$0xf]
      %v339 = vld [vmem:[%s274 + $0xe0] sm:$0xf]
      %v340 = vld [vmem:[%s274 + $0xe4] sm:$0xf]
      %v341 = vld [vmem:[%s274 + $0xe8] sm:$0xf]
      %v342 = vld [vmem:[%s274 + $0xec] sm:$0xf]
      %v343 = vld [vmem:[%s274 + $0xf0] sm:$0xf]
      %v344 = vld [vmem:[%s274 + $0xf4] sm:$0xf]
      %v345 = vld [vmem:[%s274 + $0xf8] sm:$0xf]
      %v346 = vld [vmem:[%s274 + $0xfc] sm:$0xf]
      %v347 = vld [vmem:[%s1] sm:$0xf]
      %v348 = vld [vmem:[%s1 + $0x4] sm:$0x1]
      %v349 = vld [vmem:[%s2] sm:$0x1]
      %v351 = vperm.slane %v349, 0
      %v417 = vunpack.c.l.b16 %v283
      %v418 = vunpack.c.l.b16 %v284
      %v419 = vunpack.c.l.b16 %v285
      %v420 = vunpack.c.l.b16 %v286
      %v421 = vunpack.c.l.b16 %v287
      %v422 = vunpack.c.l.b16 %v288
      %v423 = vunpack.c.l.b16 %v289
      %v424 = vunpack.c.l.b16 %v290
      %v425 = vunpack.c.l.b16 %v291
      %v426 = vunpack.c.l.b16 %v292
      %v427 = vunpack.c.l.b16 %v293
      %v428 = vunpack.c.l.b16 %v294
      %v429 = vunpack.c.l.b16 %v295
      %v430 = vunpack.c.l.b16 %v296
      %v431 = vunpack.c.l.b16 %v297
      %v432 = vunpack.c.l.b16 %v298
      %v433 = vunpack.c.l.b16 %v299
      %v434 = vunpack.c.l.b16 %v300
      %v435 = vunpack.c.l.b16 %v301
      %v436 = vunpack.c.l.b16 %v302
      %v437 = vunpack.c.l.b16 %v303
      %v438 = vunpack.c.l.b16 %v304
      %v439 = vunpack.c.l.b16 %v305
      %v440 = vunpack.c.l.b16 %v306
      %v441 = vunpack.c.l.b16 %v307
      %v442 = vunpack.c.l.b16 %v308
      %v443 = vunpack.c.l.b16 %v309
      %v444 = vunpack.c.l.b16 %v310
      %v445 = vunpack.c.l.b16 %v311
      %v446 = vunpack.c.l.b16 %v312
      %v447 = vunpack.c.l.b16 %v313
      %v448 = vunpack.c.l.b16 %v314
      %v449 = vunpack.c.l.b16 %v315
      %v450 = vunpack.c.l.b16 %v316
      %v451 = vunpack.c.l.b16 %v317
      %v452 = vunpack.c.l.b16 %v318
      %v453 = vunpack.c.l.b16 %v319
      %v454 = vunpack.c.l.b16 %v320
      %v455 = vunpack.c.l.b16 %v321
      %v456 = vunpack.c.l.b16 %v322
      %v457 = vunpack.c.l.b16 %v323
      %v458 = vunpack.c.l.b16 %v324
      %v459 = vunpack.c.l.b16 %v325
      %v460 = vunpack.c.l.b16 %v326
      %v461 = vunpack.c.l.b16 %v327
      %v462 = vunpack.c.l.b16 %v328
      %v463 = vunpack.c.l.b16 %v329
      %v464 = vunpack.c.l.b16 %v330
      %v465 = vunpack.c.l.b16 %v331
      %v466 = vunpack.c.l.b16 %v332
      %v467 = vunpack.c.l.b16 %v333
      %v468 = vunpack.c.l.b16 %v334
      %v469 = vunpack.c.l.b16 %v335
      %v470 = vunpack.c.l.b16 %v336
      %v471 = vunpack.c.l.b16 %v337
      %v472 = vunpack.c.l.b16 %v338
      %v473 = vunpack.c.l.b16 %v339
      %v474 = vunpack.c.l.b16 %v340
      %v475 = vunpack.c.l.b16 %v341
      %v476 = vunpack.c.l.b16 %v342
      %v477 = vunpack.c.l.b16 %v343
      %v478 = vunpack.c.l.b16 %v344
      %v479 = vunpack.c.l.b16 %v345
      %v480 = vunpack.c.l.b16 %v346
      %v481 = vpack.c.b16 %v418, %v417
      %v482 = vpack.c.b16 %v420, %v419
      %v483 = vpack.c.b16 %v422, %v421
      %v484 = vpack.c.b16 %v424, %v423
      %v485 = vpack.c.b16 %v426, %v425
      %v486 = vpack.c.b16 %v428, %v427
      %v487 = vpack.c.b16 %v430, %v429
      %v488 = vpack.c.b16 %v432, %v431
      %v489 = vpack.c.b16 %v434, %v433
      %v490 = vpack.c.b16 %v436, %v435
      %v491 = vpack.c.b16 %v438, %v437
      %v492 = vpack.c.b16 %v440, %v439
      %v493 = vpack.c.b16 %v442, %v441
      %v494 = vpack.c.b16 %v444, %v443
      %v495 = vpack.c.b16 %v446, %v445
      %v496 = vpack.c.b16 %v448, %v447
      %v497 = vpack.c.b16 %v450, %v449
      %v498 = vpack.c.b16 %v452, %v451
      %v499 = vpack.c.b16 %v454, %v453
      %v500 = vpack.c.b16 %v456, %v455
      %v501 = vpack.c.b16 %v458, %v457
      %v502 = vpack.c.b16 %v460, %v459
      %v503 = vpack.c.b16 %v462, %v461
      %v504 = vpack.c.b16 %v464, %v463
      %v505 = vpack.c.b16 %v466, %v465
      %v506 = vpack.c.b16 %v468, %v467
      %v507 = vpack.c.b16 %v470, %v469
      %v508 = vpack.c.b16 %v472, %v471
      %v509 = vpack.c.b16 %v474, %v473
      %v510 = vpack.c.b16 %v476, %v475
      %v511 = vpack.c.b16 %v478, %v477
      %v512 = vpack.c.b16 %v480, %v479
      %v515 = vunpack.c.l.b16 %v347
      %v516 = vunpack.c.l.b16 %v348
      %v517 = vpack.c.b16 %v516, %v515
      %vm518 = vcmask 72704
      %v520 = vsel %vm518, %v481, 0
      %v523 = vsel %vm518, %v482, 0
      %v526 = vsel %vm518, %v483, 0
      %v529 = vsel %vm518, %v484, 0
      %v532 = vsel %vm518, %v485, 0
      %v535 = vsel %vm518, %v486, 0
      %v538 = vsel %vm518, %v487, 0
      %v541 = vsel %vm518, %v488, 0
      %v544 = vsel %vm518, %v489, 0
      %v547 = vsel %vm518, %v490, 0
      %v550 = vsel %vm518, %v491, 0
      %v553 = vsel %vm518, %v492, 0
      %v556 = vsel %vm518, %v493, 0
      %v559 = vsel %vm518, %v494, 0
      %v562 = vsel %vm518, %v495, 0
      %v565 = vsel %vm518, %v496, 0
      %v568 = vsel %vm518, %v497, 0
      %v571 = vsel %vm518, %v498, 0
      %v574 = vsel %vm518, %v499, 0
      %v577 = vsel %vm518, %v500, 0
      %v580 = vsel %vm518, %v501, 0
      %v583 = vsel %vm518, %v502, 0
      %v586 = vsel %vm518, %v503, 0
      %v589 = vsel %vm518, %v504, 0
      %v592 = vsel %vm518, %v505, 0
      %v595 = vsel %vm518, %v506, 0
      %v598 = vsel %vm518, %v507, 0
      %v601 = vsel %vm518, %v508, 0
      %v604 = vsel %vm518, %v509, 0
      %v607 = vsel %vm518, %v510, 0
      %v610 = vsel %vm518, %v511, 0
      %v613 = vsel %vm518, %v512, 0
      %vm615 = vcmask 1043456
      %vm616 = vcmask 1044480
      %v617 = vsel %vm615, 4294967295, 65535
      %v618 = vsel %vm616, %v617, 0
      %v620 = vand.u32 %v517, %v618
      %622 = vmatpush.bf16.msra.mxu0 0
      %623 = vmatpush.bf16.msra.mxu0 0
      %624 = vmatpush.bf16.msra.mxu0 0
      %625 = vmatpush.bf16.msra.mxu0 0
      %626 = vmatpush.bf16.msra.mxu0 0
      %627 = vmatpush.bf16.msra.mxu0 0
      %628 = vmatpush.bf16.msra.mxu0 0
      %629 = vmatpush.bf16.msra.mxu0 %v620
      %630 = vmatmul.bf16.gmra.mxu0 %v520
      %v631 = vpop.f32.mrf.mxu0
      %v632 = vadd.f32 %v351, %v631
      %v633 = vpop.f32.mrf.mxu0
      %v634 = vadd.f32 %v351, %v633
      %635 = vmatmul.bf16.gmra.mxu0 %v523
      %v636 = vpop.f32.mrf.mxu0
      %v637 = vadd.f32 %v351, %v636
      %v638 = vpop.f32.mrf.mxu0
      %v639 = vadd.f32 %v351, %v638
      %640 = vmatmul.bf16.gmra.mxu0 %v526
      %v641 = vpop.f32.mrf.mxu0
      %v642 = vadd.f32 %v351, %v641
      %v643 = vpop.f32.mrf.mxu0
      %v644 = vadd.f32 %v351, %v643
      %645 = vmatmul.bf16.gmra.mxu0 %v529
      %v646 = vpop.f32.mrf.mxu0
      %v647 = vadd.f32 %v351, %v646
      %v648 = vpop.f32.mrf.mxu0
      %v649 = vadd.f32 %v351, %v648
      %650 = vmatmul.bf16.gmra.mxu0 %v532
      %v651 = vpop.f32.mrf.mxu0
      %v652 = vadd.f32 %v351, %v651
      %v653 = vpop.f32.mrf.mxu0
      %v654 = vadd.f32 %v351, %v653
      %655 = vmatmul.bf16.gmra.mxu0 %v535
      %v656 = vpop.f32.mrf.mxu0
      %v657 = vadd.f32 %v351, %v656
      %v658 = vpop.f32.mrf.mxu0
      %v659 = vadd.f32 %v351, %v658
      %660 = vmatmul.bf16.gmra.mxu0 %v538
      %v661 = vpop.f32.mrf.mxu0
      %v662 = vadd.f32 %v351, %v661
      %v663 = vpop.f32.mrf.mxu0
      %v664 = vadd.f32 %v351, %v663
      %665 = vmatmul.bf16.gmra.mxu0 %v541
      %v666 = vpop.f32.mrf.mxu0
      %v667 = vadd.f32 %v351, %v666
      %v668 = vpop.f32.mrf.mxu0
      %v669 = vadd.f32 %v351, %v668
      %670 = vmatmul.bf16.gmra.mxu0 %v544
      %v671 = vpop.f32.mrf.mxu0
      %v672 = vadd.f32 %v351, %v671
      %v673 = vpop.f32.mrf.mxu0
      %v674 = vadd.f32 %v351, %v673
      %675 = vmatmul.bf16.gmra.mxu0 %v547
      %v676 = vpop.f32.mrf.mxu0
      %v677 = vadd.f32 %v351, %v676
      %v678 = vpop.f32.mrf.mxu0
      %v679 = vadd.f32 %v351, %v678
      %680 = vmatmul.bf16.gmra.mxu0 %v550
      %v681 = vpop.f32.mrf.mxu0
      %v682 = vadd.f32 %v351, %v681
      %v683 = vpop.f32.mrf.mxu0
      %v684 = vadd.f32 %v351, %v683
      %685 = vmatmul.bf16.gmra.mxu0 %v553
      %v686 = vpop.f32.mrf.mxu0
      %v687 = vadd.f32 %v351, %v686
      %v688 = vpop.f32.mrf.mxu0
      %v689 = vadd.f32 %v351, %v688
      %690 = vmatmul.bf16.gmra.mxu0 %v556
      %v691 = vpop.f32.mrf.mxu0
      %v692 = vadd.f32 %v351, %v691
      %v693 = vpop.f32.mrf.mxu0
      %v694 = vadd.f32 %v351, %v693
      %695 = vmatmul.bf16.gmra.mxu0 %v559
      %v696 = vpop.f32.mrf.mxu0
      %v697 = vadd.f32 %v351, %v696
      %v698 = vpop.f32.mrf.mxu0
      %v699 = vadd.f32 %v351, %v698
      %700 = vmatmul.bf16.gmra.mxu0 %v562
      %v701 = vpop.f32.mrf.mxu0
      %v702 = vadd.f32 %v351, %v701
      %v703 = vpop.f32.mrf.mxu0
      %v704 = vadd.f32 %v351, %v703
      %705 = vmatmul.bf16.gmra.mxu0 %v565
      %v706 = vpop.f32.mrf.mxu0
      %v707 = vadd.f32 %v351, %v706
      %v708 = vpop.f32.mrf.mxu0
      %v709 = vadd.f32 %v351, %v708
      %710 = vmatmul.bf16.gmra.mxu0 %v568
      %v711 = vpop.f32.mrf.mxu0
      %v712 = vadd.f32 %v351, %v711
      %v713 = vpop.f32.mrf.mxu0
      %v714 = vadd.f32 %v351, %v713
      %715 = vmatmul.bf16.gmra.mxu0 %v571
      %v716 = vpop.f32.mrf.mxu0
      %v717 = vadd.f32 %v351, %v716
      %v718 = vpop.f32.mrf.mxu0
      %v719 = vadd.f32 %v351, %v718
      %720 = vmatmul.bf16.gmra.mxu0 %v574
      %v721 = vpop.f32.mrf.mxu0
      %v722 = vadd.f32 %v351, %v721
      %v723 = vpop.f32.mrf.mxu0
      %v724 = vadd.f32 %v351, %v723
      %725 = vmatmul.bf16.gmra.mxu0 %v577
      %v726 = vpop.f32.mrf.mxu0
      %v727 = vadd.f32 %v351, %v726
      %v728 = vpop.f32.mrf.mxu0
      %v729 = vadd.f32 %v351, %v728
      %730 = vmatmul.bf16.gmra.mxu0 %v580
      %v731 = vpop.f32.mrf.mxu0
      %v732 = vadd.f32 %v351, %v731
      %v733 = vpop.f32.mrf.mxu0
      %v734 = vadd.f32 %v351, %v733
      %735 = vmatmul.bf16.gmra.mxu0 %v583
      %v736 = vpop.f32.mrf.mxu0
      %v737 = vadd.f32 %v351, %v736
      %v738 = vpop.f32.mrf.mxu0
      %v739 = vadd.f32 %v351, %v738
      %740 = vmatmul.bf16.gmra.mxu0 %v586
      %v741 = vpop.f32.mrf.mxu0
      %v742 = vadd.f32 %v351, %v741
      %v743 = vpop.f32.mrf.mxu0
      %v744 = vadd.f32 %v351, %v743
      %745 = vmatmul.bf16.gmra.mxu0 %v589
      %v746 = vpop.f32.mrf.mxu0
      %v747 = vadd.f32 %v351, %v746
      %v748 = vpop.f32.mrf.mxu0
      %v749 = vadd.f32 %v351, %v748
      %750 = vmatmul.bf16.gmra.mxu0 %v592
      %v751 = vpop.f32.mrf.mxu0
      %v752 = vadd.f32 %v351, %v751
      %v753 = vpop.f32.mrf.mxu0
      %v754 = vadd.f32 %v351, %v753
      %755 = vmatmul.bf16.gmra.mxu0 %v595
      %v756 = vpop.f32.mrf.mxu0
      %v757 = vadd.f32 %v351, %v756
      %v758 = vpop.f32.mrf.mxu0
      %v759 = vadd.f32 %v351, %v758
      %760 = vmatmul.bf16.gmra.mxu0 %v598
      %v761 = vpop.f32.mrf.mxu0
      %v762 = vadd.f32 %v351, %v761
      %v763 = vpop.f32.mrf.mxu0
      %v764 = vadd.f32 %v351, %v763
      %765 = vmatmul.bf16.gmra.mxu0 %v601
      %v766 = vpop.f32.mrf.mxu0
      %v767 = vadd.f32 %v351, %v766
      %v768 = vpop.f32.mrf.mxu0
      %v769 = vadd.f32 %v351, %v768
      %770 = vmatmul.bf16.gmra.mxu0 %v604
      %v771 = vpop.f32.mrf.mxu0
      %v772 = vadd.f32 %v351, %v771
      %v773 = vpop.f32.mrf.mxu0
      %v774 = vadd.f32 %v351, %v773
      %775 = vmatmul.bf16.gmra.mxu0 %v607
      %v776 = vpop.f32.mrf.mxu0
      %v777 = vadd.f32 %v351, %v776
      %v778 = vpop.f32.mrf.mxu0
      %v779 = vadd.f32 %v351, %v778
      %780 = vmatmul.bf16.gmra.mxu0 %v610
      %v781 = vpop.f32.mrf.mxu0
      %v782 = vadd.f32 %v351, %v781
      %v783 = vpop.f32.mrf.mxu0
      %v784 = vadd.f32 %v351, %v783
      %785 = vmatmul.bf16.gmra.mxu0 %v613
      %v786 = vpop.f32.mrf.mxu0
      %v787 = vadd.f32 %v351, %v786
      %v788 = vpop.f32.mrf.mxu0
      %v789 = vadd.f32 %v351, %v788
      %790 = vdwg.mxu0
      %v791 = vmax.f32 %v632, 0.0
      %v792 = vmax.f32 %v634, 0.0
      %v793 = vmax.f32 %v637, 0.0
      %v794 = vmax.f32 %v639, 0.0
      %v795 = vmax.f32 %v642, 0.0
      %v796 = vmax.f32 %v644, 0.0
      %v797 = vmax.f32 %v647, 0.0
      %v798 = vmax.f32 %v649, 0.0
      %v799 = vmax.f32 %v652, 0.0
      %v800 = vmax.f32 %v654, 0.0
      %v801 = vmax.f32 %v657, 0.0
      %v802 = vmax.f32 %v659, 0.0
      %v803 = vmax.f32 %v662, 0.0
      %v804 = vmax.f32 %v664, 0.0
      %v805 = vmax.f32 %v667, 0.0
      %v806 = vmax.f32 %v669, 0.0
      %v807 = vmax.f32 %v672, 0.0
      %v808 = vmax.f32 %v674, 0.0
      %v809 = vmax.f32 %v677, 0.0
      %v810 = vmax.f32 %v679, 0.0
      %v811 = vmax.f32 %v682, 0.0
      %v812 = vmax.f32 %v684, 0.0
      %v813 = vmax.f32 %v687, 0.0
      %v814 = vmax.f32 %v689, 0.0
      %v815 = vmax.f32 %v692, 0.0
      %v816 = vmax.f32 %v694, 0.0
      %v817 = vmax.f32 %v697, 0.0
      %v818 = vmax.f32 %v699, 0.0
      %v819 = vmax.f32 %v702, 0.0
      %v820 = vmax.f32 %v704, 0.0
      %v821 = vmax.f32 %v707, 0.0
      %v822 = vmax.f32 %v709, 0.0
      %v823 = vmax.f32 %v712, 0.0
      %v824 = vmax.f32 %v714, 0.0
      %v825 = vmax.f32 %v717, 0.0
      %v826 = vmax.f32 %v719, 0.0
      %v827 = vmax.f32 %v722, 0.0
      %v828 = vmax.f32 %v724, 0.0
      %v829 = vmax.f32 %v727, 0.0
      %v830 = vmax.f32 %v729, 0.0
      %v831 = vmax.f32 %v732, 0.0
      %v832 = vmax.f32 %v734, 0.0
      %v833 = vmax.f32 %v737, 0.0
      %v834 = vmax.f32 %v739, 0.0
      %v835 = vmax.f32 %v742, 0.0
      %v836 = vmax.f32 %v744, 0.0
      %v837 = vmax.f32 %v747, 0.0
      %v838 = vmax.f32 %v749, 0.0
      %v839 = vmax.f32 %v752, 0.0
      %v840 = vmax.f32 %v754, 0.0
      %v841 = vmax.f32 %v757, 0.0
      %v842 = vmax.f32 %v759, 0.0
      %v843 = vmax.f32 %v762, 0.0
      %v844 = vmax.f32 %v764, 0.0
      %v845 = vmax.f32 %v767, 0.0
      %v846 = vmax.f32 %v769, 0.0
      %v847 = vmax.f32 %v772, 0.0
      %v848 = vmax.f32 %v774, 0.0
      %v849 = vmax.f32 %v777, 0.0
      %v850 = vmax.f32 %v779, 0.0
      %v851 = vmax.f32 %v782, 0.0
      %v852 = vmax.f32 %v784, 0.0
      %v853 = vmax.f32 %v787, 0.0
      %v854 = vmax.f32 %v789, 0.0
      %v855 = vpack.c.bf16 %v792, %v791
      %v856 = vpack.c.bf16 %v794, %v793
      %v857 = vpack.c.bf16 %v796, %v795
      %v858 = vpack.c.bf16 %v798, %v797
      %v859 = vpack.c.bf16 %v800, %v799
      %v860 = vpack.c.bf16 %v802, %v801
      %v861 = vpack.c.bf16 %v804, %v803
      %v862 = vpack.c.bf16 %v806, %v805
      %v863 = vpack.c.bf16 %v808, %v807
      %v864 = vpack.c.bf16 %v810, %v809
      %v865 = vpack.c.bf16 %v812, %v811
      %v866 = vpack.c.bf16 %v814, %v813
      %v867 = vpack.c.bf16 %v816, %v815
      %v868 = vpack.c.bf16 %v818, %v817
      %v869 = vpack.c.bf16 %v820, %v819
      %v870 = vpack.c.bf16 %v822, %v821
      %v871 = vpack.c.bf16 %v824, %v823
      %v872 = vpack.c.bf16 %v826, %v825
      %v873 = vpack.c.bf16 %v828, %v827
      %v874 = vpack.c.bf16 %v830, %v829
      %v875 = vpack.c.bf16 %v832, %v831
      %v876 = vpack.c.bf16 %v834, %v833
      %v877 = vpack.c.bf16 %v836, %v835
      %v878 = vpack.c.bf16 %v838, %v837
      %v879 = vpack.c.bf16 %v840, %v839
      %v880 = vpack.c.bf16 %v842, %v841
      %v881 = vpack.c.bf16 %v844, %v843
      %v882 = vpack.c.bf16 %v846, %v845
      %v883 = vpack.c.bf16 %v848, %v847
      %v884 = vpack.c.bf16 %v850, %v849
      %v885 = vpack.c.bf16 %v852, %v851
      %v886 = vpack.c.bf16 %v854, %v853
      %v887 = vld [vmem:[%s3] sm:$0xf]
      %v888 = vld [vmem:[%s3 + $0x4] sm:$0xf]
      %v889 = vld [vmem:[%s3 + $0x8] sm:$0xf]
      %v890 = vld [vmem:[%s3 + $0xc] sm:$0xf]
      %v891 = vld [vmem:[%s3 + $0x10] sm:$0xf]
      %v892 = vld [vmem:[%s3 + $0x14] sm:$0xf]
      %v893 = vld [vmem:[%s3 + $0x18] sm:$0xf]
      %v894 = vld [vmem:[%s3 + $0x1c] sm:$0xf]
      %v895 = vld [vmem:[%s4] sm:$0x1]
      %v897 = vperm.slane %v895, 0
      %v907 = vunpack.c.l.b16 %v887
      %v908 = vunpack.c.l.b16 %v888
      %v909 = vunpack.c.l.b16 %v889
      %v910 = vunpack.c.l.b16 %v890
      %v911 = vunpack.c.l.b16 %v891
      %v912 = vunpack.c.l.b16 %v892
      %v913 = vunpack.c.l.b16 %v893
      %v914 = vunpack.c.l.b16 %v894
      %v915 = vpack.c.b16 %v908, %v907
      %v916 = vpack.c.b16 %v910, %v909
      %v917 = vpack.c.b16 %v912, %v911
      %v918 = vpack.c.b16 %v914, %v913
      %vm923 = vcmask 523264
      %v925 = vsel %vm923, %v855, 0
      %v928 = vsel %vm923, %v856, 0
      %v931 = vsel %vm923, %v857, 0
      %v934 = vsel %vm923, %v858, 0
      %v937 = vsel %vm923, %v859, 0
      %v940 = vsel %vm923, %v860, 0
      %v943 = vsel %vm923, %v861, 0
      %v946 = vsel %vm923, %v862, 0
      %v949 = vsel %vm923, %v863, 0
      %v952 = vsel %vm923, %v864, 0
      %v955 = vsel %vm923, %v865, 0
      %v958 = vsel %vm923, %v866, 0
      %v961 = vsel %vm923, %v867, 0
      %v964 = vsel %vm923, %v868, 0
      %v967 = vsel %vm923, %v869, 0
      %v970 = vsel %vm923, %v870, 0
      %v973 = vsel %vm923, %v871, 0
      %v976 = vsel %vm923, %v872, 0
      %v979 = vsel %vm923, %v873, 0
      %v982 = vsel %vm923, %v874, 0
      %v985 = vsel %vm923, %v875, 0
      %v988 = vsel %vm923, %v876, 0
      %v991 = vsel %vm923, %v877, 0
      %v994 = vsel %vm923, %v878, 0
      %v997 = vsel %vm923, %v879, 0
      %v1000 = vsel %vm923, %v880, 0
      %v1003 = vsel %vm923, %v881, 0
      %v1006 = vsel %vm923, %v882, 0
      %v1009 = vsel %vm923, %v883, 0
      %v1012 = vsel %vm923, %v884, 0
      %v1015 = vsel %vm923, %v885, 0
      %v1018 = vsel %vm923, %v886, 0
      %1020 = vmatpush.bf16.msra.mxu0 0
      %1021 = vmatpush.bf16.msra.mxu0 0
      %1022 = vmatpush.bf16.msra.mxu0 0
      %1023 = vmatpush.bf16.msra.mxu0 0
      %1024 = vmatpush.bf16.msra.mxu0 %v918
      %1025 = vmatpush.bf16.msra.mxu0 %v917
      %1026 = vmatpush.bf16.msra.mxu0 %v916
      %1027 = vmatpush.bf16.msra.mxu0 %v915
      %1028 = vmatmul.bf16.gmra.mxu0 %v925
      %v1029 = vpop.f32.mrf.mxu0
      %v1030 = vadd.f32 %v897, %v1029
      %v1031 = vpop.f32.mrf.mxu0
      %v1032 = vadd.f32 %v897, %v1031
      %1033 = vmatmul.bf16.gmra.mxu0 %v928
      %v1034 = vpop.f32.mrf.mxu0
      %v1035 = vadd.f32 %v897, %v1034
      %v1036 = vpop.f32.mrf.mxu0
      %v1037 = vadd.f32 %v897, %v1036
      %1038 = vmatmul.bf16.gmra.mxu0 %v931
      %v1039 = vpop.f32.mrf.mxu0
      %v1040 = vadd.f32 %v897, %v1039
      %v1041 = vpop.f32.mrf.mxu0
      %v1042 = vadd.f32 %v897, %v1041
      %1043 = vmatmul.bf16.gmra.mxu0 %v934
      %v1044 = vpop.f32.mrf.mxu0
      %v1045 = vadd.f32 %v897, %v1044
      %v1046 = vpop.f32.mrf.mxu0
      %v1047 = vadd.f32 %v897, %v1046
      %1048 = vmatmul.bf16.gmra.mxu0 %v937
      %v1049 = vpop.f32.mrf.mxu0
      %v1050 = vadd.f32 %v897, %v1049
      %v1051 = vpop.f32.mrf.mxu0
      %v1052 = vadd.f32 %v897, %v1051
      %1053 = vmatmul.bf16.gmra.mxu0 %v940
      %v1054 = vpop.f32.mrf.mxu0
      %v1055 = vadd.f32 %v897, %v1054
      %v1056 = vpop.f32.mrf.mxu0
      %v1057 = vadd.f32 %v897, %v1056
      %1058 = vmatmul.bf16.gmra.mxu0 %v943
      %v1059 = vpop.f32.mrf.mxu0
      %v1060 = vadd.f32 %v897, %v1059
      %v1061 = vpop.f32.mrf.mxu0
      %v1062 = vadd.f32 %v897, %v1061
      %1063 = vmatmul.bf16.gmra.mxu0 %v946
      %v1064 = vpop.f32.mrf.mxu0
      %v1065 = vadd.f32 %v897, %v1064
      %v1066 = vpop.f32.mrf.mxu0
      %v1067 = vadd.f32 %v897, %v1066
      %1068 = vmatmul.bf16.gmra.mxu0 %v949
      %v1069 = vpop.f32.mrf.mxu0
      %v1070 = vadd.f32 %v897, %v1069
      %v1071 = vpop.f32.mrf.mxu0
      %v1072 = vadd.f32 %v897, %v1071
      %1073 = vmatmul.bf16.gmra.mxu0 %v952
      %v1074 = vpop.f32.mrf.mxu0
      %v1075 = vadd.f32 %v897, %v1074
      %v1076 = vpop.f32.mrf.mxu0
      %v1077 = vadd.f32 %v897, %v1076
      %1078 = vmatmul.bf16.gmra.mxu0 %v955
      %v1079 = vpop.f32.mrf.mxu0
      %v1080 = vadd.f32 %v897, %v1079
      %v1081 = vpop.f32.mrf.mxu0
      %v1082 = vadd.f32 %v897, %v1081
      %1083 = vmatmul.bf16.gmra.mxu0 %v958
      %v1084 = vpop.f32.mrf.mxu0
      %v1085 = vadd.f32 %v897, %v1084
      %v1086 = vpop.f32.mrf.mxu0
      %v1087 = vadd.f32 %v897, %v1086
      %1088 = vmatmul.bf16.gmra.mxu0 %v961
      %v1089 = vpop.f32.mrf.mxu0
      %v1090 = vadd.f32 %v897, %v1089
      %v1091 = vpop.f32.mrf.mxu0
      %v1092 = vadd.f32 %v897, %v1091
      %1093 = vmatmul.bf16.gmra.mxu0 %v964
      %v1094 = vpop.f32.mrf.mxu0
      %v1095 = vadd.f32 %v897, %v1094
      %v1096 = vpop.f32.mrf.mxu0
      %v1097 = vadd.f32 %v897, %v1096
      %1098 = vmatmul.bf16.gmra.mxu0 %v967
      %v1099 = vpop.f32.mrf.mxu0
      %v1100 = vadd.f32 %v897, %v1099
      %v1101 = vpop.f32.mrf.mxu0
      %v1102 = vadd.f32 %v897, %v1101
      %1103 = vmatmul.bf16.gmra.mxu0 %v970
      %v1104 = vpop.f32.mrf.mxu0
      %v1105 = vadd.f32 %v897, %v1104
      %v1106 = vpop.f32.mrf.mxu0
      %v1107 = vadd.f32 %v897, %v1106
      %1108 = vmatmul.bf16.gmra.mxu0 %v973
      %v1109 = vpop.f32.mrf.mxu0
      %v1110 = vadd.f32 %v897, %v1109
      %v1111 = vpop.f32.mrf.mxu0
      %v1112 = vadd.f32 %v897, %v1111
      %1113 = vmatmul.bf16.gmra.mxu0 %v976
      %v1114 = vpop.f32.mrf.mxu0
      %v1115 = vadd.f32 %v897, %v1114
      %v1116 = vpop.f32.mrf.mxu0
      %v1117 = vadd.f32 %v897, %v1116
      %1118 = vmatmul.bf16.gmra.mxu0 %v979
      %v1119 = vpop.f32.mrf.mxu0
      %v1120 = vadd.f32 %v897, %v1119
      %v1121 = vpop.f32.mrf.mxu0
      %v1122 = vadd.f32 %v897, %v1121
      %1123 = vmatmul.bf16.gmra.mxu0 %v982
      %v1124 = vpop.f32.mrf.mxu0
      %v1125 = vadd.f32 %v897, %v1124
      %v1126 = vpop.f32.mrf.mxu0
      %v1127 = vadd.f32 %v897, %v1126
      %1128 = vmatmul.bf16.gmra.mxu0 %v985
      %v1129 = vpop.f32.mrf.mxu0
      %v1130 = vadd.f32 %v897, %v1129
      %v1131 = vpop.f32.mrf.mxu0
      %v1132 = vadd.f32 %v897, %v1131
      %1133 = vmatmul.bf16.gmra.mxu0 %v988
      %v1134 = vpop.f32.mrf.mxu0
      %v1135 = vadd.f32 %v897, %v1134
      %v1136 = vpop.f32.mrf.mxu0
      %v1137 = vadd.f32 %v897, %v1136
      %1138 = vmatmul.bf16.gmra.mxu0 %v991
      %v1139 = vpop.f32.mrf.mxu0
      %v1140 = vadd.f32 %v897, %v1139
      %v1141 = vpop.f32.mrf.mxu0
      %v1142 = vadd.f32 %v897, %v1141
      %1143 = vmatmul.bf16.gmra.mxu0 %v994
      %v1144 = vpop.f32.mrf.mxu0
      %v1145 = vadd.f32 %v897, %v1144
      %v1146 = vpop.f32.mrf.mxu0
      %v1147 = vadd.f32 %v897, %v1146
      %1148 = vmatmul.bf16.gmra.mxu0 %v997
      %v1149 = vpop.f32.mrf.mxu0
      %v1150 = vadd.f32 %v897, %v1149
      %v1151 = vpop.f32.mrf.mxu0
      %v1152 = vadd.f32 %v897, %v1151
      %1153 = vmatmul.bf16.gmra.mxu0 %v1000
      %v1154 = vpop.f32.mrf.mxu0
      %v1155 = vadd.f32 %v897, %v1154
      %v1156 = vpop.f32.mrf.mxu0
      %v1157 = vadd.f32 %v897, %v1156
      %1158 = vmatmul.bf16.gmra.mxu0 %v1003
      %v1159 = vpop.f32.mrf.mxu0
      %v1160 = vadd.f32 %v897, %v1159
      %v1161 = vpop.f32.mrf.mxu0
      %v1162 = vadd.f32 %v897, %v1161
      %1163 = vmatmul.bf16.gmra.mxu0 %v1006
      %v1164 = vpop.f32.mrf.mxu0
      %v1165 = vadd.f32 %v897, %v1164
      %v1166 = vpop.f32.mrf.mxu0
      %v1167 = vadd.f32 %v897, %v1166
      %1168 = vmatmul.bf16.gmra.mxu0 %v1009
      %v1169 = vpop.f32.mrf.mxu0
      %v1170 = vadd.f32 %v897, %v1169
      %v1171 = vpop.f32.mrf.mxu0
      %v1172 = vadd.f32 %v897, %v1171
      %1173 = vmatmul.bf16.gmra.mxu0 %v1012
      %v1174 = vpop.f32.mrf.mxu0
      %v1175 = vadd.f32 %v897, %v1174
      %v1176 = vpop.f32.mrf.mxu0
      %v1177 = vadd.f32 %v897, %v1176
      %1178 = vmatmul.bf16.gmra.mxu0 %v1015
      %v1179 = vpop.f32.mrf.mxu0
      %v1180 = vadd.f32 %v897, %v1179
      %v1181 = vpop.f32.mrf.mxu0
      %v1182 = vadd.f32 %v897, %v1181
      %1183 = vmatmul.bf16.gmra.mxu0 %v1018
      %v1184 = vpop.f32.mrf.mxu0
      %v1185 = vadd.f32 %v897, %v1184
      %v1186 = vpop.f32.mrf.mxu0
      %v1187 = vadd.f32 %v897, %v1186
      %1188 = vdwg.mxu0
      %v1189 = vmax.f32 %v1030, 0.0
      %v1190 = vmax.f32 %v1032, 0.0
      %v1191 = vmax.f32 %v1035, 0.0
      %v1192 = vmax.f32 %v1037, 0.0
      %v1193 = vmax.f32 %v1040, 0.0
      %v1194 = vmax.f32 %v1042, 0.0
      %v1195 = vmax.f32 %v1045, 0.0
      %v1196 = vmax.f32 %v1047, 0.0
      %v1197 = vmax.f32 %v1050, 0.0
      %v1198 = vmax.f32 %v1052, 0.0
      %v1199 = vmax.f32 %v1055, 0.0
      %v1200 = vmax.f32 %v1057, 0.0
      %v1201 = vmax.f32 %v1060, 0.0
      %v1202 = vmax.f32 %v1062, 0.0
      %v1203 = vmax.f32 %v1065, 0.0
      %v1204 = vmax.f32 %v1067, 0.0
      %v1205 = vmax.f32 %v1070, 0.0
      %v1206 = vmax.f32 %v1072, 0.0
      %v1207 = vmax.f32 %v1075, 0.0
      %v1208 = vmax.f32 %v1077, 0.0
      %v1209 = vmax.f32 %v1080, 0.0
      %v1210 = vmax.f32 %v1082, 0.0
      %v1211 = vmax.f32 %v1085, 0.0
      %v1212 = vmax.f32 %v1087, 0.0
      %v1213 = vmax.f32 %v1090, 0.0
      %v1214 = vmax.f32 %v1092, 0.0
      %v1215 = vmax.f32 %v1095, 0.0
      %v1216 = vmax.f32 %v1097, 0.0
      %v1217 = vmax.f32 %v1100, 0.0
      %v1218 = vmax.f32 %v1102, 0.0
      %v1219 = vmax.f32 %v1105, 0.0
      %v1220 = vmax.f32 %v1107, 0.0
      %v1221 = vmax.f32 %v1110, 0.0
      %v1222 = vmax.f32 %v1112, 0.0
      %v1223 = vmax.f32 %v1115, 0.0
      %v1224 = vmax.f32 %v1117, 0.0
      %v1225 = vmax.f32 %v1120, 0.0
      %v1226 = vmax.f32 %v1122, 0.0
      %v1227 = vmax.f32 %v1125, 0.0
      %v1228 = vmax.f32 %v1127, 0.0
      %v1229 = vmax.f32 %v1130, 0.0
      %v1230 = vmax.f32 %v1132, 0.0
      %v1231 = vmax.f32 %v1135, 0.0
      %v1232 = vmax.f32 %v1137, 0.0
      %v1233 = vmax.f32 %v1140, 0.0
      %v1234 = vmax.f32 %v1142, 0.0
      %v1235 = vmax.f32 %v1145, 0.0
      %v1236 = vmax.f32 %v1147, 0.0
      %v1237 = vmax.f32 %v1150, 0.0
      %v1238 = vmax.f32 %v1152, 0.0
      %v1239 = vmax.f32 %v1155, 0.0
      %v1240 = vmax.f32 %v1157, 0.0
      %v1241 = vmax.f32 %v1160, 0.0
      %v1242 = vmax.f32 %v1162, 0.0
      %v1243 = vmax.f32 %v1165, 0.0
      %v1244 = vmax.f32 %v1167, 0.0
      %v1245 = vmax.f32 %v1170, 0.0
      %v1246 = vmax.f32 %v1172, 0.0
      %v1247 = vmax.f32 %v1175, 0.0
      %v1248 = vmax.f32 %v1177, 0.0
      %v1249 = vmax.f32 %v1180, 0.0
      %v1250 = vmax.f32 %v1182, 0.0
      %v1251 = vmax.f32 %v1185, 0.0
      %v1252 = vmax.f32 %v1187, 0.0
      %v1253 = vpack.c.bf16 %v1190, %v1189
      %v1254 = vpack.c.bf16 %v1192, %v1191
      %v1255 = vpack.c.bf16 %v1194, %v1193
      %v1256 = vpack.c.bf16 %v1196, %v1195
      %v1257 = vpack.c.bf16 %v1198, %v1197
      %v1258 = vpack.c.bf16 %v1200, %v1199
      %v1259 = vpack.c.bf16 %v1202, %v1201
      %v1260 = vpack.c.bf16 %v1204, %v1203
      %v1261 = vpack.c.bf16 %v1206, %v1205
      %v1262 = vpack.c.bf16 %v1208, %v1207
      %v1263 = vpack.c.bf16 %v1210, %v1209
      %v1264 = vpack.c.bf16 %v1212, %v1211
      %v1265 = vpack.c.bf16 %v1214, %v1213
      %v1266 = vpack.c.bf16 %v1216, %v1215
      %v1267 = vpack.c.bf16 %v1218, %v1217
      %v1268 = vpack.c.bf16 %v1220, %v1219
      %v1269 = vpack.c.bf16 %v1222, %v1221
      %v1270 = vpack.c.bf16 %v1224, %v1223
      %v1271 = vpack.c.bf16 %v1226, %v1225
      %v1272 = vpack.c.bf16 %v1228, %v1227
      %v1273 = vpack.c.bf16 %v1230, %v1229
      %v1274 = vpack.c.bf16 %v1232, %v1231
      %v1275 = vpack.c.bf16 %v1234, %v1233
      %v1276 = vpack.c.bf16 %v1236, %v1235
      %v1277 = vpack.c.bf16 %v1238, %v1237
      %v1278 = vpack.c.bf16 %v1240, %v1239
      %v1279 = vpack.c.bf16 %v1242, %v1241
      %v1280 = vpack.c.bf16 %v1244, %v1243
      %v1281 = vpack.c.bf16 %v1246, %v1245
      %v1282 = vpack.c.bf16 %v1248, %v1247
      %v1283 = vpack.c.bf16 %v1250, %v1249
      %v1284 = vpack.c.bf16 %v1252, %v1251
      %v1285 = vld [vmem:[%s5] sm:$0xf]
      %v1286 = vld [vmem:[%s5 + $0x4] sm:$0xf]
      %v1287 = vld [vmem:[%s5 + $0x8] sm:$0xf]
      %v1288 = vld [vmem:[%s5 + $0xc] sm:$0xf]
      %v1289 = vld [vmem:[%s5 + $0x10] sm:$0xf]
      %v1290 = vld [vmem:[%s5 + $0x14] sm:$0xf]
      %v1291 = vld [vmem:[%s5 + $0x18] sm:$0xf]
      %v1292 = vld [vmem:[%s5 + $0x1c] sm:$0xf]
      %v1293 = vld [vmem:[%s6] sm:$0x1]
      %v1295 = vperm.slane %v1293, 0
      %v1305 = vunpack.c.l.b16 %v1285
      %v1306 = vunpack.c.l.b16 %v1286
      %v1307 = vunpack.c.l.b16 %v1287
      %v1308 = vunpack.c.l.b16 %v1288
      %v1309 = vunpack.c.l.b16 %v1289
      %v1310 = vunpack.c.l.b16 %v1290
      %v1311 = vunpack.c.l.b16 %v1291
      %v1312 = vunpack.c.l.b16 %v1292
      %v1313 = vpack.c.b16 %v1306, %v1305
      %v1314 = vpack.c.b16 %v1308, %v1307
      %v1315 = vpack.c.b16 %v1310, %v1309
      %v1316 = vpack.c.b16 %v1312, %v1311
      %v1322 = vsel %vm923, %v1253, 0
      %v1325 = vsel %vm923, %v1254, 0
      %v1328 = vsel %vm923, %v1255, 0
      %v1331 = vsel %vm923, %v1256, 0
      %v1334 = vsel %vm923, %v1257, 0
      %v1337 = vsel %vm923, %v1258, 0
      %v1340 = vsel %vm923, %v1259, 0
      %v1343 = vsel %vm923, %v1260, 0
      %v1346 = vsel %vm923, %v1261, 0
      %v1349 = vsel %vm923, %v1262, 0
      %v1352 = vsel %vm923, %v1263, 0
      %v1355 = vsel %vm923, %v1264, 0
      %v1358 = vsel %vm923, %v1265, 0
      %v1361 = vsel %vm923, %v1266, 0
      %v1364 = vsel %vm923, %v1267, 0
      %v1367 = vsel %vm923, %v1268, 0
      %v1370 = vsel %vm923, %v1269, 0
      %v1373 = vsel %vm923, %v1270, 0
      %v1376 = vsel %vm923, %v1271, 0
      %v1379 = vsel %vm923, %v1272, 0
      %v1382 = vsel %vm923, %v1273, 0
      %v1385 = vsel %vm923, %v1274, 0
      %v1388 = vsel %vm923, %v1275, 0
      %v1391 = vsel %vm923, %v1276, 0
      %v1394 = vsel %vm923, %v1277, 0
      %v1397 = vsel %vm923, %v1278, 0
      %v1400 = vsel %vm923, %v1279, 0
      %v1403 = vsel %vm923, %v1280, 0
      %v1406 = vsel %vm923, %v1281, 0
      %v1409 = vsel %vm923, %v1282, 0
      %v1412 = vsel %vm923, %v1283, 0
      %v1415 = vsel %vm923, %v1284, 0
      %1417 = vmatpush.bf16.msra.mxu0 0
      %1418 = vmatpush.bf16.msra.mxu0 0
      %1419 = vmatpush.bf16.msra.mxu0 0
      %1420 = vmatpush.bf16.msra.mxu0 0
      %1421 = vmatpush.bf16.msra.mxu0 %v1316
      %1422 = vmatpush.bf16.msra.mxu0 %v1315
      %1423 = vmatpush.bf16.msra.mxu0 %v1314
      %1424 = vmatpush.bf16.msra.mxu0 %v1313
      %1425 = vmatmul.bf16.gmra.mxu0 %v1322
      %v1426 = vpop.f32.mrf.mxu0
      %v1427 = vadd.f32 %v1295, %v1426
      %v1428 = vpop.f32.mrf.mxu0
      %v1429 = vadd.f32 %v1295, %v1428
      %1430 = vmatmul.bf16.gmra.mxu0 %v1325
      %v1431 = vpop.f32.mrf.mxu0
      %v1432 = vadd.f32 %v1295, %v1431
      %v1433 = vpop.f32.mrf.mxu0
      %v1434 = vadd.f32 %v1295, %v1433
      %1435 = vmatmul.bf16.gmra.mxu0 %v1328
      %v1436 = vpop.f32.mrf.mxu0
      %v1437 = vadd.f32 %v1295, %v1436
      %v1438 = vpop.f32.mrf.mxu0
      %v1439 = vadd.f32 %v1295, %v1438
      %1440 = vmatmul.bf16.gmra.mxu0 %v1331
      %v1441 = vpop.f32.mrf.mxu0
      %v1442 = vadd.f32 %v1295, %v1441
      %v1443 = vpop.f32.mrf.mxu0
      %v1444 = vadd.f32 %v1295, %v1443
      %1445 = vmatmul.bf16.gmra.mxu0 %v1334
      %v1446 = vpop.f32.mrf.mxu0
      %v1447 = vadd.f32 %v1295, %v1446
      %v1448 = vpop.f32.mrf.mxu0
      %v1449 = vadd.f32 %v1295, %v1448
      %1450 = vmatmul.bf16.gmra.mxu0 %v1337
      %v1451 = vpop.f32.mrf.mxu0
      %v1452 = vadd.f32 %v1295, %v1451
      %v1453 = vpop.f32.mrf.mxu0
      %v1454 = vadd.f32 %v1295, %v1453
      %1455 = vmatmul.bf16.gmra.mxu0 %v1340
      %v1456 = vpop.f32.mrf.mxu0
      %v1457 = vadd.f32 %v1295, %v1456
      %v1458 = vpop.f32.mrf.mxu0
      %v1459 = vadd.f32 %v1295, %v1458
      %1460 = vmatmul.bf16.gmra.mxu0 %v1343
      %v1461 = vpop.f32.mrf.mxu0
      %v1462 = vadd.f32 %v1295, %v1461
      %v1463 = vpop.f32.mrf.mxu0
      %v1464 = vadd.f32 %v1295, %v1463
      %1465 = vmatmul.bf16.gmra.mxu0 %v1346
      %v1466 = vpop.f32.mrf.mxu0
      %v1467 = vadd.f32 %v1295, %v1466
      %v1468 = vpop.f32.mrf.mxu0
      %v1469 = vadd.f32 %v1295, %v1468
      %1470 = vmatmul.bf16.gmra.mxu0 %v1349
      %v1471 = vpop.f32.mrf.mxu0
      %v1472 = vadd.f32 %v1295, %v1471
      %v1473 = vpop.f32.mrf.mxu0
      %v1474 = vadd.f32 %v1295, %v1473
      %1475 = vmatmul.bf16.gmra.mxu0 %v1352
      %v1476 = vpop.f32.mrf.mxu0
      %v1477 = vadd.f32 %v1295, %v1476
      %v1478 = vpop.f32.mrf.mxu0
      %v1479 = vadd.f32 %v1295, %v1478
      %1480 = vmatmul.bf16.gmra.mxu0 %v1355
      %v1481 = vpop.f32.mrf.mxu0
      %v1482 = vadd.f32 %v1295, %v1481
      %v1483 = vpop.f32.mrf.mxu0
      %v1484 = vadd.f32 %v1295, %v1483
      %1485 = vmatmul.bf16.gmra.mxu0 %v1358
      %v1486 = vpop.f32.mrf.mxu0
      %v1487 = vadd.f32 %v1295, %v1486
      %v1488 = vpop.f32.mrf.mxu0
      %v1489 = vadd.f32 %v1295, %v1488
      %1490 = vmatmul.bf16.gmra.mxu0 %v1361
      %v1491 = vpop.f32.mrf.mxu0
      %v1492 = vadd.f32 %v1295, %v1491
      %v1493 = vpop.f32.mrf.mxu0
      %v1494 = vadd.f32 %v1295, %v1493
      %1495 = vmatmul.bf16.gmra.mxu0 %v1364
      %v1496 = vpop.f32.mrf.mxu0
      %v1497 = vadd.f32 %v1295, %v1496
      %v1498 = vpop.f32.mrf.mxu0
      %v1499 = vadd.f32 %v1295, %v1498
      %1500 = vmatmul.bf16.gmra.mxu0 %v1367
      %v1501 = vpop.f32.mrf.mxu0
      %v1502 = vadd.f32 %v1295, %v1501
      %v1503 = vpop.f32.mrf.mxu0
      %v1504 = vadd.f32 %v1295, %v1503
      %1505 = vmatmul.bf16.gmra.mxu0 %v1370
      %v1506 = vpop.f32.mrf.mxu0
      %v1507 = vadd.f32 %v1295, %v1506
      %v1508 = vpop.f32.mrf.mxu0
      %v1509 = vadd.f32 %v1295, %v1508
      %1510 = vmatmul.bf16.gmra.mxu0 %v1373
      %v1511 = vpop.f32.mrf.mxu0
      %v1512 = vadd.f32 %v1295, %v1511
      %v1513 = vpop.f32.mrf.mxu0
      %v1514 = vadd.f32 %v1295, %v1513
      %1515 = vmatmul.bf16.gmra.mxu0 %v1376
      %v1516 = vpop.f32.mrf.mxu0
      %v1517 = vadd.f32 %v1295, %v1516
      %v1518 = vpop.f32.mrf.mxu0
      %v1519 = vadd.f32 %v1295, %v1518
      %1520 = vmatmul.bf16.gmra.mxu0 %v1379
      %v1521 = vpop.f32.mrf.mxu0
      %v1522 = vadd.f32 %v1295, %v1521
      %v1523 = vpop.f32.mrf.mxu0
      %v1524 = vadd.f32 %v1295, %v1523
      %1525 = vmatmul.bf16.gmra.mxu0 %v1382
      %v1526 = vpop.f32.mrf.mxu0
      %v1527 = vadd.f32 %v1295, %v1526
      %v1528 = vpop.f32.mrf.mxu0
      %v1529 = vadd.f32 %v1295, %v1528
      %1530 = vmatmul.bf16.gmra.mxu0 %v1385
      %v1531 = vpop.f32.mrf.mxu0
      %v1532 = vadd.f32 %v1295, %v1531
      %v1533 = vpop.f32.mrf.mxu0
      %v1534 = vadd.f32 %v1295, %v1533
      %1535 = vmatmul.bf16.gmra.mxu0 %v1388
      %v1536 = vpop.f32.mrf.mxu0
      %v1537 = vadd.f32 %v1295, %v1536
      %v1538 = vpop.f32.mrf.mxu0
      %v1539 = vadd.f32 %v1295, %v1538
      %1540 = vmatmul.bf16.gmra.mxu0 %v1391
      %v1541 = vpop.f32.mrf.mxu0
      %v1542 = vadd.f32 %v1295, %v1541
      %v1543 = vpop.f32.mrf.mxu0
      %v1544 = vadd.f32 %v1295, %v1543
      %1545 = vmatmul.bf16.gmra.mxu0 %v1394
      %v1546 = vpop.f32.mrf.mxu0
      %v1547 = vadd.f32 %v1295, %v1546
      %v1548 = vpop.f32.mrf.mxu0
      %v1549 = vadd.f32 %v1295, %v1548
      %1550 = vmatmul.bf16.gmra.mxu0 %v1397
      %v1551 = vpop.f32.mrf.mxu0
      %v1552 = vadd.f32 %v1295, %v1551
      %v1553 = vpop.f32.mrf.mxu0
      %v1554 = vadd.f32 %v1295, %v1553
      %1555 = vmatmul.bf16.gmra.mxu0 %v1400
      %v1556 = vpop.f32.mrf.mxu0
      %v1557 = vadd.f32 %v1295, %v1556
      %v1558 = vpop.f32.mrf.mxu0
      %v1559 = vadd.f32 %v1295, %v1558
      %1560 = vmatmul.bf16.gmra.mxu0 %v1403
      %v1561 = vpop.f32.mrf.mxu0
      %v1562 = vadd.f32 %v1295, %v1561
      %v1563 = vpop.f32.mrf.mxu0
      %v1564 = vadd.f32 %v1295, %v1563
      %1565 = vmatmul.bf16.gmra.mxu0 %v1406
      %v1566 = vpop.f32.mrf.mxu0
      %v1567 = vadd.f32 %v1295, %v1566
      %v1568 = vpop.f32.mrf.mxu0
      %v1569 = vadd.f32 %v1295, %v1568
      %1570 = vmatmul.bf16.gmra.mxu0 %v1409
      %v1571 = vpop.f32.mrf.mxu0
      %v1572 = vadd.f32 %v1295, %v1571
      %v1573 = vpop.f32.mrf.mxu0
      %v1574 = vadd.f32 %v1295, %v1573
      %1575 = vmatmul.bf16.gmra.mxu0 %v1412
      %v1576 = vpop.f32.mrf.mxu0
      %v1577 = vadd.f32 %v1295, %v1576
      %v1578 = vpop.f32.mrf.mxu0
      %v1579 = vadd.f32 %v1295, %v1578
      %1580 = vmatmul.bf16.gmra.mxu0 %v1415
      %v1581 = vpop.f32.mrf.mxu0
      %v1582 = vadd.f32 %v1295, %v1581
      %v1583 = vpop.f32.mrf.mxu0
      %v1584 = vadd.f32 %v1295, %v1583
      %1585 = vdwg.mxu0
      %v1586 = vmax.f32 %v1427, 0.0
      %v1587 = vmax.f32 %v1429, 0.0
      %v1588 = vmax.f32 %v1432, 0.0
      %v1589 = vmax.f32 %v1434, 0.0
      %v1590 = vmax.f32 %v1437, 0.0
      %v1591 = vmax.f32 %v1439, 0.0
      %v1592 = vmax.f32 %v1442, 0.0
      %v1593 = vmax.f32 %v1444, 0.0
      %v1594 = vmax.f32 %v1447, 0.0
      %v1595 = vmax.f32 %v1449, 0.0
      %v1596 = vmax.f32 %v1452, 0.0
      %v1597 = vmax.f32 %v1454, 0.0
      %v1598 = vmax.f32 %v1457, 0.0
      %v1599 = vmax.f32 %v1459, 0.0
      %v1600 = vmax.f32 %v1462, 0.0
      %v1601 = vmax.f32 %v1464, 0.0
      %v1602 = vmax.f32 %v1467, 0.0
      %v1603 = vmax.f32 %v1469, 0.0
      %v1604 = vmax.f32 %v1472, 0.0
      %v1605 = vmax.f32 %v1474, 0.0
      %v1606 = vmax.f32 %v1477, 0.0
      %v1607 = vmax.f32 %v1479, 0.0
      %v1608 = vmax.f32 %v1482, 0.0
      %v1609 = vmax.f32 %v1484, 0.0
      %v1610 = vmax.f32 %v1487, 0.0
      %v1611 = vmax.f32 %v1489, 0.0
      %v1612 = vmax.f32 %v1492, 0.0
      %v1613 = vmax.f32 %v1494, 0.0
      %v1614 = vmax.f32 %v1497, 0.0
      %v1615 = vmax.f32 %v1499, 0.0
      %v1616 = vmax.f32 %v1502, 0.0
      %v1617 = vmax.f32 %v1504, 0.0
      %v1618 = vmax.f32 %v1507, 0.0
      %v1619 = vmax.f32 %v1509, 0.0
      %v1620 = vmax.f32 %v1512, 0.0
      %v1621 = vmax.f32 %v1514, 0.0
      %v1622 = vmax.f32 %v1517, 0.0
      %v1623 = vmax.f32 %v1519, 0.0
      %v1624 = vmax.f32 %v1522, 0.0
      %v1625 = vmax.f32 %v1524, 0.0
      %v1626 = vmax.f32 %v1527, 0.0
      %v1627 = vmax.f32 %v1529, 0.0
      %v1628 = vmax.f32 %v1532, 0.0
      %v1629 = vmax.f32 %v1534, 0.0
      %v1630 = vmax.f32 %v1537, 0.0
      %v1631 = vmax.f32 %v1539, 0.0
      %v1632 = vmax.f32 %v1542, 0.0
      %v1633 = vmax.f32 %v1544, 0.0
      %v1634 = vmax.f32 %v1547, 0.0
      %v1635 = vmax.f32 %v1549, 0.0
      %v1636 = vmax.f32 %v1552, 0.0
      %v1637 = vmax.f32 %v1554, 0.0
      %v1638 = vmax.f32 %v1557, 0.0
      %v1639 = vmax.f32 %v1559, 0.0
      %v1640 = vmax.f32 %v1562, 0.0
      %v1641 = vmax.f32 %v1564, 0.0
      %v1642 = vmax.f32 %v1567, 0.0
      %v1643 = vmax.f32 %v1569, 0.0
      %v1644 = vmax.f32 %v1572, 0.0
      %v1645 = vmax.f32 %v1574, 0.0
      %v1646 = vmax.f32 %v1577, 0.0
      %v1647 = vmax.f32 %v1579, 0.0
      %v1648 = vmax.f32 %v1582, 0.0
      %v1649 = vmax.f32 %v1584, 0.0
      %v1650 = vpack.c.bf16 %v1586, %v1586
      %v1651 = vpack.c.bf16 %v1587, %v1587
      %v1652 = vpack.c.bf16 %v1588, %v1588
      %v1653 = vpack.c.bf16 %v1589, %v1589
      %v1654 = vpack.c.bf16 %v1590, %v1590
      %v1655 = vpack.c.bf16 %v1591, %v1591
      %v1656 = vpack.c.bf16 %v1592, %v1592
      %v1657 = vpack.c.bf16 %v1593, %v1593
      %v1658 = vpack.c.bf16 %v1594, %v1594
      %v1659 = vpack.c.bf16 %v1595, %v1595
      %v1660 = vpack.c.bf16 %v1596, %v1596
      %v1661 = vpack.c.bf16 %v1597, %v1597
      %v1662 = vpack.c.bf16 %v1598, %v1598
      %v1663 = vpack.c.bf16 %v1599, %v1599
      %v1664 = vpack.c.bf16 %v1600, %v1600
      %v1665 = vpack.c.bf16 %v1601, %v1601
      %v1666 = vpack.c.bf16 %v1602, %v1602
      %v1667 = vpack.c.bf16 %v1603, %v1603
      %v1668 = vpack.c.bf16 %v1604, %v1604
      %v1669 = vpack.c.bf16 %v1605, %v1605
      %v1670 = vpack.c.bf16 %v1606, %v1606
      %v1671 = vpack.c.bf16 %v1607, %v1607
      %v1672 = vpack.c.bf16 %v1608, %v1608
      %v1673 = vpack.c.bf16 %v1609, %v1609
      %v1674 = vpack.c.bf16 %v1610, %v1610
      %v1675 = vpack.c.bf16 %v1611, %v1611
      %v1676 = vpack.c.bf16 %v1612, %v1612
      %v1677 = vpack.c.bf16 %v1613, %v1613
      %v1678 = vpack.c.bf16 %v1614, %v1614
      %v1679 = vpack.c.bf16 %v1615, %v1615
      %v1680 = vpack.c.bf16 %v1616, %v1616
      %v1681 = vpack.c.bf16 %v1617, %v1617
      %v1682 = vpack.c.bf16 %v1618, %v1618
      %v1683 = vpack.c.bf16 %v1619, %v1619
      %v1684 = vpack.c.bf16 %v1620, %v1620
      %v1685 = vpack.c.bf16 %v1621, %v1621
      %v1686 = vpack.c.bf16 %v1622, %v1622
      %v1687 = vpack.c.bf16 %v1623, %v1623
      %v1688 = vpack.c.bf16 %v1624, %v1624
      %v1689 = vpack.c.bf16 %v1625, %v1625
      %v1690 = vpack.c.bf16 %v1626, %v1626
      %v1691 = vpack.c.bf16 %v1627, %v1627
      %v1692 = vpack.c.bf16 %v1628, %v1628
      %v1693 = vpack.c.bf16 %v1629, %v1629
      %v1694 = vpack.c.bf16 %v1630, %v1630
      %v1695 = vpack.c.bf16 %v1631, %v1631
      %v1696 = vpack.c.bf16 %v1632, %v1632
      %v1697 = vpack.c.bf16 %v1633, %v1633
      %v1698 = vpack.c.bf16 %v1634, %v1634
      %v1699 = vpack.c.bf16 %v1635, %v1635
      %v1700 = vpack.c.bf16 %v1636, %v1636
      %v1701 = vpack.c.bf16 %v1637, %v1637
      %v1702 = vpack.c.bf16 %v1638, %v1638
      %v1703 = vpack.c.bf16 %v1639, %v1639
      %v1704 = vpack.c.bf16 %v1640, %v1640
      %v1705 = vpack.c.bf16 %v1641, %v1641
      %v1706 = vpack.c.bf16 %v1642, %v1642
      %v1707 = vpack.c.bf16 %v1643, %v1643
      %v1708 = vpack.c.bf16 %v1644, %v1644
      %v1709 = vpack.c.bf16 %v1645, %v1645
      %v1710 = vpack.c.bf16 %v1646, %v1646
      %v1711 = vpack.c.bf16 %v1647, %v1647
      %v1712 = vpack.c.bf16 %v1648, %v1648
      %v1713 = vpack.c.bf16 %v1649, %v1649
      %1714 = vst [vmem:[%s280] sm:$0xf] %v1650
      %1715 = vst [vmem:[%s280 + $0x4] sm:$0xf] %v1651
      %1716 = vst [vmem:[%s280 + $0x8] sm:$0xf] %v1652
      %1717 = vst [vmem:[%s280 + $0xc] sm:$0xf] %v1653
      %1718 = vst [vmem:[%s280 + $0x10] sm:$0xf] %v1654
      %1719 = vst [vmem:[%s280 + $0x14] sm:$0xf] %v1655
      %1720 = vst [vmem:[%s280 + $0x18] sm:$0xf] %v1656
      %1721 = vst [vmem:[%s280 + $0x1c] sm:$0xf] %v1657
      %1722 = vst [vmem:[%s280 + $0x20] sm:$0xf] %v1658
      %1723 = vst [vmem:[%s280 + $0x24] sm:$0xf] %v1659
      %1724 = vst [vmem:[%s280 + $0x28] sm:$0xf] %v1660
      %1725 = vst [vmem:[%s280 + $0x2c] sm:$0xf] %v1661
      %1726 = vst [vmem:[%s280 + $0x30] sm:$0xf] %v1662
      %1727 = vst [vmem:[%s280 + $0x34] sm:$0xf] %v1663
      %1728 = vst [vmem:[%s280 + $0x38] sm:$0xf] %v1664
      %1729 = vst [vmem:[%s280 + $0x3c] sm:$0xf] %v1665
      %1730 = vst [vmem:[%s280 + $0x40] sm:$0xf] %v1666
      %1731 = vst [vmem:[%s280 + $0x44] sm:$0xf] %v1667
      %1732 = vst [vmem:[%s280 + $0x48] sm:$0xf] %v1668
      %1733 = vst [vmem:[%s280 + $0x4c] sm:$0xf] %v1669
      %1734 = vst [vmem:[%s280 + $0x50] sm:$0xf] %v1670
      %1735 = vst [vmem:[%s280 + $0x54] sm:$0xf] %v1671
      %1736 = vst [vmem:[%s280 + $0x58] sm:$0xf] %v1672
      %1737 = vst [vmem:[%s280 + $0x5c] sm:$0xf] %v1673
      %1738 = vst [vmem:[%s280 + $0x60] sm:$0xf] %v1674
      %1739 = vst [vmem:[%s280 + $0x64] sm:$0xf] %v1675
      %1740 = vst [vmem:[%s280 + $0x68] sm:$0xf] %v1676
      %1741 = vst [vmem:[%s280 + $0x6c] sm:$0xf] %v1677
      %1742 = vst [vmem:[%s280 + $0x70] sm:$0xf] %v1678
      %1743 = vst [vmem:[%s280 + $0x74] sm:$0xf] %v1679
      %1744 = vst [vmem:[%s280 + $0x78] sm:$0xf] %v1680
      %1745 = vst [vmem:[%s280 + $0x7c] sm:$0xf] %v1681
      %1746 = vst [vmem:[%s280 + $0x80] sm:$0xf] %v1682
      %1747 = vst [vmem:[%s280 + $0x84] sm:$0xf] %v1683
      %1748 = vst [vmem:[%s280 + $0x88] sm:$0xf] %v1684
      %1749 = vst [vmem:[%s280 + $0x8c] sm:$0xf] %v1685
      %1750 = vst [vmem:[%s280 + $0x90] sm:$0xf] %v1686
      %1751 = vst [vmem:[%s280 + $0x94] sm:$0xf] %v1687
      %1752 = vst [vmem:[%s280 + $0x98] sm:$0xf] %v1688
      %1753 = vst [vmem:[%s280 + $0x9c] sm:$0xf] %v1689
      %1754 = vst [vmem:[%s280 + $0xa0] sm:$0xf] %v1690
      %1755 = vst [vmem:[%s280 + $0xa4] sm:$0xf] %v1691
      %1756 = vst [vmem:[%s280 + $0xa8] sm:$0xf] %v1692
      %1757 = vst [vmem:[%s280 + $0xac] sm:$0xf] %v1693
      %1758 = vst [vmem:[%s280 + $0xb0] sm:$0xf] %v1694
      %1759 = vst [vmem:[%s280 + $0xb4] sm:$0xf] %v1695
      %1760 = vst [vmem:[%s280 + $0xb8] sm:$0xf] %v1696
      %1761 = vst [vmem:[%s280 + $0xbc] sm:$0xf] %v1697
      %1762 = vst [vmem:[%s280 + $0xc0] sm:$0xf] %v1698
      %1763 = vst [vmem:[%s280 + $0xc4] sm:$0xf] %v1699
      %1764 = vst [vmem:[%s280 + $0xc8] sm:$0xf] %v1700
      %1765 = vst [vmem:[%s280 + $0xcc] sm:$0xf] %v1701
      %1766 = vst [vmem:[%s280 + $0xd0] sm:$0xf] %v1702
      %1767 = vst [vmem:[%s280 + $0xd4] sm:$0xf] %v1703
      %1768 = vst [vmem:[%s280 + $0xd8] sm:$0xf] %v1704
      %1769 = vst [vmem:[%s280 + $0xdc] sm:$0xf] %v1705
      %1770 = vst [vmem:[%s280 + $0xe0] sm:$0xf] %v1706
      %1771 = vst [vmem:[%s280 + $0xe4] sm:$0xf] %v1707
      %1772 = vst [vmem:[%s280 + $0xe8] sm:$0xf] %v1708
      %1773 = vst [vmem:[%s280 + $0xec] sm:$0xf] %v1709
      %1774 = vst [vmem:[%s280 + $0xf0] sm:$0xf] %v1710
      %1775 = vst [vmem:[%s280 + $0xf4] sm:$0xf] %v1711
      %1776 = vst [vmem:[%s280 + $0xf8] sm:$0xf] %v1712
      %1777 = vst [vmem:[%s280 + $0xfc] sm:$0xf] %v1713
      %s1778 = smul.u32 64, %s18
      %p1779 = scmp.lt.s32.totalorder %s1778, 127
      %s1780 = scalar_select %p1779, %s1778, 127
      %s1781 = smul.addr %s1780, 4
      %s1782 = scalar_lea.vmem %s7, %s1781
      // Predicated region
      $region49: #{pointnetpp_encoder_fp_forward.7} parent=47 // pred_check
        %p1783 = pneg %p188
      $region50: #{pointnetpp_encoder_fp_forward.7} parent=47 // pred_check_branch
        %1785 = sbr.rel (%p1783) target = $region52
      $region51: #{pointnetpp_encoder_fp_forward.7} parent=47 // pred_region
        %s1786 = smul.u32 64, %s18
      $region52: #{pointnetpp_encoder_fp_forward.7} parent=47 // pred_fallthru
        _
    $region48: #{pointnetpp_encoder_fp_forward.7} parent=5 // pred_fallthru
      _
    %p1787 = scmp.le.s32.totalorder 2, %s13
    // Predicated region
    $region53: #{pointnetpp_encoder_fp_forward.7} parent=5 // pred_check
      %p1788 = pneg %p1787
    $region54: #{pointnetpp_encoder_fp_forward.7} parent=5 // pred_check_branch
      %1790 = sbr.rel (%p1788) target = $region56
    $region55: #{pointnetpp_encoder_fp_forward.7} parent=5 // pred_region
      %s1791 = ssub.s32 %s13, 2
      // Predicated region
      $region57: #{pointnetpp_encoder_fp_forward.7} parent=55 // pred_check
        %p1792 = pneg %p194
      $region58: #{pointnetpp_encoder_fp_forward.7} parent=55 // pred_check_branch
        %1794 = sbr.rel (%p1792) target = $region60
      $region59: #{pointnetpp_encoder_fp_forward.7} parent=55 // pred_region
        %s1795 = smul.u32 64, %s19
        %p1796 = scmp.lt.s32.totalorder %s1795, 127
        %s1797 = scalar_select %p1796, %s1795, 127
        %s1798 = smul.addr %s1797, 4
        %s1799 = scalar_lea.vmem %s7, %s1798
      $region60: #{pointnetpp_encoder_fp_forward.7} parent=55 // pred_fallthru
        _
    $region56: #{pointnetpp_encoder_fp_forward.7} parent=5 // pred_fallthru
      _
  $region6: #{pointnetpp_encoder_fp_forward.7} parent=0 // loop_footer
    %s17 = sadd.s32 1, %s13
  $region7: #{pointnetpp_encoder_fp_forward.7} parent=0 // loop_footer_branch
    %12 = sbr.rel target = $region3
  $region8: #{pointnetpp_encoder_fp_forward.7} parent=0 // loop_exit
    _

// kernel: pointnetpp_encoder_fp_forward.9
$region0: #{pointnetpp_encoder_fp_forward.9}
  #allocation0 [shape = 'u32[]', space=smem, size = 0x4, offset = 0x4, fixed_abs, tag = 'smem constant byte address 0x4 - core index']
  #allocation1 [shape = 'u32[72,128]{1,0:T(1,128)}', space=vmem, size = 0x9000, scoped, tag = 'internal scratch']
  %s0 = inlined_call_operand.vmem [shape: bf16[256,128], index: 0, kind: input, shape index: {}]
  %s1 = inlined_call_operand.vmem [shape: bf16[128,128], index: 1, kind: input, shape index: {}]
  %s2 = inlined_call_operand.vmem [shape: f32[1,128], index: 2, kind: input, shape index: {}]
  %s3 = inlined_call_operand.vmem [shape: bf16[128,128], index: 3, kind: input, shape index: {}]
  %s4 = inlined_call_operand.vmem [shape: f32[1,128], index: 4, kind: input, shape index: {}]
  %s5 = inlined_call_operand.vmem [shape: bf16[128,128], index: 5, kind: input, shape index: {}]
  %s6 = inlined_call_operand.vmem [shape: f32[1,128], index: 6, kind: input, shape index: {}]
  %s7 = inlined_call_operand.vmem [shape: bf16[256,128], index: 7, kind: output, shape index: {}]
  %s8 = sld [smem:[#allocation0]]
  $region61: #{pointnetpp_encoder_fp_forward.9} parent=0
    _
  %s10 = ssub.s32 1, %s8
  %s11 = scalar_select 0, %s10, %s8
  loop: start=0, step=1, limit=4
  $region2: #{pointnetpp_encoder_fp_forward.9} parent=0 // loop_pre_header
    _
  $region3: #{pointnetpp_encoder_fp_forward.9} parent=0 // loop_header
    %s13 = sphi 0, %s17
    %p14 = scmp.ge.s32.totalorder %s13, 4
    %s23 = sphi 0, %s25
    %s26 = sphi 0, %s23
    %s27 = sphi 0, %s26
    %s43 = sphi 0, %s27
    %s47 = sphi 0, %s47
    %s49 = sphi 0, %s47
    %s50 = sphi 0, %s49
    %s64 = sphi 0, %s50
    %s68 = sphi 0, %s68
    %s70 = sphi 0, %s68
    %s71 = sphi 0, %s70
    %s85 = sphi 0, %s71
    %s89 = sphi 0, %s89
    %s91 = sphi 0, %s89
    %s92 = sphi 0, %s91
    %s106 = sphi 0, %s92
    %s110 = sphi 0, %s110
    %s112 = sphi 0, %s110
    %s113 = sphi 0, %s112
    %s127 = sphi 0, %s113
    %s131 = sphi 0, %s131
    %s133 = sphi 0, %s131
    %s134 = sphi 0, %s133
    %s148 = sphi 0, %s134
    %s152 = sphi 0, %s152
    %s154 = sphi 0, %s152
    %s155 = sphi 0, %s154
    %s169 = sphi 0, %s155
    %s175 = sphi 0, %s177
    %s178 = sphi 0, %s175
    %s179 = sphi 0, %s178
    %s195 = sphi 0, %s179
  $region4: #{pointnetpp_encoder_fp_forward.9} parent=0 // loop_header_branch
    %16 = sbr.rel (%p14) target = $region8
  $region5: #{pointnetpp_encoder_fp_forward.9} parent=0 // loop_body
    %s18 = ssub.s32 %s13, 1
    %s19 = ssub.s32 %s13, 2
    %s20 = sadd.s32 %s13, 1
    %s21 = ssub.s32 %s13, %s20
    %p22 = scmp.eq.s32.totalorder %s21, 0
    %s24 = sadd.s32 %s23, 1
    %s25 = scalar_select %p22, %s23, %s24
    %p28 = pneg %p22
    %p29 = scmp.eq.s32.totalorder %s13, 1
    %p30 = por %p28, %p29
    %p31 = scmp.ne.s32.totalorder %s23, %s26
    %p32 = scmp.eq.s32.totalorder %s13, 0
    %p33 = por %p31, %p32
    %p34 = scmp.ne.s32.totalorder %s23, %s26
    %p35 = scmp.eq.s32.totalorder %s18, 1
    %p36 = por %p34, %p35
    %p37 = scmp.ne.s32.totalorder %s26, %s27
    %p38 = scmp.eq.s32.totalorder %s18, 0
    %p39 = por %p37, %p38
    %p40 = scmp.ne.s32.totalorder %s26, %s27
    %p41 = scmp.eq.s32.totalorder %s19, 1
    %p42 = por %p40, %p41
    %p44 = scmp.ne.s32.totalorder %s27, %s43
    %p45 = scmp.eq.s32.totalorder %s19, 0
    %p46 = por %p44, %p45
    %s48 = sadd.s32 %s47, 1
    %p51 = scmp.eq.s32.totalorder %s13, 1
    %p52 = scmp.ne.s32.totalorder %s47, %s49
    %p53 = scmp.eq.s32.totalorder %s13, 0
    %p54 = por %p52, %p53
    %p55 = scmp.ne.s32.totalorder %s47, %s49
    %p56 = scmp.eq.s32.totalorder %s18, 1
    %p57 = por %p55, %p56
    %p58 = scmp.ne.s32.totalorder %s49, %s50
    %p59 = scmp.eq.s32.totalorder %s18, 0
    %p60 = por %p58, %p59
    %p61 = scmp.ne.s32.totalorder %s49, %s50
    %p62 = scmp.eq.s32.totalorder %s19, 1
    %p63 = por %p61, %p62
    %p65 = scmp.ne.s32.totalorder %s50, %s64
    %p66 = scmp.eq.s32.totalorder %s19, 0
    %p67 = por %p65, %p66
    %s69 = sadd.s32 %s68, 1
    %p72 = scmp.eq.s32.totalorder %s13, 1
    %p73 = scmp.ne.s32.totalorder %s68, %s70
    %p74 = scmp.eq.s32.totalorder %s13, 0
    %p75 = por %p73, %p74
    %p76 = scmp.ne.s32.totalorder %s68, %s70
    %p77 = scmp.eq.s32.totalorder %s18, 1
    %p78 = por %p76, %p77
    %p79 = scmp.ne.s32.totalorder %s70, %s71
    %p80 = scmp.eq.s32.totalorder %s18, 0
    %p81 = por %p79, %p80
    %p82 = scmp.ne.s32.totalorder %s70, %s71
    %p83 = scmp.eq.s32.totalorder %s19, 1
    %p84 = por %p82, %p83
    %p86 = scmp.ne.s32.totalorder %s71, %s85
    %p87 = scmp.eq.s32.totalorder %s19, 0
    %p88 = por %p86, %p87
    %s90 = sadd.s32 %s89, 1
    %p93 = scmp.eq.s32.totalorder %s13, 1
    %p94 = scmp.ne.s32.totalorder %s89, %s91
    %p95 = scmp.eq.s32.totalorder %s13, 0
    %p96 = por %p94, %p95
    %p97 = scmp.ne.s32.totalorder %s89, %s91
    %p98 = scmp.eq.s32.totalorder %s18, 1
    %p99 = por %p97, %p98
    %p100 = scmp.ne.s32.totalorder %s91, %s92
    %p101 = scmp.eq.s32.totalorder %s18, 0
    %p102 = por %p100, %p101
    %p103 = scmp.ne.s32.totalorder %s91, %s92
    %p104 = scmp.eq.s32.totalorder %s19, 1
    %p105 = por %p103, %p104
    %p107 = scmp.ne.s32.totalorder %s92, %s106
    %p108 = scmp.eq.s32.totalorder %s19, 0
    %p109 = por %p107, %p108
    %s111 = sadd.s32 %s110, 1
    %p114 = scmp.eq.s32.totalorder %s13, 1
    %p115 = scmp.ne.s32.totalorder %s110, %s112
    %p116 = scmp.eq.s32.totalorder %s13, 0
    %p117 = por %p115, %p116
    %p118 = scmp.ne.s32.totalorder %s110, %s112
    %p119 = scmp.eq.s32.totalorder %s18, 1
    %p120 = por %p118, %p119
    %p121 = scmp.ne.s32.totalorder %s112, %s113
    %p122 = scmp.eq.s32.totalorder %s18, 0
    %p123 = por %p121, %p122
    %p124 = scmp.ne.s32.totalorder %s112, %s113
    %p125 = scmp.eq.s32.totalorder %s19, 1
    %p126 = por %p124, %p125
    %p128 = scmp.ne.s32.totalorder %s113, %s127
    %p129 = scmp.eq.s32.totalorder %s19, 0
    %p130 = por %p128, %p129
    %s132 = sadd.s32 %s131, 1
    %p135 = scmp.eq.s32.totalorder %s13, 1
    %p136 = scmp.ne.s32.totalorder %s131, %s133
    %p137 = scmp.eq.s32.totalorder %s13, 0
    %p138 = por %p136, %p137
    %p139 = scmp.ne.s32.totalorder %s131, %s133
    %p140 = scmp.eq.s32.totalorder %s18, 1
    %p141 = por %p139, %p140
    %p142 = scmp.ne.s32.totalorder %s133, %s134
    %p143 = scmp.eq.s32.totalorder %s18, 0
    %p144 = por %p142, %p143
    %p145 = scmp.ne.s32.totalorder %s133, %s134
    %p146 = scmp.eq.s32.totalorder %s19, 1
    %p147 = por %p145, %p146
    %p149 = scmp.ne.s32.totalorder %s134, %s148
    %p150 = scmp.eq.s32.totalorder %s19, 0
    %p151 = por %p149, %p150
    %s153 = sadd.s32 %s152, 1
    %p156 = scmp.eq.s32.totalorder %s13, 1
    %p157 = scmp.ne.s32.totalorder %s152, %s154
    %p158 = scmp.eq.s32.totalorder %s13, 0
    %p159 = por %p157, %p158
    %p160 = scmp.ne.s32.totalorder %s152, %s154
    %p161 = scmp.eq.s32.totalorder %s18, 1
    %p162 = por %p160, %p161
    %p163 = scmp.ne.s32.totalorder %s154, %s155
    %p164 = scmp.eq.s32.totalorder %s18, 0
    %p165 = por %p163, %p164
    %p166 = scmp.ne.s32.totalorder %s154, %s155
    %p167 = scmp.eq.s32.totalorder %s19, 1
    %p168 = por %p166, %p167
    %p170 = scmp.ne.s32.totalorder %s155, %s169
    %p171 = scmp.eq.s32.totalorder %s19, 0
    %p172 = por %p170, %p171
    %s173 = ssub.s32 %s13, %s20
    %p174 = scmp.eq.s32.totalorder %s173, 0
    %s176 = sadd.s32 %s175, 1
    %s177 = scalar_select %p174, %s175, %s176
    %p180 = pneg %p174
    %p181 = scmp.eq.s32.totalorder %s13, 1
    %p182 = por %p180, %p181
    %p183 = scmp.ne.s32.totalorder %s175, %s178
    %p184 = scmp.eq.s32.totalorder %s13, 0
    %p185 = por %p183, %p184
    %p186 = scmp.ne.s32.totalorder %s175, %s178
    %p187 = scmp.eq.s32.totalorder %s18, 1
    %p188 = por %p186, %p187
    %p189 = scmp.ne.s32.totalorder %s178, %s179
    %p190 = scmp.eq.s32.totalorder %s18, 0
    %p191 = por %p189, %p190
    %p192 = scmp.ne.s32.totalorder %s178, %s179
    %p193 = scmp.eq.s32.totalorder %s19, 1
    %p194 = por %p192, %p193
    %p196 = scmp.ne.s32.totalorder %s179, %s195
    %p197 = scmp.eq.s32.totalorder %s19, 0
    %p198 = por %p196, %p197
    %p199 = scmp.le.s32.totalorder 1, %s13
    %p200 = scmp.lt.s32.totalorder %s13, 3
    %p201 = pnand %p199, %p200
    %p202 = pneg %p201
    // Predicated region
    $region9: #{pointnetpp_encoder_fp_forward.9} parent=5 // pred_check
      _
    $region10: #{pointnetpp_encoder_fp_forward.9} parent=5 // pred_check_branch
      %204 = sbr.rel (%p201) target = $region12
    $region11: #{pointnetpp_encoder_fp_forward.9} parent=5 // pred_region
      %s205 = ssub.s32 %s13, 1
      // Predicated region
      $region13: #{pointnetpp_encoder_fp_forward.9} parent=11 // pred_check
        %p206 = pneg %p60
      $region14: #{pointnetpp_encoder_fp_forward.9} parent=11 // pred_check_branch
        %208 = sbr.rel (%p206) target = $region16
      $region15: #{pointnetpp_encoder_fp_forward.9} parent=11 // pred_region
        _
      $region16: #{pointnetpp_encoder_fp_forward.9} parent=11 // pred_fallthru
        _
      // Predicated region
      $region17: #{pointnetpp_encoder_fp_forward.9} parent=11 // pred_check
        %p209 = pneg %p81
      $region18: #{pointnetpp_encoder_fp_forward.9} parent=11 // pred_check_branch
        %211 = sbr.rel (%p209) target = $region20
      $region19: #{pointnetpp_encoder_fp_forward.9} parent=11 // pred_region
        _
      $region20: #{pointnetpp_encoder_fp_forward.9} parent=11 // pred_fallthru
        _
      // Predicated region
      $region21: #{pointnetpp_encoder_fp_forward.9} parent=11 // pred_check
        %p212 = pneg %p102
      $region22: #{pointnetpp_encoder_fp_forward.9} parent=11 // pred_check_branch
        %214 = sbr.rel (%p212) target = $region24
      $region23: #{pointnetpp_encoder_fp_forward.9} parent=11 // pred_region
        _
      $region24: #{pointnetpp_encoder_fp_forward.9} parent=11 // pred_fallthru
        _
      // Predicated region
      $region25: #{pointnetpp_encoder_fp_forward.9} parent=11 // pred_check
        %p215 = pneg %p123
      $region26: #{pointnetpp_encoder_fp_forward.9} parent=11 // pred_check_branch
        %217 = sbr.rel (%p215) target = $region28
      $region27: #{pointnetpp_encoder_fp_forward.9} parent=11 // pred_region
        _
      $region28: #{pointnetpp_encoder_fp_forward.9} parent=11 // pred_fallthru
        _
      // Predicated region
      $region29: #{pointnetpp_encoder_fp_forward.9} parent=11 // pred_check
        %p218 = pneg %p144
      $region30: #{pointnetpp_encoder_fp_forward.9} parent=11 // pred_check_branch
        %220 = sbr.rel (%p218) target = $region32
      $region31: #{pointnetpp_encoder_fp_forward.9} parent=11 // pred_region
        _
      $region32: #{pointnetpp_encoder_fp_forward.9} parent=11 // pred_fallthru
        _
      // Predicated region
      $region33: #{pointnetpp_encoder_fp_forward.9} parent=11 // pred_check
        %p221 = pneg %p165
      $region34: #{pointnetpp_encoder_fp_forward.9} parent=11 // pred_check_branch
        %223 = sbr.rel (%p221) target = $region36
      $region35: #{pointnetpp_encoder_fp_forward.9} parent=11 // pred_region
        _
      $region36: #{pointnetpp_encoder_fp_forward.9} parent=11 // pred_fallthru
        _
    $region12: #{pointnetpp_encoder_fp_forward.9} parent=5 // pred_fallthru
      _
    %p224 = scmp.lt.s32.totalorder %s13, 2
    // Predicated region
    $region37: #{pointnetpp_encoder_fp_forward.9} parent=5 // pred_check
      %p225 = pneg %p224
    $region38: #{pointnetpp_encoder_fp_forward.9} parent=5 // pred_check_branch
      %227 = sbr.rel (%p225) target = $region40
    $region39: #{pointnetpp_encoder_fp_forward.9} parent=5 // pred_region
      // Predicated region
      $region41: #{pointnetpp_encoder_fp_forward.9} parent=39 // pred_check
        %p228 = pneg %p33
      $region42: #{pointnetpp_encoder_fp_forward.9} parent=39 // pred_check_branch
        %230 = sbr.rel (%p228) target = $region44
      $region43: #{pointnetpp_encoder_fp_forward.9} parent=39 // pred_region
        %s231 = smul.u32 16, %s13
        %p232 = scmp.lt.s32.totalorder %s231, 31
        %s233 = scalar_select %p232, %s231, 31
        %s234 = smul.addr %s233, 4
        %s235 = scalar_lea.vmem %s0, %s234
        %s236 = smul.u32 16, %s13
      $region44: #{pointnetpp_encoder_fp_forward.9} parent=39 // pred_fallthru
        _
    $region40: #{pointnetpp_encoder_fp_forward.9} parent=5 // pred_fallthru
      _
    %p237 = scmp.le.s32.totalorder 1, %s13
    %p238 = scmp.lt.s32.totalorder %s13, 3
    %p239 = pnand %p237, %p238
    %p240 = pneg %p239
    // Predicated region
    $region45: #{pointnetpp_encoder_fp_forward.9} parent=5 // pred_check
      _
    $region46: #{pointnetpp_encoder_fp_forward.9} parent=5 // pred_check_branch
      %242 = sbr.rel (%p239) target = $region48
    $region47: #{pointnetpp_encoder_fp_forward.9} parent=5 // pred_region
      %s243 = ssub.s32 %s13, 1
      %s244 = smul.u32 16, %s18
      %p245 = scmp.lt.s32.totalorder %s244, 31
      %s246 = scalar_select %p245, %s244, 31
      %s247 = smul.addr %s246, 4
      %s248 = scalar_lea.vmem %s0, %s247
      %p249 = pneg %p39
      %p250 = pneg %p36
      %p251 = pneg %p60
      %p252 = pneg %p57
      %p253 = pneg %p81
      %p254 = pneg %p78
      %p255 = pneg %p102
      %p256 = pneg %p99
      %p257 = pneg %p123
      %p258 = pneg %p120
      %p259 = pneg %p144
      %p260 = pneg %p141
      %p261 = pneg %p165
      %p262 = pneg %p162
      %p263 = pneg %p191
      %p264 = pneg %p188
      %s265 = smul.u32 16, %s18
      %p266 = scmp.lt.s32.totalorder %s265, 31
      %s267 = scalar_select %p266, %s265, 31
      %s268 = smul.addr %s267, 4
      %s269 = scalar_lea.vmem %s7, %s268
      %s270 = smul.u32 16, %s18
      %p271 = scmp.lt.s32.totalorder %s270, 31
      %s272 = scalar_select %p271, %s270, 31
      %s273 = smul.addr %s272, 4
      %s274 = scalar_lea.vmem %s0, %s273
      %s275 = smul.u32 16, %s18
      %s276 = smul.u32 16, %s18
      %p277 = scmp.lt.s32.totalorder %s276, 31
      %s278 = scalar_select %p277, %s276, 31
      %s279 = smul.addr %s278, 4
      %s280 = scalar_lea.vmem %s7, %s279
      %s281 = smul.u32 16, %s18
      %v282 = vld [vmem:[%s274] sm:$0xf]
      %v283 = vld [vmem:[%s274 + $0x4] sm:$0xf]
      %v284 = vld [vmem:[%s274 + $0x8] sm:$0xf]
      %v285 = vld [vmem:[%s274 + $0xc] sm:$0xf]
      %v286 = vld [vmem:[%s274 + $0x10] sm:$0xf]
      %v287 = vld [vmem:[%s274 + $0x14] sm:$0xf]
      %v288 = vld [vmem:[%s274 + $0x18] sm:$0xf]
      %v289 = vld [vmem:[%s274 + $0x1c] sm:$0xf]
      %v290 = vld [vmem:[%s274 + $0x20] sm:$0xf]
      %v291 = vld [vmem:[%s274 + $0x24] sm:$0xf]
      %v292 = vld [vmem:[%s274 + $0x28] sm:$0xf]
      %v293 = vld [vmem:[%s274 + $0x2c] sm:$0xf]
      %v294 = vld [vmem:[%s274 + $0x30] sm:$0xf]
      %v295 = vld [vmem:[%s274 + $0x34] sm:$0xf]
      %v296 = vld [vmem:[%s274 + $0x38] sm:$0xf]
      %v297 = vld [vmem:[%s274 + $0x3c] sm:$0xf]
      %v298 = vld [vmem:[%s1] sm:$0xf]
      %v299 = vld [vmem:[%s1 + $0x4] sm:$0xf]
      %v300 = vld [vmem:[%s1 + $0x8] sm:$0xf]
      %v301 = vld [vmem:[%s1 + $0xc] sm:$0xf]
      %v302 = vld [vmem:[%s1 + $0x10] sm:$0xf]
      %v303 = vld [vmem:[%s1 + $0x14] sm:$0xf]
      %v304 = vld [vmem:[%s1 + $0x18] sm:$0xf]
      %v305 = vld [vmem:[%s1 + $0x1c] sm:$0xf]
      %v306 = vld [vmem:[%s1 + $0x20] sm:$0xf]
      %v307 = vld [vmem:[%s1 + $0x24] sm:$0xf]
      %v308 = vld [vmem:[%s1 + $0x28] sm:$0xf]
      %v309 = vld [vmem:[%s1 + $0x2c] sm:$0xf]
      %v310 = vld [vmem:[%s1 + $0x30] sm:$0xf]
      %v311 = vld [vmem:[%s1 + $0x34] sm:$0xf]
      %v312 = vld [vmem:[%s1 + $0x38] sm:$0xf]
      %v313 = vld [vmem:[%s1 + $0x3c] sm:$0xf]
      %v314 = vld [vmem:[%s2] sm:$0x1]
      %v316 = vperm.slane %v314, 0
      %v334 = vunpack.c.l.b16 %v282
      %v335 = vunpack.c.l.b16 %v283
      %v336 = vunpack.c.l.b16 %v284
      %v337 = vunpack.c.l.b16 %v285
      %v338 = vunpack.c.l.b16 %v286
      %v339 = vunpack.c.l.b16 %v287
      %v340 = vunpack.c.l.b16 %v288
      %v341 = vunpack.c.l.b16 %v289
      %v342 = vunpack.c.l.b16 %v290
      %v343 = vunpack.c.l.b16 %v291
      %v344 = vunpack.c.l.b16 %v292
      %v345 = vunpack.c.l.b16 %v293
      %v346 = vunpack.c.l.b16 %v294
      %v347 = vunpack.c.l.b16 %v295
      %v348 = vunpack.c.l.b16 %v296
      %v349 = vunpack.c.l.b16 %v297
      %v350 = vpack.c.b16 %v335, %v334
      %v351 = vpack.c.b16 %v337, %v336
      %v352 = vpack.c.b16 %v339, %v338
      %v353 = vpack.c.b16 %v341, %v340
      %v354 = vpack.c.b16 %v343, %v342
      %v355 = vpack.c.b16 %v345, %v344
      %v356 = vpack.c.b16 %v347, %v346
      %v357 = vpack.c.b16 %v349, %v348
      %v382 = vunpack.c.l.b16 %v298
      %v383 = vunpack.c.l.b16 %v299
      %v384 = vunpack.c.l.b16 %v300
      %v385 = vunpack.c.l.b16 %v301
      %v386 = vunpack.c.l.b16 %v302
      %v387 = vunpack.c.l.b16 %v303
      %v388 = vunpack.c.l.b16 %v304
      %v389 = vunpack.c.l.b16 %v305
      %v390 = vunpack.c.l.b16 %v306
      %v391 = vunpack.c.l.b16 %v307
      %v392 = vunpack.c.l.b16 %v308
      %v393 = vunpack.c.l.b16 %v309
      %v394 = vunpack.c.l.b16 %v310
      %v395 = vunpack.c.l.b16 %v311
      %v396 = vunpack.c.l.b16 %v312
      %v397 = vunpack.c.l.b16 %v313
      %v398 = vpack.c.b16 %v383, %v382
      %v399 = vpack.c.b16 %v385, %v384
      %v400 = vpack.c.b16 %v387, %v386
      %v401 = vpack.c.b16 %v389, %v388
      %v402 = vpack.c.b16 %v391, %v390
      %v403 = vpack.c.b16 %v393, %v392
      %v404 = vpack.c.b16 %v395, %v394
      %v405 = vpack.c.b16 %v397, %v396
      %414 = vmatpush.bf16.msra.mxu0 %v405
      %415 = vmatpush.bf16.msra.mxu0 %v404
      %416 = vmatpush.bf16.msra.mxu0 %v403
      %417 = vmatpush.bf16.msra.mxu0 %v402
      %418 = vmatpush.bf16.msra.mxu0 %v401
      %419 = vmatpush.bf16.msra.mxu0 %v400
      %420 = vmatpush.bf16.msra.mxu0 %v399
      %421 = vmatpush.bf16.msra.mxu0 %v398
      %422 = vmatmul.bf16.gmra.mxu0 %v350
      %v423 = vpop.f32.mrf.mxu0
      %v424 = vadd.f32 %v316, %v423
      %v425 = vpop.f32.mrf.mxu0
      %v426 = vadd.f32 %v316, %v425
      %427 = vmatmul.bf16.gmra.mxu0 %v351
      %v428 = vpop.f32.mrf.mxu0
      %v429 = vadd.f32 %v316, %v428
      %v430 = vpop.f32.mrf.mxu0
      %v431 = vadd.f32 %v316, %v430
      %432 = vmatmul.bf16.gmra.mxu0 %v352
      %v433 = vpop.f32.mrf.mxu0
      %v434 = vadd.f32 %v316, %v433
      %v435 = vpop.f32.mrf.mxu0
      %v436 = vadd.f32 %v316, %v435
      %437 = vmatmul.bf16.gmra.mxu0 %v353
      %v438 = vpop.f32.mrf.mxu0
      %v439 = vadd.f32 %v316, %v438
      %v440 = vpop.f32.mrf.mxu0
      %v441 = vadd.f32 %v316, %v440
      %442 = vmatmul.bf16.gmra.mxu0 %v354
      %v443 = vpop.f32.mrf.mxu0
      %v444 = vadd.f32 %v316, %v443
      %v445 = vpop.f32.mrf.mxu0
      %v446 = vadd.f32 %v316, %v445
      %447 = vmatmul.bf16.gmra.mxu0 %v355
      %v448 = vpop.f32.mrf.mxu0
      %v449 = vadd.f32 %v316, %v448
      %v450 = vpop.f32.mrf.mxu0
      %v451 = vadd.f32 %v316, %v450
      %452 = vmatmul.bf16.gmra.mxu0 %v356
      %v453 = vpop.f32.mrf.mxu0
      %v454 = vadd.f32 %v316, %v453
      %v455 = vpop.f32.mrf.mxu0
      %v456 = vadd.f32 %v316, %v455
      %457 = vmatmul.bf16.gmra.mxu0 %v357
      %v458 = vpop.f32.mrf.mxu0
      %v459 = vadd.f32 %v316, %v458
      %v460 = vpop.f32.mrf.mxu0
      %v461 = vadd.f32 %v316, %v460
      %462 = vdwg.mxu0
      %v463 = vmax.f32 %v424, 0.0
      %v464 = vmax.f32 %v426, 0.0
      %v465 = vmax.f32 %v429, 0.0
      %v466 = vmax.f32 %v431, 0.0
      %v467 = vmax.f32 %v434, 0.0
      %v468 = vmax.f32 %v436, 0.0
      %v469 = vmax.f32 %v439, 0.0
      %v470 = vmax.f32 %v441, 0.0
      %v471 = vmax.f32 %v444, 0.0
      %v472 = vmax.f32 %v446, 0.0
      %v473 = vmax.f32 %v449, 0.0
      %v474 = vmax.f32 %v451, 0.0
      %v475 = vmax.f32 %v454, 0.0
      %v476 = vmax.f32 %v456, 0.0
      %v477 = vmax.f32 %v459, 0.0
      %v478 = vmax.f32 %v461, 0.0
      %v479 = vpack.c.bf16 %v464, %v463
      %v480 = vpack.c.bf16 %v466, %v465
      %v481 = vpack.c.bf16 %v468, %v467
      %v482 = vpack.c.bf16 %v470, %v469
      %v483 = vpack.c.bf16 %v472, %v471
      %v484 = vpack.c.bf16 %v474, %v473
      %v485 = vpack.c.bf16 %v476, %v475
      %v486 = vpack.c.bf16 %v478, %v477
      %v487 = vld [vmem:[%s3] sm:$0xf]
      %v488 = vld [vmem:[%s3 + $0x4] sm:$0xf]
      %v489 = vld [vmem:[%s3 + $0x8] sm:$0xf]
      %v490 = vld [vmem:[%s3 + $0xc] sm:$0xf]
      %v491 = vld [vmem:[%s3 + $0x10] sm:$0xf]
      %v492 = vld [vmem:[%s3 + $0x14] sm:$0xf]
      %v493 = vld [vmem:[%s3 + $0x18] sm:$0xf]
      %v494 = vld [vmem:[%s3 + $0x1c] sm:$0xf]
      %v495 = vld [vmem:[%s3 + $0x20] sm:$0xf]
      %v496 = vld [vmem:[%s3 + $0x24] sm:$0xf]
      %v497 = vld [vmem:[%s3 + $0x28] sm:$0xf]
      %v498 = vld [vmem:[%s3 + $0x2c] sm:$0xf]
      %v499 = vld [vmem:[%s3 + $0x30] sm:$0xf]
      %v500 = vld [vmem:[%s3 + $0x34] sm:$0xf]
      %v501 = vld [vmem:[%s3 + $0x38] sm:$0xf]
      %v502 = vld [vmem:[%s3 + $0x3c] sm:$0xf]
      %v503 = vld [vmem:[%s4] sm:$0x1]
      %v505 = vperm.slane %v503, 0
      %v523 = vunpack.c.l.b16 %v487
      %v524 = vunpack.c.l.b16 %v488
      %v525 = vunpack.c.l.b16 %v489
      %v526 = vunpack.c.l.b16 %v490
      %v527 = vunpack.c.l.b16 %v491
      %v528 = vunpack.c.l.b16 %v492
      %v529 = vunpack.c.l.b16 %v493
      %v530 = vunpack.c.l.b16 %v494
      %v531 = vunpack.c.l.b16 %v495
      %v532 = vunpack.c.l.b16 %v496
      %v533 = vunpack.c.l.b16 %v497
      %v534 = vunpack.c.l.b16 %v498
      %v535 = vunpack.c.l.b16 %v499
      %v536 = vunpack.c.l.b16 %v500
      %v537 = vunpack.c.l.b16 %v501
      %v538 = vunpack.c.l.b16 %v502
      %v539 = vpack.c.b16 %v524, %v523
      %v540 = vpack.c.b16 %v526, %v525
      %v541 = vpack.c.b16 %v528, %v527
      %v542 = vpack.c.b16 %v530, %v529
      %v543 = vpack.c.b16 %v532, %v531
      %v544 = vpack.c.b16 %v534, %v533
      %v545 = vpack.c.b16 %v536, %v535
      %v546 = vpack.c.b16 %v538, %v537
      %555 = vmatpush.bf16.msra.mxu0 %v546
      %556 = vmatpush.bf16.msra.mxu0 %v545
      %557 = vmatpush.bf16.msra.mxu0 %v544
      %558 = vmatpush.bf16.msra.mxu0 %v543
      %559 = vmatpush.bf16.msra.mxu0 %v542
      %560 = vmatpush.bf16.msra.mxu0 %v541
      %561 = vmatpush.bf16.msra.mxu0 %v540
      %562 = vmatpush.bf16.msra.mxu0 %v539
      %563 = vmatmul.bf16.gmra.mxu0 %v479
      %v564 = vpop.f32.mrf.mxu0
      %v565 = vadd.f32 %v505, %v564
      %v566 = vpop.f32.mrf.mxu0
      %v567 = vadd.f32 %v505, %v566
      %568 = vmatmul.bf16.gmra.mxu0 %v480
      %v569 = vpop.f32.mrf.mxu0
      %v570 = vadd.f32 %v505, %v569
      %v571 = vpop.f32.mrf.mxu0
      %v572 = vadd.f32 %v505, %v571
      %573 = vmatmul.bf16.gmra.mxu0 %v481
      %v574 = vpop.f32.mrf.mxu0
      %v575 = vadd.f32 %v505, %v574
      %v576 = vpop.f32.mrf.mxu0
      %v577 = vadd.f32 %v505, %v576
      %578 = vmatmul.bf16.gmra.mxu0 %v482
      %v579 = vpop.f32.mrf.mxu0
      %v580 = vadd.f32 %v505, %v579
      %v581 = vpop.f32.mrf.mxu0
      %v582 = vadd.f32 %v505, %v581
      %583 = vmatmul.bf16.gmra.mxu0 %v483
      %v584 = vpop.f32.mrf.mxu0
      %v585 = vadd.f32 %v505, %v584
      %v586 = vpop.f32.mrf.mxu0
      %v587 = vadd.f32 %v505, %v586
      %588 = vmatmul.bf16.gmra.mxu0 %v484
      %v589 = vpop.f32.mrf.mxu0
      %v590 = vadd.f32 %v505, %v589
      %v591 = vpop.f32.mrf.mxu0
      %v592 = vadd.f32 %v505, %v591
      %593 = vmatmul.bf16.gmra.mxu0 %v485
      %v594 = vpop.f32.mrf.mxu0
      %v595 = vadd.f32 %v505, %v594
      %v596 = vpop.f32.mrf.mxu0
      %v597 = vadd.f32 %v505, %v596
      %598 = vmatmul.bf16.gmra.mxu0 %v486
      %v599 = vpop.f32.mrf.mxu0
      %v600 = vadd.f32 %v505, %v599
      %v601 = vpop.f32.mrf.mxu0
      %v602 = vadd.f32 %v505, %v601
      %603 = vdwg.mxu0
      %v604 = vmax.f32 %v565, 0.0
      %v605 = vmax.f32 %v567, 0.0
      %v606 = vmax.f32 %v570, 0.0
      %v607 = vmax.f32 %v572, 0.0
      %v608 = vmax.f32 %v575, 0.0
      %v609 = vmax.f32 %v577, 0.0
      %v610 = vmax.f32 %v580, 0.0
      %v611 = vmax.f32 %v582, 0.0
      %v612 = vmax.f32 %v585, 0.0
      %v613 = vmax.f32 %v587, 0.0
      %v614 = vmax.f32 %v590, 0.0
      %v615 = vmax.f32 %v592, 0.0
      %v616 = vmax.f32 %v595, 0.0
      %v617 = vmax.f32 %v597, 0.0
      %v618 = vmax.f32 %v600, 0.0
      %v619 = vmax.f32 %v602, 0.0
      %v620 = vpack.c.bf16 %v605, %v604
      %v621 = vpack.c.bf16 %v607, %v606
      %v622 = vpack.c.bf16 %v609, %v608
      %v623 = vpack.c.bf16 %v611, %v610
      %v624 = vpack.c.bf16 %v613, %v612
      %v625 = vpack.c.bf16 %v615, %v614
      %v626 = vpack.c.bf16 %v617, %v616
      %v627 = vpack.c.bf16 %v619, %v618
      %v628 = vld [vmem:[%s5] sm:$0xf]
      %v629 = vld [vmem:[%s5 + $0x4] sm:$0xf]
      %v630 = vld [vmem:[%s5 + $0x8] sm:$0xf]
      %v631 = vld [vmem:[%s5 + $0xc] sm:$0xf]
      %v632 = vld [vmem:[%s5 + $0x10] sm:$0xf]
      %v633 = vld [vmem:[%s5 + $0x14] sm:$0xf]
      %v634 = vld [vmem:[%s5 + $0x18] sm:$0xf]
      %v635 = vld [vmem:[%s5 + $0x1c] sm:$0xf]
      %v636 = vld [vmem:[%s5 + $0x20] sm:$0xf]
      %v637 = vld [vmem:[%s5 + $0x24] sm:$0xf]
      %v638 = vld [vmem:[%s5 + $0x28] sm:$0xf]
      %v639 = vld [vmem:[%s5 + $0x2c] sm:$0xf]
      %v640 = vld [vmem:[%s5 + $0x30] sm:$0xf]
      %v641 = vld [vmem:[%s5 + $0x34] sm:$0xf]
      %v642 = vld [vmem:[%s5 + $0x38] sm:$0xf]
      %v643 = vld [vmem:[%s5 + $0x3c] sm:$0xf]
      %v644 = vld [vmem:[%s6] sm:$0x1]
      %v646 = vperm.slane %v644, 0
      %v664 = vunpack.c.l.b16 %v628
      %v665 = vunpack.c.l.b16 %v629
      %v666 = vunpack.c.l.b16 %v630
      %v667 = vunpack.c.l.b16 %v631
      %v668 = vunpack.c.l.b16 %v632
      %v669 = vunpack.c.l.b16 %v633
      %v670 = vunpack.c.l.b16 %v634
      %v671 = vunpack.c.l.b16 %v635
      %v672 = vunpack.c.l.b16 %v636
      %v673 = vunpack.c.l.b16 %v637
      %v674 = vunpack.c.l.b16 %v638
      %v675 = vunpack.c.l.b16 %v639
      %v676 = vunpack.c.l.b16 %v640
      %v677 = vunpack.c.l.b16 %v641
      %v678 = vunpack.c.l.b16 %v642
      %v679 = vunpack.c.l.b16 %v643
      %v680 = vpack.c.b16 %v665, %v664
      %v681 = vpack.c.b16 %v667, %v666
      %v682 = vpack.c.b16 %v669, %v668
      %v683 = vpack.c.b16 %v671, %v670
      %v684 = vpack.c.b16 %v673, %v672
      %v685 = vpack.c.b16 %v675, %v674
      %v686 = vpack.c.b16 %v677, %v676
      %v687 = vpack.c.b16 %v679, %v678
      %696 = vmatpush.bf16.msra.mxu0 %v687
      %697 = vmatpush.bf16.msra.mxu0 %v686
      %698 = vmatpush.bf16.msra.mxu0 %v685
      %699 = vmatpush.bf16.msra.mxu0 %v684
      %700 = vmatpush.bf16.msra.mxu0 %v683
      %701 = vmatpush.bf16.msra.mxu0 %v682
      %702 = vmatpush.bf16.msra.mxu0 %v681
      %703 = vmatpush.bf16.msra.mxu0 %v680
      %704 = vmatmul.bf16.gmra.mxu0 %v620
      %v705 = vpop.f32.mrf.mxu0
      %v706 = vadd.f32 %v646, %v705
      %v707 = vpop.f32.mrf.mxu0
      %v708 = vadd.f32 %v646, %v707
      %709 = vmatmul.bf16.gmra.mxu0 %v621
      %v710 = vpop.f32.mrf.mxu0
      %v711 = vadd.f32 %v646, %v710
      %v712 = vpop.f32.mrf.mxu0
      %v713 = vadd.f32 %v646, %v712
      %714 = vmatmul.bf16.gmra.mxu0 %v622
      %v715 = vpop.f32.mrf.mxu0
      %v716 = vadd.f32 %v646, %v715
      %v717 = vpop.f32.mrf.mxu0
      %v718 = vadd.f32 %v646, %v717
      %719 = vmatmul.bf16.gmra.mxu0 %v623
      %v720 = vpop.f32.mrf.mxu0
      %v721 = vadd.f32 %v646, %v720
      %v722 = vpop.f32.mrf.mxu0
      %v723 = vadd.f32 %v646, %v722
      %724 = vmatmul.bf16.gmra.mxu0 %v624
      %v725 = vpop.f32.mrf.mxu0
      %v726 = vadd.f32 %v646, %v725
      %v727 = vpop.f32.mrf.mxu0
      %v728 = vadd.f32 %v646, %v727
      %729 = vmatmul.bf16.gmra.mxu0 %v625
      %v730 = vpop.f32.mrf.mxu0
      %v731 = vadd.f32 %v646, %v730
      %v732 = vpop.f32.mrf.mxu0
      %v733 = vadd.f32 %v646, %v732
      %734 = vmatmul.bf16.gmra.mxu0 %v626
      %v735 = vpop.f32.mrf.mxu0
      %v736 = vadd.f32 %v646, %v735
      %v737 = vpop.f32.mrf.mxu0
      %v738 = vadd.f32 %v646, %v737
      %739 = vmatmul.bf16.gmra.mxu0 %v627
      %v740 = vpop.f32.mrf.mxu0
      %v741 = vadd.f32 %v646, %v740
      %v742 = vpop.f32.mrf.mxu0
      %v743 = vadd.f32 %v646, %v742
      %744 = vdwg.mxu0
      %v745 = vmax.f32 %v706, 0.0
      %v746 = vmax.f32 %v708, 0.0
      %v747 = vmax.f32 %v711, 0.0
      %v748 = vmax.f32 %v713, 0.0
      %v749 = vmax.f32 %v716, 0.0
      %v750 = vmax.f32 %v718, 0.0
      %v751 = vmax.f32 %v721, 0.0
      %v752 = vmax.f32 %v723, 0.0
      %v753 = vmax.f32 %v726, 0.0
      %v754 = vmax.f32 %v728, 0.0
      %v755 = vmax.f32 %v731, 0.0
      %v756 = vmax.f32 %v733, 0.0
      %v757 = vmax.f32 %v736, 0.0
      %v758 = vmax.f32 %v738, 0.0
      %v759 = vmax.f32 %v741, 0.0
      %v760 = vmax.f32 %v743, 0.0
      %v761 = vpack.c.bf16 %v745, %v745
      %v762 = vpack.c.bf16 %v746, %v746
      %v763 = vpack.c.bf16 %v747, %v747
      %v764 = vpack.c.bf16 %v748, %v748
      %v765 = vpack.c.bf16 %v749, %v749
      %v766 = vpack.c.bf16 %v750, %v750
      %v767 = vpack.c.bf16 %v751, %v751
      %v768 = vpack.c.bf16 %v752, %v752
      %v769 = vpack.c.bf16 %v753, %v753
      %v770 = vpack.c.bf16 %v754, %v754
      %v771 = vpack.c.bf16 %v755, %v755
      %v772 = vpack.c.bf16 %v756, %v756
      %v773 = vpack.c.bf16 %v757, %v757
      %v774 = vpack.c.bf16 %v758, %v758
      %v775 = vpack.c.bf16 %v759, %v759
      %v776 = vpack.c.bf16 %v760, %v760
      %777 = vst [vmem:[%s280] sm:$0xf] %v761
      %778 = vst [vmem:[%s280 + $0x4] sm:$0xf] %v762
      %779 = vst [vmem:[%s280 + $0x8] sm:$0xf] %v763
      %780 = vst [vmem:[%s280 + $0xc] sm:$0xf] %v764
      %781 = vst [vmem:[%s280 + $0x10] sm:$0xf] %v765
      %782 = vst [vmem:[%s280 + $0x14] sm:$0xf] %v766
      %783 = vst [vmem:[%s280 + $0x18] sm:$0xf] %v767
      %784 = vst [vmem:[%s280 + $0x1c] sm:$0xf] %v768
      %785 = vst [vmem:[%s280 + $0x20] sm:$0xf] %v769
      %786 = vst [vmem:[%s280 + $0x24] sm:$0xf] %v770
      %787 = vst [vmem:[%s280 + $0x28] sm:$0xf] %v771
      %788 = vst [vmem:[%s280 + $0x2c] sm:$0xf] %v772
      %789 = vst [vmem:[%s280 + $0x30] sm:$0xf] %v773
      %790 = vst [vmem:[%s280 + $0x34] sm:$0xf] %v774
      %791 = vst [vmem:[%s280 + $0x38] sm:$0xf] %v775
      %792 = vst [vmem:[%s280 + $0x3c] sm:$0xf] %v776
      %s793 = smul.u32 16, %s18
      %p794 = scmp.lt.s32.totalorder %s793, 31
      %s795 = scalar_select %p794, %s793, 31
      %s796 = smul.addr %s795, 4
      %s797 = scalar_lea.vmem %s7, %s796
      // Predicated region
      $region49: #{pointnetpp_encoder_fp_forward.9} parent=47 // pred_check
        %p798 = pneg %p188
      $region50: #{pointnetpp_encoder_fp_forward.9} parent=47 // pred_check_branch
        %800 = sbr.rel (%p798) target = $region52
      $region51: #{pointnetpp_encoder_fp_forward.9} parent=47 // pred_region
        %s801 = smul.u32 16, %s18
      $region52: #{pointnetpp_encoder_fp_forward.9} parent=47 // pred_fallthru
        _
    $region48: #{pointnetpp_encoder_fp_forward.9} parent=5 // pred_fallthru
      _
    %p802 = scmp.le.s32.totalorder 2, %s13
    // Predicated region
    $region53: #{pointnetpp_encoder_fp_forward.9} parent=5 // pred_check
      %p803 = pneg %p802
    $region54: #{pointnetpp_encoder_fp_forward.9} parent=5 // pred_check_branch
      %805 = sbr.rel (%p803) target = $region56
    $region55: #{pointnetpp_encoder_fp_forward.9} parent=5 // pred_region
      %s806 = ssub.s32 %s13, 2
      // Predicated region
      $region57: #{pointnetpp_encoder_fp_forward.9} parent=55 // pred_check
        %p807 = pneg %p194
      $region58: #{pointnetpp_encoder_fp_forward.9} parent=55 // pred_check_branch
        %809 = sbr.rel (%p807) target = $region60
      $region59: #{pointnetpp_encoder_fp_forward.9} parent=55 // pred_region
        %s810 = smul.u32 16, %s19
        %p811 = scmp.lt.s32.totalorder %s810, 31
        %s812 = scalar_select %p811, %s810, 31
        %s813 = smul.addr %s812, 4
        %s814 = scalar_lea.vmem %s7, %s813
      $region60: #{pointnetpp_encoder_fp_forward.9} parent=55 // pred_fallthru
        _
    $region56: #{pointnetpp_encoder_fp_forward.9} parent=5 // pred_fallthru
      _
  $region6: #{pointnetpp_encoder_fp_forward.9} parent=0 // loop_footer
    %s17 = sadd.s32 1, %s13
  $region7: #{pointnetpp_encoder_fp_forward.9} parent=0 // loop_footer_branch
    %12 = sbr.rel target = $region3
  $region8: #{pointnetpp_encoder_fp_forward.9} parent=0 // loop_exit
    _

// kernel: pointnetpp_encoder_fp_forward.10
$region0: #{pointnetpp_encoder_fp_forward.10}
  #allocation0 [shape = 'u32[]', space=smem, size = 0x4, offset = 0x4, fixed_abs, tag = 'smem constant byte address 0x4 - core index']
  #allocation1 [shape = 'u32[72,128]{1,0:T(1,128)}', space=vmem, size = 0x9000, scoped, tag = 'internal scratch']
  %s0 = inlined_call_operand.vmem [shape: bf16[1024,128], index: 0, kind: input, shape index: {}]
  %s1 = inlined_call_operand.vmem [shape: bf16[1024,128], index: 1, kind: input, shape index: {}]
  %s2 = inlined_call_operand.vmem [shape: bf16[128,256], index: 2, kind: input, shape index: {}]
  %s3 = inlined_call_operand.vmem [shape: bf16[128,256], index: 3, kind: input, shape index: {}]
  %s4 = inlined_call_operand.vmem [shape: f32[1,256], index: 4, kind: input, shape index: {}]
  %s5 = inlined_call_operand.vmem [shape: bf16[256,256], index: 5, kind: input, shape index: {}]
  %s6 = inlined_call_operand.vmem [shape: f32[1,256], index: 6, kind: input, shape index: {}]
  %s7 = inlined_call_operand.vmem [shape: f32[1024,256], index: 7, kind: output, shape index: {}]
  %s8 = sld [smem:[#allocation0]]
  $region61: #{pointnetpp_encoder_fp_forward.10} parent=0
    _
  %s10 = ssub.s32 1, %s8
  %s11 = scalar_select 0, %s10, %s8
  loop: start=0, step=1, limit=4
  $region2: #{pointnetpp_encoder_fp_forward.10} parent=0 // loop_pre_header
    _
  $region3: #{pointnetpp_encoder_fp_forward.10} parent=0 // loop_header
    %s13 = sphi 0, %s17
    %p14 = scmp.ge.s32.totalorder %s13, 4
    %s23 = sphi 0, %s25
    %s26 = sphi 0, %s23
    %s27 = sphi 0, %s26
    %s43 = sphi 0, %s27
    %s49 = sphi 0, %s51
    %s52 = sphi 0, %s49
    %s53 = sphi 0, %s52
    %s69 = sphi 0, %s53
    %s73 = sphi 0, %s73
    %s75 = sphi 0, %s73
    %s76 = sphi 0, %s75
    %s90 = sphi 0, %s76
    %s94 = sphi 0, %s94
    %s96 = sphi 0, %s94
    %s97 = sphi 0, %s96
    %s111 = sphi 0, %s97
    %s115 = sphi 0, %s115
    %s117 = sphi 0, %s115
    %s118 = sphi 0, %s117
    %s132 = sphi 0, %s118
    %s136 = sphi 0, %s136
    %s138 = sphi 0, %s136
    %s139 = sphi 0, %s138
    %s153 = sphi 0, %s139
    %s157 = sphi 0, %s157
    %s159 = sphi 0, %s157
    %s160 = sphi 0, %s159
    %s174 = sphi 0, %s160
    %s180 = sphi 0, %s182
    %s183 = sphi 0, %s180
    %s184 = sphi 0, %s183
    %s200 = sphi 0, %s184
  $region4: #{pointnetpp_encoder_fp_forward.10} parent=0 // loop_header_branch
    %16 = sbr.rel (%p14) target = $region8
  $region5: #{pointnetpp_encoder_fp_forward.10} parent=0 // loop_body
    %s18 = ssub.s32 %s13, 1
    %s19 = ssub.s32 %s13, 2
    %s20 = sadd.s32 %s13, 1
    %s21 = ssub.s32 %s13, %s20
    %p22 = scmp.eq.s32.totalorder %s21, 0
    %s24 = sadd.s32 %s23, 1
    %s25 = scalar_select %p22, %s23, %s24
    %p28 = pneg %p22
    %p29 = scmp.eq.s32.totalorder %s13, 1
    %p30 = por %p28, %p29
    %p31 = scmp.ne.s32.totalorder %s23, %s26
    %p32 = scmp.eq.s32.totalorder %s13, 0
    %p33 = por %p31, %p32
    %p34 = scmp.ne.s32.totalorder %s23, %s26
    %p35 = scmp.eq.s32.totalorder %s18, 1
    %p36 = por %p34, %p35
    %p37 = scmp.ne.s32.totalorder %s26, %s27
    %p38 = scmp.eq.s32.totalorder %s18, 0
    %p39 = por %p37, %p38
    %p40 = scmp.ne.s32.totalorder %s26, %s27
    %p41 = scmp.eq.s32.totalorder %s19, 1
    %p42 = por %p40, %p41
    %p44 = scmp.ne.s32.totalorder %s27, %s43
    %p45 = scmp.eq.s32.totalorder %s19, 0
    %p46 = por %p44, %p45
    %s47 = ssub.s32 %s13, %s20
    %p48 = scmp.eq.s32.totalorder %s47, 0
    %s50 = sadd.s32 %s49, 1
    %s51 = scalar_select %p48, %s49, %s50
    %p54 = pneg %p48
    %p55 = scmp.eq.s32.totalorder %s13, 1
    %p56 = por %p54, %p55
    %p57 = scmp.ne.s32.totalorder %s49, %s52
    %p58 = scmp.eq.s32.totalorder %s13, 0
    %p59 = por %p57, %p58
    %p60 = scmp.ne.s32.totalorder %s49, %s52
    %p61 = scmp.eq.s32.totalorder %s18, 1
    %p62 = por %p60, %p61
    %p63 = scmp.ne.s32.totalorder %s52, %s53
    %p64 = scmp.eq.s32.totalorder %s18, 0
    %p65 = por %p63, %p64
    %p66 = scmp.ne.s32.totalorder %s52, %s53
    %p67 = scmp.eq.s32.totalorder %s19, 1
    %p68 = por %p66, %p67
    %p70 = scmp.ne.s32.totalorder %s53, %s69
    %p71 = scmp.eq.s32.totalorder %s19, 0
    %p72 = por %p70, %p71
    %s74 = sadd.s32 %s73, 1
    %p77 = scmp.eq.s32.totalorder %s13, 1
    %p78 = scmp.ne.s32.totalorder %s73, %s75
    %p79 = scmp.eq.s32.totalorder %s13, 0
    %p80 = por %p78, %p79
    %p81 = scmp.ne.s32.totalorder %s73, %s75
    %p82 = scmp.eq.s32.totalorder %s18, 1
    %p83 = por %p81, %p82
    %p84 = scmp.ne.s32.totalorder %s75, %s76
    %p85 = scmp.eq.s32.totalorder %s18, 0
    %p86 = por %p84, %p85
    %p87 = scmp.ne.s32.totalorder %s75, %s76
    %p88 = scmp.eq.s32.totalorder %s19, 1
    %p89 = por %p87, %p88
    %p91 = scmp.ne.s32.totalorder %s76, %s90
    %p92 = scmp.eq.s32.totalorder %s19, 0
    %p93 = por %p91, %p92
    %s95 = sadd.s32 %s94, 1
    %p98 = scmp.eq.s32.totalorder %s13, 1
    %p99 = scmp.ne.s32.totalorder %s94, %s96
    %p100 = scmp.eq.s32.totalorder %s13, 0
    %p101 = por %p99, %p100
    %p102 = scmp.ne.s32.totalorder %s94, %s96
    %p103 = scmp.eq.s32.totalorder %s18, 1
    %p104 = por %p102, %p103
    %p105 = scmp.ne.s32.totalorder %s96, %s97
    %p106 = scmp.eq.s32.totalorder %s18, 0
    %p107 = por %p105, %p106
    %p108 = scmp.ne.s32.totalorder %s96, %s97
    %p109 = scmp.eq.s32.totalorder %s19, 1
    %p110 = por %p108, %p109
    %p112 = scmp.ne.s32.totalorder %s97, %s111
    %p113 = scmp.eq.s32.totalorder %s19, 0
    %p114 = por %p112, %p113
    %s116 = sadd.s32 %s115, 1
    %p119 = scmp.eq.s32.totalorder %s13, 1
    %p120 = scmp.ne.s32.totalorder %s115, %s117
    %p121 = scmp.eq.s32.totalorder %s13, 0
    %p122 = por %p120, %p121
    %p123 = scmp.ne.s32.totalorder %s115, %s117
    %p124 = scmp.eq.s32.totalorder %s18, 1
    %p125 = por %p123, %p124
    %p126 = scmp.ne.s32.totalorder %s117, %s118
    %p127 = scmp.eq.s32.totalorder %s18, 0
    %p128 = por %p126, %p127
    %p129 = scmp.ne.s32.totalorder %s117, %s118
    %p130 = scmp.eq.s32.totalorder %s19, 1
    %p131 = por %p129, %p130
    %p133 = scmp.ne.s32.totalorder %s118, %s132
    %p134 = scmp.eq.s32.totalorder %s19, 0
    %p135 = por %p133, %p134
    %s137 = sadd.s32 %s136, 1
    %p140 = scmp.eq.s32.totalorder %s13, 1
    %p141 = scmp.ne.s32.totalorder %s136, %s138
    %p142 = scmp.eq.s32.totalorder %s13, 0
    %p143 = por %p141, %p142
    %p144 = scmp.ne.s32.totalorder %s136, %s138
    %p145 = scmp.eq.s32.totalorder %s18, 1
    %p146 = por %p144, %p145
    %p147 = scmp.ne.s32.totalorder %s138, %s139
    %p148 = scmp.eq.s32.totalorder %s18, 0
    %p149 = por %p147, %p148
    %p150 = scmp.ne.s32.totalorder %s138, %s139
    %p151 = scmp.eq.s32.totalorder %s19, 1
    %p152 = por %p150, %p151
    %p154 = scmp.ne.s32.totalorder %s139, %s153
    %p155 = scmp.eq.s32.totalorder %s19, 0
    %p156 = por %p154, %p155
    %s158 = sadd.s32 %s157, 1
    %p161 = scmp.eq.s32.totalorder %s13, 1
    %p162 = scmp.ne.s32.totalorder %s157, %s159
    %p163 = scmp.eq.s32.totalorder %s13, 0
    %p164 = por %p162, %p163
    %p165 = scmp.ne.s32.totalorder %s157, %s159
    %p166 = scmp.eq.s32.totalorder %s18, 1
    %p167 = por %p165, %p166
    %p168 = scmp.ne.s32.totalorder %s159, %s160
    %p169 = scmp.eq.s32.totalorder %s18, 0
    %p170 = por %p168, %p169
    %p171 = scmp.ne.s32.totalorder %s159, %s160
    %p172 = scmp.eq.s32.totalorder %s19, 1
    %p173 = por %p171, %p172
    %p175 = scmp.ne.s32.totalorder %s160, %s174
    %p176 = scmp.eq.s32.totalorder %s19, 0
    %p177 = por %p175, %p176
    %s178 = ssub.s32 %s13, %s20
    %p179 = scmp.eq.s32.totalorder %s178, 0
    %s181 = sadd.s32 %s180, 1
    %s182 = scalar_select %p179, %s180, %s181
    %p185 = pneg %p179
    %p186 = scmp.eq.s32.totalorder %s13, 1
    %p187 = por %p185, %p186
    %p188 = scmp.ne.s32.totalorder %s180, %s183
    %p189 = scmp.eq.s32.totalorder %s13, 0
    %p190 = por %p188, %p189
    %p191 = scmp.ne.s32.totalorder %s180, %s183
    %p192 = scmp.eq.s32.totalorder %s18, 1
    %p193 = por %p191, %p192
    %p194 = scmp.ne.s32.totalorder %s183, %s184
    %p195 = scmp.eq.s32.totalorder %s18, 0
    %p196 = por %p194, %p195
    %p197 = scmp.ne.s32.totalorder %s183, %s184
    %p198 = scmp.eq.s32.totalorder %s19, 1
    %p199 = por %p197, %p198
    %p201 = scmp.ne.s32.totalorder %s184, %s200
    %p202 = scmp.eq.s32.totalorder %s19, 0
    %p203 = por %p201, %p202
    %p204 = scmp.le.s32.totalorder 1, %s13
    %p205 = scmp.lt.s32.totalorder %s13, 3
    %p206 = pnand %p204, %p205
    %p207 = pneg %p206
    // Predicated region
    $region9: #{pointnetpp_encoder_fp_forward.10} parent=5 // pred_check
      _
    $region10: #{pointnetpp_encoder_fp_forward.10} parent=5 // pred_check_branch
      %209 = sbr.rel (%p206) target = $region12
    $region11: #{pointnetpp_encoder_fp_forward.10} parent=5 // pred_region
      %s210 = ssub.s32 %s13, 1
      // Predicated region
      $region13: #{pointnetpp_encoder_fp_forward.10} parent=11 // pred_check
        %p211 = pneg %p86
      $region14: #{pointnetpp_encoder_fp_forward.10} parent=11 // pred_check_branch
        %213 = sbr.rel (%p211) target = $region16
      $region15: #{pointnetpp_encoder_fp_forward.10} parent=11 // pred_region
        _
      $region16: #{pointnetpp_encoder_fp_forward.10} parent=11 // pred_fallthru
        _
      // Predicated region
      $region17: #{pointnetpp_encoder_fp_forward.10} parent=11 // pred_check
        %p214 = pneg %p107
      $region18: #{pointnetpp_encoder_fp_forward.10} parent=11 // pred_check_branch
        %216 = sbr.rel (%p214) target = $region20
      $region19: #{pointnetpp_encoder_fp_forward.10} parent=11 // pred_region
        _
      $region20: #{pointnetpp_encoder_fp_forward.10} parent=11 // pred_fallthru
        _
      // Predicated region
      $region21: #{pointnetpp_encoder_fp_forward.10} parent=11 // pred_check
        %p217 = pneg %p128
      $region22: #{pointnetpp_encoder_fp_forward.10} parent=11 // pred_check_branch
        %219 = sbr.rel (%p217) target = $region24
      $region23: #{pointnetpp_encoder_fp_forward.10} parent=11 // pred_region
        _
      $region24: #{pointnetpp_encoder_fp_forward.10} parent=11 // pred_fallthru
        _
      // Predicated region
      $region25: #{pointnetpp_encoder_fp_forward.10} parent=11 // pred_check
        %p220 = pneg %p149
      $region26: #{pointnetpp_encoder_fp_forward.10} parent=11 // pred_check_branch
        %222 = sbr.rel (%p220) target = $region28
      $region27: #{pointnetpp_encoder_fp_forward.10} parent=11 // pred_region
        _
      $region28: #{pointnetpp_encoder_fp_forward.10} parent=11 // pred_fallthru
        _
      // Predicated region
      $region29: #{pointnetpp_encoder_fp_forward.10} parent=11 // pred_check
        %p223 = pneg %p170
      $region30: #{pointnetpp_encoder_fp_forward.10} parent=11 // pred_check_branch
        %225 = sbr.rel (%p223) target = $region32
      $region31: #{pointnetpp_encoder_fp_forward.10} parent=11 // pred_region
        _
      $region32: #{pointnetpp_encoder_fp_forward.10} parent=11 // pred_fallthru
        _
    $region12: #{pointnetpp_encoder_fp_forward.10} parent=5 // pred_fallthru
      _
    %p226 = scmp.lt.s32.totalorder %s13, 2
    // Predicated region
    $region33: #{pointnetpp_encoder_fp_forward.10} parent=5 // pred_check
      %p227 = pneg %p226
    $region34: #{pointnetpp_encoder_fp_forward.10} parent=5 // pred_check_branch
      %229 = sbr.rel (%p227) target = $region36
    $region35: #{pointnetpp_encoder_fp_forward.10} parent=5 // pred_region
      // Predicated region
      $region37: #{pointnetpp_encoder_fp_forward.10} parent=35 // pred_check
        %p230 = pneg %p33
      $region38: #{pointnetpp_encoder_fp_forward.10} parent=35 // pred_check_branch
        %232 = sbr.rel (%p230) target = $region40
      $region39: #{pointnetpp_encoder_fp_forward.10} parent=35 // pred_region
        %s233 = smul.u32 64, %s13
        %p234 = scmp.lt.s32.totalorder %s233, 127
        %s235 = scalar_select %p234, %s233, 127
        %s236 = smul.addr %s235, 4
        %s237 = scalar_lea.vmem %s0, %s236
        %s238 = smul.u32 64, %s13
      $region40: #{pointnetpp_encoder_fp_forward.10} parent=35 // pred_fallthru
        _
      // Predicated region
      $region41: #{pointnetpp_encoder_fp_forward.10} parent=35 // pred_check
        %p239 = pneg %p59
      $region42: #{pointnetpp_encoder_fp_forward.10} parent=35 // pred_check_branch
        %241 = sbr.rel (%p239) target = $region44
      $region43: #{pointnetpp_encoder_fp_forward.10} parent=35 // pred_region
        %s242 = smul.u32 64, %s13
        %p243 = scmp.lt.s32.totalorder %s242, 127
        %s244 = scalar_select %p243, %s242, 127
        %s245 = smul.addr %s244, 4
        %s246 = scalar_lea.vmem %s1, %s245
        %s247 = smul.u32 64, %s13
      $region44: #{pointnetpp_encoder_fp_forward.10} parent=35 // pred_fallthru
        _
    $region36: #{pointnetpp_encoder_fp_forward.10} parent=5 // pred_fallthru
      _
    %p248 = scmp.le.s32.totalorder 1, %s13
    %p249 = scmp.lt.s32.totalorder %s13, 3
    %p250 = pnand %p248, %p249
    %p251 = pneg %p250
    // Predicated region
    $region45: #{pointnetpp_encoder_fp_forward.10} parent=5 // pred_check
      _
    $region46: #{pointnetpp_encoder_fp_forward.10} parent=5 // pred_check_branch
      %253 = sbr.rel (%p250) target = $region48
    $region47: #{pointnetpp_encoder_fp_forward.10} parent=5 // pred_region
      %s254 = ssub.s32 %s13, 1
      %s255 = smul.u32 64, %s18
      %p256 = scmp.lt.s32.totalorder %s255, 127
      %s257 = scalar_select %p256, %s255, 127
      %s258 = smul.addr %s257, 4
      %s259 = scalar_lea.vmem %s0, %s258
      %p260 = pneg %p39
      %p261 = pneg %p36
      %s262 = smul.u32 64, %s18
      %p263 = scmp.lt.s32.totalorder %s262, 127
      %s264 = scalar_select %p263, %s262, 127
      %s265 = smul.addr %s264, 4
      %s266 = scalar_lea.vmem %s1, %s265
      %p267 = pneg %p65
      %p268 = pneg %p62
      %p269 = pneg %p86
      %p270 = pneg %p83
      %p271 = pneg %p107
      %p272 = pneg %p104
      %p273 = pneg %p128
      %p274 = pneg %p125
      %p275 = pneg %p149
      %p276 = pneg %p146
      %p277 = pneg %p170
      %p278 = pneg %p167
      %p279 = pneg %p196
      %p280 = pneg %p193
      %s281 = smul.u32 64, %s18
      %p282 = scmp.lt.s32.totalorder %s281, 127
      %s283 = scalar_select %p282, %s281, 127
      %s284 = smul.addr %s283, 2
      %s285 = smul.addr %s284, 8
      %s286 = scalar_lea.vmem %s7, %s285
      %s287 = smul.u32 64, %s18
      %p288 = scmp.lt.s32.totalorder %s287, 127
      %s289 = scalar_select %p288, %s287, 127
      %s290 = smul.addr %s289, 4
      %s291 = scalar_lea.vmem %s0, %s290
      %s292 = smul.u32 64, %s18
      %s293 = smul.u32 64, %s18
      %p294 = scmp.lt.s32.totalorder %s293, 127
      %s295 = scalar_select %p294, %s293, 127
      %s296 = smul.addr %s295, 4
      %s297 = scalar_lea.vmem %s1, %s296
      %s298 = smul.u32 64, %s18
      %s299 = smul.u32 64, %s18
      %p300 = scmp.lt.s32.totalorder %s299, 127
      %s301 = scalar_select %p300, %s299, 127
      %s302 = smul.addr %s301, 2
      %s303 = smul.addr %s302, 8
      %s304 = scalar_lea.vmem %s7, %s303
      %s305 = smul.u32 64, %s18
      %v306 = vld [vmem:[%s291] sm:$0xf]
      %v307 = vld [vmem:[%s291 + $0x4] sm:$0xf]
      %v308 = vld [vmem:[%s291 + $0x8] sm:$0xf]
      %v309 = vld [vmem:[%s291 + $0xc] sm:$0xf]
      %v310 = vld [vmem:[%s291 + $0x10] sm:$0xf]
      %v311 = vld [vmem:[%s291 + $0x14] sm:$0xf]
      %v312 = vld [vmem:[%s291 + $0x18] sm:$0xf]
      %v313 = vld [vmem:[%s291 + $0x1c] sm:$0xf]
      %v314 = vld [vmem:[%s291 + $0x20] sm:$0xf]
      %v315 = vld [vmem:[%s291 + $0x24] sm:$0xf]
      %v316 = vld [vmem:[%s291 + $0x28] sm:$0xf]
      %v317 = vld [vmem:[%s291 + $0x2c] sm:$0xf]
      %v318 = vld [vmem:[%s291 + $0x30] sm:$0xf]
      %v319 = vld [vmem:[%s291 + $0x34] sm:$0xf]
      %v320 = vld [vmem:[%s291 + $0x38] sm:$0xf]
      %v321 = vld [vmem:[%s291 + $0x3c] sm:$0xf]
      %v322 = vld [vmem:[%s291 + $0x40] sm:$0xf]
      %v323 = vld [vmem:[%s291 + $0x44] sm:$0xf]
      %v324 = vld [vmem:[%s291 + $0x48] sm:$0xf]
      %v325 = vld [vmem:[%s291 + $0x4c] sm:$0xf]
      %v326 = vld [vmem:[%s291 + $0x50] sm:$0xf]
      %v327 = vld [vmem:[%s291 + $0x54] sm:$0xf]
      %v328 = vld [vmem:[%s291 + $0x58] sm:$0xf]
      %v329 = vld [vmem:[%s291 + $0x5c] sm:$0xf]
      %v330 = vld [vmem:[%s291 + $0x60] sm:$0xf]
      %v331 = vld [vmem:[%s291 + $0x64] sm:$0xf]
      %v332 = vld [vmem:[%s291 + $0x68] sm:$0xf]
      %v333 = vld [vmem:[%s291 + $0x6c] sm:$0xf]
      %v334 = vld [vmem:[%s291 + $0x70] sm:$0xf]
      %v335 = vld [vmem:[%s291 + $0x74] sm:$0xf]
      %v336 = vld [vmem:[%s291 + $0x78] sm:$0xf]
      %v337 = vld [vmem:[%s291 + $0x7c] sm:$0xf]
      %v338 = vld [vmem:[%s291 + $0x80] sm:$0xf]
      %v339 = vld [vmem:[%s291 + $0x84] sm:$0xf]
      %v340 = vld [vmem:[%s291 + $0x88] sm:$0xf]
      %v341 = vld [vmem:[%s291 + $0x8c] sm:$0xf]
      %v342 = vld [vmem:[%s291 + $0x90] sm:$0xf]
      %v343 = vld [vmem:[%s291 + $0x94] sm:$0xf]
      %v344 = vld [vmem:[%s291 + $0x98] sm:$0xf]
      %v345 = vld [vmem:[%s291 + $0x9c] sm:$0xf]
      %v346 = vld [vmem:[%s291 + $0xa0] sm:$0xf]
      %v347 = vld [vmem:[%s291 + $0xa4] sm:$0xf]
      %v348 = vld [vmem:[%s291 + $0xa8] sm:$0xf]
      %v349 = vld [vmem:[%s291 + $0xac] sm:$0xf]
      %v350 = vld [vmem:[%s291 + $0xb0] sm:$0xf]
      %v351 = vld [vmem:[%s291 + $0xb4] sm:$0xf]
      %v352 = vld [vmem:[%s291 + $0xb8] sm:$0xf]
      %v353 = vld [vmem:[%s291 + $0xbc] sm:$0xf]
      %v354 = vld [vmem:[%s291 + $0xc0] sm:$0xf]
      %v355 = vld [vmem:[%s291 + $0xc4] sm:$0xf]
      %v356 = vld [vmem:[%s291 + $0xc8] sm:$0xf]
      %v357 = vld [vmem:[%s291 + $0xcc] sm:$0xf]
      %v358 = vld [vmem:[%s291 + $0xd0] sm:$0xf]
      %v359 = vld [vmem:[%s291 + $0xd4] sm:$0xf]
      %v360 = vld [vmem:[%s291 + $0xd8] sm:$0xf]
      %v361 = vld [vmem:[%s291 + $0xdc] sm:$0xf]
      %v362 = vld [vmem:[%s291 + $0xe0] sm:$0xf]
      %v363 = vld [vmem:[%s291 + $0xe4] sm:$0xf]
      %v364 = vld [vmem:[%s291 + $0xe8] sm:$0xf]
      %v365 = vld [vmem:[%s291 + $0xec] sm:$0xf]
      %v366 = vld [vmem:[%s291 + $0xf0] sm:$0xf]
      %v367 = vld [vmem:[%s291 + $0xf4] sm:$0xf]
      %v368 = vld [vmem:[%s291 + $0xf8] sm:$0xf]
      %v369 = vld [vmem:[%s291 + $0xfc] sm:$0xf]
      %v370 = vld [vmem:[%s2] sm:$0xff]
      %v371 = vld [vmem:[%s2 + $0x8] sm:$0xff]
      %v372 = vld [vmem:[%s2 + $0x10] sm:$0xff]
      %v373 = vld [vmem:[%s2 + $0x18] sm:$0xff]
      %v374 = vld [vmem:[%s2 + $0x20] sm:$0xff]
      %v375 = vld [vmem:[%s2 + $0x28] sm:$0xff]
      %v376 = vld [vmem:[%s2 + $0x30] sm:$0xff]
      %v377 = vld [vmem:[%s2 + $0x38] sm:$0xff]
      %v378 = vld [vmem:[%s2 + $0x40] sm:$0xff]
      %v379 = vld [vmem:[%s2 + $0x48] sm:$0xff]
      %v380 = vld [vmem:[%s2 + $0x50] sm:$0xff]
      %v381 = vld [vmem:[%s2 + $0x58] sm:$0xff]
      %v382 = vld [vmem:[%s2 + $0x60] sm:$0xff]
      %v383 = vld [vmem:[%s2 + $0x68] sm:$0xff]
      %v384 = vld [vmem:[%s2 + $0x70] sm:$0xff]
      %v385 = vld [vmem:[%s2 + $0x78] sm:$0xff]
      %v386 = vld [vmem:[%s297] sm:$0xf]
      %v387 = vld [vmem:[%s297 + $0x4] sm:$0xf]
      %v388 = vld [vmem:[%s297 + $0x8] sm:$0xf]
      %v389 = vld [vmem:[%s297 + $0xc] sm:$0xf]
      %v390 = vld [vmem:[%s297 + $0x10] sm:$0xf]
      %v391 = vld [vmem:[%s297 + $0x14] sm:$0xf]
      %v392 = vld [vmem:[%s297 + $0x18] sm:$0xf]
      %v393 = vld [vmem:[%s297 + $0x1c] sm:$0xf]
      %v394 = vld [vmem:[%s297 + $0x20] sm:$0xf]
      %v395 = vld [vmem:[%s297 + $0x24] sm:$0xf]
      %v396 = vld [vmem:[%s297 + $0x28] sm:$0xf]
      %v397 = vld [vmem:[%s297 + $0x2c] sm:$0xf]
      %v398 = vld [vmem:[%s297 + $0x30] sm:$0xf]
      %v399 = vld [vmem:[%s297 + $0x34] sm:$0xf]
      %v400 = vld [vmem:[%s297 + $0x38] sm:$0xf]
      %v401 = vld [vmem:[%s297 + $0x3c] sm:$0xf]
      %v402 = vld [vmem:[%s297 + $0x40] sm:$0xf]
      %v403 = vld [vmem:[%s297 + $0x44] sm:$0xf]
      %v404 = vld [vmem:[%s297 + $0x48] sm:$0xf]
      %v405 = vld [vmem:[%s297 + $0x4c] sm:$0xf]
      %v406 = vld [vmem:[%s297 + $0x50] sm:$0xf]
      %v407 = vld [vmem:[%s297 + $0x54] sm:$0xf]
      %v408 = vld [vmem:[%s297 + $0x58] sm:$0xf]
      %v409 = vld [vmem:[%s297 + $0x5c] sm:$0xf]
      %v410 = vld [vmem:[%s297 + $0x60] sm:$0xf]
      %v411 = vld [vmem:[%s297 + $0x64] sm:$0xf]
      %v412 = vld [vmem:[%s297 + $0x68] sm:$0xf]
      %v413 = vld [vmem:[%s297 + $0x6c] sm:$0xf]
      %v414 = vld [vmem:[%s297 + $0x70] sm:$0xf]
      %v415 = vld [vmem:[%s297 + $0x74] sm:$0xf]
      %v416 = vld [vmem:[%s297 + $0x78] sm:$0xf]
      %v417 = vld [vmem:[%s297 + $0x7c] sm:$0xf]
      %v418 = vld [vmem:[%s297 + $0x80] sm:$0xf]
      %v419 = vld [vmem:[%s297 + $0x84] sm:$0xf]
      %v420 = vld [vmem:[%s297 + $0x88] sm:$0xf]
      %v421 = vld [vmem:[%s297 + $0x8c] sm:$0xf]
      %v422 = vld [vmem:[%s297 + $0x90] sm:$0xf]
      %v423 = vld [vmem:[%s297 + $0x94] sm:$0xf]
      %v424 = vld [vmem:[%s297 + $0x98] sm:$0xf]
      %v425 = vld [vmem:[%s297 + $0x9c] sm:$0xf]
      %v426 = vld [vmem:[%s297 + $0xa0] sm:$0xf]
      %v427 = vld [vmem:[%s297 + $0xa4] sm:$0xf]
      %v428 = vld [vmem:[%s297 + $0xa8] sm:$0xf]
      %v429 = vld [vmem:[%s297 + $0xac] sm:$0xf]
      %v430 = vld [vmem:[%s297 + $0xb0] sm:$0xf]
      %v431 = vld [vmem:[%s297 + $0xb4] sm:$0xf]
      %v432 = vld [vmem:[%s297 + $0xb8] sm:$0xf]
      %v433 = vld [vmem:[%s297 + $0xbc] sm:$0xf]
      %v434 = vld [vmem:[%s297 + $0xc0] sm:$0xf]
      %v435 = vld [vmem:[%s297 + $0xc4] sm:$0xf]
      %v436 = vld [vmem:[%s297 + $0xc8] sm:$0xf]
      %v437 = vld [vmem:[%s297 + $0xcc] sm:$0xf]
      %v438 = vld [vmem:[%s297 + $0xd0] sm:$0xf]
      %v439 = vld [vmem:[%s297 + $0xd4] sm:$0xf]
      %v440 = vld [vmem:[%s297 + $0xd8] sm:$0xf]
      %v441 = vld [vmem:[%s297 + $0xdc] sm:$0xf]
      %v442 = vld [vmem:[%s297 + $0xe0] sm:$0xf]
      %v443 = vld [vmem:[%s297 + $0xe4] sm:$0xf]
      %v444 = vld [vmem:[%s297 + $0xe8] sm:$0xf]
      %v445 = vld [vmem:[%s297 + $0xec] sm:$0xf]
      %v446 = vld [vmem:[%s297 + $0xf0] sm:$0xf]
      %v447 = vld [vmem:[%s297 + $0xf4] sm:$0xf]
      %v448 = vld [vmem:[%s297 + $0xf8] sm:$0xf]
      %v449 = vld [vmem:[%s297 + $0xfc] sm:$0xf]
      %v450 = vld [vmem:[%s3] sm:$0xff]
      %v451 = vld [vmem:[%s3 + $0x8] sm:$0xff]
      %v452 = vld [vmem:[%s3 + $0x10] sm:$0xff]
      %v453 = vld [vmem:[%s3 + $0x18] sm:$0xff]
      %v454 = vld [vmem:[%s3 + $0x20] sm:$0xff]
      %v455 = vld [vmem:[%s3 + $0x28] sm:$0xff]
      %v456 = vld [vmem:[%s3 + $0x30] sm:$0xff]
      %v457 = vld [vmem:[%s3 + $0x38] sm:$0xff]
      %v458 = vld [vmem:[%s3 + $0x40] sm:$0xff]
      %v459 = vld [vmem:[%s3 + $0x48] sm:$0xff]
      %v460 = vld [vmem:[%s3 + $0x50] sm:$0xff]
      %v461 = vld [vmem:[%s3 + $0x58] sm:$0xff]
      %v462 = vld [vmem:[%s3 + $0x60] sm:$0xff]
      %v463 = vld [vmem:[%s3 + $0x68] sm:$0xff]
      %v464 = vld [vmem:[%s3 + $0x70] sm:$0xff]
      %v465 = vld [vmem:[%s3 + $0x78] sm:$0xff]
      %v530 = vunpack.c.l.b16 %v386
      %v531 = vunpack.c.l.b16 %v387
      %v532 = vunpack.c.l.b16 %v388
      %v533 = vunpack.c.l.b16 %v389
      %v534 = vunpack.c.l.b16 %v390
      %v535 = vunpack.c.l.b16 %v391
      %v536 = vunpack.c.l.b16 %v392
      %v537 = vunpack.c.l.b16 %v393
      %v538 = vunpack.c.l.b16 %v394
      %v539 = vunpack.c.l.b16 %v395
      %v540 = vunpack.c.l.b16 %v396
      %v541 = vunpack.c.l.b16 %v397
      %v542 = vunpack.c.l.b16 %v398
      %v543 = vunpack.c.l.b16 %v399
      %v544 = vunpack.c.l.b16 %v400
      %v545 = vunpack.c.l.b16 %v401
      %v546 = vunpack.c.l.b16 %v402
      %v547 = vunpack.c.l.b16 %v403
      %v548 = vunpack.c.l.b16 %v404
      %v549 = vunpack.c.l.b16 %v405
      %v550 = vunpack.c.l.b16 %v406
      %v551 = vunpack.c.l.b16 %v407
      %v552 = vunpack.c.l.b16 %v408
      %v553 = vunpack.c.l.b16 %v409
      %v554 = vunpack.c.l.b16 %v410
      %v555 = vunpack.c.l.b16 %v411
      %v556 = vunpack.c.l.b16 %v412
      %v557 = vunpack.c.l.b16 %v413
      %v558 = vunpack.c.l.b16 %v414
      %v559 = vunpack.c.l.b16 %v415
      %v560 = vunpack.c.l.b16 %v416
      %v561 = vunpack.c.l.b16 %v417
      %v562 = vunpack.c.l.b16 %v418
      %v563 = vunpack.c.l.b16 %v419
      %v564 = vunpack.c.l.b16 %v420
      %v565 = vunpack.c.l.b16 %v421
      %v566 = vunpack.c.l.b16 %v422
      %v567 = vunpack.c.l.b16 %v423
      %v568 = vunpack.c.l.b16 %v424
      %v569 = vunpack.c.l.b16 %v425
      %v570 = vunpack.c.l.b16 %v426
      %v571 = vunpack.c.l.b16 %v427
      %v572 = vunpack.c.l.b16 %v428
      %v573 = vunpack.c.l.b16 %v429
      %v574 = vunpack.c.l.b16 %v430
      %v575 = vunpack.c.l.b16 %v431
      %v576 = vunpack.c.l.b16 %v432
      %v577 = vunpack.c.l.b16 %v433
      %v578 = vunpack.c.l.b16 %v434
      %v579 = vunpack.c.l.b16 %v435
      %v580 = vunpack.c.l.b16 %v436
      %v581 = vunpack.c.l.b16 %v437
      %v582 = vunpack.c.l.b16 %v438
      %v583 = vunpack.c.l.b16 %v439
      %v584 = vunpack.c.l.b16 %v440
      %v585 = vunpack.c.l.b16 %v441
      %v586 = vunpack.c.l.b16 %v442
      %v587 = vunpack.c.l.b16 %v443
      %v588 = vunpack.c.l.b16 %v444
      %v589 = vunpack.c.l.b16 %v445
      %v590 = vunpack.c.l.b16 %v446
      %v591 = vunpack.c.l.b16 %v447
      %v592 = vunpack.c.l.b16 %v448
      %v593 = vunpack.c.l.b16 %v449
      %v594 = vpack.c.b16 %v531, %v530
      %v595 = vpack.c.b16 %v533, %v532
      %v596 = vpack.c.b16 %v535, %v534
      %v597 = vpack.c.b16 %v537, %v536
      %v598 = vpack.c.b16 %v539, %v538
      %v599 = vpack.c.b16 %v541, %v540
      %v600 = vpack.c.b16 %v543, %v542
      %v601 = vpack.c.b16 %v545, %v544
      %v602 = vpack.c.b16 %v547, %v546
      %v603 = vpack.c.b16 %v549, %v548
      %v604 = vpack.c.b16 %v551, %v550
      %v605 = vpack.c.b16 %v553, %v552
      %v606 = vpack.c.b16 %v555, %v554
      %v607 = vpack.c.b16 %v557, %v556
      %v608 = vpack.c.b16 %v559, %v558
      %v609 = vpack.c.b16 %v561, %v560
      %v610 = vpack.c.b16 %v563, %v562
      %v611 = vpack.c.b16 %v565, %v564
      %v612 = vpack.c.b16 %v567, %v566
      %v613 = vpack.c.b16 %v569, %v568
      %v614 = vpack.c.b16 %v571, %v570
      %v615 = vpack.c.b16 %v573, %v572
      %v616 = vpack.c.b16 %v575, %v574
      %v617 = vpack.c.b16 %v577, %v576
      %v618 = vpack.c.b16 %v579, %v578
      %v619 = vpack.c.b16 %v581, %v580
      %v620 = vpack.c.b16 %v583, %v582
      %v621 = vpack.c.b16 %v585, %v584
      %v622 = vpack.c.b16 %v587, %v586
      %v623 = vpack.c.b16 %v589, %v588
      %v624 = vpack.c.b16 %v591, %v590
      %v625 = vpack.c.b16 %v593, %v592
      %v674 = vunpack.c.l.b16 %v450
      %v675 = vunpack.c.h.b16 %v450
      %v676 = vunpack.c.l.b16 %v451
      %v677 = vunpack.c.h.b16 %v451
      %v678 = vunpack.c.l.b16 %v452
      %v679 = vunpack.c.h.b16 %v452
      %v680 = vunpack.c.l.b16 %v453
      %v681 = vunpack.c.h.b16 %v453
      %v682 = vunpack.c.l.b16 %v454
      %v683 = vunpack.c.h.b16 %v454
      %v684 = vunpack.c.l.b16 %v455
      %v685 = vunpack.c.h.b16 %v455
      %v686 = vunpack.c.l.b16 %v456
      %v687 = vunpack.c.h.b16 %v456
      %v688 = vunpack.c.l.b16 %v457
      %v689 = vunpack.c.h.b16 %v457
      %v690 = vunpack.c.l.b16 %v458
      %v691 = vunpack.c.h.b16 %v458
      %v692 = vunpack.c.l.b16 %v459
      %v693 = vunpack.c.h.b16 %v459
      %v694 = vunpack.c.l.b16 %v460
      %v695 = vunpack.c.h.b16 %v460
      %v696 = vunpack.c.l.b16 %v461
      %v697 = vunpack.c.h.b16 %v461
      %v698 = vunpack.c.l.b16 %v462
      %v699 = vunpack.c.h.b16 %v462
      %v700 = vunpack.c.l.b16 %v463
      %v701 = vunpack.c.h.b16 %v463
      %v702 = vunpack.c.l.b16 %v464
      %v703 = vunpack.c.h.b16 %v464
      %v704 = vunpack.c.l.b16 %v465
      %v705 = vunpack.c.h.b16 %v465
      %v706 = vpack.c.b16 %v676, %v674
      %v707 = vpack.c.b16 %v677, %v675
      %v708 = vpack.c.b16 %v680, %v678
      %v709 = vpack.c.b16 %v681, %v679
      %v710 = vpack.c.b16 %v684, %v682
      %v711 = vpack.c.b16 %v685, %v683
      %v712 = vpack.c.b16 %v688, %v686
      %v713 = vpack.c.b16 %v689, %v687
      %v714 = vpack.c.b16 %v692, %v690
      %v715 = vpack.c.b16 %v693, %v691
      %v716 = vpack.c.b16 %v696, %v694
      %v717 = vpack.c.b16 %v697, %v695
      %v718 = vpack.c.b16 %v700, %v698
      %v719 = vpack.c.b16 %v701, %v699
      %v720 = vpack.c.b16 %v704, %v702
      %v721 = vpack.c.b16 %v705, %v703
      %738 = vmatpush.bf16.msra.mxu0 %v720
      %739 = vmatpush.bf16.msra.mxu0 %v718
      %740 = vmatpush.bf16.msra.mxu0 %v716
      %741 = vmatpush.bf16.msra.mxu0 %v714
      %742 = vmatpush.bf16.msra.mxu0 %v712
      %743 = vmatpush.bf16.msra.mxu0 %v710
      %744 = vmatpush.bf16.msra.mxu0 %v708
      %745 = vmatpush.bf16.msra.mxu0 %v706
      %746 = vmatmul.bf16.gmra.mxu0 %v594
      %v747 = vpop.f32.mrf.mxu0
      %v748 = vadd.f32 0.0, %v747
      %v749 = vpop.f32.mrf.mxu0
      %v750 = vadd.f32 0.0, %v749
      %751 = vmatmul.bf16.gmra.mxu0 %v595
      %v752 = vpop.f32.mrf.mxu0
      %v753 = vadd.f32 0.0, %v752
      %v754 = vpop.f32.mrf.mxu0
      %v755 = vadd.f32 0.0, %v754
      %756 = vmatmul.bf16.gmra.mxu0 %v596
      %v757 = vpop.f32.mrf.mxu0
      %v758 = vadd.f32 0.0, %v757
      %v759 = vpop.f32.mrf.mxu0
      %v760 = vadd.f32 0.0, %v759
      %761 = vmatmul.bf16.gmra.mxu0 %v597
      %v762 = vpop.f32.mrf.mxu0
      %v763 = vadd.f32 0.0, %v762
      %v764 = vpop.f32.mrf.mxu0
      %v765 = vadd.f32 0.0, %v764
      %766 = vmatmul.bf16.gmra.mxu0 %v598
      %v767 = vpop.f32.mrf.mxu0
      %v768 = vadd.f32 0.0, %v767
      %v769 = vpop.f32.mrf.mxu0
      %v770 = vadd.f32 0.0, %v769
      %771 = vmatmul.bf16.gmra.mxu0 %v599
      %v772 = vpop.f32.mrf.mxu0
      %v773 = vadd.f32 0.0, %v772
      %v774 = vpop.f32.mrf.mxu0
      %v775 = vadd.f32 0.0, %v774
      %776 = vmatmul.bf16.gmra.mxu0 %v600
      %v777 = vpop.f32.mrf.mxu0
      %v778 = vadd.f32 0.0, %v777
      %v779 = vpop.f32.mrf.mxu0
      %v780 = vadd.f32 0.0, %v779
      %781 = vmatmul.bf16.gmra.mxu0 %v601
      %v782 = vpop.f32.mrf.mxu0
      %v783 = vadd.f32 0.0, %v782
      %v784 = vpop.f32.mrf.mxu0
      %v785 = vadd.f32 0.0, %v784
      %786 = vmatmul.bf16.gmra.mxu0 %v602
      %v787 = vpop.f32.mrf.mxu0
      %v788 = vadd.f32 0.0, %v787
      %v789 = vpop.f32.mrf.mxu0
      %v790 = vadd.f32 0.0, %v789
      %791 = vmatmul.bf16.gmra.mxu0 %v603
      %v792 = vpop.f32.mrf.mxu0
      %v793 = vadd.f32 0.0, %v792
      %v794 = vpop.f32.mrf.mxu0
      %v795 = vadd.f32 0.0, %v794
      %796 = vmatmul.bf16.gmra.mxu0 %v604
      %v797 = vpop.f32.mrf.mxu0
      %v798 = vadd.f32 0.0, %v797
      %v799 = vpop.f32.mrf.mxu0
      %v800 = vadd.f32 0.0, %v799
      %801 = vmatmul.bf16.gmra.mxu0 %v605
      %v802 = vpop.f32.mrf.mxu0
      %v803 = vadd.f32 0.0, %v802
      %v804 = vpop.f32.mrf.mxu0
      %v805 = vadd.f32 0.0, %v804
      %806 = vmatmul.bf16.gmra.mxu0 %v606
      %v807 = vpop.f32.mrf.mxu0
      %v808 = vadd.f32 0.0, %v807
      %v809 = vpop.f32.mrf.mxu0
      %v810 = vadd.f32 0.0, %v809
      %811 = vmatmul.bf16.gmra.mxu0 %v607
      %v812 = vpop.f32.mrf.mxu0
      %v813 = vadd.f32 0.0, %v812
      %v814 = vpop.f32.mrf.mxu0
      %v815 = vadd.f32 0.0, %v814
      %816 = vmatmul.bf16.gmra.mxu0 %v608
      %v817 = vpop.f32.mrf.mxu0
      %v818 = vadd.f32 0.0, %v817
      %v819 = vpop.f32.mrf.mxu0
      %v820 = vadd.f32 0.0, %v819
      %821 = vmatmul.bf16.gmra.mxu0 %v609
      %v822 = vpop.f32.mrf.mxu0
      %v823 = vadd.f32 0.0, %v822
      %v824 = vpop.f32.mrf.mxu0
      %v825 = vadd.f32 0.0, %v824
      %826 = vmatmul.bf16.gmra.mxu0 %v610
      %v827 = vpop.f32.mrf.mxu0
      %v828 = vadd.f32 0.0, %v827
      %v829 = vpop.f32.mrf.mxu0
      %v830 = vadd.f32 0.0, %v829
      %831 = vmatmul.bf16.gmra.mxu0 %v611
      %v832 = vpop.f32.mrf.mxu0
      %v833 = vadd.f32 0.0, %v832
      %v834 = vpop.f32.mrf.mxu0
      %v835 = vadd.f32 0.0, %v834
      %836 = vmatmul.bf16.gmra.mxu0 %v612
      %v837 = vpop.f32.mrf.mxu0
      %v838 = vadd.f32 0.0, %v837
      %v839 = vpop.f32.mrf.mxu0
      %v840 = vadd.f32 0.0, %v839
      %841 = vmatmul.bf16.gmra.mxu0 %v613
      %v842 = vpop.f32.mrf.mxu0
      %v843 = vadd.f32 0.0, %v842
      %v844 = vpop.f32.mrf.mxu0
      %v845 = vadd.f32 0.0, %v844
      %846 = vmatmul.bf16.gmra.mxu0 %v614
      %v847 = vpop.f32.mrf.mxu0
      %v848 = vadd.f32 0.0, %v847
      %v849 = vpop.f32.mrf.mxu0
      %v850 = vadd.f32 0.0, %v849
      %851 = vmatmul.bf16.gmra.mxu0 %v615
      %v852 = vpop.f32.mrf.mxu0
      %v853 = vadd.f32 0.0, %v852
      %v854 = vpop.f32.mrf.mxu0
      %v855 = vadd.f32 0.0, %v854
      %856 = vmatmul.bf16.gmra.mxu0 %v616
      %v857 = vpop.f32.mrf.mxu0
      %v858 = vadd.f32 0.0, %v857
      %v859 = vpop.f32.mrf.mxu0
      %v860 = vadd.f32 0.0, %v859
      %861 = vmatmul.bf16.gmra.mxu0 %v617
      %v862 = vpop.f32.mrf.mxu0
      %v863 = vadd.f32 0.0, %v862
      %v864 = vpop.f32.mrf.mxu0
      %v865 = vadd.f32 0.0, %v864
      %866 = vmatmul.bf16.gmra.mxu0 %v618
      %v867 = vpop.f32.mrf.mxu0
      %v868 = vadd.f32 0.0, %v867
      %v869 = vpop.f32.mrf.mxu0
      %v870 = vadd.f32 0.0, %v869
      %871 = vmatmul.bf16.gmra.mxu0 %v619
      %v872 = vpop.f32.mrf.mxu0
      %v873 = vadd.f32 0.0, %v872
      %v874 = vpop.f32.mrf.mxu0
      %v875 = vadd.f32 0.0, %v874
      %876 = vmatmul.bf16.gmra.mxu0 %v620
      %v877 = vpop.f32.mrf.mxu0
      %v878 = vadd.f32 0.0, %v877
      %v879 = vpop.f32.mrf.mxu0
      %v880 = vadd.f32 0.0, %v879
      %881 = vmatmul.bf16.gmra.mxu0 %v621
      %v882 = vpop.f32.mrf.mxu0
      %v883 = vadd.f32 0.0, %v882
      %v884 = vpop.f32.mrf.mxu0
      %v885 = vadd.f32 0.0, %v884
      %886 = vmatmul.bf16.gmra.mxu0 %v622
      %v887 = vpop.f32.mrf.mxu0
      %v888 = vadd.f32 0.0, %v887
      %v889 = vpop.f32.mrf.mxu0
      %v890 = vadd.f32 0.0, %v889
      %891 = vmatmul.bf16.gmra.mxu0 %v623
      %v892 = vpop.f32.mrf.mxu0
      %v893 = vadd.f32 0.0, %v892
      %v894 = vpop.f32.mrf.mxu0
      %v895 = vadd.f32 0.0, %v894
      %896 = vmatmul.bf16.gmra.mxu0 %v624
      %v897 = vpop.f32.mrf.mxu0
      %v898 = vadd.f32 0.0, %v897
      %v899 = vpop.f32.mrf.mxu0
      %v900 = vadd.f32 0.0, %v899
      %901 = vmatmul.bf16.gmra.mxu0 %v625
      %v902 = vpop.f32.mrf.mxu0
      %v903 = vadd.f32 0.0, %v902
      %v904 = vpop.f32.mrf.mxu0
      %v905 = vadd.f32 0.0, %v904
      %906 = vdwg.mxu0
      %907 = vmatpush.bf16.msra.mxu0 %v721
      %908 = vmatpush.bf16.msra.mxu0 %v719
      %909 = vmatpush.bf16.msra.mxu0 %v717
      %910 = vmatpush.bf16.msra.mxu0 %v715
      %911 = vmatpush.bf16.msra.mxu0 %v713
      %912 = vmatpush.bf16.msra.mxu0 %v711
      %913 = vmatpush.bf16.msra.mxu0 %v709
      %914 = vmatpush.bf16.msra.mxu0 %v707
      %915 = vmatmul.bf16.gmra.mxu0 %v594
      %v916 = vpop.f32.mrf.mxu0
      %v917 = vadd.f32 0.0, %v916
      %v918 = vpop.f32.mrf.mxu0
      %v919 = vadd.f32 0.0, %v918
      %920 = vmatmul.bf16.gmra.mxu0 %v595
      %v921 = vpop.f32.mrf.mxu0
      %v922 = vadd.f32 0.0, %v921
      %v923 = vpop.f32.mrf.mxu0
      %v924 = vadd.f32 0.0, %v923
      %925 = vmatmul.bf16.gmra.mxu0 %v596
      %v926 = vpop.f32.mrf.mxu0
      %v927 = vadd.f32 0.0, %v926
      %v928 = vpop.f32.mrf.mxu0
      %v929 = vadd.f32 0.0, %v928
      %930 = vmatmul.bf16.gmra.mxu0 %v597
      %v931 = vpop.f32.mrf.mxu0
      %v932 = vadd.f32 0.0, %v931
      %v933 = vpop.f32.mrf.mxu0
      %v934 = vadd.f32 0.0, %v933
      %935 = vmatmul.bf16.gmra.mxu0 %v598
      %v936 = vpop.f32.mrf.mxu0
      %v937 = vadd.f32 0.0, %v936
      %v938 = vpop.f32.mrf.mxu0
      %v939 = vadd.f32 0.0, %v938
      %940 = vmatmul.bf16.gmra.mxu0 %v599
      %v941 = vpop.f32.mrf.mxu0
      %v942 = vadd.f32 0.0, %v941
      %v943 = vpop.f32.mrf.mxu0
      %v944 = vadd.f32 0.0, %v943
      %945 = vmatmul.bf16.gmra.mxu0 %v600
      %v946 = vpop.f32.mrf.mxu0
      %v947 = vadd.f32 0.0, %v946
      %v948 = vpop.f32.mrf.mxu0
      %v949 = vadd.f32 0.0, %v948
      %950 = vmatmul.bf16.gmra.mxu0 %v601
      %v951 = vpop.f32.mrf.mxu0
      %v952 = vadd.f32 0.0, %v951
      %v953 = vpop.f32.mrf.mxu0
      %v954 = vadd.f32 0.0, %v953
      %955 = vmatmul.bf16.gmra.mxu0 %v602
      %v956 = vpop.f32.mrf.mxu0
      %v957 = vadd.f32 0.0, %v956
      %v958 = vpop.f32.mrf.mxu0
      %v959 = vadd.f32 0.0, %v958
      %960 = vmatmul.bf16.gmra.mxu0 %v603
      %v961 = vpop.f32.mrf.mxu0
      %v962 = vadd.f32 0.0, %v961
      %v963 = vpop.f32.mrf.mxu0
      %v964 = vadd.f32 0.0, %v963
      %965 = vmatmul.bf16.gmra.mxu0 %v604
      %v966 = vpop.f32.mrf.mxu0
      %v967 = vadd.f32 0.0, %v966
      %v968 = vpop.f32.mrf.mxu0
      %v969 = vadd.f32 0.0, %v968
      %970 = vmatmul.bf16.gmra.mxu0 %v605
      %v971 = vpop.f32.mrf.mxu0
      %v972 = vadd.f32 0.0, %v971
      %v973 = vpop.f32.mrf.mxu0
      %v974 = vadd.f32 0.0, %v973
      %975 = vmatmul.bf16.gmra.mxu0 %v606
      %v976 = vpop.f32.mrf.mxu0
      %v977 = vadd.f32 0.0, %v976
      %v978 = vpop.f32.mrf.mxu0
      %v979 = vadd.f32 0.0, %v978
      %980 = vmatmul.bf16.gmra.mxu0 %v607
      %v981 = vpop.f32.mrf.mxu0
      %v982 = vadd.f32 0.0, %v981
      %v983 = vpop.f32.mrf.mxu0
      %v984 = vadd.f32 0.0, %v983
      %985 = vmatmul.bf16.gmra.mxu0 %v608
      %v986 = vpop.f32.mrf.mxu0
      %v987 = vadd.f32 0.0, %v986
      %v988 = vpop.f32.mrf.mxu0
      %v989 = vadd.f32 0.0, %v988
      %990 = vmatmul.bf16.gmra.mxu0 %v609
      %v991 = vpop.f32.mrf.mxu0
      %v992 = vadd.f32 0.0, %v991
      %v993 = vpop.f32.mrf.mxu0
      %v994 = vadd.f32 0.0, %v993
      %995 = vmatmul.bf16.gmra.mxu0 %v610
      %v996 = vpop.f32.mrf.mxu0
      %v997 = vadd.f32 0.0, %v996
      %v998 = vpop.f32.mrf.mxu0
      %v999 = vadd.f32 0.0, %v998
      %1000 = vmatmul.bf16.gmra.mxu0 %v611
      %v1001 = vpop.f32.mrf.mxu0
      %v1002 = vadd.f32 0.0, %v1001
      %v1003 = vpop.f32.mrf.mxu0
      %v1004 = vadd.f32 0.0, %v1003
      %1005 = vmatmul.bf16.gmra.mxu0 %v612
      %v1006 = vpop.f32.mrf.mxu0
      %v1007 = vadd.f32 0.0, %v1006
      %v1008 = vpop.f32.mrf.mxu0
      %v1009 = vadd.f32 0.0, %v1008
      %1010 = vmatmul.bf16.gmra.mxu0 %v613
      %v1011 = vpop.f32.mrf.mxu0
      %v1012 = vadd.f32 0.0, %v1011
      %v1013 = vpop.f32.mrf.mxu0
      %v1014 = vadd.f32 0.0, %v1013
      %1015 = vmatmul.bf16.gmra.mxu0 %v614
      %v1016 = vpop.f32.mrf.mxu0
      %v1017 = vadd.f32 0.0, %v1016
      %v1018 = vpop.f32.mrf.mxu0
      %v1019 = vadd.f32 0.0, %v1018
      %1020 = vmatmul.bf16.gmra.mxu0 %v615
      %v1021 = vpop.f32.mrf.mxu0
      %v1022 = vadd.f32 0.0, %v1021
      %v1023 = vpop.f32.mrf.mxu0
      %v1024 = vadd.f32 0.0, %v1023
      %1025 = vmatmul.bf16.gmra.mxu0 %v616
      %v1026 = vpop.f32.mrf.mxu0
      %v1027 = vadd.f32 0.0, %v1026
      %v1028 = vpop.f32.mrf.mxu0
      %v1029 = vadd.f32 0.0, %v1028
      %1030 = vmatmul.bf16.gmra.mxu0 %v617
      %v1031 = vpop.f32.mrf.mxu0
      %v1032 = vadd.f32 0.0, %v1031
      %v1033 = vpop.f32.mrf.mxu0
      %v1034 = vadd.f32 0.0, %v1033
      %1035 = vmatmul.bf16.gmra.mxu0 %v618
      %v1036 = vpop.f32.mrf.mxu0
      %v1037 = vadd.f32 0.0, %v1036
      %v1038 = vpop.f32.mrf.mxu0
      %v1039 = vadd.f32 0.0, %v1038
      %1040 = vmatmul.bf16.gmra.mxu0 %v619
      %v1041 = vpop.f32.mrf.mxu0
      %v1042 = vadd.f32 0.0, %v1041
      %v1043 = vpop.f32.mrf.mxu0
      %v1044 = vadd.f32 0.0, %v1043
      %1045 = vmatmul.bf16.gmra.mxu0 %v620
      %v1046 = vpop.f32.mrf.mxu0
      %v1047 = vadd.f32 0.0, %v1046
      %v1048 = vpop.f32.mrf.mxu0
      %v1049 = vadd.f32 0.0, %v1048
      %1050 = vmatmul.bf16.gmra.mxu0 %v621
      %v1051 = vpop.f32.mrf.mxu0
      %v1052 = vadd.f32 0.0, %v1051
      %v1053 = vpop.f32.mrf.mxu0
      %v1054 = vadd.f32 0.0, %v1053
      %1055 = vmatmul.bf16.gmra.mxu0 %v622
      %v1056 = vpop.f32.mrf.mxu0
      %v1057 = vadd.f32 0.0, %v1056
      %v1058 = vpop.f32.mrf.mxu0
      %v1059 = vadd.f32 0.0, %v1058
      %1060 = vmatmul.bf16.gmra.mxu0 %v623
      %v1061 = vpop.f32.mrf.mxu0
      %v1062 = vadd.f32 0.0, %v1061
      %v1063 = vpop.f32.mrf.mxu0
      %v1064 = vadd.f32 0.0, %v1063
      %1065 = vmatmul.bf16.gmra.mxu0 %v624
      %v1066 = vpop.f32.mrf.mxu0
      %v1067 = vadd.f32 0.0, %v1066
      %v1068 = vpop.f32.mrf.mxu0
      %v1069 = vadd.f32 0.0, %v1068
      %1070 = vmatmul.bf16.gmra.mxu0 %v625
      %v1071 = vpop.f32.mrf.mxu0
      %v1072 = vadd.f32 0.0, %v1071
      %v1073 = vpop.f32.mrf.mxu0
      %v1074 = vadd.f32 0.0, %v1073
      %1075 = vdwg.mxu0
      %v1140 = vunpack.c.l.b16 %v306
      %v1141 = vunpack.c.l.b16 %v307
      %v1142 = vunpack.c.l.b16 %v308
      %v1143 = vunpack.c.l.b16 %v309
      %v1144 = vunpack.c.l.b16 %v310
      %v1145 = vunpack.c.l.b16 %v311
      %v1146 = vunpack.c.l.b16 %v312
      %v1147 = vunpack.c.l.b16 %v313
      %v1148 = vunpack.c.l.b16 %v314
      %v1149 = vunpack.c.l.b16 %v315
      %v1150 = vunpack.c.l.b16 %v316
      %v1151 = vunpack.c.l.b16 %v317
      %v1152 = vunpack.c.l.b16 %v318
      %v1153 = vunpack.c.l.b16 %v319
      %v1154 = vunpack.c.l.b16 %v320
      %v1155 = vunpack.c.l.b16 %v321
      %v1156 = vunpack.c.l.b16 %v322
      %v1157 = vunpack.c.l.b16 %v323
      %v1158 = vunpack.c.l.b16 %v324
      %v1159 = vunpack.c.l.b16 %v325
      %v1160 = vunpack.c.l.b16 %v326
      %v1161 = vunpack.c.l.b16 %v327
      %v1162 = vunpack.c.l.b16 %v328
      %v1163 = vunpack.c.l.b16 %v329
      %v1164 = vunpack.c.l.b16 %v330
      %v1165 = vunpack.c.l.b16 %v331
      %v1166 = vunpack.c.l.b16 %v332
      %v1167 = vunpack.c.l.b16 %v333
      %v1168 = vunpack.c.l.b16 %v334
      %v1169 = vunpack.c.l.b16 %v335
      %v1170 = vunpack.c.l.b16 %v336
      %v1171 = vunpack.c.l.b16 %v337
      %v1172 = vunpack.c.l.b16 %v338
      %v1173 = vunpack.c.l.b16 %v339
      %v1174 = vunpack.c.l.b16 %v340
      %v1175 = vunpack.c.l.b16 %v341
      %v1176 = vunpack.c.l.b16 %v342
      %v1177 = vunpack.c.l.b16 %v343
      %v1178 = vunpack.c.l.b16 %v344
      %v1179 = vunpack.c.l.b16 %v345
      %v1180 = vunpack.c.l.b16 %v346
      %v1181 = vunpack.c.l.b16 %v347
      %v1182 = vunpack.c.l.b16 %v348
      %v1183 = vunpack.c.l.b16 %v349
      %v1184 = vunpack.c.l.b16 %v350
      %v1185 = vunpack.c.l.b16 %v351
      %v1186 = vunpack.c.l.b16 %v352
      %v1187 = vunpack.c.l.b16 %v353
      %v1188 = vunpack.c.l.b16 %v354
      %v1189 = vunpack.c.l.b16 %v355
      %v1190 = vunpack.c.l.b16 %v356
      %v1191 = vunpack.c.l.b16 %v357
      %v1192 = vunpack.c.l.b16 %v358
      %v1193 = vunpack.c.l.b16 %v359
      %v1194 = vunpack.c.l.b16 %v360
      %v1195 = vunpack.c.l.b16 %v361
      %v1196 = vunpack.c.l.b16 %v362
      %v1197 = vunpack.c.l.b16 %v363
      %v1198 = vunpack.c.l.b16 %v364
      %v1199 = vunpack.c.l.b16 %v365
      %v1200 = vunpack.c.l.b16 %v366
      %v1201 = vunpack.c.l.b16 %v367
      %v1202 = vunpack.c.l.b16 %v368
      %v1203 = vunpack.c.l.b16 %v369
      %v1204 = vpack.c.b16 %v1141, %v1140
      %v1205 = vpack.c.b16 %v1143, %v1142
      %v1206 = vpack.c.b16 %v1145, %v1144
      %v1207 = vpack.c.b16 %v1147, %v1146
      %v1208 = vpack.c.b16 %v1149, %v1148
      %v1209 = vpack.c.b16 %v1151, %v1150
      %v1210 = vpack.c.b16 %v1153, %v1152
      %v1211 = vpack.c.b16 %v1155, %v1154
      %v1212 = vpack.c.b16 %v1157, %v1156
      %v1213 = vpack.c.b16 %v1159, %v1158
      %v1214 = vpack.c.b16 %v1161, %v1160
      %v1215 = vpack.c.b16 %v1163, %v1162
      %v1216 = vpack.c.b16 %v1165, %v1164
      %v1217 = vpack.c.b16 %v1167, %v1166
      %v1218 = vpack.c.b16 %v1169, %v1168
      %v1219 = vpack.c.b16 %v1171, %v1170
      %v1220 = vpack.c.b16 %v1173, %v1172
      %v1221 = vpack.c.b16 %v1175, %v1174
      %v1222 = vpack.c.b16 %v1177, %v1176
      %v1223 = vpack.c.b16 %v1179, %v1178
      %v1224 = vpack.c.b16 %v1181, %v1180
      %v1225 = vpack.c.b16 %v1183, %v1182
      %v1226 = vpack.c.b16 %v1185, %v1184
      %v1227 = vpack.c.b16 %v1187, %v1186
      %v1228 = vpack.c.b16 %v1189, %v1188
      %v1229 = vpack.c.b16 %v1191, %v1190
      %v1230 = vpack.c.b16 %v1193, %v1192
      %v1231 = vpack.c.b16 %v1195, %v1194
      %v1232 = vpack.c.b16 %v1197, %v1196
      %v1233 = vpack.c.b16 %v1199, %v1198
      %v1234 = vpack.c.b16 %v1201, %v1200
      %v1235 = vpack.c.b16 %v1203, %v1202
      %v1284 = vunpack.c.l.b16 %v370
      %v1285 = vunpack.c.h.b16 %v370
      %v1286 = vunpack.c.l.b16 %v371
      %v1287 = vunpack.c.h.b16 %v371
      %v1288 = vunpack.c.l.b16 %v372
      %v1289 = vunpack.c.h.b16 %v372
      %v1290 = vunpack.c.l.b16 %v373
      %v1291 = vunpack.c.h.b16 %v373
      %v1292 = vunpack.c.l.b16 %v374
      %v1293 = vunpack.c.h.b16 %v374
      %v1294 = vunpack.c.l.b16 %v375
      %v1295 = vunpack.c.h.b16 %v375
      %v1296 = vunpack.c.l.b16 %v376
      %v1297 = vunpack.c.h.b16 %v376
      %v1298 = vunpack.c.l.b16 %v377
      %v1299 = vunpack.c.h.b16 %v377
      %v1300 = vunpack.c.l.b16 %v378
      %v1301 = vunpack.c.h.b16 %v378
      %v1302 = vunpack.c.l.b16 %v379
      %v1303 = vunpack.c.h.b16 %v379
      %v1304 = vunpack.c.l.b16 %v380
      %v1305 = vunpack.c.h.b16 %v380
      %v1306 = vunpack.c.l.b16 %v381
      %v1307 = vunpack.c.h.b16 %v381
      %v1308 = vunpack.c.l.b16 %v382
      %v1309 = vunpack.c.h.b16 %v382
      %v1310 = vunpack.c.l.b16 %v383
      %v1311 = vunpack.c.h.b16 %v383
      %v1312 = vunpack.c.l.b16 %v384
      %v1313 = vunpack.c.h.b16 %v384
      %v1314 = vunpack.c.l.b16 %v385
      %v1315 = vunpack.c.h.b16 %v385
      %v1316 = vpack.c.b16 %v1286, %v1284
      %v1317 = vpack.c.b16 %v1287, %v1285
      %v1318 = vpack.c.b16 %v1290, %v1288
      %v1319 = vpack.c.b16 %v1291, %v1289
      %v1320 = vpack.c.b16 %v1294, %v1292
      %v1321 = vpack.c.b16 %v1295, %v1293
      %v1322 = vpack.c.b16 %v1298, %v1296
      %v1323 = vpack.c.b16 %v1299, %v1297
      %v1324 = vpack.c.b16 %v1302, %v1300
      %v1325 = vpack.c.b16 %v1303, %v1301
      %v1326 = vpack.c.b16 %v1306, %v1304
      %v1327 = vpack.c.b16 %v1307, %v1305
      %v1328 = vpack.c.b16 %v1310, %v1308
      %v1329 = vpack.c.b16 %v1311, %v1309
      %v1330 = vpack.c.b16 %v1314, %v1312
      %v1331 = vpack.c.b16 %v1315, %v1313
      %1348 = vmatpush.bf16.msra.mxu0 %v1330
      %1349 = vmatpush.bf16.msra.mxu0 %v1328
      %1350 = vmatpush.bf16.msra.mxu0 %v1326
      %1351 = vmatpush.bf16.msra.mxu0 %v1324
      %1352 = vmatpush.bf16.msra.mxu0 %v1322
      %1353 = vmatpush.bf16.msra.mxu0 %v1320
      %1354 = vmatpush.bf16.msra.mxu0 %v1318
      %1355 = vmatpush.bf16.msra.mxu0 %v1316
      %1356 = vmatmul.bf16.gmra.mxu0 %v1204
      %v1357 = vpop.f32.mrf.mxu0
      %v1358 = vadd.f32 %v748, %v1357
      %v1359 = vpop.f32.mrf.mxu0
      %v1360 = vadd.f32 %v750, %v1359
      %1361 = vmatmul.bf16.gmra.mxu0 %v1205
      %v1362 = vpop.f32.mrf.mxu0
      %v1363 = vadd.f32 %v753, %v1362
      %v1364 = vpop.f32.mrf.mxu0
      %v1365 = vadd.f32 %v755, %v1364
      %1366 = vmatmul.bf16.gmra.mxu0 %v1206
      %v1367 = vpop.f32.mrf.mxu0
      %v1368 = vadd.f32 %v758, %v1367
      %v1369 = vpop.f32.mrf.mxu0
      %v1370 = vadd.f32 %v760, %v1369
      %1371 = vmatmul.bf16.gmra.mxu0 %v1207
      %v1372 = vpop.f32.mrf.mxu0
      %v1373 = vadd.f32 %v763, %v1372
      %v1374 = vpop.f32.mrf.mxu0
      %v1375 = vadd.f32 %v765, %v1374
      %1376 = vmatmul.bf16.gmra.mxu0 %v1208
      %v1377 = vpop.f32.mrf.mxu0
      %v1378 = vadd.f32 %v768, %v1377
      %v1379 = vpop.f32.mrf.mxu0
      %v1380 = vadd.f32 %v770, %v1379
      %1381 = vmatmul.bf16.gmra.mxu0 %v1209
      %v1382 = vpop.f32.mrf.mxu0
      %v1383 = vadd.f32 %v773, %v1382
      %v1384 = vpop.f32.mrf.mxu0
      %v1385 = vadd.f32 %v775, %v1384
      %1386 = vmatmul.bf16.gmra.mxu0 %v1210
      %v1387 = vpop.f32.mrf.mxu0
      %v1388 = vadd.f32 %v778, %v1387
      %v1389 = vpop.f32.mrf.mxu0
      %v1390 = vadd.f32 %v780, %v1389
      %1391 = vmatmul.bf16.gmra.mxu0 %v1211
      %v1392 = vpop.f32.mrf.mxu0
      %v1393 = vadd.f32 %v783, %v1392
      %v1394 = vpop.f32.mrf.mxu0
      %v1395 = vadd.f32 %v785, %v1394
      %1396 = vmatmul.bf16.gmra.mxu0 %v1212
      %v1397 = vpop.f32.mrf.mxu0
      %v1398 = vadd.f32 %v788, %v1397
      %v1399 = vpop.f32.mrf.mxu0
      %v1400 = vadd.f32 %v790, %v1399
      %1401 = vmatmul.bf16.gmra.mxu0 %v1213
      %v1402 = vpop.f32.mrf.mxu0
      %v1403 = vadd.f32 %v793, %v1402
      %v1404 = vpop.f32.mrf.mxu0
      %v1405 = vadd.f32 %v795, %v1404
      %1406 = vmatmul.bf16.gmra.mxu0 %v1214
      %v1407 = vpop.f32.mrf.mxu0
      %v1408 = vadd.f32 %v798, %v1407
      %v1409 = vpop.f32.mrf.mxu0
      %v1410 = vadd.f32 %v800, %v1409
      %1411 = vmatmul.bf16.gmra.mxu0 %v1215
      %v1412 = vpop.f32.mrf.mxu0
      %v1413 = vadd.f32 %v803, %v1412
      %v1414 = vpop.f32.mrf.mxu0
      %v1415 = vadd.f32 %v805, %v1414
      %1416 = vmatmul.bf16.gmra.mxu0 %v1216
      %v1417 = vpop.f32.mrf.mxu0
      %v1418 = vadd.f32 %v808, %v1417
      %v1419 = vpop.f32.mrf.mxu0
      %v1420 = vadd.f32 %v810, %v1419
      %1421 = vmatmul.bf16.gmra.mxu0 %v1217
      %v1422 = vpop.f32.mrf.mxu0
      %v1423 = vadd.f32 %v813, %v1422
      %v1424 = vpop.f32.mrf.mxu0
      %v1425 = vadd.f32 %v815, %v1424
      %1426 = vmatmul.bf16.gmra.mxu0 %v1218
      %v1427 = vpop.f32.mrf.mxu0
      %v1428 = vadd.f32 %v818, %v1427
      %v1429 = vpop.f32.mrf.mxu0
      %v1430 = vadd.f32 %v820, %v1429
      %1431 = vmatmul.bf16.gmra.mxu0 %v1219
      %v1432 = vpop.f32.mrf.mxu0
      %v1433 = vadd.f32 %v823, %v1432
      %v1434 = vpop.f32.mrf.mxu0
      %v1435 = vadd.f32 %v825, %v1434
      %1436 = vmatmul.bf16.gmra.mxu0 %v1220
      %v1437 = vpop.f32.mrf.mxu0
      %v1438 = vadd.f32 %v828, %v1437
      %v1439 = vpop.f32.mrf.mxu0
      %v1440 = vadd.f32 %v830, %v1439
      %1441 = vmatmul.bf16.gmra.mxu0 %v1221
      %v1442 = vpop.f32.mrf.mxu0
      %v1443 = vadd.f32 %v833, %v1442
      %v1444 = vpop.f32.mrf.mxu0
      %v1445 = vadd.f32 %v835, %v1444
      %1446 = vmatmul.bf16.gmra.mxu0 %v1222
      %v1447 = vpop.f32.mrf.mxu0
      %v1448 = vadd.f32 %v838, %v1447
      %v1449 = vpop.f32.mrf.mxu0
      %v1450 = vadd.f32 %v840, %v1449
      %1451 = vmatmul.bf16.gmra.mxu0 %v1223
      %v1452 = vpop.f32.mrf.mxu0
      %v1453 = vadd.f32 %v843, %v1452
      %v1454 = vpop.f32.mrf.mxu0
      %v1455 = vadd.f32 %v845, %v1454
      %1456 = vmatmul.bf16.gmra.mxu0 %v1224
      %v1457 = vpop.f32.mrf.mxu0
      %v1458 = vadd.f32 %v848, %v1457
      %v1459 = vpop.f32.mrf.mxu0
      %v1460 = vadd.f32 %v850, %v1459
      %1461 = vmatmul.bf16.gmra.mxu0 %v1225
      %v1462 = vpop.f32.mrf.mxu0
      %v1463 = vadd.f32 %v853, %v1462
      %v1464 = vpop.f32.mrf.mxu0
      %v1465 = vadd.f32 %v855, %v1464
      %1466 = vmatmul.bf16.gmra.mxu0 %v1226
      %v1467 = vpop.f32.mrf.mxu0
      %v1468 = vadd.f32 %v858, %v1467
      %v1469 = vpop.f32.mrf.mxu0
      %v1470 = vadd.f32 %v860, %v1469
      %1471 = vmatmul.bf16.gmra.mxu0 %v1227
      %v1472 = vpop.f32.mrf.mxu0
      %v1473 = vadd.f32 %v863, %v1472
      %v1474 = vpop.f32.mrf.mxu0
      %v1475 = vadd.f32 %v865, %v1474
      %1476 = vmatmul.bf16.gmra.mxu0 %v1228
      %v1477 = vpop.f32.mrf.mxu0
      %v1478 = vadd.f32 %v868, %v1477
      %v1479 = vpop.f32.mrf.mxu0
      %v1480 = vadd.f32 %v870, %v1479
      %1481 = vmatmul.bf16.gmra.mxu0 %v1229
      %v1482 = vpop.f32.mrf.mxu0
      %v1483 = vadd.f32 %v873, %v1482
      %v1484 = vpop.f32.mrf.mxu0
      %v1485 = vadd.f32 %v875, %v1484
      %1486 = vmatmul.bf16.gmra.mxu0 %v1230
      %v1487 = vpop.f32.mrf.mxu0
      %v1488 = vadd.f32 %v878, %v1487
      %v1489 = vpop.f32.mrf.mxu0
      %v1490 = vadd.f32 %v880, %v1489
      %1491 = vmatmul.bf16.gmra.mxu0 %v1231
      %v1492 = vpop.f32.mrf.mxu0
      %v1493 = vadd.f32 %v883, %v1492
      %v1494 = vpop.f32.mrf.mxu0
      %v1495 = vadd.f32 %v885, %v1494
      %1496 = vmatmul.bf16.gmra.mxu0 %v1232
      %v1497 = vpop.f32.mrf.mxu0
      %v1498 = vadd.f32 %v888, %v1497
      %v1499 = vpop.f32.mrf.mxu0
      %v1500 = vadd.f32 %v890, %v1499
      %1501 = vmatmul.bf16.gmra.mxu0 %v1233
      %v1502 = vpop.f32.mrf.mxu0
      %v1503 = vadd.f32 %v893, %v1502
      %v1504 = vpop.f32.mrf.mxu0
      %v1505 = vadd.f32 %v895, %v1504
      %1506 = vmatmul.bf16.gmra.mxu0 %v1234
      %v1507 = vpop.f32.mrf.mxu0
      %v1508 = vadd.f32 %v898, %v1507
      %v1509 = vpop.f32.mrf.mxu0
      %v1510 = vadd.f32 %v900, %v1509
      %1511 = vmatmul.bf16.gmra.mxu0 %v1235
      %v1512 = vpop.f32.mrf.mxu0
      %v1513 = vadd.f32 %v903, %v1512
      %v1514 = vpop.f32.mrf.mxu0
      %v1515 = vadd.f32 %v905, %v1514
      %1516 = vdwg.mxu0
      %1517 = vmatpush.bf16.msra.mxu0 %v1331
      %1518 = vmatpush.bf16.msra.mxu0 %v1329
      %1519 = vmatpush.bf16.msra.mxu0 %v1327
      %1520 = vmatpush.bf16.msra.mxu0 %v1325
      %1521 = vmatpush.bf16.msra.mxu0 %v1323
      %1522 = vmatpush.bf16.msra.mxu0 %v1321
      %1523 = vmatpush.bf16.msra.mxu0 %v1319
      %1524 = vmatpush.bf16.msra.mxu0 %v1317
      %1525 = vmatmul.bf16.gmra.mxu0 %v1204
      %v1526 = vpop.f32.mrf.mxu0
      %v1527 = vadd.f32 %v917, %v1526
      %v1528 = vpop.f32.mrf.mxu0
      %v1529 = vadd.f32 %v919, %v1528
      %1530 = vmatmul.bf16.gmra.mxu0 %v1205
      %v1531 = vpop.f32.mrf.mxu0
      %v1532 = vadd.f32 %v922, %v1531
      %v1533 = vpop.f32.mrf.mxu0
      %v1534 = vadd.f32 %v924, %v1533
      %1535 = vmatmul.bf16.gmra.mxu0 %v1206
      %v1536 = vpop.f32.mrf.mxu0
      %v1537 = vadd.f32 %v927, %v1536
      %v1538 = vpop.f32.mrf.mxu0
      %v1539 = vadd.f32 %v929, %v1538
      %1540 = vmatmul.bf16.gmra.mxu0 %v1207
      %v1541 = vpop.f32.mrf.mxu0
      %v1542 = vadd.f32 %v932, %v1541
      %v1543 = vpop.f32.mrf.mxu0
      %v1544 = vadd.f32 %v934, %v1543
      %1545 = vmatmul.bf16.gmra.mxu0 %v1208
      %v1546 = vpop.f32.mrf.mxu0
      %v1547 = vadd.f32 %v937, %v1546
      %v1548 = vpop.f32.mrf.mxu0
      %v1549 = vadd.f32 %v939, %v1548
      %1550 = vmatmul.bf16.gmra.mxu0 %v1209
      %v1551 = vpop.f32.mrf.mxu0
      %v1552 = vadd.f32 %v942, %v1551
      %v1553 = vpop.f32.mrf.mxu0
      %v1554 = vadd.f32 %v944, %v1553
      %1555 = vmatmul.bf16.gmra.mxu0 %v1210
      %v1556 = vpop.f32.mrf.mxu0
      %v1557 = vadd.f32 %v947, %v1556
      %v1558 = vpop.f32.mrf.mxu0
      %v1559 = vadd.f32 %v949, %v1558
      %1560 = vmatmul.bf16.gmra.mxu0 %v1211
      %v1561 = vpop.f32.mrf.mxu0
      %v1562 = vadd.f32 %v952, %v1561
      %v1563 = vpop.f32.mrf.mxu0
      %v1564 = vadd.f32 %v954, %v1563
      %1565 = vmatmul.bf16.gmra.mxu0 %v1212
      %v1566 = vpop.f32.mrf.mxu0
      %v1567 = vadd.f32 %v957, %v1566
      %v1568 = vpop.f32.mrf.mxu0
      %v1569 = vadd.f32 %v959, %v1568
      %1570 = vmatmul.bf16.gmra.mxu0 %v1213
      %v1571 = vpop.f32.mrf.mxu0
      %v1572 = vadd.f32 %v962, %v1571
      %v1573 = vpop.f32.mrf.mxu0
      %v1574 = vadd.f32 %v964, %v1573
      %1575 = vmatmul.bf16.gmra.mxu0 %v1214
      %v1576 = vpop.f32.mrf.mxu0
      %v1577 = vadd.f32 %v967, %v1576
      %v1578 = vpop.f32.mrf.mxu0
      %v1579 = vadd.f32 %v969, %v1578
      %1580 = vmatmul.bf16.gmra.mxu0 %v1215
      %v1581 = vpop.f32.mrf.mxu0
      %v1582 = vadd.f32 %v972, %v1581
      %v1583 = vpop.f32.mrf.mxu0
      %v1584 = vadd.f32 %v974, %v1583
      %1585 = vmatmul.bf16.gmra.mxu0 %v1216
      %v1586 = vpop.f32.mrf.mxu0
      %v1587 = vadd.f32 %v977, %v1586
      %v1588 = vpop.f32.mrf.mxu0
      %v1589 = vadd.f32 %v979, %v1588
      %1590 = vmatmul.bf16.gmra.mxu0 %v1217
      %v1591 = vpop.f32.mrf.mxu0
      %v1592 = vadd.f32 %v982, %v1591
      %v1593 = vpop.f32.mrf.mxu0
      %v1594 = vadd.f32 %v984, %v1593
      %1595 = vmatmul.bf16.gmra.mxu0 %v1218
      %v1596 = vpop.f32.mrf.mxu0
      %v1597 = vadd.f32 %v987, %v1596
      %v1598 = vpop.f32.mrf.mxu0
      %v1599 = vadd.f32 %v989, %v1598
      %1600 = vmatmul.bf16.gmra.mxu0 %v1219
      %v1601 = vpop.f32.mrf.mxu0
      %v1602 = vadd.f32 %v992, %v1601
      %v1603 = vpop.f32.mrf.mxu0
      %v1604 = vadd.f32 %v994, %v1603
      %1605 = vmatmul.bf16.gmra.mxu0 %v1220
      %v1606 = vpop.f32.mrf.mxu0
      %v1607 = vadd.f32 %v997, %v1606
      %v1608 = vpop.f32.mrf.mxu0
      %v1609 = vadd.f32 %v999, %v1608
      %1610 = vmatmul.bf16.gmra.mxu0 %v1221
      %v1611 = vpop.f32.mrf.mxu0
      %v1612 = vadd.f32 %v1002, %v1611
      %v1613 = vpop.f32.mrf.mxu0
      %v1614 = vadd.f32 %v1004, %v1613
      %1615 = vmatmul.bf16.gmra.mxu0 %v1222
      %v1616 = vpop.f32.mrf.mxu0
      %v1617 = vadd.f32 %v1007, %v1616
      %v1618 = vpop.f32.mrf.mxu0
      %v1619 = vadd.f32 %v1009, %v1618
      %1620 = vmatmul.bf16.gmra.mxu0 %v1223
      %v1621 = vpop.f32.mrf.mxu0
      %v1622 = vadd.f32 %v1012, %v1621
      %v1623 = vpop.f32.mrf.mxu0
      %v1624 = vadd.f32 %v1014, %v1623
      %1625 = vmatmul.bf16.gmra.mxu0 %v1224
      %v1626 = vpop.f32.mrf.mxu0
      %v1627 = vadd.f32 %v1017, %v1626
      %v1628 = vpop.f32.mrf.mxu0
      %v1629 = vadd.f32 %v1019, %v1628
      %1630 = vmatmul.bf16.gmra.mxu0 %v1225
      %v1631 = vpop.f32.mrf.mxu0
      %v1632 = vadd.f32 %v1022, %v1631
      %v1633 = vpop.f32.mrf.mxu0
      %v1634 = vadd.f32 %v1024, %v1633
      %1635 = vmatmul.bf16.gmra.mxu0 %v1226
      %v1636 = vpop.f32.mrf.mxu0
      %v1637 = vadd.f32 %v1027, %v1636
      %v1638 = vpop.f32.mrf.mxu0
      %v1639 = vadd.f32 %v1029, %v1638
      %1640 = vmatmul.bf16.gmra.mxu0 %v1227
      %v1641 = vpop.f32.mrf.mxu0
      %v1642 = vadd.f32 %v1032, %v1641
      %v1643 = vpop.f32.mrf.mxu0
      %v1644 = vadd.f32 %v1034, %v1643
      %1645 = vmatmul.bf16.gmra.mxu0 %v1228
      %v1646 = vpop.f32.mrf.mxu0
      %v1647 = vadd.f32 %v1037, %v1646
      %v1648 = vpop.f32.mrf.mxu0
      %v1649 = vadd.f32 %v1039, %v1648
      %1650 = vmatmul.bf16.gmra.mxu0 %v1229
      %v1651 = vpop.f32.mrf.mxu0
      %v1652 = vadd.f32 %v1042, %v1651
      %v1653 = vpop.f32.mrf.mxu0
      %v1654 = vadd.f32 %v1044, %v1653
      %1655 = vmatmul.bf16.gmra.mxu0 %v1230
      %v1656 = vpop.f32.mrf.mxu0
      %v1657 = vadd.f32 %v1047, %v1656
      %v1658 = vpop.f32.mrf.mxu0
      %v1659 = vadd.f32 %v1049, %v1658
      %1660 = vmatmul.bf16.gmra.mxu0 %v1231
      %v1661 = vpop.f32.mrf.mxu0
      %v1662 = vadd.f32 %v1052, %v1661
      %v1663 = vpop.f32.mrf.mxu0
      %v1664 = vadd.f32 %v1054, %v1663
      %1665 = vmatmul.bf16.gmra.mxu0 %v1232
      %v1666 = vpop.f32.mrf.mxu0
      %v1667 = vadd.f32 %v1057, %v1666
      %v1668 = vpop.f32.mrf.mxu0
      %v1669 = vadd.f32 %v1059, %v1668
      %1670 = vmatmul.bf16.gmra.mxu0 %v1233
      %v1671 = vpop.f32.mrf.mxu0
      %v1672 = vadd.f32 %v1062, %v1671
      %v1673 = vpop.f32.mrf.mxu0
      %v1674 = vadd.f32 %v1064, %v1673
      %1675 = vmatmul.bf16.gmra.mxu0 %v1234
      %v1676 = vpop.f32.mrf.mxu0
      %v1677 = vadd.f32 %v1067, %v1676
      %v1678 = vpop.f32.mrf.mxu0
      %v1679 = vadd.f32 %v1069, %v1678
      %1680 = vmatmul.bf16.gmra.mxu0 %v1235
      %v1681 = vpop.f32.mrf.mxu0
      %v1682 = vadd.f32 %v1072, %v1681
      %v1683 = vpop.f32.mrf.mxu0
      %v1684 = vadd.f32 %v1074, %v1683
      %1685 = vdwg.mxu0
      %v1686 = vld [vmem:[%s4] sm:$0x3]
      %v1688 = vperm.slane %v1686, 0
      %v1689 = vperm.slane %v1686, 1
      %v1692 = vadd.f32 %v1358, %v1688
      %v1693 = vadd.f32 %v1527, %v1689
      %v1694 = vadd.f32 %v1360, %v1688
      %v1695 = vadd.f32 %v1529, %v1689
      %v1696 = vadd.f32 %v1363, %v1688
      %v1697 = vadd.f32 %v1532, %v1689
      %v1698 = vadd.f32 %v1365, %v1688
      %v1699 = vadd.f32 %v1534, %v1689
      %v1700 = vadd.f32 %v1368, %v1688
      %v1701 = vadd.f32 %v1537, %v1689
      %v1702 = vadd.f32 %v1370, %v1688
      %v1703 = vadd.f32 %v1539, %v1689
      %v1704 = vadd.f32 %v1373, %v1688
      %v1705 = vadd.f32 %v1542, %v1689
      %v1706 = vadd.f32 %v1375, %v1688
      %v1707 = vadd.f32 %v1544, %v1689
      %v1708 = vadd.f32 %v1378, %v1688
      %v1709 = vadd.f32 %v1547, %v1689
      %v1710 = vadd.f32 %v1380, %v1688
      %v1711 = vadd.f32 %v1549, %v1689
      %v1712 = vadd.f32 %v1383, %v1688
      %v1713 = vadd.f32 %v1552, %v1689
      %v1714 = vadd.f32 %v1385, %v1688
      %v1715 = vadd.f32 %v1554, %v1689
      %v1716 = vadd.f32 %v1388, %v1688
      %v1717 = vadd.f32 %v1557, %v1689
      %v1718 = vadd.f32 %v1390, %v1688
      %v1719 = vadd.f32 %v1559, %v1689
      %v1720 = vadd.f32 %v1393, %v1688
      %v1721 = vadd.f32 %v1562, %v1689
      %v1722 = vadd.f32 %v1395, %v1688
      %v1723 = vadd.f32 %v1564, %v1689
      %v1724 = vadd.f32 %v1398, %v1688
      %v1725 = vadd.f32 %v1567, %v1689
      %v1726 = vadd.f32 %v1400, %v1688
      %v1727 = vadd.f32 %v1569, %v1689
      %v1728 = vadd.f32 %v1403, %v1688
      %v1729 = vadd.f32 %v1572, %v1689
      %v1730 = vadd.f32 %v1405, %v1688
      %v1731 = vadd.f32 %v1574, %v1689
      %v1732 = vadd.f32 %v1408, %v1688
      %v1733 = vadd.f32 %v1577, %v1689
      %v1734 = vadd.f32 %v1410, %v1688
      %v1735 = vadd.f32 %v1579, %v1689
      %v1736 = vadd.f32 %v1413, %v1688
      %v1737 = vadd.f32 %v1582, %v1689
      %v1738 = vadd.f32 %v1415, %v1688
      %v1739 = vadd.f32 %v1584, %v1689
      %v1740 = vadd.f32 %v1418, %v1688
      %v1741 = vadd.f32 %v1587, %v1689
      %v1742 = vadd.f32 %v1420, %v1688
      %v1743 = vadd.f32 %v1589, %v1689
      %v1744 = vadd.f32 %v1423, %v1688
      %v1745 = vadd.f32 %v1592, %v1689
      %v1746 = vadd.f32 %v1425, %v1688
      %v1747 = vadd.f32 %v1594, %v1689
      %v1748 = vadd.f32 %v1428, %v1688
      %v1749 = vadd.f32 %v1597, %v1689
      %v1750 = vadd.f32 %v1430, %v1688
      %v1751 = vadd.f32 %v1599, %v1689
      %v1752 = vadd.f32 %v1433, %v1688
      %v1753 = vadd.f32 %v1602, %v1689
      %v1754 = vadd.f32 %v1435, %v1688
      %v1755 = vadd.f32 %v1604, %v1689
      %v1756 = vadd.f32 %v1438, %v1688
      %v1757 = vadd.f32 %v1607, %v1689
      %v1758 = vadd.f32 %v1440, %v1688
      %v1759 = vadd.f32 %v1609, %v1689
      %v1760 = vadd.f32 %v1443, %v1688
      %v1761 = vadd.f32 %v1612, %v1689
      %v1762 = vadd.f32 %v1445, %v1688
      %v1763 = vadd.f32 %v1614, %v1689
      %v1764 = vadd.f32 %v1448, %v1688
      %v1765 = vadd.f32 %v1617, %v1689
      %v1766 = vadd.f32 %v1450, %v1688
      %v1767 = vadd.f32 %v1619, %v1689
      %v1768 = vadd.f32 %v1453, %v1688
      %v1769 = vadd.f32 %v1622, %v1689
      %v1770 = vadd.f32 %v1455, %v1688
      %v1771 = vadd.f32 %v1624, %v1689
      %v1772 = vadd.f32 %v1458, %v1688
      %v1773 = vadd.f32 %v1627, %v1689
      %v1774 = vadd.f32 %v1460, %v1688
      %v1775 = vadd.f32 %v1629, %v1689
      %v1776 = vadd.f32 %v1463, %v1688
      %v1777 = vadd.f32 %v1632, %v1689
      %v1778 = vadd.f32 %v1465, %v1688
      %v1779 = vadd.f32 %v1634, %v1689
      %v1780 = vadd.f32 %v1468, %v1688
      %v1781 = vadd.f32 %v1637, %v1689
      %v1782 = vadd.f32 %v1470, %v1688
      %v1783 = vadd.f32 %v1639, %v1689
      %v1784 = vadd.f32 %v1473, %v1688
      %v1785 = vadd.f32 %v1642, %v1689
      %v1786 = vadd.f32 %v1475, %v1688
      %v1787 = vadd.f32 %v1644, %v1689
      %v1788 = vadd.f32 %v1478, %v1688
      %v1789 = vadd.f32 %v1647, %v1689
      %v1790 = vadd.f32 %v1480, %v1688
      %v1791 = vadd.f32 %v1649, %v1689
      %v1792 = vadd.f32 %v1483, %v1688
      %v1793 = vadd.f32 %v1652, %v1689
      %v1794 = vadd.f32 %v1485, %v1688
      %v1795 = vadd.f32 %v1654, %v1689
      %v1796 = vadd.f32 %v1488, %v1688
      %v1797 = vadd.f32 %v1657, %v1689
      %v1798 = vadd.f32 %v1490, %v1688
      %v1799 = vadd.f32 %v1659, %v1689
      %v1800 = vadd.f32 %v1493, %v1688
      %v1801 = vadd.f32 %v1662, %v1689
      %v1802 = vadd.f32 %v1495, %v1688
      %v1803 = vadd.f32 %v1664, %v1689
      %v1804 = vadd.f32 %v1498, %v1688
      %v1805 = vadd.f32 %v1667, %v1689
      %v1806 = vadd.f32 %v1500, %v1688
      %v1807 = vadd.f32 %v1669, %v1689
      %v1808 = vadd.f32 %v1503, %v1688
      %v1809 = vadd.f32 %v1672, %v1689
      %v1810 = vadd.f32 %v1505, %v1688
      %v1811 = vadd.f32 %v1674, %v1689
      %v1812 = vadd.f32 %v1508, %v1688
      %v1813 = vadd.f32 %v1677, %v1689
      %v1814 = vadd.f32 %v1510, %v1688
      %v1815 = vadd.f32 %v1679, %v1689
      %v1816 = vadd.f32 %v1513, %v1688
      %v1817 = vadd.f32 %v1682, %v1689
      %v1818 = vadd.f32 %v1515, %v1688
      %v1819 = vadd.f32 %v1684, %v1689
      %v1820 = vmax.f32 %v1692, 0.0
      %v1821 = vmax.f32 %v1693, 0.0
      %v1822 = vmax.f32 %v1694, 0.0
      %v1823 = vmax.f32 %v1695, 0.0
      %v1824 = vmax.f32 %v1696, 0.0
      %v1825 = vmax.f32 %v1697, 0.0
      %v1826 = vmax.f32 %v1698, 0.0
      %v1827 = vmax.f32 %v1699, 0.0
      %v1828 = vmax.f32 %v1700, 0.0
      %v1829 = vmax.f32 %v1701, 0.0
      %v1830 = vmax.f32 %v1702, 0.0
      %v1831 = vmax.f32 %v1703, 0.0
      %v1832 = vmax.f32 %v1704, 0.0
      %v1833 = vmax.f32 %v1705, 0.0
      %v1834 = vmax.f32 %v1706, 0.0
      %v1835 = vmax.f32 %v1707, 0.0
      %v1836 = vmax.f32 %v1708, 0.0
      %v1837 = vmax.f32 %v1709, 0.0
      %v1838 = vmax.f32 %v1710, 0.0
      %v1839 = vmax.f32 %v1711, 0.0
      %v1840 = vmax.f32 %v1712, 0.0
      %v1841 = vmax.f32 %v1713, 0.0
      %v1842 = vmax.f32 %v1714, 0.0
      %v1843 = vmax.f32 %v1715, 0.0
      %v1844 = vmax.f32 %v1716, 0.0
      %v1845 = vmax.f32 %v1717, 0.0
      %v1846 = vmax.f32 %v1718, 0.0
      %v1847 = vmax.f32 %v1719, 0.0
      %v1848 = vmax.f32 %v1720, 0.0
      %v1849 = vmax.f32 %v1721, 0.0
      %v1850 = vmax.f32 %v1722, 0.0
      %v1851 = vmax.f32 %v1723, 0.0
      %v1852 = vmax.f32 %v1724, 0.0
      %v1853 = vmax.f32 %v1725, 0.0
      %v1854 = vmax.f32 %v1726, 0.0
      %v1855 = vmax.f32 %v1727, 0.0
      %v1856 = vmax.f32 %v1728, 0.0
      %v1857 = vmax.f32 %v1729, 0.0
      %v1858 = vmax.f32 %v1730, 0.0
      %v1859 = vmax.f32 %v1731, 0.0
      %v1860 = vmax.f32 %v1732, 0.0
      %v1861 = vmax.f32 %v1733, 0.0
      %v1862 = vmax.f32 %v1734, 0.0
      %v1863 = vmax.f32 %v1735, 0.0
      %v1864 = vmax.f32 %v1736, 0.0
      %v1865 = vmax.f32 %v1737, 0.0
      %v1866 = vmax.f32 %v1738, 0.0
      %v1867 = vmax.f32 %v1739, 0.0
      %v1868 = vmax.f32 %v1740, 0.0
      %v1869 = vmax.f32 %v1741, 0.0
      %v1870 = vmax.f32 %v1742, 0.0
      %v1871 = vmax.f32 %v1743, 0.0
      %v1872 = vmax.f32 %v1744, 0.0
      %v1873 = vmax.f32 %v1745, 0.0
      %v1874 = vmax.f32 %v1746, 0.0
      %v1875 = vmax.f32 %v1747, 0.0
      %v1876 = vmax.f32 %v1748, 0.0
      %v1877 = vmax.f32 %v1749, 0.0
      %v1878 = vmax.f32 %v1750, 0.0
      %v1879 = vmax.f32 %v1751, 0.0
      %v1880 = vmax.f32 %v1752, 0.0
      %v1881 = vmax.f32 %v1753, 0.0
      %v1882 = vmax.f32 %v1754, 0.0
      %v1883 = vmax.f32 %v1755, 0.0
      %v1884 = vmax.f32 %v1756, 0.0
      %v1885 = vmax.f32 %v1757, 0.0
      %v1886 = vmax.f32 %v1758, 0.0
      %v1887 = vmax.f32 %v1759, 0.0
      %v1888 = vmax.f32 %v1760, 0.0
      %v1889 = vmax.f32 %v1761, 0.0
      %v1890 = vmax.f32 %v1762, 0.0
      %v1891 = vmax.f32 %v1763, 0.0
      %v1892 = vmax.f32 %v1764, 0.0
      %v1893 = vmax.f32 %v1765, 0.0
      %v1894 = vmax.f32 %v1766, 0.0
      %v1895 = vmax.f32 %v1767, 0.0
      %v1896 = vmax.f32 %v1768, 0.0
      %v1897 = vmax.f32 %v1769, 0.0
      %v1898 = vmax.f32 %v1770, 0.0
      %v1899 = vmax.f32 %v1771, 0.0
      %v1900 = vmax.f32 %v1772, 0.0
      %v1901 = vmax.f32 %v1773, 0.0
      %v1902 = vmax.f32 %v1774, 0.0
      %v1903 = vmax.f32 %v1775, 0.0
      %v1904 = vmax.f32 %v1776, 0.0
      %v1905 = vmax.f32 %v1777, 0.0
      %v1906 = vmax.f32 %v1778, 0.0
      %v1907 = vmax.f32 %v1779, 0.0
      %v1908 = vmax.f32 %v1780, 0.0
      %v1909 = vmax.f32 %v1781, 0.0
      %v1910 = vmax.f32 %v1782, 0.0
      %v1911 = vmax.f32 %v1783, 0.0
      %v1912 = vmax.f32 %v1784, 0.0
      %v1913 = vmax.f32 %v1785, 0.0
      %v1914 = vmax.f32 %v1786, 0.0
      %v1915 = vmax.f32 %v1787, 0.0
      %v1916 = vmax.f32 %v1788, 0.0
      %v1917 = vmax.f32 %v1789, 0.0
      %v1918 = vmax.f32 %v1790, 0.0
      %v1919 = vmax.f32 %v1791, 0.0
      %v1920 = vmax.f32 %v1792, 0.0
      %v1921 = vmax.f32 %v1793, 0.0
      %v1922 = vmax.f32 %v1794, 0.0
      %v1923 = vmax.f32 %v1795, 0.0
      %v1924 = vmax.f32 %v1796, 0.0
      %v1925 = vmax.f32 %v1797, 0.0
      %v1926 = vmax.f32 %v1798, 0.0
      %v1927 = vmax.f32 %v1799, 0.0
      %v1928 = vmax.f32 %v1800, 0.0
      %v1929 = vmax.f32 %v1801, 0.0
      %v1930 = vmax.f32 %v1802, 0.0
      %v1931 = vmax.f32 %v1803, 0.0
      %v1932 = vmax.f32 %v1804, 0.0
      %v1933 = vmax.f32 %v1805, 0.0
      %v1934 = vmax.f32 %v1806, 0.0
      %v1935 = vmax.f32 %v1807, 0.0
      %v1936 = vmax.f32 %v1808, 0.0
      %v1937 = vmax.f32 %v1809, 0.0
      %v1938 = vmax.f32 %v1810, 0.0
      %v1939 = vmax.f32 %v1811, 0.0
      %v1940 = vmax.f32 %v1812, 0.0
      %v1941 = vmax.f32 %v1813, 0.0
      %v1942 = vmax.f32 %v1814, 0.0
      %v1943 = vmax.f32 %v1815, 0.0
      %v1944 = vmax.f32 %v1816, 0.0
      %v1945 = vmax.f32 %v1817, 0.0
      %v1946 = vmax.f32 %v1818, 0.0
      %v1947 = vmax.f32 %v1819, 0.0
      %v1948 = vpack.c.bf16 %v1822, %v1820
      %v1949 = vpack.c.bf16 %v1823, %v1821
      %v1950 = vpack.c.bf16 %v1826, %v1824
      %v1951 = vpack.c.bf16 %v1827, %v1825
      %v1952 = vpack.c.bf16 %v1830, %v1828
      %v1953 = vpack.c.bf16 %v1831, %v1829
      %v1954 = vpack.c.bf16 %v1834, %v1832
      %v1955 = vpack.c.bf16 %v1835, %v1833
      %v1956 = vpack.c.bf16 %v1838, %v1836
      %v1957 = vpack.c.bf16 %v1839, %v1837
      %v1958 = vpack.c.bf16 %v1842, %v1840
      %v1959 = vpack.c.bf16 %v1843, %v1841
      %v1960 = vpack.c.bf16 %v1846, %v1844
      %v1961 = vpack.c.bf16 %v1847, %v1845
      %v1962 = vpack.c.bf16 %v1850, %v1848
      %v1963 = vpack.c.bf16 %v1851, %v1849
      %v1964 = vpack.c.bf16 %v1854, %v1852
      %v1965 = vpack.c.bf16 %v1855, %v1853
      %v1966 = vpack.c.bf16 %v1858, %v1856
      %v1967 = vpack.c.bf16 %v1859, %v1857
      %v1968 = vpack.c.bf16 %v1862, %v1860
      %v1969 = vpack.c.bf16 %v1863, %v1861
      %v1970 = vpack.c.bf16 %v1866, %v1864
      %v1971 = vpack.c.bf16 %v1867, %v1865
      %v1972 = vpack.c.bf16 %v1870, %v1868
      %v1973 = vpack.c.bf16 %v1871, %v1869
      %v1974 = vpack.c.bf16 %v1874, %v1872
      %v1975 = vpack.c.bf16 %v1875, %v1873
      %v1976 = vpack.c.bf16 %v1878, %v1876
      %v1977 = vpack.c.bf16 %v1879, %v1877
      %v1978 = vpack.c.bf16 %v1882, %v1880
      %v1979 = vpack.c.bf16 %v1883, %v1881
      %v1980 = vpack.c.bf16 %v1886, %v1884
      %v1981 = vpack.c.bf16 %v1887, %v1885
      %v1982 = vpack.c.bf16 %v1890, %v1888
      %v1983 = vpack.c.bf16 %v1891, %v1889
      %v1984 = vpack.c.bf16 %v1894, %v1892
      %v1985 = vpack.c.bf16 %v1895, %v1893
      %v1986 = vpack.c.bf16 %v1898, %v1896
      %v1987 = vpack.c.bf16 %v1899, %v1897
      %v1988 = vpack.c.bf16 %v1902, %v1900
      %v1989 = vpack.c.bf16 %v1903, %v1901
      %v1990 = vpack.c.bf16 %v1906, %v1904
      %v1991 = vpack.c.bf16 %v1907, %v1905
      %v1992 = vpack.c.bf16 %v1910, %v1908
      %v1993 = vpack.c.bf16 %v1911, %v1909
      %v1994 = vpack.c.bf16 %v1914, %v1912
      %v1995 = vpack.c.bf16 %v1915, %v1913
      %v1996 = vpack.c.bf16 %v1918, %v1916
      %v1997 = vpack.c.bf16 %v1919, %v1917
      %v1998 = vpack.c.bf16 %v1922, %v1920
      %v1999 = vpack.c.bf16 %v1923, %v1921
      %v2000 = vpack.c.bf16 %v1926, %v1924
      %v2001 = vpack.c.bf16 %v1927, %v1925
      %v2002 = vpack.c.bf16 %v1930, %v1928
      %v2003 = vpack.c.bf16 %v1931, %v1929
      %v2004 = vpack.c.bf16 %v1934, %v1932
      %v2005 = vpack.c.bf16 %v1935, %v1933
      %v2006 = vpack.c.bf16 %v1938, %v1936
      %v2007 = vpack.c.bf16 %v1939, %v1937
      %v2008 = vpack.c.bf16 %v1942, %v1940
      %v2009 = vpack.c.bf16 %v1943, %v1941
      %v2010 = vpack.c.bf16 %v1946, %v1944
      %v2011 = vpack.c.bf16 %v1947, %v1945
      %v2012 = vld [vmem:[%s5] sm:$0xff]
      %v2013 = vld [vmem:[%s5 + $0x8] sm:$0xff]
      %v2014 = vld [vmem:[%s5 + $0x10] sm:$0xff]
      %v2015 = vld [vmem:[%s5 + $0x18] sm:$0xff]
      %v2016 = vld [vmem:[%s5 + $0x20] sm:$0xff]
      %v2017 = vld [vmem:[%s5 + $0x28] sm:$0xff]
      %v2018 = vld [vmem:[%s5 + $0x30] sm:$0xff]
      %v2019 = vld [vmem:[%s5 + $0x38] sm:$0xff]
      %v2020 = vld [vmem:[%s5 + $0x40] sm:$0xff]
      %v2021 = vld [vmem:[%s5 + $0x48] sm:$0xff]
      %v2022 = vld [vmem:[%s5 + $0x50] sm:$0xff]
      %v2023 = vld [vmem:[%s5 + $0x58] sm:$0xff]
      %v2024 = vld [vmem:[%s5 + $0x60] sm:$0xff]
      %v2025 = vld [vmem:[%s5 + $0x68] sm:$0xff]
      %v2026 = vld [vmem:[%s5 + $0x70] sm:$0xff]
      %v2027 = vld [vmem:[%s5 + $0x78] sm:$0xff]
      %v2028 = vld [vmem:[%s5 + $0x80] sm:$0xff]
      %v2029 = vld [vmem:[%s5 + $0x88] sm:$0xff]
      %v2030 = vld [vmem:[%s5 + $0x90] sm:$0xff]
      %v2031 = vld [vmem:[%s5 + $0x98] sm:$0xff]
      %v2032 = vld [vmem:[%s5 + $0xa0] sm:$0xff]
      %v2033 = vld [vmem:[%s5 + $0xa8] sm:$0xff]
      %v2034 = vld [vmem:[%s5 + $0xb0] sm:$0xff]
      %v2035 = vld [vmem:[%s5 + $0xb8] sm:$0xff]
      %v2036 = vld [vmem:[%s5 + $0xc0] sm:$0xff]
      %v2037 = vld [vmem:[%s5 + $0xc8] sm:$0xff]
      %v2038 = vld [vmem:[%s5 + $0xd0] sm:$0xff]
      %v2039 = vld [vmem:[%s5 + $0xd8] sm:$0xff]
      %v2040 = vld [vmem:[%s5 + $0xe0] sm:$0xff]
      %v2041 = vld [vmem:[%s5 + $0xe8] sm:$0xff]
      %v2042 = vld [vmem:[%s5 + $0xf0] sm:$0xff]
      %v2043 = vld [vmem:[%s5 + $0xf8] sm:$0xff]
      %v2044 = vld [vmem:[%s6] sm:$0x3]
      %v2046 = vperm.slane %v2044, 0
      %v2047 = vperm.slane %v2044, 1
      %v2082 = vunpack.c.l.b16 %v2012
      %v2083 = vunpack.c.h.b16 %v2012
      %v2084 = vunpack.c.l.b16 %v2013
      %v2085 = vunpack.c.h.b16 %v2013
      %v2086 = vunpack.c.l.b16 %v2014
      %v2087 = vunpack.c.h.b16 %v2014
      %v2088 = vunpack.c.l.b16 %v2015
      %v2089 = vunpack.c.h.b16 %v2015
      %v2090 = vunpack.c.l.b16 %v2016
      %v2091 = vunpack.c.h.b16 %v2016
      %v2092 = vunpack.c.l.b16 %v2017
      %v2093 = vunpack.c.h.b16 %v2017
      %v2094 = vunpack.c.l.b16 %v2018
      %v2095 = vunpack.c.h.b16 %v2018
      %v2096 = vunpack.c.l.b16 %v2019
      %v2097 = vunpack.c.h.b16 %v2019
      %v2098 = vunpack.c.l.b16 %v2020
      %v2099 = vunpack.c.h.b16 %v2020
      %v2100 = vunpack.c.l.b16 %v2021
      %v2101 = vunpack.c.h.b16 %v2021
      %v2102 = vunpack.c.l.b16 %v2022
      %v2103 = vunpack.c.h.b16 %v2022
      %v2104 = vunpack.c.l.b16 %v2023
      %v2105 = vunpack.c.h.b16 %v2023
      %v2106 = vunpack.c.l.b16 %v2024
      %v2107 = vunpack.c.h.b16 %v2024
      %v2108 = vunpack.c.l.b16 %v2025
      %v2109 = vunpack.c.h.b16 %v2025
      %v2110 = vunpack.c.l.b16 %v2026
      %v2111 = vunpack.c.h.b16 %v2026
      %v2112 = vunpack.c.l.b16 %v2027
      %v2113 = vunpack.c.h.b16 %v2027
      %v2114 = vunpack.c.l.b16 %v2028
      %v2115 = vunpack.c.h.b16 %v2028
      %v2116 = vunpack.c.l.b16 %v2029
      %v2117 = vunpack.c.h.b16 %v2029
      %v2118 = vunpack.c.l.b16 %v2030
      %v2119 = vunpack.c.h.b16 %v2030
      %v2120 = vunpack.c.l.b16 %v2031
      %v2121 = vunpack.c.h.b16 %v2031
      %v2122 = vunpack.c.l.b16 %v2032
      %v2123 = vunpack.c.h.b16 %v2032
      %v2124 = vunpack.c.l.b16 %v2033
      %v2125 = vunpack.c.h.b16 %v2033
      %v2126 = vunpack.c.l.b16 %v2034
      %v2127 = vunpack.c.h.b16 %v2034
      %v2128 = vunpack.c.l.b16 %v2035
      %v2129 = vunpack.c.h.b16 %v2035
      %v2130 = vunpack.c.l.b16 %v2036
      %v2131 = vunpack.c.h.b16 %v2036
      %v2132 = vunpack.c.l.b16 %v2037
      %v2133 = vunpack.c.h.b16 %v2037
      %v2134 = vunpack.c.l.b16 %v2038
      %v2135 = vunpack.c.h.b16 %v2038
      %v2136 = vunpack.c.l.b16 %v2039
      %v2137 = vunpack.c.h.b16 %v2039
      %v2138 = vunpack.c.l.b16 %v2040
      %v2139 = vunpack.c.h.b16 %v2040
      %v2140 = vunpack.c.l.b16 %v2041
      %v2141 = vunpack.c.h.b16 %v2041
      %v2142 = vunpack.c.l.b16 %v2042
      %v2143 = vunpack.c.h.b16 %v2042
      %v2144 = vunpack.c.l.b16 %v2043
      %v2145 = vunpack.c.h.b16 %v2043
      %v2146 = vpack.c.b16 %v2084, %v2082
      %v2147 = vpack.c.b16 %v2085, %v2083
      %v2148 = vpack.c.b16 %v2088, %v2086
      %v2149 = vpack.c.b16 %v2089, %v2087
      %v2150 = vpack.c.b16 %v2092, %v2090
      %v2151 = vpack.c.b16 %v2093, %v2091
      %v2152 = vpack.c.b16 %v2096, %v2094
      %v2153 = vpack.c.b16 %v2097, %v2095
      %v2154 = vpack.c.b16 %v2100, %v2098
      %v2155 = vpack.c.b16 %v2101, %v2099
      %v2156 = vpack.c.b16 %v2104, %v2102
      %v2157 = vpack.c.b16 %v2105, %v2103
      %v2158 = vpack.c.b16 %v2108, %v2106
      %v2159 = vpack.c.b16 %v2109, %v2107
      %v2160 = vpack.c.b16 %v2112, %v2110
      %v2161 = vpack.c.b16 %v2113, %v2111
      %v2162 = vpack.c.b16 %v2116, %v2114
      %v2163 = vpack.c.b16 %v2117, %v2115
      %v2164 = vpack.c.b16 %v2120, %v2118
      %v2165 = vpack.c.b16 %v2121, %v2119
      %v2166 = vpack.c.b16 %v2124, %v2122
      %v2167 = vpack.c.b16 %v2125, %v2123
      %v2168 = vpack.c.b16 %v2128, %v2126
      %v2169 = vpack.c.b16 %v2129, %v2127
      %v2170 = vpack.c.b16 %v2132, %v2130
      %v2171 = vpack.c.b16 %v2133, %v2131
      %v2172 = vpack.c.b16 %v2136, %v2134
      %v2173 = vpack.c.b16 %v2137, %v2135
      %v2174 = vpack.c.b16 %v2140, %v2138
      %v2175 = vpack.c.b16 %v2141, %v2139
      %v2176 = vpack.c.b16 %v2144, %v2142
      %v2177 = vpack.c.b16 %v2145, %v2143
      %2210 = vmatpush.bf16.msra.mxu0 %v2160
      %2211 = vmatpush.bf16.msra.mxu0 %v2158
      %2212 = vmatpush.bf16.msra.mxu0 %v2156
      %2213 = vmatpush.bf16.msra.mxu0 %v2154
      %2214 = vmatpush.bf16.msra.mxu0 %v2152
      %2215 = vmatpush.bf16.msra.mxu0 %v2150
      %2216 = vmatpush.bf16.msra.mxu0 %v2148
      %2217 = vmatpush.bf16.msra.mxu0 %v2146
      %2218 = vmatmul.bf16.gmra.mxu0 %v1948
      %v2219 = vpop.f32.mrf.mxu0
      %v2220 = vadd.f32 %v2046, %v2219
      %v2221 = vpop.f32.mrf.mxu0
      %v2222 = vadd.f32 %v2046, %v2221
      %2223 = vmatmul.bf16.gmra.mxu0 %v1950
      %v2224 = vpop.f32.mrf.mxu0
      %v2225 = vadd.f32 %v2046, %v2224
      %v2226 = vpop.f32.mrf.mxu0
      %v2227 = vadd.f32 %v2046, %v2226
      %2228 = vmatmul.bf16.gmra.mxu0 %v1952
      %v2229 = vpop.f32.mrf.mxu0
      %v2230 = vadd.f32 %v2046, %v2229
      %v2231 = vpop.f32.mrf.mxu0
      %v2232 = vadd.f32 %v2046, %v2231
      %2233 = vmatmul.bf16.gmra.mxu0 %v1954
      %v2234 = vpop.f32.mrf.mxu0
      %v2235 = vadd.f32 %v2046, %v2234
      %v2236 = vpop.f32.mrf.mxu0
      %v2237 = vadd.f32 %v2046, %v2236
      %2238 = vmatmul.bf16.gmra.mxu0 %v1956
      %v2239 = vpop.f32.mrf.mxu0
      %v2240 = vadd.f32 %v2046, %v2239
      %v2241 = vpop.f32.mrf.mxu0
      %v2242 = vadd.f32 %v2046, %v2241
      %2243 = vmatmul.bf16.gmra.mxu0 %v1958
      %v2244 = vpop.f32.mrf.mxu0
      %v2245 = vadd.f32 %v2046, %v2244
      %v2246 = vpop.f32.mrf.mxu0
      %v2247 = vadd.f32 %v2046, %v2246
      %2248 = vmatmul.bf16.gmra.mxu0 %v1960
      %v2249 = vpop.f32.mrf.mxu0
      %v2250 = vadd.f32 %v2046, %v2249
      %v2251 = vpop.f32.mrf.mxu0
      %v2252 = vadd.f32 %v2046, %v2251
      %2253 = vmatmul.bf16.gmra.mxu0 %v1962
      %v2254 = vpop.f32.mrf.mxu0
      %v2255 = vadd.f32 %v2046, %v2254
      %v2256 = vpop.f32.mrf.mxu0
      %v2257 = vadd.f32 %v2046, %v2256
      %2258 = vmatmul.bf16.gmra.mxu0 %v1964
      %v2259 = vpop.f32.mrf.mxu0
      %v2260 = vadd.f32 %v2046, %v2259
      %v2261 = vpop.f32.mrf.mxu0
      %v2262 = vadd.f32 %v2046, %v2261
      %2263 = vmatmul.bf16.gmra.mxu0 %v1966
      %v2264 = vpop.f32.mrf.mxu0
      %v2265 = vadd.f32 %v2046, %v2264
      %v2266 = vpop.f32.mrf.mxu0
      %v2267 = vadd.f32 %v2046, %v2266
      %2268 = vmatmul.bf16.gmra.mxu0 %v1968
      %v2269 = vpop.f32.mrf.mxu0
      %v2270 = vadd.f32 %v2046, %v2269
      %v2271 = vpop.f32.mrf.mxu0
      %v2272 = vadd.f32 %v2046, %v2271
      %2273 = vmatmul.bf16.gmra.mxu0 %v1970
      %v2274 = vpop.f32.mrf.mxu0
      %v2275 = vadd.f32 %v2046, %v2274
      %v2276 = vpop.f32.mrf.mxu0
      %v2277 = vadd.f32 %v2046, %v2276
      %2278 = vmatmul.bf16.gmra.mxu0 %v1972
      %v2279 = vpop.f32.mrf.mxu0
      %v2280 = vadd.f32 %v2046, %v2279
      %v2281 = vpop.f32.mrf.mxu0
      %v2282 = vadd.f32 %v2046, %v2281
      %2283 = vmatmul.bf16.gmra.mxu0 %v1974
      %v2284 = vpop.f32.mrf.mxu0
      %v2285 = vadd.f32 %v2046, %v2284
      %v2286 = vpop.f32.mrf.mxu0
      %v2287 = vadd.f32 %v2046, %v2286
      %2288 = vmatmul.bf16.gmra.mxu0 %v1976
      %v2289 = vpop.f32.mrf.mxu0
      %v2290 = vadd.f32 %v2046, %v2289
      %v2291 = vpop.f32.mrf.mxu0
      %v2292 = vadd.f32 %v2046, %v2291
      %2293 = vmatmul.bf16.gmra.mxu0 %v1978
      %v2294 = vpop.f32.mrf.mxu0
      %v2295 = vadd.f32 %v2046, %v2294
      %v2296 = vpop.f32.mrf.mxu0
      %v2297 = vadd.f32 %v2046, %v2296
      %2298 = vmatmul.bf16.gmra.mxu0 %v1980
      %v2299 = vpop.f32.mrf.mxu0
      %v2300 = vadd.f32 %v2046, %v2299
      %v2301 = vpop.f32.mrf.mxu0
      %v2302 = vadd.f32 %v2046, %v2301
      %2303 = vmatmul.bf16.gmra.mxu0 %v1982
      %v2304 = vpop.f32.mrf.mxu0
      %v2305 = vadd.f32 %v2046, %v2304
      %v2306 = vpop.f32.mrf.mxu0
      %v2307 = vadd.f32 %v2046, %v2306
      %2308 = vmatmul.bf16.gmra.mxu0 %v1984
      %v2309 = vpop.f32.mrf.mxu0
      %v2310 = vadd.f32 %v2046, %v2309
      %v2311 = vpop.f32.mrf.mxu0
      %v2312 = vadd.f32 %v2046, %v2311
      %2313 = vmatmul.bf16.gmra.mxu0 %v1986
      %v2314 = vpop.f32.mrf.mxu0
      %v2315 = vadd.f32 %v2046, %v2314
      %v2316 = vpop.f32.mrf.mxu0
      %v2317 = vadd.f32 %v2046, %v2316
      %2318 = vmatmul.bf16.gmra.mxu0 %v1988
      %v2319 = vpop.f32.mrf.mxu0
      %v2320 = vadd.f32 %v2046, %v2319
      %v2321 = vpop.f32.mrf.mxu0
      %v2322 = vadd.f32 %v2046, %v2321
      %2323 = vmatmul.bf16.gmra.mxu0 %v1990
      %v2324 = vpop.f32.mrf.mxu0
      %v2325 = vadd.f32 %v2046, %v2324
      %v2326 = vpop.f32.mrf.mxu0
      %v2327 = vadd.f32 %v2046, %v2326
      %2328 = vmatmul.bf16.gmra.mxu0 %v1992
      %v2329 = vpop.f32.mrf.mxu0
      %v2330 = vadd.f32 %v2046, %v2329
      %v2331 = vpop.f32.mrf.mxu0
      %v2332 = vadd.f32 %v2046, %v2331
      %2333 = vmatmul.bf16.gmra.mxu0 %v1994
      %v2334 = vpop.f32.mrf.mxu0
      %v2335 = vadd.f32 %v2046, %v2334
      %v2336 = vpop.f32.mrf.mxu0
      %v2337 = vadd.f32 %v2046, %v2336
      %2338 = vmatmul.bf16.gmra.mxu0 %v1996
      %v2339 = vpop.f32.mrf.mxu0
      %v2340 = vadd.f32 %v2046, %v2339
      %v2341 = vpop.f32.mrf.mxu0
      %v2342 = vadd.f32 %v2046, %v2341
      %2343 = vmatmul.bf16.gmra.mxu0 %v1998
      %v2344 = vpop.f32.mrf.mxu0
      %v2345 = vadd.f32 %v2046, %v2344
      %v2346 = vpop.f32.mrf.mxu0
      %v2347 = vadd.f32 %v2046, %v2346
      %2348 = vmatmul.bf16.gmra.mxu0 %v2000
      %v2349 = vpop.f32.mrf.mxu0
      %v2350 = vadd.f32 %v2046, %v2349
      %v2351 = vpop.f32.mrf.mxu0
      %v2352 = vadd.f32 %v2046, %v2351
      %2353 = vmatmul.bf16.gmra.mxu0 %v2002
      %v2354 = vpop.f32.mrf.mxu0
      %v2355 = vadd.f32 %v2046, %v2354
      %v2356 = vpop.f32.mrf.mxu0
      %v2357 = vadd.f32 %v2046, %v2356
      %2358 = vmatmul.bf16.gmra.mxu0 %v2004
      %v2359 = vpop.f32.mrf.mxu0
      %v2360 = vadd.f32 %v2046, %v2359
      %v2361 = vpop.f32.mrf.mxu0
      %v2362 = vadd.f32 %v2046, %v2361
      %2363 = vmatmul.bf16.gmra.mxu0 %v2006
      %v2364 = vpop.f32.mrf.mxu0
      %v2365 = vadd.f32 %v2046, %v2364
      %v2366 = vpop.f32.mrf.mxu0
      %v2367 = vadd.f32 %v2046, %v2366
      %2368 = vmatmul.bf16.gmra.mxu0 %v2008
      %v2369 = vpop.f32.mrf.mxu0
      %v2370 = vadd.f32 %v2046, %v2369
      %v2371 = vpop.f32.mrf.mxu0
      %v2372 = vadd.f32 %v2046, %v2371
      %2373 = vmatmul.bf16.gmra.mxu0 %v2010
      %v2374 = vpop.f32.mrf.mxu0
      %v2375 = vadd.f32 %v2046, %v2374
      %v2376 = vpop.f32.mrf.mxu0
      %v2377 = vadd.f32 %v2046, %v2376
      %2378 = vdwg.mxu0
      %2379 = vmatpush.bf16.msra.mxu0 %v2176
      %2380 = vmatpush.bf16.msra.mxu0 %v2174
      %2381 = vmatpush.bf16.msra.mxu0 %v2172
      %2382 = vmatpush.bf16.msra.mxu0 %v2170
      %2383 = vmatpush.bf16.msra.mxu0 %v2168
      %2384 = vmatpush.bf16.msra.mxu0 %v2166
      %2385 = vmatpush.bf16.msra.mxu0 %v2164
      %2386 = vmatpush.bf16.msra.mxu0 %v2162
      %2387 = vmatmul.bf16.gmra.mxu0 %v1949
      %v2388 = vpop.f32.mrf.mxu0
      %v2389 = vadd.f32 %v2220, %v2388
      %v2390 = vpop.f32.mrf.mxu0
      %v2391 = vadd.f32 %v2222, %v2390
      %2392 = vmatmul.bf16.gmra.mxu0 %v1951
      %v2393 = vpop.f32.mrf.mxu0
      %v2394 = vadd.f32 %v2225, %v2393
      %v2395 = vpop.f32.mrf.mxu0
      %v2396 = vadd.f32 %v2227, %v2395
      %2397 = vmatmul.bf16.gmra.mxu0 %v1953
      %v2398 = vpop.f32.mrf.mxu0
      %v2399 = vadd.f32 %v2230, %v2398
      %v2400 = vpop.f32.mrf.mxu0
      %v2401 = vadd.f32 %v2232, %v2400
      %2402 = vmatmul.bf16.gmra.mxu0 %v1955
      %v2403 = vpop.f32.mrf.mxu0
      %v2404 = vadd.f32 %v2235, %v2403
      %v2405 = vpop.f32.mrf.mxu0
      %v2406 = vadd.f32 %v2237, %v2405
      %2407 = vmatmul.bf16.gmra.mxu0 %v1957
      %v2408 = vpop.f32.mrf.mxu0
      %v2409 = vadd.f32 %v2240, %v2408
      %v2410 = vpop.f32.mrf.mxu0
      %v2411 = vadd.f32 %v2242, %v2410
      %2412 = vmatmul.bf16.gmra.mxu0 %v1959
      %v2413 = vpop.f32.mrf.mxu0
      %v2414 = vadd.f32 %v2245, %v2413
      %v2415 = vpop.f32.mrf.mxu0
      %v2416 = vadd.f32 %v2247, %v2415
      %2417 = vmatmul.bf16.gmra.mxu0 %v1961
      %v2418 = vpop.f32.mrf.mxu0
      %v2419 = vadd.f32 %v2250, %v2418
      %v2420 = vpop.f32.mrf.mxu0
      %v2421 = vadd.f32 %v2252, %v2420
      %2422 = vmatmul.bf16.gmra.mxu0 %v1963
      %v2423 = vpop.f32.mrf.mxu0
      %v2424 = vadd.f32 %v2255, %v2423
      %v2425 = vpop.f32.mrf.mxu0
      %v2426 = vadd.f32 %v2257, %v2425
      %2427 = vmatmul.bf16.gmra.mxu0 %v1965
      %v2428 = vpop.f32.mrf.mxu0
      %v2429 = vadd.f32 %v2260, %v2428
      %v2430 = vpop.f32.mrf.mxu0
      %v2431 = vadd.f32 %v2262, %v2430
      %2432 = vmatmul.bf16.gmra.mxu0 %v1967
      %v2433 = vpop.f32.mrf.mxu0
      %v2434 = vadd.f32 %v2265, %v2433
      %v2435 = vpop.f32.mrf.mxu0
      %v2436 = vadd.f32 %v2267, %v2435
      %2437 = vmatmul.bf16.gmra.mxu0 %v1969
      %v2438 = vpop.f32.mrf.mxu0
      %v2439 = vadd.f32 %v2270, %v2438
      %v2440 = vpop.f32.mrf.mxu0
      %v2441 = vadd.f32 %v2272, %v2440
      %2442 = vmatmul.bf16.gmra.mxu0 %v1971
      %v2443 = vpop.f32.mrf.mxu0
      %v2444 = vadd.f32 %v2275, %v2443
      %v2445 = vpop.f32.mrf.mxu0
      %v2446 = vadd.f32 %v2277, %v2445
      %2447 = vmatmul.bf16.gmra.mxu0 %v1973
      %v2448 = vpop.f32.mrf.mxu0
      %v2449 = vadd.f32 %v2280, %v2448
      %v2450 = vpop.f32.mrf.mxu0
      %v2451 = vadd.f32 %v2282, %v2450
      %2452 = vmatmul.bf16.gmra.mxu0 %v1975
      %v2453 = vpop.f32.mrf.mxu0
      %v2454 = vadd.f32 %v2285, %v2453
      %v2455 = vpop.f32.mrf.mxu0
      %v2456 = vadd.f32 %v2287, %v2455
      %2457 = vmatmul.bf16.gmra.mxu0 %v1977
      %v2458 = vpop.f32.mrf.mxu0
      %v2459 = vadd.f32 %v2290, %v2458
      %v2460 = vpop.f32.mrf.mxu0
      %v2461 = vadd.f32 %v2292, %v2460
      %2462 = vmatmul.bf16.gmra.mxu0 %v1979
      %v2463 = vpop.f32.mrf.mxu0
      %v2464 = vadd.f32 %v2295, %v2463
      %v2465 = vpop.f32.mrf.mxu0
      %v2466 = vadd.f32 %v2297, %v2465
      %2467 = vmatmul.bf16.gmra.mxu0 %v1981
      %v2468 = vpop.f32.mrf.mxu0
      %v2469 = vadd.f32 %v2300, %v2468
      %v2470 = vpop.f32.mrf.mxu0
      %v2471 = vadd.f32 %v2302, %v2470
      %2472 = vmatmul.bf16.gmra.mxu0 %v1983
      %v2473 = vpop.f32.mrf.mxu0
      %v2474 = vadd.f32 %v2305, %v2473
      %v2475 = vpop.f32.mrf.mxu0
      %v2476 = vadd.f32 %v2307, %v2475
      %2477 = vmatmul.bf16.gmra.mxu0 %v1985
      %v2478 = vpop.f32.mrf.mxu0
      %v2479 = vadd.f32 %v2310, %v2478
      %v2480 = vpop.f32.mrf.mxu0
      %v2481 = vadd.f32 %v2312, %v2480
      %2482 = vmatmul.bf16.gmra.mxu0 %v1987
      %v2483 = vpop.f32.mrf.mxu0
      %v2484 = vadd.f32 %v2315, %v2483
      %v2485 = vpop.f32.mrf.mxu0
      %v2486 = vadd.f32 %v2317, %v2485
      %2487 = vmatmul.bf16.gmra.mxu0 %v1989
      %v2488 = vpop.f32.mrf.mxu0
      %v2489 = vadd.f32 %v2320, %v2488
      %v2490 = vpop.f32.mrf.mxu0
      %v2491 = vadd.f32 %v2322, %v2490
      %2492 = vmatmul.bf16.gmra.mxu0 %v1991
      %v2493 = vpop.f32.mrf.mxu0
      %v2494 = vadd.f32 %v2325, %v2493
      %v2495 = vpop.f32.mrf.mxu0
      %v2496 = vadd.f32 %v2327, %v2495
      %2497 = vmatmul.bf16.gmra.mxu0 %v1993
      %v2498 = vpop.f32.mrf.mxu0
      %v2499 = vadd.f32 %v2330, %v2498
      %v2500 = vpop.f32.mrf.mxu0
      %v2501 = vadd.f32 %v2332, %v2500
      %2502 = vmatmul.bf16.gmra.mxu0 %v1995
      %v2503 = vpop.f32.mrf.mxu0
      %v2504 = vadd.f32 %v2335, %v2503
      %v2505 = vpop.f32.mrf.mxu0
      %v2506 = vadd.f32 %v2337, %v2505
      %2507 = vmatmul.bf16.gmra.mxu0 %v1997
      %v2508 = vpop.f32.mrf.mxu0
      %v2509 = vadd.f32 %v2340, %v2508
      %v2510 = vpop.f32.mrf.mxu0
      %v2511 = vadd.f32 %v2342, %v2510
      %2512 = vmatmul.bf16.gmra.mxu0 %v1999
      %v2513 = vpop.f32.mrf.mxu0
      %v2514 = vadd.f32 %v2345, %v2513
      %v2515 = vpop.f32.mrf.mxu0
      %v2516 = vadd.f32 %v2347, %v2515
      %2517 = vmatmul.bf16.gmra.mxu0 %v2001
      %v2518 = vpop.f32.mrf.mxu0
      %v2519 = vadd.f32 %v2350, %v2518
      %v2520 = vpop.f32.mrf.mxu0
      %v2521 = vadd.f32 %v2352, %v2520
      %2522 = vmatmul.bf16.gmra.mxu0 %v2003
      %v2523 = vpop.f32.mrf.mxu0
      %v2524 = vadd.f32 %v2355, %v2523
      %v2525 = vpop.f32.mrf.mxu0
      %v2526 = vadd.f32 %v2357, %v2525
      %2527 = vmatmul.bf16.gmra.mxu0 %v2005
      %v2528 = vpop.f32.mrf.mxu0
      %v2529 = vadd.f32 %v2360, %v2528
      %v2530 = vpop.f32.mrf.mxu0
      %v2531 = vadd.f32 %v2362, %v2530
      %2532 = vmatmul.bf16.gmra.mxu0 %v2007
      %v2533 = vpop.f32.mrf.mxu0
      %v2534 = vadd.f32 %v2365, %v2533
      %v2535 = vpop.f32.mrf.mxu0
      %v2536 = vadd.f32 %v2367, %v2535
      %2537 = vmatmul.bf16.gmra.mxu0 %v2009
      %v2538 = vpop.f32.mrf.mxu0
      %v2539 = vadd.f32 %v2370, %v2538
      %v2540 = vpop.f32.mrf.mxu0
      %v2541 = vadd.f32 %v2372, %v2540
      %2542 = vmatmul.bf16.gmra.mxu0 %v2011
      %v2543 = vpop.f32.mrf.mxu0
      %v2544 = vadd.f32 %v2375, %v2543
      %v2545 = vpop.f32.mrf.mxu0
      %v2546 = vadd.f32 %v2377, %v2545
      %2547 = vdwg.mxu0
      %2548 = vmatpush.bf16.msra.mxu0 %v2161
      %2549 = vmatpush.bf16.msra.mxu0 %v2159
      %2550 = vmatpush.bf16.msra.mxu0 %v2157
      %2551 = vmatpush.bf16.msra.mxu0 %v2155
      %2552 = vmatpush.bf16.msra.mxu0 %v2153
      %2553 = vmatpush.bf16.msra.mxu0 %v2151
      %2554 = vmatpush.bf16.msra.mxu0 %v2149
      %2555 = vmatpush.bf16.msra.mxu0 %v2147
      %2556 = vmatmul.bf16.gmra.mxu0 %v1948
      %v2557 = vpop.f32.mrf.mxu0
      %v2558 = vadd.f32 %v2047, %v2557
      %v2559 = vpop.f32.mrf.mxu0
      %v2560 = vadd.f32 %v2047, %v2559
      %2561 = vmatmul.bf16.gmra.mxu0 %v1950
      %v2562 = vpop.f32.mrf.mxu0
      %v2563 = vadd.f32 %v2047, %v2562
      %v2564 = vpop.f32.mrf.mxu0
      %v2565 = vadd.f32 %v2047, %v2564
      %2566 = vmatmul.bf16.gmra.mxu0 %v1952
      %v2567 = vpop.f32.mrf.mxu0
      %v2568 = vadd.f32 %v2047, %v2567
      %v2569 = vpop.f32.mrf.mxu0
      %v2570 = vadd.f32 %v2047, %v2569
      %2571 = vmatmul.bf16.gmra.mxu0 %v1954
      %v2572 = vpop.f32.mrf.mxu0
      %v2573 = vadd.f32 %v2047, %v2572
      %v2574 = vpop.f32.mrf.mxu0
      %v2575 = vadd.f32 %v2047, %v2574
      %2576 = vmatmul.bf16.gmra.mxu0 %v1956
      %v2577 = vpop.f32.mrf.mxu0
      %v2578 = vadd.f32 %v2047, %v2577
      %v2579 = vpop.f32.mrf.mxu0
      %v2580 = vadd.f32 %v2047, %v2579
      %2581 = vmatmul.bf16.gmra.mxu0 %v1958
      %v2582 = vpop.f32.mrf.mxu0
      %v2583 = vadd.f32 %v2047, %v2582
      %v2584 = vpop.f32.mrf.mxu0
      %v2585 = vadd.f32 %v2047, %v2584
      %2586 = vmatmul.bf16.gmra.mxu0 %v1960
      %v2587 = vpop.f32.mrf.mxu0
      %v2588 = vadd.f32 %v2047, %v2587
      %v2589 = vpop.f32.mrf.mxu0
      %v2590 = vadd.f32 %v2047, %v2589
      %2591 = vmatmul.bf16.gmra.mxu0 %v1962
      %v2592 = vpop.f32.mrf.mxu0
      %v2593 = vadd.f32 %v2047, %v2592
      %v2594 = vpop.f32.mrf.mxu0
      %v2595 = vadd.f32 %v2047, %v2594
      %2596 = vmatmul.bf16.gmra.mxu0 %v1964
      %v2597 = vpop.f32.mrf.mxu0
      %v2598 = vadd.f32 %v2047, %v2597
      %v2599 = vpop.f32.mrf.mxu0
      %v2600 = vadd.f32 %v2047, %v2599
      %2601 = vmatmul.bf16.gmra.mxu0 %v1966
      %v2602 = vpop.f32.mrf.mxu0
      %v2603 = vadd.f32 %v2047, %v2602
      %v2604 = vpop.f32.mrf.mxu0
      %v2605 = vadd.f32 %v2047, %v2604
      %2606 = vmatmul.bf16.gmra.mxu0 %v1968
      %v2607 = vpop.f32.mrf.mxu0
      %v2608 = vadd.f32 %v2047, %v2607
      %v2609 = vpop.f32.mrf.mxu0
      %v2610 = vadd.f32 %v2047, %v2609
      %2611 = vmatmul.bf16.gmra.mxu0 %v1970
      %v2612 = vpop.f32.mrf.mxu0
      %v2613 = vadd.f32 %v2047, %v2612
      %v2614 = vpop.f32.mrf.mxu0
      %v2615 = vadd.f32 %v2047, %v2614
      %2616 = vmatmul.bf16.gmra.mxu0 %v1972
      %v2617 = vpop.f32.mrf.mxu0
      %v2618 = vadd.f32 %v2047, %v2617
      %v2619 = vpop.f32.mrf.mxu0
      %v2620 = vadd.f32 %v2047, %v2619
      %2621 = vmatmul.bf16.gmra.mxu0 %v1974
      %v2622 = vpop.f32.mrf.mxu0
      %v2623 = vadd.f32 %v2047, %v2622
      %v2624 = vpop.f32.mrf.mxu0
      %v2625 = vadd.f32 %v2047, %v2624
      %2626 = vmatmul.bf16.gmra.mxu0 %v1976
      %v2627 = vpop.f32.mrf.mxu0
      %v2628 = vadd.f32 %v2047, %v2627
      %v2629 = vpop.f32.mrf.mxu0
      %v2630 = vadd.f32 %v2047, %v2629
      %2631 = vmatmul.bf16.gmra.mxu0 %v1978
      %v2632 = vpop.f32.mrf.mxu0
      %v2633 = vadd.f32 %v2047, %v2632
      %v2634 = vpop.f32.mrf.mxu0
      %v2635 = vadd.f32 %v2047, %v2634
      %2636 = vmatmul.bf16.gmra.mxu0 %v1980
      %v2637 = vpop.f32.mrf.mxu0
      %v2638 = vadd.f32 %v2047, %v2637
      %v2639 = vpop.f32.mrf.mxu0
      %v2640 = vadd.f32 %v2047, %v2639
      %2641 = vmatmul.bf16.gmra.mxu0 %v1982
      %v2642 = vpop.f32.mrf.mxu0
      %v2643 = vadd.f32 %v2047, %v2642
      %v2644 = vpop.f32.mrf.mxu0
      %v2645 = vadd.f32 %v2047, %v2644
      %2646 = vmatmul.bf16.gmra.mxu0 %v1984
      %v2647 = vpop.f32.mrf.mxu0
      %v2648 = vadd.f32 %v2047, %v2647
      %v2649 = vpop.f32.mrf.mxu0
      %v2650 = vadd.f32 %v2047, %v2649
      %2651 = vmatmul.bf16.gmra.mxu0 %v1986
      %v2652 = vpop.f32.mrf.mxu0
      %v2653 = vadd.f32 %v2047, %v2652
      %v2654 = vpop.f32.mrf.mxu0
      %v2655 = vadd.f32 %v2047, %v2654
      %2656 = vmatmul.bf16.gmra.mxu0 %v1988
      %v2657 = vpop.f32.mrf.mxu0
      %v2658 = vadd.f32 %v2047, %v2657
      %v2659 = vpop.f32.mrf.mxu0
      %v2660 = vadd.f32 %v2047, %v2659
      %2661 = vmatmul.bf16.gmra.mxu0 %v1990
      %v2662 = vpop.f32.mrf.mxu0
      %v2663 = vadd.f32 %v2047, %v2662
      %v2664 = vpop.f32.mrf.mxu0
      %v2665 = vadd.f32 %v2047, %v2664
      %2666 = vmatmul.bf16.gmra.mxu0 %v1992
      %v2667 = vpop.f32.mrf.mxu0
      %v2668 = vadd.f32 %v2047, %v2667
      %v2669 = vpop.f32.mrf.mxu0
      %v2670 = vadd.f32 %v2047, %v2669
      %2671 = vmatmul.bf16.gmra.mxu0 %v1994
      %v2672 = vpop.f32.mrf.mxu0
      %v2673 = vadd.f32 %v2047, %v2672
      %v2674 = vpop.f32.mrf.mxu0
      %v2675 = vadd.f32 %v2047, %v2674
      %2676 = vmatmul.bf16.gmra.mxu0 %v1996
      %v2677 = vpop.f32.mrf.mxu0
      %v2678 = vadd.f32 %v2047, %v2677
      %v2679 = vpop.f32.mrf.mxu0
      %v2680 = vadd.f32 %v2047, %v2679
      %2681 = vmatmul.bf16.gmra.mxu0 %v1998
      %v2682 = vpop.f32.mrf.mxu0
      %v2683 = vadd.f32 %v2047, %v2682
      %v2684 = vpop.f32.mrf.mxu0
      %v2685 = vadd.f32 %v2047, %v2684
      %2686 = vmatmul.bf16.gmra.mxu0 %v2000
      %v2687 = vpop.f32.mrf.mxu0
      %v2688 = vadd.f32 %v2047, %v2687
      %v2689 = vpop.f32.mrf.mxu0
      %v2690 = vadd.f32 %v2047, %v2689
      %2691 = vmatmul.bf16.gmra.mxu0 %v2002
      %v2692 = vpop.f32.mrf.mxu0
      %v2693 = vadd.f32 %v2047, %v2692
      %v2694 = vpop.f32.mrf.mxu0
      %v2695 = vadd.f32 %v2047, %v2694
      %2696 = vmatmul.bf16.gmra.mxu0 %v2004
      %v2697 = vpop.f32.mrf.mxu0
      %v2698 = vadd.f32 %v2047, %v2697
      %v2699 = vpop.f32.mrf.mxu0
      %v2700 = vadd.f32 %v2047, %v2699
      %2701 = vmatmul.bf16.gmra.mxu0 %v2006
      %v2702 = vpop.f32.mrf.mxu0
      %v2703 = vadd.f32 %v2047, %v2702
      %v2704 = vpop.f32.mrf.mxu0
      %v2705 = vadd.f32 %v2047, %v2704
      %2706 = vmatmul.bf16.gmra.mxu0 %v2008
      %v2707 = vpop.f32.mrf.mxu0
      %v2708 = vadd.f32 %v2047, %v2707
      %v2709 = vpop.f32.mrf.mxu0
      %v2710 = vadd.f32 %v2047, %v2709
      %2711 = vmatmul.bf16.gmra.mxu0 %v2010
      %v2712 = vpop.f32.mrf.mxu0
      %v2713 = vadd.f32 %v2047, %v2712
      %v2714 = vpop.f32.mrf.mxu0
      %v2715 = vadd.f32 %v2047, %v2714
      %2716 = vdwg.mxu0
      %2717 = vmatpush.bf16.msra.mxu0 %v2177
      %2718 = vmatpush.bf16.msra.mxu0 %v2175
      %2719 = vmatpush.bf16.msra.mxu0 %v2173
      %2720 = vmatpush.bf16.msra.mxu0 %v2171
      %2721 = vmatpush.bf16.msra.mxu0 %v2169
      %2722 = vmatpush.bf16.msra.mxu0 %v2167
      %2723 = vmatpush.bf16.msra.mxu0 %v2165
      %2724 = vmatpush.bf16.msra.mxu0 %v2163
      %2725 = vmatmul.bf16.gmra.mxu0 %v1949
      %v2726 = vpop.f32.mrf.mxu0
      %v2727 = vadd.f32 %v2558, %v2726
      %v2728 = vpop.f32.mrf.mxu0
      %v2729 = vadd.f32 %v2560, %v2728
      %2730 = vmatmul.bf16.gmra.mxu0 %v1951
      %v2731 = vpop.f32.mrf.mxu0
      %v2732 = vadd.f32 %v2563, %v2731
      %v2733 = vpop.f32.mrf.mxu0
      %v2734 = vadd.f32 %v2565, %v2733
      %2735 = vmatmul.bf16.gmra.mxu0 %v1953
      %v2736 = vpop.f32.mrf.mxu0
      %v2737 = vadd.f32 %v2568, %v2736
      %v2738 = vpop.f32.mrf.mxu0
      %v2739 = vadd.f32 %v2570, %v2738
      %2740 = vmatmul.bf16.gmra.mxu0 %v1955
      %v2741 = vpop.f32.mrf.mxu0
      %v2742 = vadd.f32 %v2573, %v2741
      %v2743 = vpop.f32.mrf.mxu0
      %v2744 = vadd.f32 %v2575, %v2743
      %2745 = vmatmul.bf16.gmra.mxu0 %v1957
      %v2746 = vpop.f32.mrf.mxu0
      %v2747 = vadd.f32 %v2578, %v2746
      %v2748 = vpop.f32.mrf.mxu0
      %v2749 = vadd.f32 %v2580, %v2748
      %2750 = vmatmul.bf16.gmra.mxu0 %v1959
      %v2751 = vpop.f32.mrf.mxu0
      %v2752 = vadd.f32 %v2583, %v2751
      %v2753 = vpop.f32.mrf.mxu0
      %v2754 = vadd.f32 %v2585, %v2753
      %2755 = vmatmul.bf16.gmra.mxu0 %v1961
      %v2756 = vpop.f32.mrf.mxu0
      %v2757 = vadd.f32 %v2588, %v2756
      %v2758 = vpop.f32.mrf.mxu0
      %v2759 = vadd.f32 %v2590, %v2758
      %2760 = vmatmul.bf16.gmra.mxu0 %v1963
      %v2761 = vpop.f32.mrf.mxu0
      %v2762 = vadd.f32 %v2593, %v2761
      %v2763 = vpop.f32.mrf.mxu0
      %v2764 = vadd.f32 %v2595, %v2763
      %2765 = vmatmul.bf16.gmra.mxu0 %v1965
      %v2766 = vpop.f32.mrf.mxu0
      %v2767 = vadd.f32 %v2598, %v2766
      %v2768 = vpop.f32.mrf.mxu0
      %v2769 = vadd.f32 %v2600, %v2768
      %2770 = vmatmul.bf16.gmra.mxu0 %v1967
      %v2771 = vpop.f32.mrf.mxu0
      %v2772 = vadd.f32 %v2603, %v2771
      %v2773 = vpop.f32.mrf.mxu0
      %v2774 = vadd.f32 %v2605, %v2773
      %2775 = vmatmul.bf16.gmra.mxu0 %v1969
      %v2776 = vpop.f32.mrf.mxu0
      %v2777 = vadd.f32 %v2608, %v2776
      %v2778 = vpop.f32.mrf.mxu0
      %v2779 = vadd.f32 %v2610, %v2778
      %2780 = vmatmul.bf16.gmra.mxu0 %v1971
      %v2781 = vpop.f32.mrf.mxu0
      %v2782 = vadd.f32 %v2613, %v2781
      %v2783 = vpop.f32.mrf.mxu0
      %v2784 = vadd.f32 %v2615, %v2783
      %2785 = vmatmul.bf16.gmra.mxu0 %v1973
      %v2786 = vpop.f32.mrf.mxu0
      %v2787 = vadd.f32 %v2618, %v2786
      %v2788 = vpop.f32.mrf.mxu0
      %v2789 = vadd.f32 %v2620, %v2788
      %2790 = vmatmul.bf16.gmra.mxu0 %v1975
      %v2791 = vpop.f32.mrf.mxu0
      %v2792 = vadd.f32 %v2623, %v2791
      %v2793 = vpop.f32.mrf.mxu0
      %v2794 = vadd.f32 %v2625, %v2793
      %2795 = vmatmul.bf16.gmra.mxu0 %v1977
      %v2796 = vpop.f32.mrf.mxu0
      %v2797 = vadd.f32 %v2628, %v2796
      %v2798 = vpop.f32.mrf.mxu0
      %v2799 = vadd.f32 %v2630, %v2798
      %2800 = vmatmul.bf16.gmra.mxu0 %v1979
      %v2801 = vpop.f32.mrf.mxu0
      %v2802 = vadd.f32 %v2633, %v2801
      %v2803 = vpop.f32.mrf.mxu0
      %v2804 = vadd.f32 %v2635, %v2803
      %2805 = vmatmul.bf16.gmra.mxu0 %v1981
      %v2806 = vpop.f32.mrf.mxu0
      %v2807 = vadd.f32 %v2638, %v2806
      %v2808 = vpop.f32.mrf.mxu0
      %v2809 = vadd.f32 %v2640, %v2808
      %2810 = vmatmul.bf16.gmra.mxu0 %v1983
      %v2811 = vpop.f32.mrf.mxu0
      %v2812 = vadd.f32 %v2643, %v2811
      %v2813 = vpop.f32.mrf.mxu0
      %v2814 = vadd.f32 %v2645, %v2813
      %2815 = vmatmul.bf16.gmra.mxu0 %v1985
      %v2816 = vpop.f32.mrf.mxu0
      %v2817 = vadd.f32 %v2648, %v2816
      %v2818 = vpop.f32.mrf.mxu0
      %v2819 = vadd.f32 %v2650, %v2818
      %2820 = vmatmul.bf16.gmra.mxu0 %v1987
      %v2821 = vpop.f32.mrf.mxu0
      %v2822 = vadd.f32 %v2653, %v2821
      %v2823 = vpop.f32.mrf.mxu0
      %v2824 = vadd.f32 %v2655, %v2823
      %2825 = vmatmul.bf16.gmra.mxu0 %v1989
      %v2826 = vpop.f32.mrf.mxu0
      %v2827 = vadd.f32 %v2658, %v2826
      %v2828 = vpop.f32.mrf.mxu0
      %v2829 = vadd.f32 %v2660, %v2828
      %2830 = vmatmul.bf16.gmra.mxu0 %v1991
      %v2831 = vpop.f32.mrf.mxu0
      %v2832 = vadd.f32 %v2663, %v2831
      %v2833 = vpop.f32.mrf.mxu0
      %v2834 = vadd.f32 %v2665, %v2833
      %2835 = vmatmul.bf16.gmra.mxu0 %v1993
      %v2836 = vpop.f32.mrf.mxu0
      %v2837 = vadd.f32 %v2668, %v2836
      %v2838 = vpop.f32.mrf.mxu0
      %v2839 = vadd.f32 %v2670, %v2838
      %2840 = vmatmul.bf16.gmra.mxu0 %v1995
      %v2841 = vpop.f32.mrf.mxu0
      %v2842 = vadd.f32 %v2673, %v2841
      %v2843 = vpop.f32.mrf.mxu0
      %v2844 = vadd.f32 %v2675, %v2843
      %2845 = vmatmul.bf16.gmra.mxu0 %v1997
      %v2846 = vpop.f32.mrf.mxu0
      %v2847 = vadd.f32 %v2678, %v2846
      %v2848 = vpop.f32.mrf.mxu0
      %v2849 = vadd.f32 %v2680, %v2848
      %2850 = vmatmul.bf16.gmra.mxu0 %v1999
      %v2851 = vpop.f32.mrf.mxu0
      %v2852 = vadd.f32 %v2683, %v2851
      %v2853 = vpop.f32.mrf.mxu0
      %v2854 = vadd.f32 %v2685, %v2853
      %2855 = vmatmul.bf16.gmra.mxu0 %v2001
      %v2856 = vpop.f32.mrf.mxu0
      %v2857 = vadd.f32 %v2688, %v2856
      %v2858 = vpop.f32.mrf.mxu0
      %v2859 = vadd.f32 %v2690, %v2858
      %2860 = vmatmul.bf16.gmra.mxu0 %v2003
      %v2861 = vpop.f32.mrf.mxu0
      %v2862 = vadd.f32 %v2693, %v2861
      %v2863 = vpop.f32.mrf.mxu0
      %v2864 = vadd.f32 %v2695, %v2863
      %2865 = vmatmul.bf16.gmra.mxu0 %v2005
      %v2866 = vpop.f32.mrf.mxu0
      %v2867 = vadd.f32 %v2698, %v2866
      %v2868 = vpop.f32.mrf.mxu0
      %v2869 = vadd.f32 %v2700, %v2868
      %2870 = vmatmul.bf16.gmra.mxu0 %v2007
      %v2871 = vpop.f32.mrf.mxu0
      %v2872 = vadd.f32 %v2703, %v2871
      %v2873 = vpop.f32.mrf.mxu0
      %v2874 = vadd.f32 %v2705, %v2873
      %2875 = vmatmul.bf16.gmra.mxu0 %v2009
      %v2876 = vpop.f32.mrf.mxu0
      %v2877 = vadd.f32 %v2708, %v2876
      %v2878 = vpop.f32.mrf.mxu0
      %v2879 = vadd.f32 %v2710, %v2878
      %2880 = vmatmul.bf16.gmra.mxu0 %v2011
      %v2881 = vpop.f32.mrf.mxu0
      %v2882 = vadd.f32 %v2713, %v2881
      %v2883 = vpop.f32.mrf.mxu0
      %v2884 = vadd.f32 %v2715, %v2883
      %2885 = vdwg.mxu0
      %v2886 = vmax.f32 %v2389, 0.0
      %v2887 = vmax.f32 %v2727, 0.0
      %v2888 = vmax.f32 %v2391, 0.0
      %v2889 = vmax.f32 %v2729, 0.0
      %v2890 = vmax.f32 %v2394, 0.0
      %v2891 = vmax.f32 %v2732, 0.0
      %v2892 = vmax.f32 %v2396, 0.0
      %v2893 = vmax.f32 %v2734, 0.0
      %v2894 = vmax.f32 %v2399, 0.0
      %v2895 = vmax.f32 %v2737, 0.0
      %v2896 = vmax.f32 %v2401, 0.0
      %v2897 = vmax.f32 %v2739, 0.0
      %v2898 = vmax.f32 %v2404, 0.0
      %v2899 = vmax.f32 %v2742, 0.0
      %v2900 = vmax.f32 %v2406, 0.0
      %v2901 = vmax.f32 %v2744, 0.0
      %v2902 = vmax.f32 %v2409, 0.0
      %v2903 = vmax.f32 %v2747, 0.0
      %v2904 = vmax.f32 %v2411, 0.0
      %v2905 = vmax.f32 %v2749, 0.0
      %v2906 = vmax.f32 %v2414, 0.0
      %v2907 = vmax.f32 %v2752, 0.0
      %v2908 = vmax.f32 %v2416, 0.0
      %v2909 = vmax.f32 %v2754, 0.0
      %v2910 = vmax.f32 %v2419, 0.0
      %v2911 = vmax.f32 %v2757, 0.0
      %v2912 = vmax.f32 %v2421, 0.0
      %v2913 = vmax.f32 %v2759, 0.0
      %v2914 = vmax.f32 %v2424, 0.0
      %v2915 = vmax.f32 %v2762, 0.0
      %v2916 = vmax.f32 %v2426, 0.0
      %v2917 = vmax.f32 %v2764, 0.0
      %v2918 = vmax.f32 %v2429, 0.0
      %v2919 = vmax.f32 %v2767, 0.0
      %v2920 = vmax.f32 %v2431, 0.0
      %v2921 = vmax.f32 %v2769, 0.0
      %v2922 = vmax.f32 %v2434, 0.0
      %v2923 = vmax.f32 %v2772, 0.0
      %v2924 = vmax.f32 %v2436, 0.0
      %v2925 = vmax.f32 %v2774, 0.0
      %v2926 = vmax.f32 %v2439, 0.0
      %v2927 = vmax.f32 %v2777, 0.0
      %v2928 = vmax.f32 %v2441, 0.0
      %v2929 = vmax.f32 %v2779, 0.0
      %v2930 = vmax.f32 %v2444, 0.0
      %v2931 = vmax.f32 %v2782, 0.0
      %v2932 = vmax.f32 %v2446, 0.0
      %v2933 = vmax.f32 %v2784, 0.0
      %v2934 = vmax.f32 %v2449, 0.0
      %v2935 = vmax.f32 %v2787, 0.0
      %v2936 = vmax.f32 %v2451, 0.0
      %v2937 = vmax.f32 %v2789, 0.0
      %v2938 = vmax.f32 %v2454, 0.0
      %v2939 = vmax.f32 %v2792, 0.0
      %v2940 = vmax.f32 %v2456, 0.0
      %v2941 = vmax.f32 %v2794, 0.0
      %v2942 = vmax.f32 %v2459, 0.0
      %v2943 = vmax.f32 %v2797, 0.0
      %v2944 = vmax.f32 %v2461, 0.0
      %v2945 = vmax.f32 %v2799, 0.0
      %v2946 = vmax.f32 %v2464, 0.0
      %v2947 = vmax.f32 %v2802, 0.0
      %v2948 = vmax.f32 %v2466, 0.0
      %v2949 = vmax.f32 %v2804, 0.0
      %v2950 = vmax.f32 %v2469, 0.0
      %v2951 = vmax.f32 %v2807, 0.0
      %v2952 = vmax.f32 %v2471, 0.0
      %v2953 = vmax.f32 %v2809, 0.0
      %v2954 = vmax.f32 %v2474, 0.0
      %v2955 = vmax.f32 %v2812, 0.0
      %v2956 = vmax.f32 %v2476, 0.0
      %v2957 = vmax.f32 %v2814, 0.0
      %v2958 = vmax.f32 %v2479, 0.0
      %v2959 = vmax.f32 %v2817, 0.0
      %v2960 = vmax.f32 %v2481, 0.0
      %v2961 = vmax.f32 %v2819, 0.0
      %v2962 = vmax.f32 %v2484, 0.0
      %v2963 = vmax.f32 %v2822, 0.0
      %v2964 = vmax.f32 %v2486, 0.0
      %v2965 = vmax.f32 %v2824, 0.0
      %v2966 = vmax.f32 %v2489, 0.0
      %v2967 = vmax.f32 %v2827, 0.0
      %v2968 = vmax.f32 %v2491, 0.0
      %v2969 = vmax.f32 %v2829, 0.0
      %v2970 = vmax.f32 %v2494, 0.0
      %v2971 = vmax.f32 %v2832, 0.0
      %v2972 = vmax.f32 %v2496, 0.0
      %v2973 = vmax.f32 %v2834, 0.0
      %v2974 = vmax.f32 %v2499, 0.0
      %v2975 = vmax.f32 %v2837, 0.0
      %v2976 = vmax.f32 %v2501, 0.0
      %v2977 = vmax.f32 %v2839, 0.0
      %v2978 = vmax.f32 %v2504, 0.0
      %v2979 = vmax.f32 %v2842, 0.0
      %v2980 = vmax.f32 %v2506, 0.0
      %v2981 = vmax.f32 %v2844, 0.0
      %v2982 = vmax.f32 %v2509, 0.0
      %v2983 = vmax.f32 %v2847, 0.0
      %v2984 = vmax.f32 %v2511, 0.0
      %v2985 = vmax.f32 %v2849, 0.0
      %v2986 = vmax.f32 %v2514, 0.0
      %v2987 = vmax.f32 %v2852, 0.0
      %v2988 = vmax.f32 %v2516, 0.0
      %v2989 = vmax.f32 %v2854, 0.0
      %v2990 = vmax.f32 %v2519, 0.0
      %v2991 = vmax.f32 %v2857, 0.0
      %v2992 = vmax.f32 %v2521, 0.0
      %v2993 = vmax.f32 %v2859, 0.0
      %v2994 = vmax.f32 %v2524, 0.0
      %v2995 = vmax.f32 %v2862, 0.0
      %v2996 = vmax.f32 %v2526, 0.0
      %v2997 = vmax.f32 %v2864, 0.0
      %v2998 = vmax.f32 %v2529, 0.0
      %v2999 = vmax.f32 %v2867, 0.0
      %v3000 = vmax.f32 %v2531, 0.0
      %v3001 = vmax.f32 %v2869, 0.0
      %v3002 = vmax.f32 %v2534, 0.0
      %v3003 = vmax.f32 %v2872, 0.0
      %v3004 = vmax.f32 %v2536, 0.0
      %v3005 = vmax.f32 %v2874, 0.0
      %v3006 = vmax.f32 %v2539, 0.0
      %v3007 = vmax.f32 %v2877, 0.0
      %v3008 = vmax.f32 %v2541, 0.0
      %v3009 = vmax.f32 %v2879, 0.0
      %v3010 = vmax.f32 %v2544, 0.0
      %v3011 = vmax.f32 %v2882, 0.0
      %v3012 = vmax.f32 %v2546, 0.0
      %v3013 = vmax.f32 %v2884, 0.0
      %3014 = vst [vmem:[%s304] sm:$0xff] %v2886
      %3015 = vst [vmem:[%s304 + $0x8] sm:$0xff] %v2887
      %3016 = vst [vmem:[%s304 + $0x10] sm:$0xff] %v2888
      %3017 = vst [vmem:[%s304 + $0x18] sm:$0xff] %v2889
      %3018 = vst [vmem:[%s304 + $0x20] sm:$0xff] %v2890
      %3019 = vst [vmem:[%s304 + $0x28] sm:$0xff] %v2891
      %3020 = vst [vmem:[%s304 + $0x30] sm:$0xff] %v2892
      %3021 = vst [vmem:[%s304 + $0x38] sm:$0xff] %v2893
      %3022 = vst [vmem:[%s304 + $0x40] sm:$0xff] %v2894
      %3023 = vst [vmem:[%s304 + $0x48] sm:$0xff] %v2895
      %3024 = vst [vmem:[%s304 + $0x50] sm:$0xff] %v2896
      %3025 = vst [vmem:[%s304 + $0x58] sm:$0xff] %v2897
      %3026 = vst [vmem:[%s304 + $0x60] sm:$0xff] %v2898
      %3027 = vst [vmem:[%s304 + $0x68] sm:$0xff] %v2899
      %3028 = vst [vmem:[%s304 + $0x70] sm:$0xff] %v2900
      %3029 = vst [vmem:[%s304 + $0x78] sm:$0xff] %v2901
      %3030 = vst [vmem:[%s304 + $0x80] sm:$0xff] %v2902
      %3031 = vst [vmem:[%s304 + $0x88] sm:$0xff] %v2903
      %3032 = vst [vmem:[%s304 + $0x90] sm:$0xff] %v2904
      %3033 = vst [vmem:[%s304 + $0x98] sm:$0xff] %v2905
      %3034 = vst [vmem:[%s304 + $0xa0] sm:$0xff] %v2906
      %3035 = vst [vmem:[%s304 + $0xa8] sm:$0xff] %v2907
      %3036 = vst [vmem:[%s304 + $0xb0] sm:$0xff] %v2908
      %3037 = vst [vmem:[%s304 + $0xb8] sm:$0xff] %v2909
      %3038 = vst [vmem:[%s304 + $0xc0] sm:$0xff] %v2910
      %3039 = vst [vmem:[%s304 + $0xc8] sm:$0xff] %v2911
      %3040 = vst [vmem:[%s304 + $0xd0] sm:$0xff] %v2912
      %3041 = vst [vmem:[%s304 + $0xd8] sm:$0xff] %v2913
      %3042 = vst [vmem:[%s304 + $0xe0] sm:$0xff] %v2914
      %3043 = vst [vmem:[%s304 + $0xe8] sm:$0xff] %v2915
      %3044 = vst [vmem:[%s304 + $0xf0] sm:$0xff] %v2916
      %3045 = vst [vmem:[%s304 + $0xf8] sm:$0xff] %v2917
      %3046 = vst [vmem:[%s304 + $0x100] sm:$0xff] %v2918
      %3047 = vst [vmem:[%s304 + $0x108] sm:$0xff] %v2919
      %3048 = vst [vmem:[%s304 + $0x110] sm:$0xff] %v2920
      %3049 = vst [vmem:[%s304 + $0x118] sm:$0xff] %v2921
      %3050 = vst [vmem:[%s304 + $0x120] sm:$0xff] %v2922
      %3051 = vst [vmem:[%s304 + $0x128] sm:$0xff] %v2923
      %3052 = vst [vmem:[%s304 + $0x130] sm:$0xff] %v2924
      %3053 = vst [vmem:[%s304 + $0x138] sm:$0xff] %v2925
      %3054 = vst [vmem:[%s304 + $0x140] sm:$0xff] %v2926
      %3055 = vst [vmem:[%s304 + $0x148] sm:$0xff] %v2927
      %3056 = vst [vmem:[%s304 + $0x150] sm:$0xff] %v2928
      %3057 = vst [vmem:[%s304 + $0x158] sm:$0xff] %v2929
      %3058 = vst [vmem:[%s304 + $0x160] sm:$0xff] %v2930
      %3059 = vst [vmem:[%s304 + $0x168] sm:$0xff] %v2931
      %3060 = vst [vmem:[%s304 + $0x170] sm:$0xff] %v2932
      %3061 = vst [vmem:[%s304 + $0x178] sm:$0xff] %v2933
      %3062 = vst [vmem:[%s304 + $0x180] sm:$0xff] %v2934
      %3063 = vst [vmem:[%s304 + $0x188] sm:$0xff] %v2935
      %3064 = vst [vmem:[%s304 + $0x190] sm:$0xff] %v2936
      %3065 = vst [vmem:[%s304 + $0x198] sm:$0xff] %v2937
      %3066 = vst [vmem:[%s304 + $0x1a0] sm:$0xff] %v2938
      %3067 = vst [vmem:[%s304 + $0x1a8] sm:$0xff] %v2939
      %3068 = vst [vmem:[%s304 + $0x1b0] sm:$0xff] %v2940
      %3069 = vst [vmem:[%s304 + $0x1b8] sm:$0xff] %v2941
      %3070 = vst [vmem:[%s304 + $0x1c0] sm:$0xff] %v2942
      %3071 = vst [vmem:[%s304 + $0x1c8] sm:$0xff] %v2943
      %3072 = vst [vmem:[%s304 + $0x1d0] sm:$0xff] %v2944
      %3073 = vst [vmem:[%s304 + $0x1d8] sm:$0xff] %v2945
      %3074 = vst [vmem:[%s304 + $0x1e0] sm:$0xff] %v2946
      %3075 = vst [vmem:[%s304 + $0x1e8] sm:$0xff] %v2947
      %3076 = vst [vmem:[%s304 + $0x1f0] sm:$0xff] %v2948
      %3077 = vst [vmem:[%s304 + $0x1f8] sm:$0xff] %v2949
      %3078 = vst [vmem:[%s304 + $0x200] sm:$0xff] %v2950
      %3079 = vst [vmem:[%s304 + $0x208] sm:$0xff] %v2951
      %3080 = vst [vmem:[%s304 + $0x210] sm:$0xff] %v2952
      %3081 = vst [vmem:[%s304 + $0x218] sm:$0xff] %v2953
      %3082 = vst [vmem:[%s304 + $0x220] sm:$0xff] %v2954
      %3083 = vst [vmem:[%s304 + $0x228] sm:$0xff] %v2955
      %3084 = vst [vmem:[%s304 + $0x230] sm:$0xff] %v2956
      %3085 = vst [vmem:[%s304 + $0x238] sm:$0xff] %v2957
      %3086 = vst [vmem:[%s304 + $0x240] sm:$0xff] %v2958
      %3087 = vst [vmem:[%s304 + $0x248] sm:$0xff] %v2959
      %3088 = vst [vmem:[%s304 + $0x250] sm:$0xff] %v2960
      %3089 = vst [vmem:[%s304 + $0x258] sm:$0xff] %v2961
      %3090 = vst [vmem:[%s304 + $0x260] sm:$0xff] %v2962
      %3091 = vst [vmem:[%s304 + $0x268] sm:$0xff] %v2963
      %3092 = vst [vmem:[%s304 + $0x270] sm:$0xff] %v2964
      %3093 = vst [vmem:[%s304 + $0x278] sm:$0xff] %v2965
      %3094 = vst [vmem:[%s304 + $0x280] sm:$0xff] %v2966
      %3095 = vst [vmem:[%s304 + $0x288] sm:$0xff] %v2967
      %3096 = vst [vmem:[%s304 + $0x290] sm:$0xff] %v2968
      %3097 = vst [vmem:[%s304 + $0x298] sm:$0xff] %v2969
      %3098 = vst [vmem:[%s304 + $0x2a0] sm:$0xff] %v2970
      %3099 = vst [vmem:[%s304 + $0x2a8] sm:$0xff] %v2971
      %3100 = vst [vmem:[%s304 + $0x2b0] sm:$0xff] %v2972
      %3101 = vst [vmem:[%s304 + $0x2b8] sm:$0xff] %v2973
      %3102 = vst [vmem:[%s304 + $0x2c0] sm:$0xff] %v2974
      %3103 = vst [vmem:[%s304 + $0x2c8] sm:$0xff] %v2975
      %3104 = vst [vmem:[%s304 + $0x2d0] sm:$0xff] %v2976
      %3105 = vst [vmem:[%s304 + $0x2d8] sm:$0xff] %v2977
      %3106 = vst [vmem:[%s304 + $0x2e0] sm:$0xff] %v2978
      %3107 = vst [vmem:[%s304 + $0x2e8] sm:$0xff] %v2979
      %3108 = vst [vmem:[%s304 + $0x2f0] sm:$0xff] %v2980
      %3109 = vst [vmem:[%s304 + $0x2f8] sm:$0xff] %v2981
      %3110 = vst [vmem:[%s304 + $0x300] sm:$0xff] %v2982
      %3111 = vst [vmem:[%s304 + $0x308] sm:$0xff] %v2983
      %3112 = vst [vmem:[%s304 + $0x310] sm:$0xff] %v2984
      %3113 = vst [vmem:[%s304 + $0x318] sm:$0xff] %v2985
      %3114 = vst [vmem:[%s304 + $0x320] sm:$0xff] %v2986
      %3115 = vst [vmem:[%s304 + $0x328] sm:$0xff] %v2987
      %3116 = vst [vmem:[%s304 + $0x330] sm:$0xff] %v2988
      %3117 = vst [vmem:[%s304 + $0x338] sm:$0xff] %v2989
      %3118 = vst [vmem:[%s304 + $0x340] sm:$0xff] %v2990
      %3119 = vst [vmem:[%s304 + $0x348] sm:$0xff] %v2991
      %3120 = vst [vmem:[%s304 + $0x350] sm:$0xff] %v2992
      %3121 = vst [vmem:[%s304 + $0x358] sm:$0xff] %v2993
      %3122 = vst [vmem:[%s304 + $0x360] sm:$0xff] %v2994
      %3123 = vst [vmem:[%s304 + $0x368] sm:$0xff] %v2995
      %3124 = vst [vmem:[%s304 + $0x370] sm:$0xff] %v2996
      %3125 = vst [vmem:[%s304 + $0x378] sm:$0xff] %v2997
      %3126 = vst [vmem:[%s304 + $0x380] sm:$0xff] %v2998
      %3127 = vst [vmem:[%s304 + $0x388] sm:$0xff] %v2999
      %3128 = vst [vmem:[%s304 + $0x390] sm:$0xff] %v3000
      %3129 = vst [vmem:[%s304 + $0x398] sm:$0xff] %v3001
      %3130 = vst [vmem:[%s304 + $0x3a0] sm:$0xff] %v3002
      %3131 = vst [vmem:[%s304 + $0x3a8] sm:$0xff] %v3003
      %3132 = vst [vmem:[%s304 + $0x3b0] sm:$0xff] %v3004
      %3133 = vst [vmem:[%s304 + $0x3b8] sm:$0xff] %v3005
      %3134 = vst [vmem:[%s304 + $0x3c0] sm:$0xff] %v3006
      %3135 = vst [vmem:[%s304 + $0x3c8] sm:$0xff] %v3007
      %3136 = vst [vmem:[%s304 + $0x3d0] sm:$0xff] %v3008
      %3137 = vst [vmem:[%s304 + $0x3d8] sm:$0xff] %v3009
      %3138 = vst [vmem:[%s304 + $0x3e0] sm:$0xff] %v3010
      %3139 = vst [vmem:[%s304 + $0x3e8] sm:$0xff] %v3011
      %3140 = vst [vmem:[%s304 + $0x3f0] sm:$0xff] %v3012
      %3141 = vst [vmem:[%s304 + $0x3f8] sm:$0xff] %v3013
      %s3142 = smul.u32 64, %s18
      %p3143 = scmp.lt.s32.totalorder %s3142, 127
      %s3144 = scalar_select %p3143, %s3142, 127
      %s3145 = smul.addr %s3144, 2
      %s3146 = smul.addr %s3145, 8
      %s3147 = scalar_lea.vmem %s7, %s3146
      // Predicated region
      $region49: #{pointnetpp_encoder_fp_forward.10} parent=47 // pred_check
        %p3148 = pneg %p193
      $region50: #{pointnetpp_encoder_fp_forward.10} parent=47 // pred_check_branch
        %3150 = sbr.rel (%p3148) target = $region52
      $region51: #{pointnetpp_encoder_fp_forward.10} parent=47 // pred_region
        %s3151 = smul.u32 64, %s18
      $region52: #{pointnetpp_encoder_fp_forward.10} parent=47 // pred_fallthru
        _
    $region48: #{pointnetpp_encoder_fp_forward.10} parent=5 // pred_fallthru
      _
    %p3152 = scmp.le.s32.totalorder 2, %s13
    // Predicated region
    $region53: #{pointnetpp_encoder_fp_forward.10} parent=5 // pred_check
      %p3153 = pneg %p3152
    $region54: #{pointnetpp_encoder_fp_forward.10} parent=5 // pred_check_branch
      %3155 = sbr.rel (%p3153) target = $region56
    $region55: #{pointnetpp_encoder_fp_forward.10} parent=5 // pred_region
      %s3156 = ssub.s32 %s13, 2
      // Predicated region
      $region57: #{pointnetpp_encoder_fp_forward.10} parent=55 // pred_check
        %p3157 = pneg %p199
      $region58: #{pointnetpp_encoder_fp_forward.10} parent=55 // pred_check_branch
        %3159 = sbr.rel (%p3157) target = $region60
      $region59: #{pointnetpp_encoder_fp_forward.10} parent=55 // pred_region
        %s3160 = smul.u32 64, %s19
        %p3161 = scmp.lt.s32.totalorder %s3160, 127
        %s3162 = scalar_select %p3161, %s3160, 127
        %s3163 = smul.addr %s3162, 2
        %s3164 = smul.addr %s3163, 8
        %s3165 = scalar_lea.vmem %s7, %s3164
      $region60: #{pointnetpp_encoder_fp_forward.10} parent=55 // pred_fallthru
        _
    $region56: #{pointnetpp_encoder_fp_forward.10} parent=5 // pred_fallthru
      _
  $region6: #{pointnetpp_encoder_fp_forward.10} parent=0 // loop_footer
    %s17 = sadd.s32 1, %s13
  $region7: #{pointnetpp_encoder_fp_forward.10} parent=0 // loop_footer_branch
    %12 = sbr.rel target = $region3
  $region8: #{pointnetpp_encoder_fp_forward.10} parent=0 // loop_exit
    _

// kernel: pointnetpp_encoder_fp_forward.11
$region0: #{pointnetpp_encoder_fp_forward.11}
  #allocation0 [shape = 'u32[]', space=smem, size = 0x4, offset = 0x4, fixed_abs, tag = 'smem constant byte address 0x4 - core index']
  #allocation1 [shape = 'u32[72,128]{1,0:T(1,128)}', space=vmem, size = 0x9000, scoped, tag = 'internal scratch']
  %s0 = inlined_call_operand.vmem [shape: bf16[2048,256], index: 0, kind: input, shape index: {}]
  %s1 = inlined_call_operand.vmem [shape: bf16[2048,9], index: 1, kind: input, shape index: {}]
  %s2 = inlined_call_operand.vmem [shape: bf16[256,128], index: 2, kind: input, shape index: {}]
  %s3 = inlined_call_operand.vmem [shape: bf16[9,128], index: 3, kind: input, shape index: {}]
  %s4 = inlined_call_operand.vmem [shape: f32[1,128], index: 4, kind: input, shape index: {}]
  %s5 = inlined_call_operand.vmem [shape: bf16[128,128], index: 5, kind: input, shape index: {}]
  %s6 = inlined_call_operand.vmem [shape: f32[1,128], index: 6, kind: input, shape index: {}]
  %s7 = inlined_call_operand.hbm [shape: f32[2048,128], index: 7, kind: output, shape index: {}]
  %s8 = sld [smem:[#allocation0]]
  $region61: #{pointnetpp_encoder_fp_forward.11} parent=0
    _
  %s10 = ssub.s32 1, %s8
  %s11 = scalar_select 0, %s10, %s8
  $region1: #{pointnetpp_encoder_fp_forward.11} parent=0
    #allocation2 [shape = 'u8[524288]{0}', space=vmem, size = 0x80000, scoped, tag = 'output window, operand 0']
    #allocation3 [shape = 's32[2]{0}', space=sflag, size = 0x8, scoped, tag = 'scoped memory for pointnetpp_encoder_fp_forward.11']
    %12 = vsyncpa [#allocation3], 0
    %s13 = scalar_lea.sflag [#allocation3], 1
    %14 = vsyncpa %s13, 0
    loop: start=0, step=1, limit=6
    $region2: #{pointnetpp_encoder_fp_forward.11} parent=1 // loop_pre_header
      _
    $region3: #{pointnetpp_encoder_fp_forward.11} parent=1 // loop_header
      %s16 = sphi 0, %s20
      %p17 = scmp.ge.s32.totalorder %s16, 6
      %s26 = sphi 0, %s28
      %s29 = sphi 0, %s26
      %s30 = sphi 0, %s29
      %s46 = sphi 0, %s30
      %s52 = sphi 0, %s54
      %s55 = sphi 0, %s52
      %s56 = sphi 0, %s55
      %s72 = sphi 0, %s56
      %s76 = sphi 0, %s76
      %s78 = sphi 0, %s76
      %s79 = sphi 0, %s78
      %s93 = sphi 0, %s79
      %s97 = sphi 0, %s97
      %s99 = sphi 0, %s97
      %s100 = sphi 0, %s99
      %s114 = sphi 0, %s100
      %s118 = sphi 0, %s118
      %s120 = sphi 0, %s118
      %s121 = sphi 0, %s120
      %s135 = sphi 0, %s121
      %s139 = sphi 0, %s139
      %s141 = sphi 0, %s139
      %s142 = sphi 0, %s141
      %s156 = sphi 0, %s142
      %s160 = sphi 0, %s160
      %s162 = sphi 0, %s160
      %s163 = sphi 0, %s162
      %s177 = sphi 0, %s163
      %s183 = sphi 0, %s185
      %s186 = sphi 0, %s183
      %s187 = sphi 0, %s186
      %s203 = sphi 0, %s187
    $region4: #{pointnetpp_encoder_fp_forward.11} parent=1 // loop_header_branch
      %19 = sbr.rel (%p17) target = $region8
    $region5: #{pointnetpp_encoder_fp_forward.11} parent=1 // loop_body
      %s21 = ssub.s32 %s16, 1
      %s22 = ssub.s32 %s16, 2
      %s23 = sadd.s32 %s16, 1
      %s24 = ssub.s32 %s16, %s23
      %p25 = scmp.eq.s32.totalorder %s24, 0
      %s27 = sadd.s32 %s26, 1
      %s28 = scalar_select %p25, %s26, %s27
      %p31 = pneg %p25
      %p32 = scmp.eq.s32.totalorder %s16, 3
      %p33 = por %p31, %p32
      %p34 = scmp.ne.s32.totalorder %s26, %s29
      %p35 = scmp.eq.s32.totalorder %s16, 0
      %p36 = por %p34, %p35
      %p37 = scmp.ne.s32.totalorder %s26, %s29
      %p38 = scmp.eq.s32.totalorder %s21, 3
      %p39 = por %p37, %p38
      %p40 = scmp.ne.s32.totalorder %s29, %s30
      %p41 = scmp.eq.s32.totalorder %s21, 0
      %p42 = por %p40, %p41
      %p43 = scmp.ne.s32.totalorder %s29, %s30
      %p44 = scmp.eq.s32.totalorder %s22, 3
      %p45 = por %p43, %p44
      %p47 = scmp.ne.s32.totalorder %s30, %s46
      %p48 = scmp.eq.s32.totalorder %s22, 0
      %p49 = por %p47, %p48
      %s50 = ssub.s32 %s16, %s23
      %p51 = scmp.eq.s32.totalorder %s50, 0
      %s53 = sadd.s32 %s52, 1
      %s54 = scalar_select %p51, %s52, %s53
      %p57 = pneg %p51
      %p58 = scmp.eq.s32.totalorder %s16, 3
      %p59 = por %p57, %p58
      %p60 = scmp.ne.s32.totalorder %s52, %s55
      %p61 = scmp.eq.s32.totalorder %s16, 0
      %p62 = por %p60, %p61
      %p63 = scmp.ne.s32.totalorder %s52, %s55
      %p64 = scmp.eq.s32.totalorder %s21, 3
      %p65 = por %p63, %p64
      %p66 = scmp.ne.s32.totalorder %s55, %s56
      %p67 = scmp.eq.s32.totalorder %s21, 0
      %p68 = por %p66, %p67
      %p69 = scmp.ne.s32.totalorder %s55, %s56
      %p70 = scmp.eq.s32.totalorder %s22, 3
      %p71 = por %p69, %p70
      %p73 = scmp.ne.s32.totalorder %s56, %s72
      %p74 = scmp.eq.s32.totalorder %s22, 0
      %p75 = por %p73, %p74
      %s77 = sadd.s32 %s76, 1
      %p80 = scmp.eq.s32.totalorder %s16, 3
      %p81 = scmp.ne.s32.totalorder %s76, %s78
      %p82 = scmp.eq.s32.totalorder %s16, 0
      %p83 = por %p81, %p82
      %p84 = scmp.ne.s32.totalorder %s76, %s78
      %p85 = scmp.eq.s32.totalorder %s21, 3
      %p86 = por %p84, %p85
      %p87 = scmp.ne.s32.totalorder %s78, %s79
      %p88 = scmp.eq.s32.totalorder %s21, 0
      %p89 = por %p87, %p88
      %p90 = scmp.ne.s32.totalorder %s78, %s79
      %p91 = scmp.eq.s32.totalorder %s22, 3
      %p92 = por %p90, %p91
      %p94 = scmp.ne.s32.totalorder %s79, %s93
      %p95 = scmp.eq.s32.totalorder %s22, 0
      %p96 = por %p94, %p95
      %s98 = sadd.s32 %s97, 1
      %p101 = scmp.eq.s32.totalorder %s16, 3
      %p102 = scmp.ne.s32.totalorder %s97, %s99
      %p103 = scmp.eq.s32.totalorder %s16, 0
      %p104 = por %p102, %p103
      %p105 = scmp.ne.s32.totalorder %s97, %s99
      %p106 = scmp.eq.s32.totalorder %s21, 3
      %p107 = por %p105, %p106
      %p108 = scmp.ne.s32.totalorder %s99, %s100
      %p109 = scmp.eq.s32.totalorder %s21, 0
      %p110 = por %p108, %p109
      %p111 = scmp.ne.s32.totalorder %s99, %s100
      %p112 = scmp.eq.s32.totalorder %s22, 3
      %p113 = por %p111, %p112
      %p115 = scmp.ne.s32.totalorder %s100, %s114
      %p116 = scmp.eq.s32.totalorder %s22, 0
      %p117 = por %p115, %p116
      %s119 = sadd.s32 %s118, 1
      %p122 = scmp.eq.s32.totalorder %s16, 3
      %p123 = scmp.ne.s32.totalorder %s118, %s120
      %p124 = scmp.eq.s32.totalorder %s16, 0
      %p125 = por %p123, %p124
      %p126 = scmp.ne.s32.totalorder %s118, %s120
      %p127 = scmp.eq.s32.totalorder %s21, 3
      %p128 = por %p126, %p127
      %p129 = scmp.ne.s32.totalorder %s120, %s121
      %p130 = scmp.eq.s32.totalorder %s21, 0
      %p131 = por %p129, %p130
      %p132 = scmp.ne.s32.totalorder %s120, %s121
      %p133 = scmp.eq.s32.totalorder %s22, 3
      %p134 = por %p132, %p133
      %p136 = scmp.ne.s32.totalorder %s121, %s135
      %p137 = scmp.eq.s32.totalorder %s22, 0
      %p138 = por %p136, %p137
      %s140 = sadd.s32 %s139, 1
      %p143 = scmp.eq.s32.totalorder %s16, 3
      %p144 = scmp.ne.s32.totalorder %s139, %s141
      %p145 = scmp.eq.s32.totalorder %s16, 0
      %p146 = por %p144, %p145
      %p147 = scmp.ne.s32.totalorder %s139, %s141
      %p148 = scmp.eq.s32.totalorder %s21, 3
      %p149 = por %p147, %p148
      %p150 = scmp.ne.s32.totalorder %s141, %s142
      %p151 = scmp.eq.s32.totalorder %s21, 0
      %p152 = por %p150, %p151
      %p153 = scmp.ne.s32.totalorder %s141, %s142
      %p154 = scmp.eq.s32.totalorder %s22, 3
      %p155 = por %p153, %p154
      %p157 = scmp.ne.s32.totalorder %s142, %s156
      %p158 = scmp.eq.s32.totalorder %s22, 0
      %p159 = por %p157, %p158
      %s161 = sadd.s32 %s160, 1
      %p164 = scmp.eq.s32.totalorder %s16, 3
      %p165 = scmp.ne.s32.totalorder %s160, %s162
      %p166 = scmp.eq.s32.totalorder %s16, 0
      %p167 = por %p165, %p166
      %p168 = scmp.ne.s32.totalorder %s160, %s162
      %p169 = scmp.eq.s32.totalorder %s21, 3
      %p170 = por %p168, %p169
      %p171 = scmp.ne.s32.totalorder %s162, %s163
      %p172 = scmp.eq.s32.totalorder %s21, 0
      %p173 = por %p171, %p172
      %p174 = scmp.ne.s32.totalorder %s162, %s163
      %p175 = scmp.eq.s32.totalorder %s22, 3
      %p176 = por %p174, %p175
      %p178 = scmp.ne.s32.totalorder %s163, %s177
      %p179 = scmp.eq.s32.totalorder %s22, 0
      %p180 = por %p178, %p179
      %s181 = ssub.s32 %s16, %s23
      %p182 = scmp.eq.s32.totalorder %s181, 0
      %s184 = sadd.s32 %s183, 1
      %s185 = scalar_select %p182, %s183, %s184
      %p188 = pneg %p182
      %p189 = scmp.eq.s32.totalorder %s16, 3
      %p190 = por %p188, %p189
      %p191 = scmp.ne.s32.totalorder %s183, %s186
      %p192 = scmp.eq.s32.totalorder %s16, 0
      %p193 = por %p191, %p192
      %p194 = scmp.ne.s32.totalorder %s183, %s186
      %p195 = scmp.eq.s32.totalorder %s21, 3
      %p196 = por %p194, %p195
      %p197 = scmp.ne.s32.totalorder %s186, %s187
      %p198 = scmp.eq.s32.totalorder %s21, 0
      %p199 = por %p197, %p198
      %p200 = scmp.ne.s32.totalorder %s186, %s187
      %p201 = scmp.eq.s32.totalorder %s22, 3
      %p202 = por %p200, %p201
      %p204 = scmp.ne.s32.totalorder %s187, %s203
      %p205 = scmp.eq.s32.totalorder %s22, 0
      %p206 = por %p204, %p205
      %p207 = scmp.le.s32.totalorder 1, %s16
      %p208 = scmp.lt.s32.totalorder %s16, 5
      %p209 = pnand %p207, %p208
      %p210 = pneg %p209
      // Predicated region
      $region9: #{pointnetpp_encoder_fp_forward.11} parent=5 // pred_check
        _
      $region10: #{pointnetpp_encoder_fp_forward.11} parent=5 // pred_check_branch
        %212 = sbr.rel (%p209) target = $region12
      $region11: #{pointnetpp_encoder_fp_forward.11} parent=5 // pred_region
        %s213 = ssub.s32 %s16, 1
        // Predicated region
        $region13: #{pointnetpp_encoder_fp_forward.11} parent=11 // pred_check
          %p214 = pneg %p89
        $region14: #{pointnetpp_encoder_fp_forward.11} parent=11 // pred_check_branch
          %216 = sbr.rel (%p214) target = $region16
        $region15: #{pointnetpp_encoder_fp_forward.11} parent=11 // pred_region
          _
        $region16: #{pointnetpp_encoder_fp_forward.11} parent=11 // pred_fallthru
          _
        // Predicated region
        $region17: #{pointnetpp_encoder_fp_forward.11} parent=11 // pred_check
          %p217 = pneg %p110
        $region18: #{pointnetpp_encoder_fp_forward.11} parent=11 // pred_check_branch
          %219 = sbr.rel (%p217) target = $region20
        $region19: #{pointnetpp_encoder_fp_forward.11} parent=11 // pred_region
          _
        $region20: #{pointnetpp_encoder_fp_forward.11} parent=11 // pred_fallthru
          _
        // Predicated region
        $region21: #{pointnetpp_encoder_fp_forward.11} parent=11 // pred_check
          %p220 = pneg %p131
        $region22: #{pointnetpp_encoder_fp_forward.11} parent=11 // pred_check_branch
          %222 = sbr.rel (%p220) target = $region24
        $region23: #{pointnetpp_encoder_fp_forward.11} parent=11 // pred_region
          _
        $region24: #{pointnetpp_encoder_fp_forward.11} parent=11 // pred_fallthru
          _
        // Predicated region
        $region25: #{pointnetpp_encoder_fp_forward.11} parent=11 // pred_check
          %p223 = pneg %p152
        $region26: #{pointnetpp_encoder_fp_forward.11} parent=11 // pred_check_branch
          %225 = sbr.rel (%p223) target = $region28
        $region27: #{pointnetpp_encoder_fp_forward.11} parent=11 // pred_region
          _
        $region28: #{pointnetpp_encoder_fp_forward.11} parent=11 // pred_fallthru
          _
        // Predicated region
        $region29: #{pointnetpp_encoder_fp_forward.11} parent=11 // pred_check
          %p226 = pneg %p173
        $region30: #{pointnetpp_encoder_fp_forward.11} parent=11 // pred_check_branch
          %228 = sbr.rel (%p226) target = $region32
        $region31: #{pointnetpp_encoder_fp_forward.11} parent=11 // pred_region
          _
        $region32: #{pointnetpp_encoder_fp_forward.11} parent=11 // pred_fallthru
          _
      $region12: #{pointnetpp_encoder_fp_forward.11} parent=5 // pred_fallthru
        _
      %p229 = scmp.lt.s32.totalorder %s16, 4
      // Predicated region
      $region33: #{pointnetpp_encoder_fp_forward.11} parent=5 // pred_check
        %p230 = pneg %p229
      $region34: #{pointnetpp_encoder_fp_forward.11} parent=5 // pred_check_branch
        %232 = sbr.rel (%p230) target = $region36
      $region35: #{pointnetpp_encoder_fp_forward.11} parent=5 // pred_region
        // Predicated region
        $region37: #{pointnetpp_encoder_fp_forward.11} parent=35 // pred_check
          %p233 = pneg %p36
        $region38: #{pointnetpp_encoder_fp_forward.11} parent=35 // pred_check_branch
          %235 = sbr.rel (%p233) target = $region40
        $region39: #{pointnetpp_encoder_fp_forward.11} parent=35 // pred_region
          %s236 = smul.u32 64, %s16
          %p237 = scmp.lt.s32.totalorder %s236, 255
          %s238 = scalar_select %p237, %s236, 255
          %s239 = smul.addr %s238, 2
          %s240 = smul.addr %s239, 4
          %s241 = scalar_lea.vmem %s0, %s240
          %s242 = smul.u32 64, %s16
        $region40: #{pointnetpp_encoder_fp_forward.11} parent=35 // pred_fallthru
          _
        // Predicated region
        $region41: #{pointnetpp_encoder_fp_forward.11} parent=35 // pred_check
          %p243 = pneg %p62
        $region42: #{pointnetpp_encoder_fp_forward.11} parent=35 // pred_check_branch
          %245 = sbr.rel (%p243) target = $region44
        $region43: #{pointnetpp_encoder_fp_forward.11} parent=35 // pred_region
          %s246 = smul.u32 64, %s16
          %p247 = scmp.lt.s32.totalorder %s246, 255
          %s248 = scalar_select %p247, %s246, 255
          %s249 = smul.addr %s248, 4
          %s250 = scalar_lea.vmem %s1, %s249
          %s251 = smul.u32 64, %s16
        $region44: #{pointnetpp_encoder_fp_forward.11} parent=35 // pred_fallthru
          _
      $region36: #{pointnetpp_encoder_fp_forward.11} parent=5 // pred_fallthru
        _
      %p252 = scmp.le.s32.totalorder 1, %s16
      %p253 = scmp.lt.s32.totalorder %s16, 5
      %p254 = pnand %p252, %p253
      %p255 = pneg %p254
      // Predicated region
      $region45: #{pointnetpp_encoder_fp_forward.11} parent=5 // pred_check
        _
      $region46: #{pointnetpp_encoder_fp_forward.11} parent=5 // pred_check_branch
        %257 = sbr.rel (%p254) target = $region48
      $region47: #{pointnetpp_encoder_fp_forward.11} parent=5 // pred_region
        %s258 = ssub.s32 %s16, 1
        %s259 = smul.u32 64, %s21
        %p260 = scmp.lt.s32.totalorder %s259, 255
        %s261 = scalar_select %p260, %s259, 255
        %s262 = smul.addr %s261, 2
        %s263 = smul.addr %s262, 4
        %s264 = scalar_lea.vmem %s0, %s263
        %p265 = pneg %p42
        %p266 = pneg %p39
        %s267 = smul.u32 64, %s21
        %p268 = scmp.lt.s32.totalorder %s267, 255
        %s269 = scalar_select %p268, %s267, 255
        %s270 = smul.addr %s269, 4
        %s271 = scalar_lea.vmem %s1, %s270
        %p272 = pneg %p68
        %p273 = pneg %p65
        %p274 = pneg %p89
        %p275 = pneg %p86
        %p276 = pneg %p110
        %p277 = pneg %p107
        %p278 = pneg %p131
        %p279 = pneg %p128
        %p280 = pneg %p152
        %p281 = pneg %p149
        %p282 = pneg %p173
        %p283 = pneg %p170
        %p284 = pneg %p199
        %p285 = pneg %p196
        %s286 = sand.u32 %s186, 1
        %s287 = scalar_lea.sflag [#allocation3], %s286
        %s288 = sand.u32 %s186, 1
        %s289 = smul.addr %s288, 512
        %s290 = scalar_lea.vmem [#allocation2], %s289
        %s291 = smul.u32 64, %s21
        %p292 = scmp.lt.s32.totalorder %s291, 255
        %s293 = scalar_select %p292, %s291, 255
        %s294 = smul.addr %s293, 2
        %s295 = smul.addr %s294, 4
        %s296 = scalar_lea.vmem %s0, %s295
        %s297 = smul.u32 64, %s21
        %s298 = smul.u32 64, %s21
        %p299 = scmp.lt.s32.totalorder %s298, 255
        %s300 = scalar_select %p299, %s298, 255
        %s301 = smul.addr %s300, 4
        %s302 = scalar_lea.vmem %s1, %s301
        %s303 = smul.u32 64, %s21
        %s304 = smul.u32 64, %s21
        %v306 = vld [vmem:[%s296] sm:$0xff]
        %v307 = vld [vmem:[%s296 + $0x8] sm:$0xff]
        %v308 = vld [vmem:[%s296 + $0x10] sm:$0xff]
        %v309 = vld [vmem:[%s296 + $0x18] sm:$0xff]
        %v310 = vld [vmem:[%s296 + $0x20] sm:$0xff]
        %v311 = vld [vmem:[%s296 + $0x28] sm:$0xff]
        %v312 = vld [vmem:[%s296 + $0x30] sm:$0xff]
        %v313 = vld [vmem:[%s296 + $0x38] sm:$0xff]
        %v314 = vld [vmem:[%s296 + $0x40] sm:$0xff]
        %v315 = vld [vmem:[%s296 + $0x48] sm:$0xff]
        %v316 = vld [vmem:[%s296 + $0x50] sm:$0xff]
        %v317 = vld [vmem:[%s296 + $0x58] sm:$0xff]
        %v318 = vld [vmem:[%s296 + $0x60] sm:$0xff]
        %v319 = vld [vmem:[%s296 + $0x68] sm:$0xff]
        %v320 = vld [vmem:[%s296 + $0x70] sm:$0xff]
        %v321 = vld [vmem:[%s296 + $0x78] sm:$0xff]
        %v322 = vld [vmem:[%s296 + $0x80] sm:$0xff]
        %v323 = vld [vmem:[%s296 + $0x88] sm:$0xff]
        %v324 = vld [vmem:[%s296 + $0x90] sm:$0xff]
        %v325 = vld [vmem:[%s296 + $0x98] sm:$0xff]
        %v326 = vld [vmem:[%s296 + $0xa0] sm:$0xff]
        %v327 = vld [vmem:[%s296 + $0xa8] sm:$0xff]
        %v328 = vld [vmem:[%s296 + $0xb0] sm:$0xff]
        %v329 = vld [vmem:[%s296 + $0xb8] sm:$0xff]
        %v330 = vld [vmem:[%s296 + $0xc0] sm:$0xff]
        %v331 = vld [vmem:[%s296 + $0xc8] sm:$0xff]
        %v332 = vld [vmem:[%s296 + $0xd0] sm:$0xff]
        %v333 = vld [vmem:[%s296 + $0xd8] sm:$0xff]
        %v334 = vld [vmem:[%s296 + $0xe0] sm:$0xff]
        %v335 = vld [vmem:[%s296 + $0xe8] sm:$0xff]
        %v336 = vld [vmem:[%s296 + $0xf0] sm:$0xff]
        %v337 = vld [vmem:[%s296 + $0xf8] sm:$0xff]
        %v338 = vld [vmem:[%s296 + $0x100] sm:$0xff]
        %v339 = vld [vmem:[%s296 + $0x108] sm:$0xff]
        %v340 = vld [vmem:[%s296 + $0x110] sm:$0xff]
        %v341 = vld [vmem:[%s296 + $0x118] sm:$0xff]
        %v342 = vld [vmem:[%s296 + $0x120] sm:$0xff]
        %v343 = vld [vmem:[%s296 + $0x128] sm:$0xff]
        %v344 = vld [vmem:[%s296 + $0x130] sm:$0xff]
        %v345 = vld [vmem:[%s296 + $0x138] sm:$0xff]
        %v346 = vld [vmem:[%s296 + $0x140] sm:$0xff]
        %v347 = vld [vmem:[%s296 + $0x148] sm:$0xff]
        %v348 = vld [vmem:[%s296 + $0x150] sm:$0xff]
        %v349 = vld [vmem:[%s296 + $0x158] sm:$0xff]
        %v350 = vld [vmem:[%s296 + $0x160] sm:$0xff]
        %v351 = vld [vmem:[%s296 + $0x168] sm:$0xff]
        %v352 = vld [vmem:[%s296 + $0x170] sm:$0xff]
        %v353 = vld [vmem:[%s296 + $0x178] sm:$0xff]
        %v354 = vld [vmem:[%s296 + $0x180] sm:$0xff]
        %v355 = vld [vmem:[%s296 + $0x188] sm:$0xff]
        %v356 = vld [vmem:[%s296 + $0x190] sm:$0xff]
        %v357 = vld [vmem:[%s296 + $0x198] sm:$0xff]
        %v358 = vld [vmem:[%s296 + $0x1a0] sm:$0xff]
        %v359 = vld [vmem:[%s296 + $0x1a8] sm:$0xff]
        %v360 = vld [vmem:[%s296 + $0x1b0] sm:$0xff]
        %v361 = vld [vmem:[%s296 + $0x1b8] sm:$0xff]
        %v362 = vld [vmem:[%s296 + $0x1c0] sm:$0xff]
        %v363 = vld [vmem:[%s296 + $0x1c8] sm:$0xff]
        %v364 = vld [vmem:[%s296 + $0x1d0] sm:$0xff]
        %v365 = vld [vmem:[%s296 + $0x1d8] sm:$0xff]
        %v366 = vld [vmem:[%s296 + $0x1e0] sm:$0xff]
        %v367 = vld [vmem:[%s296 + $0x1e8] sm:$0xff]
        %v368 = vld [vmem:[%s296 + $0x1f0] sm:$0xff]
        %v369 = vld [vmem:[%s296 + $0x1f8] sm:$0xff]
        %v370 = vld [vmem:[%s2] sm:$0xf]
        %v371 = vld [vmem:[%s2 + $0x4] sm:$0xf]
        %v372 = vld [vmem:[%s2 + $0x8] sm:$0xf]
        %v373 = vld [vmem:[%s2 + $0xc] sm:$0xf]
        %v374 = vld [vmem:[%s2 + $0x10] sm:$0xf]
        %v375 = vld [vmem:[%s2 + $0x14] sm:$0xf]
        %v376 = vld [vmem:[%s2 + $0x18] sm:$0xf]
        %v377 = vld [vmem:[%s2 + $0x1c] sm:$0xf]
        %v378 = vld [vmem:[%s2 + $0x20] sm:$0xf]
        %v379 = vld [vmem:[%s2 + $0x24] sm:$0xf]
        %v380 = vld [vmem:[%s2 + $0x28] sm:$0xf]
        %v381 = vld [vmem:[%s2 + $0x2c] sm:$0xf]
        %v382 = vld [vmem:[%s2 + $0x30] sm:$0xf]
        %v383 = vld [vmem:[%s2 + $0x34] sm:$0xf]
        %v384 = vld [vmem:[%s2 + $0x38] sm:$0xf]
        %v385 = vld [vmem:[%s2 + $0x3c] sm:$0xf]
        %v386 = vld [vmem:[%s2 + $0x40] sm:$0xf]
        %v387 = vld [vmem:[%s2 + $0x44] sm:$0xf]
        %v388 = vld [vmem:[%s2 + $0x48] sm:$0xf]
        %v389 = vld [vmem:[%s2 + $0x4c] sm:$0xf]
        %v390 = vld [vmem:[%s2 + $0x50] sm:$0xf]
        %v391 = vld [vmem:[%s2 + $0x54] sm:$0xf]
        %v392 = vld [vmem:[%s2 + $0x58] sm:$0xf]
        %v393 = vld [vmem:[%s2 + $0x5c] sm:$0xf]
        %v394 = vld [vmem:[%s2 + $0x60] sm:$0xf]
        %v395 = vld [vmem:[%s2 + $0x64] sm:$0xf]
        %v396 = vld [vmem:[%s2 + $0x68] sm:$0xf]
        %v397 = vld [vmem:[%s2 + $0x6c] sm:$0xf]
        %v398 = vld [vmem:[%s2 + $0x70] sm:$0xf]
        %v399 = vld [vmem:[%s2 + $0x74] sm:$0xf]
        %v400 = vld [vmem:[%s2 + $0x78] sm:$0xf]
        %v401 = vld [vmem:[%s2 + $0x7c] sm:$0xf]
        %v402 = vld [vmem:[%s302] sm:$0xf]
        %v403 = vld [vmem:[%s302 + $0x4] sm:$0xf]
        %v404 = vld [vmem:[%s302 + $0x8] sm:$0xf]
        %v405 = vld [vmem:[%s302 + $0xc] sm:$0xf]
        %v406 = vld [vmem:[%s302 + $0x10] sm:$0xf]
        %v407 = vld [vmem:[%s302 + $0x14] sm:$0xf]
        %v408 = vld [vmem:[%s302 + $0x18] sm:$0xf]
        %v409 = vld [vmem:[%s302 + $0x1c] sm:$0xf]
        %v410 = vld [vmem:[%s302 + $0x20] sm:$0xf]
        %v411 = vld [vmem:[%s302 + $0x24] sm:$0xf]
        %v412 = vld [vmem:[%s302 + $0x28] sm:$0xf]
        %v413 = vld [vmem:[%s302 + $0x2c] sm:$0xf]
        %v414 = vld [vmem:[%s302 + $0x30] sm:$0xf]
        %v415 = vld [vmem:[%s302 + $0x34] sm:$0xf]
        %v416 = vld [vmem:[%s302 + $0x38] sm:$0xf]
        %v417 = vld [vmem:[%s302 + $0x3c] sm:$0xf]
        %v418 = vld [vmem:[%s302 + $0x40] sm:$0xf]
        %v419 = vld [vmem:[%s302 + $0x44] sm:$0xf]
        %v420 = vld [vmem:[%s302 + $0x48] sm:$0xf]
        %v421 = vld [vmem:[%s302 + $0x4c] sm:$0xf]
        %v422 = vld [vmem:[%s302 + $0x50] sm:$0xf]
        %v423 = vld [vmem:[%s302 + $0x54] sm:$0xf]
        %v424 = vld [vmem:[%s302 + $0x58] sm:$0xf]
        %v425 = vld [vmem:[%s302 + $0x5c] sm:$0xf]
        %v426 = vld [vmem:[%s302 + $0x60] sm:$0xf]
        %v427 = vld [vmem:[%s302 + $0x64] sm:$0xf]
        %v428 = vld [vmem:[%s302 + $0x68] sm:$0xf]
        %v429 = vld [vmem:[%s302 + $0x6c] sm:$0xf]
        %v430 = vld [vmem:[%s302 + $0x70] sm:$0xf]
        %v431 = vld [vmem:[%s302 + $0x74] sm:$0xf]
        %v432 = vld [vmem:[%s302 + $0x78] sm:$0xf]
        %v433 = vld [vmem:[%s302 + $0x7c] sm:$0xf]
        %v434 = vld [vmem:[%s302 + $0x80] sm:$0xf]
        %v435 = vld [vmem:[%s302 + $0x84] sm:$0xf]
        %v436 = vld [vmem:[%s302 + $0x88] sm:$0xf]
        %v437 = vld [vmem:[%s302 + $0x8c] sm:$0xf]
        %v438 = vld [vmem:[%s302 + $0x90] sm:$0xf]
        %v439 = vld [vmem:[%s302 + $0x94] sm:$0xf]
        %v440 = vld [vmem:[%s302 + $0x98] sm:$0xf]
        %v441 = vld [vmem:[%s302 + $0x9c] sm:$0xf]
        %v442 = vld [vmem:[%s302 + $0xa0] sm:$0xf]
        %v443 = vld [vmem:[%s302 + $0xa4] sm:$0xf]
        %v444 = vld [vmem:[%s302 + $0xa8] sm:$0xf]
        %v445 = vld [vmem:[%s302 + $0xac] sm:$0xf]
        %v446 = vld [vmem:[%s302 + $0xb0] sm:$0xf]
        %v447 = vld [vmem:[%s302 + $0xb4] sm:$0xf]
        %v448 = vld [vmem:[%s302 + $0xb8] sm:$0xf]
        %v449 = vld [vmem:[%s302 + $0xbc] sm:$0xf]
        %v450 = vld [vmem:[%s302 + $0xc0] sm:$0xf]
        %v451 = vld [vmem:[%s302 + $0xc4] sm:$0xf]
        %v452 = vld [vmem:[%s302 + $0xc8] sm:$0xf]
        %v453 = vld [vmem:[%s302 + $0xcc] sm:$0xf]
        %v454 = vld [vmem:[%s302 + $0xd0] sm:$0xf]
        %v455 = vld [vmem:[%s302 + $0xd4] sm:$0xf]
        %v456 = vld [vmem:[%s302 + $0xd8] sm:$0xf]
        %v457 = vld [vmem:[%s302 + $0xdc] sm:$0xf]
        %v458 = vld [vmem:[%s302 + $0xe0] sm:$0xf]
        %v459 = vld [vmem:[%s302 + $0xe4] sm:$0xf]
        %v460 = vld [vmem:[%s302 + $0xe8] sm:$0xf]
        %v461 = vld [vmem:[%s302 + $0xec] sm:$0xf]
        %v462 = vld [vmem:[%s302 + $0xf0] sm:$0xf]
        %v463 = vld [vmem:[%s302 + $0xf4] sm:$0xf]
        %v464 = vld [vmem:[%s302 + $0xf8] sm:$0xf]
        %v465 = vld [vmem:[%s302 + $0xfc] sm:$0xf]
        %v466 = vld [vmem:[%s3] sm:$0xf]
        %v467 = vld [vmem:[%s3 + $0x4] sm:$0x1]
        %v532 = vunpack.c.l.b16 %v402
        %v533 = vunpack.c.l.b16 %v403
        %v534 = vunpack.c.l.b16 %v404
        %v535 = vunpack.c.l.b16 %v405
        %v536 = vunpack.c.l.b16 %v406
        %v537 = vunpack.c.l.b16 %v407
        %v538 = vunpack.c.l.b16 %v408
        %v539 = vunpack.c.l.b16 %v409
        %v540 = vunpack.c.l.b16 %v410
        %v541 = vunpack.c.l.b16 %v411
        %v542 = vunpack.c.l.b16 %v412
        %v543 = vunpack.c.l.b16 %v413
        %v544 = vunpack.c.l.b16 %v414
        %v545 = vunpack.c.l.b16 %v415
        %v546 = vunpack.c.l.b16 %v416
        %v547 = vunpack.c.l.b16 %v417
        %v548 = vunpack.c.l.b16 %v418
        %v549 = vunpack.c.l.b16 %v419
        %v550 = vunpack.c.l.b16 %v420
        %v551 = vunpack.c.l.b16 %v421
        %v552 = vunpack.c.l.b16 %v422
        %v553 = vunpack.c.l.b16 %v423
        %v554 = vunpack.c.l.b16 %v424
        %v555 = vunpack.c.l.b16 %v425
        %v556 = vunpack.c.l.b16 %v426
        %v557 = vunpack.c.l.b16 %v427
        %v558 = vunpack.c.l.b16 %v428
        %v559 = vunpack.c.l.b16 %v429
        %v560 = vunpack.c.l.b16 %v430
        %v561 = vunpack.c.l.b16 %v431
        %v562 = vunpack.c.l.b16 %v432
        %v563 = vunpack.c.l.b16 %v433
        %v564 = vunpack.c.l.b16 %v434
        %v565 = vunpack.c.l.b16 %v435
        %v566 = vunpack.c.l.b16 %v436
        %v567 = vunpack.c.l.b16 %v437
        %v568 = vunpack.c.l.b16 %v438
        %v569 = vunpack.c.l.b16 %v439
        %v570 = vunpack.c.l.b16 %v440
        %v571 = vunpack.c.l.b16 %v441
        %v572 = vunpack.c.l.b16 %v442
        %v573 = vunpack.c.l.b16 %v443
        %v574 = vunpack.c.l.b16 %v444
        %v575 = vunpack.c.l.b16 %v445
        %v576 = vunpack.c.l.b16 %v446
        %v577 = vunpack.c.l.b16 %v447
        %v578 = vunpack.c.l.b16 %v448
        %v579 = vunpack.c.l.b16 %v449
        %v580 = vunpack.c.l.b16 %v450
        %v581 = vunpack.c.l.b16 %v451
        %v582 = vunpack.c.l.b16 %v452
        %v583 = vunpack.c.l.b16 %v453
        %v584 = vunpack.c.l.b16 %v454
        %v585 = vunpack.c.l.b16 %v455
        %v586 = vunpack.c.l.b16 %v456
        %v587 = vunpack.c.l.b16 %v457
        %v588 = vunpack.c.l.b16 %v458
        %v589 = vunpack.c.l.b16 %v459
        %v590 = vunpack.c.l.b16 %v460
        %v591 = vunpack.c.l.b16 %v461
        %v592 = vunpack.c.l.b16 %v462
        %v593 = vunpack.c.l.b16 %v463
        %v594 = vunpack.c.l.b16 %v464
        %v595 = vunpack.c.l.b16 %v465
        %v596 = vpack.c.b16 %v533, %v532
        %v597 = vpack.c.b16 %v535, %v534
        %v598 = vpack.c.b16 %v537, %v536
        %v599 = vpack.c.b16 %v539, %v538
        %v600 = vpack.c.b16 %v541, %v540
        %v601 = vpack.c.b16 %v543, %v542
        %v602 = vpack.c.b16 %v545, %v544
        %v603 = vpack.c.b16 %v547, %v546
        %v604 = vpack.c.b16 %v549, %v548
        %v605 = vpack.c.b16 %v551, %v550
        %v606 = vpack.c.b16 %v553, %v552
        %v607 = vpack.c.b16 %v555, %v554
        %v608 = vpack.c.b16 %v557, %v556
        %v609 = vpack.c.b16 %v559, %v558
        %v610 = vpack.c.b16 %v561, %v560
        %v611 = vpack.c.b16 %v563, %v562
        %v612 = vpack.c.b16 %v565, %v564
        %v613 = vpack.c.b16 %v567, %v566
        %v614 = vpack.c.b16 %v569, %v568
        %v615 = vpack.c.b16 %v571, %v570
        %v616 = vpack.c.b16 %v573, %v572
        %v617 = vpack.c.b16 %v575, %v574
        %v618 = vpack.c.b16 %v577, %v576
        %v619 = vpack.c.b16 %v579, %v578
        %v620 = vpack.c.b16 %v581, %v580
        %v621 = vpack.c.b16 %v583, %v582
        %v622 = vpack.c.b16 %v585, %v584
        %v623 = vpack.c.b16 %v587, %v586
        %v624 = vpack.c.b16 %v589, %v588
        %v625 = vpack.c.b16 %v591, %v590
        %v626 = vpack.c.b16 %v593, %v592
        %v627 = vpack.c.b16 %v595, %v594
        %v630 = vunpack.c.l.b16 %v466
        %v631 = vunpack.c.l.b16 %v467
        %v632 = vpack.c.b16 %v631, %v630
        %vm633 = vcmask 72704
        %v635 = vsel %vm633, %v596, 0
        %v638 = vsel %vm633, %v597, 0
        %v641 = vsel %vm633, %v598, 0
        %v644 = vsel %vm633, %v599, 0
        %v647 = vsel %vm633, %v600, 0
        %v650 = vsel %vm633, %v601, 0
        %v653 = vsel %vm633, %v602, 0
        %v656 = vsel %vm633, %v603, 0
        %v659 = vsel %vm633, %v604, 0
        %v662 = vsel %vm633, %v605, 0
        %v665 = vsel %vm633, %v606, 0
        %v668 = vsel %vm633, %v607, 0
        %v671 = vsel %vm633, %v608, 0
        %v674 = vsel %vm633, %v609, 0
        %v677 = vsel %vm633, %v610, 0
        %v680 = vsel %vm633, %v611, 0
        %v683 = vsel %vm633, %v612, 0
        %v686 = vsel %vm633, %v613, 0
        %v689 = vsel %vm633, %v614, 0
        %v692 = vsel %vm633, %v615, 0
        %v695 = vsel %vm633, %v616, 0
        %v698 = vsel %vm633, %v617, 0
        %v701 = vsel %vm633, %v618, 0
        %v704 = vsel %vm633, %v619, 0
        %v707 = vsel %vm633, %v620, 0
        %v710 = vsel %vm633, %v621, 0
        %v713 = vsel %vm633, %v622, 0
        %v716 = vsel %vm633, %v623, 0
        %v719 = vsel %vm633, %v624, 0
        %v722 = vsel %vm633, %v625, 0
        %v725 = vsel %vm633, %v626, 0
        %v728 = vsel %vm633, %v627, 0
        %vm730 = vcmask 1043456
        %vm731 = vcmask 1044480
        %v732 = vsel %vm730, 4294967295, 65535
        %v733 = vsel %vm731, %v732, 0
        %v735 = vand.u32 %v632, %v733
        %737 = vmatpush.bf16.msra.mxu0 0
        %738 = vmatpush.bf16.msra.mxu0 0
        %739 = vmatpush.bf16.msra.mxu0 0
        %740 = vmatpush.bf16.msra.mxu0 0
        %741 = vmatpush.bf16.msra.mxu0 0
        %742 = vmatpush.bf16.msra.mxu0 0
        %743 = vmatpush.bf16.msra.mxu0 0
        %744 = vmatpush.bf16.msra.mxu0 %v735
        %745 = vmatmul.bf16.gmra.mxu0 %v635
        %v746 = vpop.f32.mrf.mxu0
        %v747 = vadd.f32 0.0, %v746
        %v748 = vpop.f32.mrf.mxu0
        %v749 = vadd.f32 0.0, %v748
        %750 = vmatmul.bf16.gmra.mxu0 %v638
        %v751 = vpop.f32.mrf.mxu0
        %v752 = vadd.f32 0.0, %v751
        %v753 = vpop.f32.mrf.mxu0
        %v754 = vadd.f32 0.0, %v753
        %755 = vmatmul.bf16.gmra.mxu0 %v641
        %v756 = vpop.f32.mrf.mxu0
        %v757 = vadd.f32 0.0, %v756
        %v758 = vpop.f32.mrf.mxu0
        %v759 = vadd.f32 0.0, %v758
        %760 = vmatmul.bf16.gmra.mxu0 %v644
        %v761 = vpop.f32.mrf.mxu0
        %v762 = vadd.f32 0.0, %v761
        %v763 = vpop.f32.mrf.mxu0
        %v764 = vadd.f32 0.0, %v763
        %765 = vmatmul.bf16.gmra.mxu0 %v647
        %v766 = vpop.f32.mrf.mxu0
        %v767 = vadd.f32 0.0, %v766
        %v768 = vpop.f32.mrf.mxu0
        %v769 = vadd.f32 0.0, %v768
        %770 = vmatmul.bf16.gmra.mxu0 %v650
        %v771 = vpop.f32.mrf.mxu0
        %v772 = vadd.f32 0.0, %v771
        %v773 = vpop.f32.mrf.mxu0
        %v774 = vadd.f32 0.0, %v773
        %775 = vmatmul.bf16.gmra.mxu0 %v653
        %v776 = vpop.f32.mrf.mxu0
        %v777 = vadd.f32 0.0, %v776
        %v778 = vpop.f32.mrf.mxu0
        %v779 = vadd.f32 0.0, %v778
        %780 = vmatmul.bf16.gmra.mxu0 %v656
        %v781 = vpop.f32.mrf.mxu0
        %v782 = vadd.f32 0.0, %v781
        %v783 = vpop.f32.mrf.mxu0
        %v784 = vadd.f32 0.0, %v783
        %785 = vmatmul.bf16.gmra.mxu0 %v659
        %v786 = vpop.f32.mrf.mxu0
        %v787 = vadd.f32 0.0, %v786
        %v788 = vpop.f32.mrf.mxu0
        %v789 = vadd.f32 0.0, %v788
        %790 = vmatmul.bf16.gmra.mxu0 %v662
        %v791 = vpop.f32.mrf.mxu0
        %v792 = vadd.f32 0.0, %v791
        %v793 = vpop.f32.mrf.mxu0
        %v794 = vadd.f32 0.0, %v793
        %795 = vmatmul.bf16.gmra.mxu0 %v665
        %v796 = vpop.f32.mrf.mxu0
        %v797 = vadd.f32 0.0, %v796
        %v798 = vpop.f32.mrf.mxu0
        %v799 = vadd.f32 0.0, %v798
        %800 = vmatmul.bf16.gmra.mxu0 %v668
        %v801 = vpop.f32.mrf.mxu0
        %v802 = vadd.f32 0.0, %v801
        %v803 = vpop.f32.mrf.mxu0
        %v804 = vadd.f32 0.0, %v803
        %805 = vmatmul.bf16.gmra.mxu0 %v671
        %v806 = vpop.f32.mrf.mxu0
        %v807 = vadd.f32 0.0, %v806
        %v808 = vpop.f32.mrf.mxu0
        %v809 = vadd.f32 0.0, %v808
        %810 = vmatmul.bf16.gmra.mxu0 %v674
        %v811 = vpop.f32.mrf.mxu0
        %v812 = vadd.f32 0.0, %v811
        %v813 = vpop.f32.mrf.mxu0
        %v814 = vadd.f32 0.0, %v813
        %815 = vmatmul.bf16.gmra.mxu0 %v677
        %v816 = vpop.f32.mrf.mxu0
        %v817 = vadd.f32 0.0, %v816
        %v818 = vpop.f32.mrf.mxu0
        %v819 = vadd.f32 0.0, %v818
        %820 = vmatmul.bf16.gmra.mxu0 %v680
        %v821 = vpop.f32.mrf.mxu0
        %v822 = vadd.f32 0.0, %v821
        %v823 = vpop.f32.mrf.mxu0
        %v824 = vadd.f32 0.0, %v823
        %825 = vmatmul.bf16.gmra.mxu0 %v683
        %v826 = vpop.f32.mrf.mxu0
        %v827 = vadd.f32 0.0, %v826
        %v828 = vpop.f32.mrf.mxu0
        %v829 = vadd.f32 0.0, %v828
        %830 = vmatmul.bf16.gmra.mxu0 %v686
        %v831 = vpop.f32.mrf.mxu0
        %v832 = vadd.f32 0.0, %v831
        %v833 = vpop.f32.mrf.mxu0
        %v834 = vadd.f32 0.0, %v833
        %835 = vmatmul.bf16.gmra.mxu0 %v689
        %v836 = vpop.f32.mrf.mxu0
        %v837 = vadd.f32 0.0, %v836
        %v838 = vpop.f32.mrf.mxu0
        %v839 = vadd.f32 0.0, %v838
        %840 = vmatmul.bf16.gmra.mxu0 %v692
        %v841 = vpop.f32.mrf.mxu0
        %v842 = vadd.f32 0.0, %v841
        %v843 = vpop.f32.mrf.mxu0
        %v844 = vadd.f32 0.0, %v843
        %845 = vmatmul.bf16.gmra.mxu0 %v695
        %v846 = vpop.f32.mrf.mxu0
        %v847 = vadd.f32 0.0, %v846
        %v848 = vpop.f32.mrf.mxu0
        %v849 = vadd.f32 0.0, %v848
        %850 = vmatmul.bf16.gmra.mxu0 %v698
        %v851 = vpop.f32.mrf.mxu0
        %v852 = vadd.f32 0.0, %v851
        %v853 = vpop.f32.mrf.mxu0
        %v854 = vadd.f32 0.0, %v853
        %855 = vmatmul.bf16.gmra.mxu0 %v701
        %v856 = vpop.f32.mrf.mxu0
        %v857 = vadd.f32 0.0, %v856
        %v858 = vpop.f32.mrf.mxu0
        %v859 = vadd.f32 0.0, %v858
        %860 = vmatmul.bf16.gmra.mxu0 %v704
        %v861 = vpop.f32.mrf.mxu0
        %v862 = vadd.f32 0.0, %v861
        %v863 = vpop.f32.mrf.mxu0
        %v864 = vadd.f32 0.0, %v863
        %865 = vmatmul.bf16.gmra.mxu0 %v707
        %v866 = vpop.f32.mrf.mxu0
        %v867 = vadd.f32 0.0, %v866
        %v868 = vpop.f32.mrf.mxu0
        %v869 = vadd.f32 0.0, %v868
        %870 = vmatmul.bf16.gmra.mxu0 %v710
        %v871 = vpop.f32.mrf.mxu0
        %v872 = vadd.f32 0.0, %v871
        %v873 = vpop.f32.mrf.mxu0
        %v874 = vadd.f32 0.0, %v873
        %875 = vmatmul.bf16.gmra.mxu0 %v713
        %v876 = vpop.f32.mrf.mxu0
        %v877 = vadd.f32 0.0, %v876
        %v878 = vpop.f32.mrf.mxu0
        %v879 = vadd.f32 0.0, %v878
        %880 = vmatmul.bf16.gmra.mxu0 %v716
        %v881 = vpop.f32.mrf.mxu0
        %v882 = vadd.f32 0.0, %v881
        %v883 = vpop.f32.mrf.mxu0
        %v884 = vadd.f32 0.0, %v883
        %885 = vmatmul.bf16.gmra.mxu0 %v719
        %v886 = vpop.f32.mrf.mxu0
        %v887 = vadd.f32 0.0, %v886
        %v888 = vpop.f32.mrf.mxu0
        %v889 = vadd.f32 0.0, %v888
        %890 = vmatmul.bf16.gmra.mxu0 %v722
        %v891 = vpop.f32.mrf.mxu0
        %v892 = vadd.f32 0.0, %v891
        %v893 = vpop.f32.mrf.mxu0
        %v894 = vadd.f32 0.0, %v893
        %895 = vmatmul.bf16.gmra.mxu0 %v725
        %v896 = vpop.f32.mrf.mxu0
        %v897 = vadd.f32 0.0, %v896
        %v898 = vpop.f32.mrf.mxu0
        %v899 = vadd.f32 0.0, %v898
        %900 = vmatmul.bf16.gmra.mxu0 %v728
        %v901 = vpop.f32.mrf.mxu0
        %v902 = vadd.f32 0.0, %v901
        %v903 = vpop.f32.mrf.mxu0
        %v904 = vadd.f32 0.0, %v903
        %905 = vdwg.mxu0
        %v970 = vunpack.c.l.b16 %v306
        %v971 = vunpack.c.h.b16 %v306
        %v972 = vunpack.c.l.b16 %v307
        %v973 = vunpack.c.h.b16 %v307
        %v974 = vunpack.c.l.b16 %v308
        %v975 = vunpack.c.h.b16 %v308
        %v976 = vunpack.c.l.b16 %v309
        %v977 = vunpack.c.h.b16 %v309
        %v978 = vunpack.c.l.b16 %v310
        %v979 = vunpack.c.h.b16 %v310
        %v980 = vunpack.c.l.b16 %v311
        %v981 = vunpack.c.h.b16 %v311
        %v982 = vunpack.c.l.b16 %v312
        %v983 = vunpack.c.h.b16 %v312
        %v984 = vunpack.c.l.b16 %v313
        %v985 = vunpack.c.h.b16 %v313
        %v986 = vunpack.c.l.b16 %v314
        %v987 = vunpack.c.h.b16 %v314
        %v988 = vunpack.c.l.b16 %v315
        %v989 = vunpack.c.h.b16 %v315
        %v990 = vunpack.c.l.b16 %v316
        %v991 = vunpack.c.h.b16 %v316
        %v992 = vunpack.c.l.b16 %v317
        %v993 = vunpack.c.h.b16 %v317
        %v994 = vunpack.c.l.b16 %v318
        %v995 = vunpack.c.h.b16 %v318
        %v996 = vunpack.c.l.b16 %v319
        %v997 = vunpack.c.h.b16 %v319
        %v998 = vunpack.c.l.b16 %v320
        %v999 = vunpack.c.h.b16 %v320
        %v1000 = vunpack.c.l.b16 %v321
        %v1001 = vunpack.c.h.b16 %v321
        %v1002 = vunpack.c.l.b16 %v322
        %v1003 = vunpack.c.h.b16 %v322
        %v1004 = vunpack.c.l.b16 %v323
        %v1005 = vunpack.c.h.b16 %v323
        %v1006 = vunpack.c.l.b16 %v324
        %v1007 = vunpack.c.h.b16 %v324
        %v1008 = vunpack.c.l.b16 %v325
        %v1009 = vunpack.c.h.b16 %v325
        %v1010 = vunpack.c.l.b16 %v326
        %v1011 = vunpack.c.h.b16 %v326
        %v1012 = vunpack.c.l.b16 %v327
        %v1013 = vunpack.c.h.b16 %v327
        %v1014 = vunpack.c.l.b16 %v328
        %v1015 = vunpack.c.h.b16 %v328
        %v1016 = vunpack.c.l.b16 %v329
        %v1017 = vunpack.c.h.b16 %v329
        %v1018 = vunpack.c.l.b16 %v330
        %v1019 = vunpack.c.h.b16 %v330
        %v1020 = vunpack.c.l.b16 %v331
        %v1021 = vunpack.c.h.b16 %v331
        %v1022 = vunpack.c.l.b16 %v332
        %v1023 = vunpack.c.h.b16 %v332
        %v1024 = vunpack.c.l.b16 %v333
        %v1025 = vunpack.c.h.b16 %v333
        %v1026 = vunpack.c.l.b16 %v334
        %v1027 = vunpack.c.h.b16 %v334
        %v1028 = vunpack.c.l.b16 %v335
        %v1029 = vunpack.c.h.b16 %v335
        %v1030 = vunpack.c.l.b16 %v336
        %v1031 = vunpack.c.h.b16 %v336
        %v1032 = vunpack.c.l.b16 %v337
        %v1033 = vunpack.c.h.b16 %v337
        %v1034 = vunpack.c.l.b16 %v338
        %v1035 = vunpack.c.h.b16 %v338
        %v1036 = vunpack.c.l.b16 %v339
        %v1037 = vunpack.c.h.b16 %v339
        %v1038 = vunpack.c.l.b16 %v340
        %v1039 = vunpack.c.h.b16 %v340
        %v1040 = vunpack.c.l.b16 %v341
        %v1041 = vunpack.c.h.b16 %v341
        %v1042 = vunpack.c.l.b16 %v342
        %v1043 = vunpack.c.h.b16 %v342
        %v1044 = vunpack.c.l.b16 %v343
        %v1045 = vunpack.c.h.b16 %v343
        %v1046 = vunpack.c.l.b16 %v344
        %v1047 = vunpack.c.h.b16 %v344
        %v1048 = vunpack.c.l.b16 %v345
        %v1049 = vunpack.c.h.b16 %v345
        %v1050 = vunpack.c.l.b16 %v346
        %v1051 = vunpack.c.h.b16 %v346
        %v1052 = vunpack.c.l.b16 %v347
        %v1053 = vunpack.c.h.b16 %v347
        %v1054 = vunpack.c.l.b16 %v348
        %v1055 = vunpack.c.h.b16 %v348
        %v1056 = vunpack.c.l.b16 %v349
        %v1057 = vunpack.c.h.b16 %v349
        %v1058 = vunpack.c.l.b16 %v350
        %v1059 = vunpack.c.h.b16 %v350
        %v1060 = vunpack.c.l.b16 %v351
        %v1061 = vunpack.c.h.b16 %v351
        %v1062 = vunpack.c.l.b16 %v352
        %v1063 = vunpack.c.h.b16 %v352
        %v1064 = vunpack.c.l.b16 %v353
        %v1065 = vunpack.c.h.b16 %v353
        %v1066 = vunpack.c.l.b16 %v354
        %v1067 = vunpack.c.h.b16 %v354
        %v1068 = vunpack.c.l.b16 %v355
        %v1069 = vunpack.c.h.b16 %v355
        %v1070 = vunpack.c.l.b16 %v356
        %v1071 = vunpack.c.h.b16 %v356
        %v1072 = vunpack.c.l.b16 %v357
        %v1073 = vunpack.c.h.b16 %v357
        %v1074 = vunpack.c.l.b16 %v358
        %v1075 = vunpack.c.h.b16 %v358
        %v1076 = vunpack.c.l.b16 %v359
        %v1077 = vunpack.c.h.b16 %v359
        %v1078 = vunpack.c.l.b16 %v360
        %v1079 = vunpack.c.h.b16 %v360
        %v1080 = vunpack.c.l.b16 %v361
        %v1081 = vunpack.c.h.b16 %v361
        %v1082 = vunpack.c.l.b16 %v362
        %v1083 = vunpack.c.h.b16 %v362
        %v1084 = vunpack.c.l.b16 %v363
        %v1085 = vunpack.c.h.b16 %v363
        %v1086 = vunpack.c.l.b16 %v364
        %v1087 = vunpack.c.h.b16 %v364
        %v1088 = vunpack.c.l.b16 %v365
        %v1089 = vunpack.c.h.b16 %v365
        %v1090 = vunpack.c.l.b16 %v366
        %v1091 = vunpack.c.h.b16 %v366
        %v1092 = vunpack.c.l.b16 %v367
        %v1093 = vunpack.c.h.b16 %v367
        %v1094 = vunpack.c.l.b16 %v368
        %v1095 = vunpack.c.h.b16 %v368
        %v1096 = vunpack.c.l.b16 %v369
        %v1097 = vunpack.c.h.b16 %v369
        %v1098 = vpack.c.b16 %v972, %v970
        %v1099 = vpack.c.b16 %v973, %v971
        %v1100 = vpack.c.b16 %v976, %v974
        %v1101 = vpack.c.b16 %v977, %v975
        %v1102 = vpack.c.b16 %v980, %v978
        %v1103 = vpack.c.b16 %v981, %v979
        %v1104 = vpack.c.b16 %v984, %v982
        %v1105 = vpack.c.b16 %v985, %v983
        %v1106 = vpack.c.b16 %v988, %v986
        %v1107 = vpack.c.b16 %v989, %v987
        %v1108 = vpack.c.b16 %v992, %v990
        %v1109 = vpack.c.b16 %v993, %v991
        %v1110 = vpack.c.b16 %v996, %v994
        %v1111 = vpack.c.b16 %v997, %v995
        %v1112 = vpack.c.b16 %v1000, %v998
        %v1113 = vpack.c.b16 %v1001, %v999
        %v1114 = vpack.c.b16 %v1004, %v1002
        %v1115 = vpack.c.b16 %v1005, %v1003
        %v1116 = vpack.c.b16 %v1008, %v1006
        %v1117 = vpack.c.b16 %v1009, %v1007
        %v1118 = vpack.c.b16 %v1012, %v1010
        %v1119 = vpack.c.b16 %v1013, %v1011
        %v1120 = vpack.c.b16 %v1016, %v1014
        %v1121 = vpack.c.b16 %v1017, %v1015
        %v1122 = vpack.c.b16 %v1020, %v1018
        %v1123 = vpack.c.b16 %v1021, %v1019
        %v1124 = vpack.c.b16 %v1024, %v1022
        %v1125 = vpack.c.b16 %v1025, %v1023
        %v1126 = vpack.c.b16 %v1028, %v1026
        %v1127 = vpack.c.b16 %v1029, %v1027
        %v1128 = vpack.c.b16 %v1032, %v1030
        %v1129 = vpack.c.b16 %v1033, %v1031
        %v1130 = vpack.c.b16 %v1036, %v1034
        %v1131 = vpack.c.b16 %v1037, %v1035
        %v1132 = vpack.c.b16 %v1040, %v1038
        %v1133 = vpack.c.b16 %v1041, %v1039
        %v1134 = vpack.c.b16 %v1044, %v1042
        %v1135 = vpack.c.b16 %v1045, %v1043
        %v1136 = vpack.c.b16 %v1048, %v1046
        %v1137 = vpack.c.b16 %v1049, %v1047
        %v1138 = vpack.c.b16 %v1052, %v1050
        %v1139 = vpack.c.b16 %v1053, %v1051
        %v1140 = vpack.c.b16 %v1056, %v1054
        %v1141 = vpack.c.b16 %v1057, %v1055
        %v1142 = vpack.c.b16 %v1060, %v1058
        %v1143 = vpack.c.b16 %v1061, %v1059
        %v1144 = vpack.c.b16 %v1064, %v1062
        %v1145 = vpack.c.b16 %v1065, %v1063
        %v1146 = vpack.c.b16 %v1068, %v1066
        %v1147 = vpack.c.b16 %v1069, %v1067
        %v1148 = vpack.c.b16 %v1072, %v1070
        %v1149 = vpack.c.b16 %v1073, %v1071
        %v1150 = vpack.c.b16 %v1076, %v1074
        %v1151 = vpack.c.b16 %v1077, %v1075
        %v1152 = vpack.c.b16 %v1080, %v1078
        %v1153 = vpack.c.b16 %v1081, %v1079
        %v1154 = vpack.c.b16 %v1084, %v1082
        %v1155 = vpack.c.b16 %v1085, %v1083
        %v1156 = vpack.c.b16 %v1088, %v1086
        %v1157 = vpack.c.b16 %v1089, %v1087
        %v1158 = vpack.c.b16 %v1092, %v1090
        %v1159 = vpack.c.b16 %v1093, %v1091
        %v1160 = vpack.c.b16 %v1096, %v1094
        %v1161 = vpack.c.b16 %v1097, %v1095
        %v1258 = vunpack.c.l.b16 %v370
        %v1259 = vunpack.c.l.b16 %v371
        %v1260 = vunpack.c.l.b16 %v372
        %v1261 = vunpack.c.l.b16 %v373
        %v1262 = vunpack.c.l.b16 %v374
        %v1263 = vunpack.c.l.b16 %v375
        %v1264 = vunpack.c.l.b16 %v376
        %v1265 = vunpack.c.l.b16 %v377
        %v1266 = vunpack.c.l.b16 %v378
        %v1267 = vunpack.c.l.b16 %v379
        %v1268 = vunpack.c.l.b16 %v380
        %v1269 = vunpack.c.l.b16 %v381
        %v1270 = vunpack.c.l.b16 %v382
        %v1271 = vunpack.c.l.b16 %v383
        %v1272 = vunpack.c.l.b16 %v384
        %v1273 = vunpack.c.l.b16 %v385
        %v1274 = vunpack.c.l.b16 %v386
        %v1275 = vunpack.c.l.b16 %v387
        %v1276 = vunpack.c.l.b16 %v388
        %v1277 = vunpack.c.l.b16 %v389
        %v1278 = vunpack.c.l.b16 %v390
        %v1279 = vunpack.c.l.b16 %v391
        %v1280 = vunpack.c.l.b16 %v392
        %v1281 = vunpack.c.l.b16 %v393
        %v1282 = vunpack.c.l.b16 %v394
        %v1283 = vunpack.c.l.b16 %v395
        %v1284 = vunpack.c.l.b16 %v396
        %v1285 = vunpack.c.l.b16 %v397
        %v1286 = vunpack.c.l.b16 %v398
        %v1287 = vunpack.c.l.b16 %v399
        %v1288 = vunpack.c.l.b16 %v400
        %v1289 = vunpack.c.l.b16 %v401
        %v1290 = vpack.c.b16 %v1259, %v1258
        %v1291 = vpack.c.b16 %v1261, %v1260
        %v1292 = vpack.c.b16 %v1263, %v1262
        %v1293 = vpack.c.b16 %v1265, %v1264
        %v1294 = vpack.c.b16 %v1267, %v1266
        %v1295 = vpack.c.b16 %v1269, %v1268
        %v1296 = vpack.c.b16 %v1271, %v1270
        %v1297 = vpack.c.b16 %v1273, %v1272
        %v1298 = vpack.c.b16 %v1275, %v1274
        %v1299 = vpack.c.b16 %v1277, %v1276
        %v1300 = vpack.c.b16 %v1279, %v1278
        %v1301 = vpack.c.b16 %v1281, %v1280
        %v1302 = vpack.c.b16 %v1283, %v1282
        %v1303 = vpack.c.b16 %v1285, %v1284
        %v1304 = vpack.c.b16 %v1287, %v1286
        %v1305 = vpack.c.b16 %v1289, %v1288
        %1322 = vmatpush.bf16.msra.mxu0 %v1297
        %1323 = vmatpush.bf16.msra.mxu0 %v1296
        %1324 = vmatpush.bf16.msra.mxu0 %v1295
        %1325 = vmatpush.bf16.msra.mxu0 %v1294
        %1326 = vmatpush.bf16.msra.mxu0 %v1293
        %1327 = vmatpush.bf16.msra.mxu0 %v1292
        %1328 = vmatpush.bf16.msra.mxu0 %v1291
        %1329 = vmatpush.bf16.msra.mxu0 %v1290
        %1330 = vmatmul.bf16.gmra.mxu0 %v1098
        %v1331 = vpop.f32.mrf.mxu0
        %v1332 = vadd.f32 %v747, %v1331
        %v1333 = vpop.f32.mrf.mxu0
        %v1334 = vadd.f32 %v749, %v1333
        %1335 = vmatmul.bf16.gmra.mxu0 %v1100
        %v1336 = vpop.f32.mrf.mxu0
        %v1337 = vadd.f32 %v752, %v1336
        %v1338 = vpop.f32.mrf.mxu0
        %v1339 = vadd.f32 %v754, %v1338
        %1340 = vmatmul.bf16.gmra.mxu0 %v1102
        %v1341 = vpop.f32.mrf.mxu0
        %v1342 = vadd.f32 %v757, %v1341
        %v1343 = vpop.f32.mrf.mxu0
        %v1344 = vadd.f32 %v759, %v1343
        %1345 = vmatmul.bf16.gmra.mxu0 %v1104
        %v1346 = vpop.f32.mrf.mxu0
        %v1347 = vadd.f32 %v762, %v1346
        %v1348 = vpop.f32.mrf.mxu0
        %v1349 = vadd.f32 %v764, %v1348
        %1350 = vmatmul.bf16.gmra.mxu0 %v1106
        %v1351 = vpop.f32.mrf.mxu0
        %v1352 = vadd.f32 %v767, %v1351
        %v1353 = vpop.f32.mrf.mxu0
        %v1354 = vadd.f32 %v769, %v1353
        %1355 = vmatmul.bf16.gmra.mxu0 %v1108
        %v1356 = vpop.f32.mrf.mxu0
        %v1357 = vadd.f32 %v772, %v1356
        %v1358 = vpop.f32.mrf.mxu0
        %v1359 = vadd.f32 %v774, %v1358
        %1360 = vmatmul.bf16.gmra.mxu0 %v1110
        %v1361 = vpop.f32.mrf.mxu0
        %v1362 = vadd.f32 %v777, %v1361
        %v1363 = vpop.f32.mrf.mxu0
        %v1364 = vadd.f32 %v779, %v1363
        %1365 = vmatmul.bf16.gmra.mxu0 %v1112
        %v1366 = vpop.f32.mrf.mxu0
        %v1367 = vadd.f32 %v782, %v1366
        %v1368 = vpop.f32.mrf.mxu0
        %v1369 = vadd.f32 %v784, %v1368
        %1370 = vmatmul.bf16.gmra.mxu0 %v1114
        %v1371 = vpop.f32.mrf.mxu0
        %v1372 = vadd.f32 %v787, %v1371
        %v1373 = vpop.f32.mrf.mxu0
        %v1374 = vadd.f32 %v789, %v1373
        %1375 = vmatmul.bf16.gmra.mxu0 %v1116
        %v1376 = vpop.f32.mrf.mxu0
        %v1377 = vadd.f32 %v792, %v1376
        %v1378 = vpop.f32.mrf.mxu0
        %v1379 = vadd.f32 %v794, %v1378
        %1380 = vmatmul.bf16.gmra.mxu0 %v1118
        %v1381 = vpop.f32.mrf.mxu0
        %v1382 = vadd.f32 %v797, %v1381
        %v1383 = vpop.f32.mrf.mxu0
        %v1384 = vadd.f32 %v799, %v1383
        %1385 = vmatmul.bf16.gmra.mxu0 %v1120
        %v1386 = vpop.f32.mrf.mxu0
        %v1387 = vadd.f32 %v802, %v1386
        %v1388 = vpop.f32.mrf.mxu0
        %v1389 = vadd.f32 %v804, %v1388
        %1390 = vmatmul.bf16.gmra.mxu0 %v1122
        %v1391 = vpop.f32.mrf.mxu0
        %v1392 = vadd.f32 %v807, %v1391
        %v1393 = vpop.f32.mrf.mxu0
        %v1394 = vadd.f32 %v809, %v1393
        %1395 = vmatmul.bf16.gmra.mxu0 %v1124
        %v1396 = vpop.f32.mrf.mxu0
        %v1397 = vadd.f32 %v812, %v1396
        %v1398 = vpop.f32.mrf.mxu0
        %v1399 = vadd.f32 %v814, %v1398
        %1400 = vmatmul.bf16.gmra.mxu0 %v1126
        %v1401 = vpop.f32.mrf.mxu0
        %v1402 = vadd.f32 %v817, %v1401
        %v1403 = vpop.f32.mrf.mxu0
        %v1404 = vadd.f32 %v819, %v1403
        %1405 = vmatmul.bf16.gmra.mxu0 %v1128
        %v1406 = vpop.f32.mrf.mxu0
        %v1407 = vadd.f32 %v822, %v1406
        %v1408 = vpop.f32.mrf.mxu0
        %v1409 = vadd.f32 %v824, %v1408
        %1410 = vmatmul.bf16.gmra.mxu0 %v1130
        %v1411 = vpop.f32.mrf.mxu0
        %v1412 = vadd.f32 %v827, %v1411
        %v1413 = vpop.f32.mrf.mxu0
        %v1414 = vadd.f32 %v829, %v1413
        %1415 = vmatmul.bf16.gmra.mxu0 %v1132
        %v1416 = vpop.f32.mrf.mxu0
        %v1417 = vadd.f32 %v832, %v1416
        %v1418 = vpop.f32.mrf.mxu0
        %v1419 = vadd.f32 %v834, %v1418
        %1420 = vmatmul.bf16.gmra.mxu0 %v1134
        %v1421 = vpop.f32.mrf.mxu0
        %v1422 = vadd.f32 %v837, %v1421
        %v1423 = vpop.f32.mrf.mxu0
        %v1424 = vadd.f32 %v839, %v1423
        %1425 = vmatmul.bf16.gmra.mxu0 %v1136
        %v1426 = vpop.f32.mrf.mxu0
        %v1427 = vadd.f32 %v842, %v1426
        %v1428 = vpop.f32.mrf.mxu0
        %v1429 = vadd.f32 %v844, %v1428
        %1430 = vmatmul.bf16.gmra.mxu0 %v1138
        %v1431 = vpop.f32.mrf.mxu0
        %v1432 = vadd.f32 %v847, %v1431
        %v1433 = vpop.f32.mrf.mxu0
        %v1434 = vadd.f32 %v849, %v1433
        %1435 = vmatmul.bf16.gmra.mxu0 %v1140
        %v1436 = vpop.f32.mrf.mxu0
        %v1437 = vadd.f32 %v852, %v1436
        %v1438 = vpop.f32.mrf.mxu0
        %v1439 = vadd.f32 %v854, %v1438
        %1440 = vmatmul.bf16.gmra.mxu0 %v1142
        %v1441 = vpop.f32.mrf.mxu0
        %v1442 = vadd.f32 %v857, %v1441
        %v1443 = vpop.f32.mrf.mxu0
        %v1444 = vadd.f32 %v859, %v1443
        %1445 = vmatmul.bf16.gmra.mxu0 %v1144
        %v1446 = vpop.f32.mrf.mxu0
        %v1447 = vadd.f32 %v862, %v1446
        %v1448 = vpop.f32.mrf.mxu0
        %v1449 = vadd.f32 %v864, %v1448
        %1450 = vmatmul.bf16.gmra.mxu0 %v1146
        %v1451 = vpop.f32.mrf.mxu0
        %v1452 = vadd.f32 %v867, %v1451
        %v1453 = vpop.f32.mrf.mxu0
        %v1454 = vadd.f32 %v869, %v1453
        %1455 = vmatmul.bf16.gmra.mxu0 %v1148
        %v1456 = vpop.f32.mrf.mxu0
        %v1457 = vadd.f32 %v872, %v1456
        %v1458 = vpop.f32.mrf.mxu0
        %v1459 = vadd.f32 %v874, %v1458
        %1460 = vmatmul.bf16.gmra.mxu0 %v1150
        %v1461 = vpop.f32.mrf.mxu0
        %v1462 = vadd.f32 %v877, %v1461
        %v1463 = vpop.f32.mrf.mxu0
        %v1464 = vadd.f32 %v879, %v1463
        %1465 = vmatmul.bf16.gmra.mxu0 %v1152
        %v1466 = vpop.f32.mrf.mxu0
        %v1467 = vadd.f32 %v882, %v1466
        %v1468 = vpop.f32.mrf.mxu0
        %v1469 = vadd.f32 %v884, %v1468
        %1470 = vmatmul.bf16.gmra.mxu0 %v1154
        %v1471 = vpop.f32.mrf.mxu0
        %v1472 = vadd.f32 %v887, %v1471
        %v1473 = vpop.f32.mrf.mxu0
        %v1474 = vadd.f32 %v889, %v1473
        %1475 = vmatmul.bf16.gmra.mxu0 %v1156
        %v1476 = vpop.f32.mrf.mxu0
        %v1477 = vadd.f32 %v892, %v1476
        %v1478 = vpop.f32.mrf.mxu0
        %v1479 = vadd.f32 %v894, %v1478
        %1480 = vmatmul.bf16.gmra.mxu0 %v1158
        %v1481 = vpop.f32.mrf.mxu0
        %v1482 = vadd.f32 %v897, %v1481
        %v1483 = vpop.f32.mrf.mxu0
        %v1484 = vadd.f32 %v899, %v1483
        %1485 = vmatmul.bf16.gmra.mxu0 %v1160
        %v1486 = vpop.f32.mrf.mxu0
        %v1487 = vadd.f32 %v902, %v1486
        %v1488 = vpop.f32.mrf.mxu0
        %v1489 = vadd.f32 %v904, %v1488
        %1490 = vdwg.mxu0
        %1491 = vmatpush.bf16.msra.mxu0 %v1305
        %1492 = vmatpush.bf16.msra.mxu0 %v1304
        %1493 = vmatpush.bf16.msra.mxu0 %v1303
        %1494 = vmatpush.bf16.msra.mxu0 %v1302
        %1495 = vmatpush.bf16.msra.mxu0 %v1301
        %1496 = vmatpush.bf16.msra.mxu0 %v1300
        %1497 = vmatpush.bf16.msra.mxu0 %v1299
        %1498 = vmatpush.bf16.msra.mxu0 %v1298
        %1499 = vmatmul.bf16.gmra.mxu0 %v1099
        %v1500 = vpop.f32.mrf.mxu0
        %v1501 = vadd.f32 %v1332, %v1500
        %v1502 = vpop.f32.mrf.mxu0
        %v1503 = vadd.f32 %v1334, %v1502
        %1504 = vmatmul.bf16.gmra.mxu0 %v1101
        %v1505 = vpop.f32.mrf.mxu0
        %v1506 = vadd.f32 %v1337, %v1505
        %v1507 = vpop.f32.mrf.mxu0
        %v1508 = vadd.f32 %v1339, %v1507
        %1509 = vmatmul.bf16.gmra.mxu0 %v1103
        %v1510 = vpop.f32.mrf.mxu0
        %v1511 = vadd.f32 %v1342, %v1510
        %v1512 = vpop.f32.mrf.mxu0
        %v1513 = vadd.f32 %v1344, %v1512
        %1514 = vmatmul.bf16.gmra.mxu0 %v1105
        %v1515 = vpop.f32.mrf.mxu0
        %v1516 = vadd.f32 %v1347, %v1515
        %v1517 = vpop.f32.mrf.mxu0
        %v1518 = vadd.f32 %v1349, %v1517
        %1519 = vmatmul.bf16.gmra.mxu0 %v1107
        %v1520 = vpop.f32.mrf.mxu0
        %v1521 = vadd.f32 %v1352, %v1520
        %v1522 = vpop.f32.mrf.mxu0
        %v1523 = vadd.f32 %v1354, %v1522
        %1524 = vmatmul.bf16.gmra.mxu0 %v1109
        %v1525 = vpop.f32.mrf.mxu0
        %v1526 = vadd.f32 %v1357, %v1525
        %v1527 = vpop.f32.mrf.mxu0
        %v1528 = vadd.f32 %v1359, %v1527
        %1529 = vmatmul.bf16.gmra.mxu0 %v1111
        %v1530 = vpop.f32.mrf.mxu0
        %v1531 = vadd.f32 %v1362, %v1530
        %v1532 = vpop.f32.mrf.mxu0
        %v1533 = vadd.f32 %v1364, %v1532
        %1534 = vmatmul.bf16.gmra.mxu0 %v1113
        %v1535 = vpop.f32.mrf.mxu0
        %v1536 = vadd.f32 %v1367, %v1535
        %v1537 = vpop.f32.mrf.mxu0
        %v1538 = vadd.f32 %v1369, %v1537
        %1539 = vmatmul.bf16.gmra.mxu0 %v1115
        %v1540 = vpop.f32.mrf.mxu0
        %v1541 = vadd.f32 %v1372, %v1540
        %v1542 = vpop.f32.mrf.mxu0
        %v1543 = vadd.f32 %v1374, %v1542
        %1544 = vmatmul.bf16.gmra.mxu0 %v1117
        %v1545 = vpop.f32.mrf.mxu0
        %v1546 = vadd.f32 %v1377, %v1545
        %v1547 = vpop.f32.mrf.mxu0
        %v1548 = vadd.f32 %v1379, %v1547
        %1549 = vmatmul.bf16.gmra.mxu0 %v1119
        %v1550 = vpop.f32.mrf.mxu0
        %v1551 = vadd.f32 %v1382, %v1550
        %v1552 = vpop.f32.mrf.mxu0
        %v1553 = vadd.f32 %v1384, %v1552
        %1554 = vmatmul.bf16.gmra.mxu0 %v1121
        %v1555 = vpop.f32.mrf.mxu0
        %v1556 = vadd.f32 %v1387, %v1555
        %v1557 = vpop.f32.mrf.mxu0
        %v1558 = vadd.f32 %v1389, %v1557
        %1559 = vmatmul.bf16.gmra.mxu0 %v1123
        %v1560 = vpop.f32.mrf.mxu0
        %v1561 = vadd.f32 %v1392, %v1560
        %v1562 = vpop.f32.mrf.mxu0
        %v1563 = vadd.f32 %v1394, %v1562
        %1564 = vmatmul.bf16.gmra.mxu0 %v1125
        %v1565 = vpop.f32.mrf.mxu0
        %v1566 = vadd.f32 %v1397, %v1565
        %v1567 = vpop.f32.mrf.mxu0
        %v1568 = vadd.f32 %v1399, %v1567
        %1569 = vmatmul.bf16.gmra.mxu0 %v1127
        %v1570 = vpop.f32.mrf.mxu0
        %v1571 = vadd.f32 %v1402, %v1570
        %v1572 = vpop.f32.mrf.mxu0
        %v1573 = vadd.f32 %v1404, %v1572
        %1574 = vmatmul.bf16.gmra.mxu0 %v1129
        %v1575 = vpop.f32.mrf.mxu0
        %v1576 = vadd.f32 %v1407, %v1575
        %v1577 = vpop.f32.mrf.mxu0
        %v1578 = vadd.f32 %v1409, %v1577
        %1579 = vmatmul.bf16.gmra.mxu0 %v1131
        %v1580 = vpop.f32.mrf.mxu0
        %v1581 = vadd.f32 %v1412, %v1580
        %v1582 = vpop.f32.mrf.mxu0
        %v1583 = vadd.f32 %v1414, %v1582
        %1584 = vmatmul.bf16.gmra.mxu0 %v1133
        %v1585 = vpop.f32.mrf.mxu0
        %v1586 = vadd.f32 %v1417, %v1585
        %v1587 = vpop.f32.mrf.mxu0
        %v1588 = vadd.f32 %v1419, %v1587
        %1589 = vmatmul.bf16.gmra.mxu0 %v1135
        %v1590 = vpop.f32.mrf.mxu0
        %v1591 = vadd.f32 %v1422, %v1590
        %v1592 = vpop.f32.mrf.mxu0
        %v1593 = vadd.f32 %v1424, %v1592
        %1594 = vmatmul.bf16.gmra.mxu0 %v1137
        %v1595 = vpop.f32.mrf.mxu0
        %v1596 = vadd.f32 %v1427, %v1595
        %v1597 = vpop.f32.mrf.mxu0
        %v1598 = vadd.f32 %v1429, %v1597
        %1599 = vmatmul.bf16.gmra.mxu0 %v1139
        %v1600 = vpop.f32.mrf.mxu0
        %v1601 = vadd.f32 %v1432, %v1600
        %v1602 = vpop.f32.mrf.mxu0
        %v1603 = vadd.f32 %v1434, %v1602
        %1604 = vmatmul.bf16.gmra.mxu0 %v1141
        %v1605 = vpop.f32.mrf.mxu0
        %v1606 = vadd.f32 %v1437, %v1605
        %v1607 = vpop.f32.mrf.mxu0
        %v1608 = vadd.f32 %v1439, %v1607
        %1609 = vmatmul.bf16.gmra.mxu0 %v1143
        %v1610 = vpop.f32.mrf.mxu0
        %v1611 = vadd.f32 %v1442, %v1610
        %v1612 = vpop.f32.mrf.mxu0
        %v1613 = vadd.f32 %v1444, %v1612
        %1614 = vmatmul.bf16.gmra.mxu0 %v1145
        %v1615 = vpop.f32.mrf.mxu0
        %v1616 = vadd.f32 %v1447, %v1615
        %v1617 = vpop.f32.mrf.mxu0
        %v1618 = vadd.f32 %v1449, %v1617
        %1619 = vmatmul.bf16.gmra.mxu0 %v1147
        %v1620 = vpop.f32.mrf.mxu0
        %v1621 = vadd.f32 %v1452, %v1620
        %v1622 = vpop.f32.mrf.mxu0
        %v1623 = vadd.f32 %v1454, %v1622
        %1624 = vmatmul.bf16.gmra.mxu0 %v1149
        %v1625 = vpop.f32.mrf.mxu0
        %v1626 = vadd.f32 %v1457, %v1625
        %v1627 = vpop.f32.mrf.mxu0
        %v1628 = vadd.f32 %v1459, %v1627
        %1629 = vmatmul.bf16.gmra.mxu0 %v1151
        %v1630 = vpop.f32.mrf.mxu0
        %v1631 = vadd.f32 %v1462, %v1630
        %v1632 = vpop.f32.mrf.mxu0
        %v1633 = vadd.f32 %v1464, %v1632
        %1634 = vmatmul.bf16.gmra.mxu0 %v1153
        %v1635 = vpop.f32.mrf.mxu0
        %v1636 = vadd.f32 %v1467, %v1635
        %v1637 = vpop.f32.mrf.mxu0
        %v1638 = vadd.f32 %v1469, %v1637
        %1639 = vmatmul.bf16.gmra.mxu0 %v1155
        %v1640 = vpop.f32.mrf.mxu0
        %v1641 = vadd.f32 %v1472, %v1640
        %v1642 = vpop.f32.mrf.mxu0
        %v1643 = vadd.f32 %v1474, %v1642
        %1644 = vmatmul.bf16.gmra.mxu0 %v1157
        %v1645 = vpop.f32.mrf.mxu0
        %v1646 = vadd.f32 %v1477, %v1645
        %v1647 = vpop.f32.mrf.mxu0
        %v1648 = vadd.f32 %v1479, %v1647
        %1649 = vmatmul.bf16.gmra.mxu0 %v1159
        %v1650 = vpop.f32.mrf.mxu0
        %v1651 = vadd.f32 %v1482, %v1650
        %v1652 = vpop.f32.mrf.mxu0
        %v1653 = vadd.f32 %v1484, %v1652
        %1654 = vmatmul.bf16.gmra.mxu0 %v1161
        %v1655 = vpop.f32.mrf.mxu0
        %v1656 = vadd.f32 %v1487, %v1655
        %v1657 = vpop.f32.mrf.mxu0
        %v1658 = vadd.f32 %v1489, %v1657
        %1659 = vdwg.mxu0
        %v1660 = vld [vmem:[%s4] sm:$0x1]
        %v1662 = vperm.slane %v1660, 0
        %v1664 = vadd.f32 %v1501, %v1662
        %v1665 = vadd.f32 %v1503, %v1662
        %v1666 = vadd.f32 %v1506, %v1662
        %v1667 = vadd.f32 %v1508, %v1662
        %v1668 = vadd.f32 %v1511, %v1662
        %v1669 = vadd.f32 %v1513, %v1662
        %v1670 = vadd.f32 %v1516, %v1662
        %v1671 = vadd.f32 %v1518, %v1662
        %v1672 = vadd.f32 %v1521, %v1662
        %v1673 = vadd.f32 %v1523, %v1662
        %v1674 = vadd.f32 %v1526, %v1662
        %v1675 = vadd.f32 %v1528, %v1662
        %v1676 = vadd.f32 %v1531, %v1662
        %v1677 = vadd.f32 %v1533, %v1662
        %v1678 = vadd.f32 %v1536, %v1662
        %v1679 = vadd.f32 %v1538, %v1662
        %v1680 = vadd.f32 %v1541, %v1662
        %v1681 = vadd.f32 %v1543, %v1662
        %v1682 = vadd.f32 %v1546, %v1662
        %v1683 = vadd.f32 %v1548, %v1662
        %v1684 = vadd.f32 %v1551, %v1662
        %v1685 = vadd.f32 %v1553, %v1662
        %v1686 = vadd.f32 %v1556, %v1662
        %v1687 = vadd.f32 %v1558, %v1662
        %v1688 = vadd.f32 %v1561, %v1662
        %v1689 = vadd.f32 %v1563, %v1662
        %v1690 = vadd.f32 %v1566, %v1662
        %v1691 = vadd.f32 %v1568, %v1662
        %v1692 = vadd.f32 %v1571, %v1662
        %v1693 = vadd.f32 %v1573, %v1662
        %v1694 = vadd.f32 %v1576, %v1662
        %v1695 = vadd.f32 %v1578, %v1662
        %v1696 = vadd.f32 %v1581, %v1662
        %v1697 = vadd.f32 %v1583, %v1662
        %v1698 = vadd.f32 %v1586, %v1662
        %v1699 = vadd.f32 %v1588, %v1662
        %v1700 = vadd.f32 %v1591, %v1662
        %v1701 = vadd.f32 %v1593, %v1662
        %v1702 = vadd.f32 %v1596, %v1662
        %v1703 = vadd.f32 %v1598, %v1662
        %v1704 = vadd.f32 %v1601, %v1662
        %v1705 = vadd.f32 %v1603, %v1662
        %v1706 = vadd.f32 %v1606, %v1662
        %v1707 = vadd.f32 %v1608, %v1662
        %v1708 = vadd.f32 %v1611, %v1662
        %v1709 = vadd.f32 %v1613, %v1662
        %v1710 = vadd.f32 %v1616, %v1662
        %v1711 = vadd.f32 %v1618, %v1662
        %v1712 = vadd.f32 %v1621, %v1662
        %v1713 = vadd.f32 %v1623, %v1662
        %v1714 = vadd.f32 %v1626, %v1662
        %v1715 = vadd.f32 %v1628, %v1662
        %v1716 = vadd.f32 %v1631, %v1662
        %v1717 = vadd.f32 %v1633, %v1662
        %v1718 = vadd.f32 %v1636, %v1662
        %v1719 = vadd.f32 %v1638, %v1662
        %v1720 = vadd.f32 %v1641, %v1662
        %v1721 = vadd.f32 %v1643, %v1662
        %v1722 = vadd.f32 %v1646, %v1662
        %v1723 = vadd.f32 %v1648, %v1662
        %v1724 = vadd.f32 %v1651, %v1662
        %v1725 = vadd.f32 %v1653, %v1662
        %v1726 = vadd.f32 %v1656, %v1662
        %v1727 = vadd.f32 %v1658, %v1662
        %v1728 = vmax.f32 %v1664, 0.0
        %v1729 = vmax.f32 %v1665, 0.0
        %v1730 = vmax.f32 %v1666, 0.0
        %v1731 = vmax.f32 %v1667, 0.0
        %v1732 = vmax.f32 %v1668, 0.0
        %v1733 = vmax.f32 %v1669, 0.0
        %v1734 = vmax.f32 %v1670, 0.0
        %v1735 = vmax.f32 %v1671, 0.0
        %v1736 = vmax.f32 %v1672, 0.0
        %v1737 = vmax.f32 %v1673, 0.0
        %v1738 = vmax.f32 %v1674, 0.0
        %v1739 = vmax.f32 %v1675, 0.0
        %v1740 = vmax.f32 %v1676, 0.0
        %v1741 = vmax.f32 %v1677, 0.0
        %v1742 = vmax.f32 %v1678, 0.0
        %v1743 = vmax.f32 %v1679, 0.0
        %v1744 = vmax.f32 %v1680, 0.0
        %v1745 = vmax.f32 %v1681, 0.0
        %v1746 = vmax.f32 %v1682, 0.0
        %v1747 = vmax.f32 %v1683, 0.0
        %v1748 = vmax.f32 %v1684, 0.0
        %v1749 = vmax.f32 %v1685, 0.0
        %v1750 = vmax.f32 %v1686, 0.0
        %v1751 = vmax.f32 %v1687, 0.0
        %v1752 = vmax.f32 %v1688, 0.0
        %v1753 = vmax.f32 %v1689, 0.0
        %v1754 = vmax.f32 %v1690, 0.0
        %v1755 = vmax.f32 %v1691, 0.0
        %v1756 = vmax.f32 %v1692, 0.0
        %v1757 = vmax.f32 %v1693, 0.0
        %v1758 = vmax.f32 %v1694, 0.0
        %v1759 = vmax.f32 %v1695, 0.0
        %v1760 = vmax.f32 %v1696, 0.0
        %v1761 = vmax.f32 %v1697, 0.0
        %v1762 = vmax.f32 %v1698, 0.0
        %v1763 = vmax.f32 %v1699, 0.0
        %v1764 = vmax.f32 %v1700, 0.0
        %v1765 = vmax.f32 %v1701, 0.0
        %v1766 = vmax.f32 %v1702, 0.0
        %v1767 = vmax.f32 %v1703, 0.0
        %v1768 = vmax.f32 %v1704, 0.0
        %v1769 = vmax.f32 %v1705, 0.0
        %v1770 = vmax.f32 %v1706, 0.0
        %v1771 = vmax.f32 %v1707, 0.0
        %v1772 = vmax.f32 %v1708, 0.0
        %v1773 = vmax.f32 %v1709, 0.0
        %v1774 = vmax.f32 %v1710, 0.0
        %v1775 = vmax.f32 %v1711, 0.0
        %v1776 = vmax.f32 %v1712, 0.0
        %v1777 = vmax.f32 %v1713, 0.0
        %v1778 = vmax.f32 %v1714, 0.0
        %v1779 = vmax.f32 %v1715, 0.0
        %v1780 = vmax.f32 %v1716, 0.0
        %v1781 = vmax.f32 %v1717, 0.0
        %v1782 = vmax.f32 %v1718, 0.0
        %v1783 = vmax.f32 %v1719, 0.0
        %v1784 = vmax.f32 %v1720, 0.0
        %v1785 = vmax.f32 %v1721, 0.0
        %v1786 = vmax.f32 %v1722, 0.0
        %v1787 = vmax.f32 %v1723, 0.0
        %v1788 = vmax.f32 %v1724, 0.0
        %v1789 = vmax.f32 %v1725, 0.0
        %v1790 = vmax.f32 %v1726, 0.0
        %v1791 = vmax.f32 %v1727, 0.0
        %v1792 = vpack.c.bf16 %v1729, %v1728
        %v1793 = vpack.c.bf16 %v1731, %v1730
        %v1794 = vpack.c.bf16 %v1733, %v1732
        %v1795 = vpack.c.bf16 %v1735, %v1734
        %v1796 = vpack.c.bf16 %v1737, %v1736
        %v1797 = vpack.c.bf16 %v1739, %v1738
        %v1798 = vpack.c.bf16 %v1741, %v1740
        %v1799 = vpack.c.bf16 %v1743, %v1742
        %v1800 = vpack.c.bf16 %v1745, %v1744
        %v1801 = vpack.c.bf16 %v1747, %v1746
        %v1802 = vpack.c.bf16 %v1749, %v1748
        %v1803 = vpack.c.bf16 %v1751, %v1750
        %v1804 = vpack.c.bf16 %v1753, %v1752
        %v1805 = vpack.c.bf16 %v1755, %v1754
        %v1806 = vpack.c.bf16 %v1757, %v1756
        %v1807 = vpack.c.bf16 %v1759, %v1758
        %v1808 = vpack.c.bf16 %v1761, %v1760
        %v1809 = vpack.c.bf16 %v1763, %v1762
        %v1810 = vpack.c.bf16 %v1765, %v1764
        %v1811 = vpack.c.bf16 %v1767, %v1766
        %v1812 = vpack.c.bf16 %v1769, %v1768
        %v1813 = vpack.c.bf16 %v1771, %v1770
        %v1814 = vpack.c.bf16 %v1773, %v1772
        %v1815 = vpack.c.bf16 %v1775, %v1774
        %v1816 = vpack.c.bf16 %v1777, %v1776
        %v1817 = vpack.c.bf16 %v1779, %v1778
        %v1818 = vpack.c.bf16 %v1781, %v1780
        %v1819 = vpack.c.bf16 %v1783, %v1782
        %v1820 = vpack.c.bf16 %v1785, %v1784
        %v1821 = vpack.c.bf16 %v1787, %v1786
        %v1822 = vpack.c.bf16 %v1789, %v1788
        %v1823 = vpack.c.bf16 %v1791, %v1790
        %v1824 = vld [vmem:[%s5] sm:$0xf]
        %v1825 = vld [vmem:[%s5 + $0x4] sm:$0xf]
        %v1826 = vld [vmem:[%s5 + $0x8] sm:$0xf]
        %v1827 = vld [vmem:[%s5 + $0xc] sm:$0xf]
        %v1828 = vld [vmem:[%s5 + $0x10] sm:$0xf]
        %v1829 = vld [vmem:[%s5 + $0x14] sm:$0xf]
        %v1830 = vld [vmem:[%s5 + $0x18] sm:$0xf]
        %v1831 = vld [vmem:[%s5 + $0x1c] sm:$0xf]
        %v1832 = vld [vmem:[%s5 + $0x20] sm:$0xf]
        %v1833 = vld [vmem:[%s5 + $0x24] sm:$0xf]
        %v1834 = vld [vmem:[%s5 + $0x28] sm:$0xf]
        %v1835 = vld [vmem:[%s5 + $0x2c] sm:$0xf]
        %v1836 = vld [vmem:[%s5 + $0x30] sm:$0xf]
        %v1837 = vld [vmem:[%s5 + $0x34] sm:$0xf]
        %v1838 = vld [vmem:[%s5 + $0x38] sm:$0xf]
        %v1839 = vld [vmem:[%s5 + $0x3c] sm:$0xf]
        %v1840 = vld [vmem:[%s6] sm:$0x1]
        %v1842 = vperm.slane %v1840, 0
        %v1860 = vunpack.c.l.b16 %v1824
        %v1861 = vunpack.c.l.b16 %v1825
        %v1862 = vunpack.c.l.b16 %v1826
        %v1863 = vunpack.c.l.b16 %v1827
        %v1864 = vunpack.c.l.b16 %v1828
        %v1865 = vunpack.c.l.b16 %v1829
        %v1866 = vunpack.c.l.b16 %v1830
        %v1867 = vunpack.c.l.b16 %v1831
        %v1868 = vunpack.c.l.b16 %v1832
        %v1869 = vunpack.c.l.b16 %v1833
        %v1870 = vunpack.c.l.b16 %v1834
        %v1871 = vunpack.c.l.b16 %v1835
        %v1872 = vunpack.c.l.b16 %v1836
        %v1873 = vunpack.c.l.b16 %v1837
        %v1874 = vunpack.c.l.b16 %v1838
        %v1875 = vunpack.c.l.b16 %v1839
        %v1876 = vpack.c.b16 %v1861, %v1860
        %v1877 = vpack.c.b16 %v1863, %v1862
        %v1878 = vpack.c.b16 %v1865, %v1864
        %v1879 = vpack.c.b16 %v1867, %v1866
        %v1880 = vpack.c.b16 %v1869, %v1868
        %v1881 = vpack.c.b16 %v1871, %v1870
        %v1882 = vpack.c.b16 %v1873, %v1872
        %v1883 = vpack.c.b16 %v1875, %v1874
        %1892 = vmatpush.bf16.msra.mxu0 %v1883
        %1893 = vmatpush.bf16.msra.mxu0 %v1882
        %1894 = vmatpush.bf16.msra.mxu0 %v1881
        %1895 = vmatpush.bf16.msra.mxu0 %v1880
        %1896 = vmatpush.bf16.msra.mxu0 %v1879
        %1897 = vmatpush.bf16.msra.mxu0 %v1878
        %1898 = vmatpush.bf16.msra.mxu0 %v1877
        %1899 = vmatpush.bf16.msra.mxu0 %v1876
        %1900 = vmatmul.bf16.gmra.mxu0 %v1792
        %v1901 = vpop.f32.mrf.mxu0
        %v1902 = vadd.f32 %v1842, %v1901
        %v1903 = vpop.f32.mrf.mxu0
        %v1904 = vadd.f32 %v1842, %v1903
        %1905 = vmatmul.bf16.gmra.mxu0 %v1793
        %v1906 = vpop.f32.mrf.mxu0
        %v1907 = vadd.f32 %v1842, %v1906
        %v1908 = vpop.f32.mrf.mxu0
        %v1909 = vadd.f32 %v1842, %v1908
        %1910 = vmatmul.bf16.gmra.mxu0 %v1794
        %v1911 = vpop.f32.mrf.mxu0
        %v1912 = vadd.f32 %v1842, %v1911
        %v1913 = vpop.f32.mrf.mxu0
        %v1914 = vadd.f32 %v1842, %v1913
        %1915 = vmatmul.bf16.gmra.mxu0 %v1795
        %v1916 = vpop.f32.mrf.mxu0
        %v1917 = vadd.f32 %v1842, %v1916
        %v1918 = vpop.f32.mrf.mxu0
        %v1919 = vadd.f32 %v1842, %v1918
        %1920 = vmatmul.bf16.gmra.mxu0 %v1796
        %v1921 = vpop.f32.mrf.mxu0
        %v1922 = vadd.f32 %v1842, %v1921
        %v1923 = vpop.f32.mrf.mxu0
        %v1924 = vadd.f32 %v1842, %v1923
        %1925 = vmatmul.bf16.gmra.mxu0 %v1797
        %v1926 = vpop.f32.mrf.mxu0
        %v1927 = vadd.f32 %v1842, %v1926
        %v1928 = vpop.f32.mrf.mxu0
        %v1929 = vadd.f32 %v1842, %v1928
        %1930 = vmatmul.bf16.gmra.mxu0 %v1798
        %v1931 = vpop.f32.mrf.mxu0
        %v1932 = vadd.f32 %v1842, %v1931
        %v1933 = vpop.f32.mrf.mxu0
        %v1934 = vadd.f32 %v1842, %v1933
        %1935 = vmatmul.bf16.gmra.mxu0 %v1799
        %v1936 = vpop.f32.mrf.mxu0
        %v1937 = vadd.f32 %v1842, %v1936
        %v1938 = vpop.f32.mrf.mxu0
        %v1939 = vadd.f32 %v1842, %v1938
        %1940 = vmatmul.bf16.gmra.mxu0 %v1800
        %v1941 = vpop.f32.mrf.mxu0
        %v1942 = vadd.f32 %v1842, %v1941
        %v1943 = vpop.f32.mrf.mxu0
        %v1944 = vadd.f32 %v1842, %v1943
        %1945 = vmatmul.bf16.gmra.mxu0 %v1801
        %v1946 = vpop.f32.mrf.mxu0
        %v1947 = vadd.f32 %v1842, %v1946
        %v1948 = vpop.f32.mrf.mxu0
        %v1949 = vadd.f32 %v1842, %v1948
        %1950 = vmatmul.bf16.gmra.mxu0 %v1802
        %v1951 = vpop.f32.mrf.mxu0
        %v1952 = vadd.f32 %v1842, %v1951
        %v1953 = vpop.f32.mrf.mxu0
        %v1954 = vadd.f32 %v1842, %v1953
        %1955 = vmatmul.bf16.gmra.mxu0 %v1803
        %v1956 = vpop.f32.mrf.mxu0
        %v1957 = vadd.f32 %v1842, %v1956
        %v1958 = vpop.f32.mrf.mxu0
        %v1959 = vadd.f32 %v1842, %v1958
        %1960 = vmatmul.bf16.gmra.mxu0 %v1804
        %v1961 = vpop.f32.mrf.mxu0
        %v1962 = vadd.f32 %v1842, %v1961
        %v1963 = vpop.f32.mrf.mxu0
        %v1964 = vadd.f32 %v1842, %v1963
        %1965 = vmatmul.bf16.gmra.mxu0 %v1805
        %v1966 = vpop.f32.mrf.mxu0
        %v1967 = vadd.f32 %v1842, %v1966
        %v1968 = vpop.f32.mrf.mxu0
        %v1969 = vadd.f32 %v1842, %v1968
        %1970 = vmatmul.bf16.gmra.mxu0 %v1806
        %v1971 = vpop.f32.mrf.mxu0
        %v1972 = vadd.f32 %v1842, %v1971
        %v1973 = vpop.f32.mrf.mxu0
        %v1974 = vadd.f32 %v1842, %v1973
        %1975 = vmatmul.bf16.gmra.mxu0 %v1807
        %v1976 = vpop.f32.mrf.mxu0
        %v1977 = vadd.f32 %v1842, %v1976
        %v1978 = vpop.f32.mrf.mxu0
        %v1979 = vadd.f32 %v1842, %v1978
        %1980 = vmatmul.bf16.gmra.mxu0 %v1808
        %v1981 = vpop.f32.mrf.mxu0
        %v1982 = vadd.f32 %v1842, %v1981
        %v1983 = vpop.f32.mrf.mxu0
        %v1984 = vadd.f32 %v1842, %v1983
        %1985 = vmatmul.bf16.gmra.mxu0 %v1809
        %v1986 = vpop.f32.mrf.mxu0
        %v1987 = vadd.f32 %v1842, %v1986
        %v1988 = vpop.f32.mrf.mxu0
        %v1989 = vadd.f32 %v1842, %v1988
        %1990 = vmatmul.bf16.gmra.mxu0 %v1810
        %v1991 = vpop.f32.mrf.mxu0
        %v1992 = vadd.f32 %v1842, %v1991
        %v1993 = vpop.f32.mrf.mxu0
        %v1994 = vadd.f32 %v1842, %v1993
        %1995 = vmatmul.bf16.gmra.mxu0 %v1811
        %v1996 = vpop.f32.mrf.mxu0
        %v1997 = vadd.f32 %v1842, %v1996
        %v1998 = vpop.f32.mrf.mxu0
        %v1999 = vadd.f32 %v1842, %v1998
        %2000 = vmatmul.bf16.gmra.mxu0 %v1812
        %v2001 = vpop.f32.mrf.mxu0
        %v2002 = vadd.f32 %v1842, %v2001
        %v2003 = vpop.f32.mrf.mxu0
        %v2004 = vadd.f32 %v1842, %v2003
        %2005 = vmatmul.bf16.gmra.mxu0 %v1813
        %v2006 = vpop.f32.mrf.mxu0
        %v2007 = vadd.f32 %v1842, %v2006
        %v2008 = vpop.f32.mrf.mxu0
        %v2009 = vadd.f32 %v1842, %v2008
        %2010 = vmatmul.bf16.gmra.mxu0 %v1814
        %v2011 = vpop.f32.mrf.mxu0
        %v2012 = vadd.f32 %v1842, %v2011
        %v2013 = vpop.f32.mrf.mxu0
        %v2014 = vadd.f32 %v1842, %v2013
        %2015 = vmatmul.bf16.gmra.mxu0 %v1815
        %v2016 = vpop.f32.mrf.mxu0
        %v2017 = vadd.f32 %v1842, %v2016
        %v2018 = vpop.f32.mrf.mxu0
        %v2019 = vadd.f32 %v1842, %v2018
        %2020 = vmatmul.bf16.gmra.mxu0 %v1816
        %v2021 = vpop.f32.mrf.mxu0
        %v2022 = vadd.f32 %v1842, %v2021
        %v2023 = vpop.f32.mrf.mxu0
        %v2024 = vadd.f32 %v1842, %v2023
        %2025 = vmatmul.bf16.gmra.mxu0 %v1817
        %v2026 = vpop.f32.mrf.mxu0
        %v2027 = vadd.f32 %v1842, %v2026
        %v2028 = vpop.f32.mrf.mxu0
        %v2029 = vadd.f32 %v1842, %v2028
        %2030 = vmatmul.bf16.gmra.mxu0 %v1818
        %v2031 = vpop.f32.mrf.mxu0
        %v2032 = vadd.f32 %v1842, %v2031
        %v2033 = vpop.f32.mrf.mxu0
        %v2034 = vadd.f32 %v1842, %v2033
        %2035 = vmatmul.bf16.gmra.mxu0 %v1819
        %v2036 = vpop.f32.mrf.mxu0
        %v2037 = vadd.f32 %v1842, %v2036
        %v2038 = vpop.f32.mrf.mxu0
        %v2039 = vadd.f32 %v1842, %v2038
        %2040 = vmatmul.bf16.gmra.mxu0 %v1820
        %v2041 = vpop.f32.mrf.mxu0
        %v2042 = vadd.f32 %v1842, %v2041
        %v2043 = vpop.f32.mrf.mxu0
        %v2044 = vadd.f32 %v1842, %v2043
        %2045 = vmatmul.bf16.gmra.mxu0 %v1821
        %v2046 = vpop.f32.mrf.mxu0
        %v2047 = vadd.f32 %v1842, %v2046
        %v2048 = vpop.f32.mrf.mxu0
        %v2049 = vadd.f32 %v1842, %v2048
        %2050 = vmatmul.bf16.gmra.mxu0 %v1822
        %v2051 = vpop.f32.mrf.mxu0
        %v2052 = vadd.f32 %v1842, %v2051
        %v2053 = vpop.f32.mrf.mxu0
        %v2054 = vadd.f32 %v1842, %v2053
        %2055 = vmatmul.bf16.gmra.mxu0 %v1823
        %v2056 = vpop.f32.mrf.mxu0
        %v2057 = vadd.f32 %v1842, %v2056
        %v2058 = vpop.f32.mrf.mxu0
        %v2059 = vadd.f32 %v1842, %v2058
        %2060 = vdwg.mxu0
        %v2061 = vmax.f32 %v1902, 0.0
        %v2062 = vmax.f32 %v1904, 0.0
        %v2063 = vmax.f32 %v1907, 0.0
        %v2064 = vmax.f32 %v1909, 0.0
        %v2065 = vmax.f32 %v1912, 0.0
        %v2066 = vmax.f32 %v1914, 0.0
        %v2067 = vmax.f32 %v1917, 0.0
        %v2068 = vmax.f32 %v1919, 0.0
        %v2069 = vmax.f32 %v1922, 0.0
        %v2070 = vmax.f32 %v1924, 0.0
        %v2071 = vmax.f32 %v1927, 0.0
        %v2072 = vmax.f32 %v1929, 0.0
        %v2073 = vmax.f32 %v1932, 0.0
        %v2074 = vmax.f32 %v1934, 0.0
        %v2075 = vmax.f32 %v1937, 0.0
        %v2076 = vmax.f32 %v1939, 0.0
        %v2077 = vmax.f32 %v1942, 0.0
        %v2078 = vmax.f32 %v1944, 0.0
        %v2079 = vmax.f32 %v1947, 0.0
        %v2080 = vmax.f32 %v1949, 0.0
        %v2081 = vmax.f32 %v1952, 0.0
        %v2082 = vmax.f32 %v1954, 0.0
        %v2083 = vmax.f32 %v1957, 0.0
        %v2084 = vmax.f32 %v1959, 0.0
        %v2085 = vmax.f32 %v1962, 0.0
        %v2086 = vmax.f32 %v1964, 0.0
        %v2087 = vmax.f32 %v1967, 0.0
        %v2088 = vmax.f32 %v1969, 0.0
        %v2089 = vmax.f32 %v1972, 0.0
        %v2090 = vmax.f32 %v1974, 0.0
        %v2091 = vmax.f32 %v1977, 0.0
        %v2092 = vmax.f32 %v1979, 0.0
        %v2093 = vmax.f32 %v1982, 0.0
        %v2094 = vmax.f32 %v1984, 0.0
        %v2095 = vmax.f32 %v1987, 0.0
        %v2096 = vmax.f32 %v1989, 0.0
        %v2097 = vmax.f32 %v1992, 0.0
        %v2098 = vmax.f32 %v1994, 0.0
        %v2099 = vmax.f32 %v1997, 0.0
        %v2100 = vmax.f32 %v1999, 0.0
        %v2101 = vmax.f32 %v2002, 0.0
        %v2102 = vmax.f32 %v2004, 0.0
        %v2103 = vmax.f32 %v2007, 0.0
        %v2104 = vmax.f32 %v2009, 0.0
        %v2105 = vmax.f32 %v2012, 0.0
        %v2106 = vmax.f32 %v2014, 0.0
        %v2107 = vmax.f32 %v2017, 0.0
        %v2108 = vmax.f32 %v2019, 0.0
        %v2109 = vmax.f32 %v2022, 0.0
        %v2110 = vmax.f32 %v2024, 0.0
        %v2111 = vmax.f32 %v2027, 0.0
        %v2112 = vmax.f32 %v2029, 0.0
        %v2113 = vmax.f32 %v2032, 0.0
        %v2114 = vmax.f32 %v2034, 0.0
        %v2115 = vmax.f32 %v2037, 0.0
        %v2116 = vmax.f32 %v2039, 0.0
        %v2117 = vmax.f32 %v2042, 0.0
        %v2118 = vmax.f32 %v2044, 0.0
        %v2119 = vmax.f32 %v2047, 0.0
        %v2120 = vmax.f32 %v2049, 0.0
        %v2121 = vmax.f32 %v2052, 0.0
        %v2122 = vmax.f32 %v2054, 0.0
        %v2123 = vmax.f32 %v2057, 0.0
        %v2124 = vmax.f32 %v2059, 0.0
        %2125 = vst [vmem:[%s290] sm:$0xff] %v2061
        %2126 = vst [vmem:[%s290 + $0x8] sm:$0xff] %v2062
        %2127 = vst [vmem:[%s290 + $0x10] sm:$0xff] %v2063
        %2128 = vst [vmem:[%s290 + $0x18] sm:$0xff] %v2064
        %2129 = vst [vmem:[%s290 + $0x20] sm:$0xff] %v2065
        %2130 = vst [vmem:[%s290 + $0x28] sm:$0xff] %v2066
        %2131 = vst [vmem:[%s290 + $0x30] sm:$0xff] %v2067
        %2132 = vst [vmem:[%s290 + $0x38] sm:$0xff] %v2068
        %2133 = vst [vmem:[%s290 + $0x40] sm:$0xff] %v2069
        %2134 = vst [vmem:[%s290 + $0x48] sm:$0xff] %v2070
        %2135 = vst [vmem:[%s290 + $0x50] sm:$0xff] %v2071
        %2136 = vst [vmem:[%s290 + $0x58] sm:$0xff] %v2072
        %2137 = vst [vmem:[%s290 + $0x60] sm:$0xff] %v2073
        %2138 = vst [vmem:[%s290 + $0x68] sm:$0xff] %v2074
        %2139 = vst [vmem:[%s290 + $0x70] sm:$0xff] %v2075
        %2140 = vst [vmem:[%s290 + $0x78] sm:$0xff] %v2076
        %2141 = vst [vmem:[%s290 + $0x80] sm:$0xff] %v2077
        %2142 = vst [vmem:[%s290 + $0x88] sm:$0xff] %v2078
        %2143 = vst [vmem:[%s290 + $0x90] sm:$0xff] %v2079
        %2144 = vst [vmem:[%s290 + $0x98] sm:$0xff] %v2080
        %2145 = vst [vmem:[%s290 + $0xa0] sm:$0xff] %v2081
        %2146 = vst [vmem:[%s290 + $0xa8] sm:$0xff] %v2082
        %2147 = vst [vmem:[%s290 + $0xb0] sm:$0xff] %v2083
        %2148 = vst [vmem:[%s290 + $0xb8] sm:$0xff] %v2084
        %2149 = vst [vmem:[%s290 + $0xc0] sm:$0xff] %v2085
        %2150 = vst [vmem:[%s290 + $0xc8] sm:$0xff] %v2086
        %2151 = vst [vmem:[%s290 + $0xd0] sm:$0xff] %v2087
        %2152 = vst [vmem:[%s290 + $0xd8] sm:$0xff] %v2088
        %2153 = vst [vmem:[%s290 + $0xe0] sm:$0xff] %v2089
        %2154 = vst [vmem:[%s290 + $0xe8] sm:$0xff] %v2090
        %2155 = vst [vmem:[%s290 + $0xf0] sm:$0xff] %v2091
        %2156 = vst [vmem:[%s290 + $0xf8] sm:$0xff] %v2092
        %2157 = vst [vmem:[%s290 + $0x100] sm:$0xff] %v2093
        %2158 = vst [vmem:[%s290 + $0x108] sm:$0xff] %v2094
        %2159 = vst [vmem:[%s290 + $0x110] sm:$0xff] %v2095
        %2160 = vst [vmem:[%s290 + $0x118] sm:$0xff] %v2096
        %2161 = vst [vmem:[%s290 + $0x120] sm:$0xff] %v2097
        %2162 = vst [vmem:[%s290 + $0x128] sm:$0xff] %v2098
        %2163 = vst [vmem:[%s290 + $0x130] sm:$0xff] %v2099
        %2164 = vst [vmem:[%s290 + $0x138] sm:$0xff] %v2100
        %2165 = vst [vmem:[%s290 + $0x140] sm:$0xff] %v2101
        %2166 = vst [vmem:[%s290 + $0x148] sm:$0xff] %v2102
        %2167 = vst [vmem:[%s290 + $0x150] sm:$0xff] %v2103
        %2168 = vst [vmem:[%s290 + $0x158] sm:$0xff] %v2104
        %2169 = vst [vmem:[%s290 + $0x160] sm:$0xff] %v2105
        %2170 = vst [vmem:[%s290 + $0x168] sm:$0xff] %v2106
        %2171 = vst [vmem:[%s290 + $0x170] sm:$0xff] %v2107
        %2172 = vst [vmem:[%s290 + $0x178] sm:$0xff] %v2108
        %2173 = vst [vmem:[%s290 + $0x180] sm:$0xff] %v2109
        %2174 = vst [vmem:[%s290 + $0x188] sm:$0xff] %v2110
        %2175 = vst [vmem:[%s290 + $0x190] sm:$0xff] %v2111
        %2176 = vst [vmem:[%s290 + $0x198] sm:$0xff] %v2112
        %2177 = vst [vmem:[%s290 + $0x1a0] sm:$0xff] %v2113
        %2178 = vst [vmem:[%s290 + $0x1a8] sm:$0xff] %v2114
        %2179 = vst [vmem:[%s290 + $0x1b0] sm:$0xff] %v2115
        %2180 = vst [vmem:[%s290 + $0x1b8] sm:$0xff] %v2116
        %2181 = vst [vmem:[%s290 + $0x1c0] sm:$0xff] %v2117
        %2182 = vst [vmem:[%s290 + $0x1c8] sm:$0xff] %v2118
        %2183 = vst [vmem:[%s290 + $0x1d0] sm:$0xff] %v2119
        %2184 = vst [vmem:[%s290 + $0x1d8] sm:$0xff] %v2120
        %2185 = vst [vmem:[%s290 + $0x1e0] sm:$0xff] %v2121
        %2186 = vst [vmem:[%s290 + $0x1e8] sm:$0xff] %v2122
        %2187 = vst [vmem:[%s290 + $0x1f0] sm:$0xff] %v2123
        %2188 = vst [vmem:[%s290 + $0x1f8] sm:$0xff] %v2124
        %s2189 = sand.u32 %s186, 1
        %s2190 = scalar_lea.sflag [#allocation3], %s2189
        %s2191 = sand.u32 %s186, 1
        %s2192 = smul.addr %s2191, 512
        %s2193 = scalar_lea.vmem [#allocation2], %s2192
        // Predicated region
        $region49: #{pointnetpp_encoder_fp_forward.11} parent=47 // pred_check
          %p2194 = pneg %p196
        $region50: #{pointnetpp_encoder_fp_forward.11} parent=47 // pred_check_branch
          %2196 = sbr.rel (%p2194) target = $region52
        $region51: #{pointnetpp_encoder_fp_forward.11} parent=47 // pred_region
          %s2197 = smul.u32 64, %s21
          %2199 = vsyncadd %s2190, 0
          %s2200 = smul.addr %s2197, 8
          %s2201 = scalar_lea.hbm %s7, %s2200
          %s2202 = sshll.u32 %s2193, 4
          %s2203 = int_to_ptr.vmem [resolvable:$true] %s2202
          %s2204 = sshll.u32 %s2201, 4
          %s2205 = int_to_ptr.hbm [resolvable:$true] %s2204
          %2210 = dma.vmem_to_hbm [thread:$0]  %s2203, 8192, %s2205, %s2190, 128, 128, 8
        $region52: #{pointnetpp_encoder_fp_forward.11} parent=47 // pred_fallthru
          _
      $region48: #{pointnetpp_encoder_fp_forward.11} parent=5 // pred_fallthru
        _
      %p2211 = scmp.le.s32.totalorder 2, %s16
      // Predicated region
      $region53: #{pointnetpp_encoder_fp_forward.11} parent=5 // pred_check
        %p2212 = pneg %p2211
      $region54: #{pointnetpp_encoder_fp_forward.11} parent=5 // pred_check_branch
        %2214 = sbr.rel (%p2212) target = $region56
      $region55: #{pointnetpp_encoder_fp_forward.11} parent=5 // pred_region
        %s2215 = ssub.s32 %s16, 2
        // Predicated region
        $region57: #{pointnetpp_encoder_fp_forward.11} parent=55 // pred_check
          %p2216 = pneg %p202
        $region58: #{pointnetpp_encoder_fp_forward.11} parent=55 // pred_check_branch
          %2218 = sbr.rel (%p2216) target = $region60
        $region59: #{pointnetpp_encoder_fp_forward.11} parent=55 // pred_region
          %s2219 = sand.u32 %s187, 1
          %s2220 = scalar_lea.sflag [#allocation3], %s2219
          %s2221 = sand.u32 %s187, 1
          %s2222 = smul.addr %s2221, 512
          %s2223 = scalar_lea.vmem [#allocation2], %s2222
          %2225 = dma.done %s2220, 8192
        $region60: #{pointnetpp_encoder_fp_forward.11} parent=55 // pred_fallthru
          _
      $region56: #{pointnetpp_encoder_fp_forward.11} parent=5 // pred_fallthru
        _
    $region6: #{pointnetpp_encoder_fp_forward.11} parent=1 // loop_footer
      %s20 = sadd.s32 1, %s16
    $region7: #{pointnetpp_encoder_fp_forward.11} parent=1 // loop_footer_branch
      %15 = sbr.rel target = $region3
    $region8: #{pointnetpp_encoder_fp_forward.11} parent=1 // loop_exit
      _
    %2226 = vsyncpa [#allocation3], 1
    %s2227 = scalar_lea.sflag [#allocation3], 1
    %2228 = vsyncpa %s2227, 1

</llo_original>
